<compile_context>
chip_gen: v6e
topology: v6e:2x2x1
jax: 0.10.0
libtpu: 0.0.40
codegen_flags: <defaults>
</compile_context>

<pallas_src>
import functools
import math

import jax
import jax.numpy as jnp
from jax.experimental import pallas as pl
from jax.experimental.pallas import tpu as pltpu

# ----------------------------- model config ---------------------------------
BATCH = 2
BOARD_SEQ = 64          # 64 board squares
SEQ = BOARD_SEQ + 1     # + 1 special (CLS-like) token at position 0
N_EMBD = 32
N_HEAD = 4
HEAD_DIM = N_EMBD // N_HEAD
N_LAYER = 2
VOCAB = 32              # piece / special-token vocabulary
NUM_MOVES = 128         # policy head output size (move vocabulary)
TOP_K = 5

# Order in which stacked weights are passed to the fused kernel.
WEIGHT_KEYS = (
    "ln1_g", "ln1_b", "w_qkv", "b_qkv", "w_proj", "b_proj",
    "ln2_g", "ln2_b", "w_fc", "b_fc", "w_fc2", "b_fc2",
    "lnf_g", "lnf_b", "policy_w", "policy_b",
)


# ----------------------------- fused Pallas kernel ---------------------------
def _chess_fwd_kernel(x_ref,
                      ln1g_ref, ln1b_ref, wqkv_ref, bqkv_ref,
                      wproj_ref, bproj_ref, ln2g_ref, ln2b_ref,
                      wfc_ref, bfc_ref, wfc2_ref, bfc2_ref,
                      lnfg_ref, lnfb_ref, wpol_ref, bpol_ref,
                      o_ref):
    """One grid step = one batch element: embeds -> 2 layers -> LN -> policy."""
    x = x_ref[0].astype(jnp.float32)                       # (S, D), VMEM resident

    def layer_norm(h, g, b):
        mu = jnp.mean(h, axis=-1, keepdims=True)
        var = jnp.mean((h - mu) ** 2, axis=-1, keepdims=True)
        return (h - mu) * jax.lax.rsqrt(var + 1e-5) * g + b

    scale = 1.0 / math.sqrt(HEAD_DIM)

    for l in range(N_LAYER):                               # static unroll (L=2)
        # --- attention sub-block (pre-LN) -----------------------------------
        h = layer_norm(x, ln1g_ref[l], ln1b_ref[l])        # (S, D)
        qkv = jnp.dot(h, wqkv_ref[l],
                      preferred_element_type=jnp.float32) + bqkv_ref[l]  # (S, 3D)
        heads = []
        for hh in range(N_HEAD):                           # static unroll (H=4)
            lo = hh * HEAD_DIM
            # fold 1/sqrt(hd) into q: scales a (S, hd) tile instead of (S, S)
            q = qkv[:, lo:lo + HEAD_DIM] * scale                        # (S, hd)
            k = qkv[:, N_EMBD + lo:N_EMBD + lo + HEAD_DIM]              # (S, hd)
            v = qkv[:, 2 * N_EMBD + lo:2 * N_EMBD + lo + HEAD_DIM]      # (S, hd)
            # s = q @ k^T  (contract on head_dim, no materialized transpose)
            s = jax.lax.dot_general(q, k, (((1,), (1,)), ((), ())),
                                    preferred_element_type=jnp.float32)  # (S, S)
            m = jnp.max(s, axis=-1, keepdims=True)
            p = jnp.exp(s - m)                              # EUP
            p = p / jnp.sum(p, axis=-1, keepdims=True)      # exact div (accuracy model)
            heads.append(jnp.dot(p, v, preferred_element_type=jnp.float32))
        attn = jnp.concatenate(heads, axis=-1)             # (S, D)
        x = x + jnp.dot(attn, wproj_ref[l],
                        preferred_element_type=jnp.float32) + bproj_ref[l]

        # --- MLP sub-block (pre-LN) -----------------------------------------
        h = layer_norm(x, ln2g_ref[l], ln2b_ref[l])
        h = jnp.dot(h, wfc_ref[l],
                    preferred_element_type=jnp.float32) + bfc_ref[l]
        # TODO(synk): PyTorch nn.GELU defaults to exact erf; the tanh
        # approximation is used here because erf has no clean Mosaic lowering.
        h = jax.nn.gelu(h, approximate=True)
        x = x + jnp.dot(h, wfc2_ref[l],
                        preferred_element_type=jnp.float32) + bfc2_ref[l]

    # --- final LN on the CLS token only + policy head ------------------------
    cls = x[0:1, :]                                        # (1, D)
    cls = layer_norm(cls, lnfg_ref[...], lnfb_ref[...])
    logits = jnp.dot(cls, wpol_ref[...],
                     preferred_element_type=jnp.float32) + bpol_ref[...]
    o_ref[0] = logits.astype(o_ref.dtype)                  # (1, NUM_MOVES), lane-dense


def fused_forward(params, x_emb):
    """x_emb: (B, S, D) embedded tokens -> (B, NUM_MOVES) policy logits."""
    B = x_emb.shape[0]

    def full_spec(arr):
        nd = arr.ndim
        return pl.BlockSpec(arr.shape, lambda b, nd=nd: (0,) * nd)

    weights = [params[k] for k in WEIGHT_KEYS]
    in_specs = [pl.BlockSpec((1, SEQ, N_EMBD), lambda b: (b, 0, 0))]
    in_specs += [full_spec(w) for w in weights]

    out = pl.pallas_call(
        _chess_fwd_kernel,
        out_shape=jax.ShapeDtypeStruct((B, 1, NUM_MOVES), jnp.float32),
        grid=(B,),
        in_specs=in_specs,
        out_specs=pl.BlockSpec((1, 1, NUM_MOVES), lambda b: (b, 0, 0)),
        compiler_params=pltpu.CompilerParams(
            dimension_semantics=("parallel",)),   # v7x: one batch element per TC
    )(x_emb, *weights)
    return out.reshape(B, NUM_MOVES)


# ----------------------------- parameters ------------------------------------
def init_params(key):
    def normal(k, shape, std=0.02):
        return (std * jax.random.normal(k, shape)).astype(jnp.float32)

    ks = jax.random.split(key, 8)
    L, D = N_LAYER, N_EMBD
    return {
        "wte": normal(ks[0], (VOCAB, D)),
        "wpe": normal(ks[1], (SEQ, D)),
        # per-layer weights stacked on a leading layer axis
        "ln1_g": jnp.ones((L, 1, D), jnp.float32),
        "ln1_b": jnp.zeros((L, 1, D), jnp.float32),
        "w_qkv": normal(ks[2], (L, D, 3 * D)),
        "b_qkv": jnp.zeros((L, 1, 3 * D), jnp.float32),
        "w_proj": normal(ks[3], (L, D, D)),
        "b_proj": jnp.zeros((L, 1, D), jnp.float32),
        "ln2_g": jnp.ones((L, 1, D), jnp.float32),
        "ln2_b": jnp.zeros((L, 1, D), jnp.float32),
        "w_fc": normal(ks[4], (L, D, 4 * D)),
        "b_fc": jnp.zeros((L, 1, 4 * D), jnp.float32),
        "w_fc2": normal(ks[5], (L, 4 * D, D)),
        "b_fc2": jnp.zeros((L, 1, D), jnp.float32),
        # final LN + policy head
        "lnf_g": jnp.ones((1, D), jnp.float32),
        "lnf_b": jnp.zeros((1, D), jnp.float32),
        "policy_w": normal(ks[6], (D, NUM_MOVES)),
        "policy_b": jnp.zeros((1, NUM_MOVES), jnp.float32),
    }


# ----------------------------- forward ---------------------------------------
@functools.partial(jax.jit, static_argnames=("top_k",))
def chess_forward(params, top_k, board_state_tensor, special_token_tensor,
                  target_p_tensor):
    # token embedding + positional embedding (cheap gather; stays in XLA)
    tok = jnp.concatenate([special_token_tensor, board_state_tensor], axis=1)  # (B, S)
    x_emb = jnp.take(params["wte"], tok, axis=0) + params["wpe"][None]         # (B, S, D)

    # whole transformer + final LN (CLS only) + policy head in one Pallas call
    x_policy = fused_forward(params, x_emb)                                    # (B, NUM_MOVES)

    # TODO(synk): torch.topk has no direct Pallas TPU primitive; jax.lax.top_k
    # and the match count run outside the kernel (all heavy compute is fused above).
    _, final_target_indices = jax.lax.top_k(x_policy, top_k)                   # (B, k)
    matches = target_p_tensor[:, None] == final_target_indices
    num_matches = jnp.sum(jnp.any(matches, axis=1).astype(jnp.int32))
    return num_matches


# ----------------------------- main ------------------------------------------
if __name__ == "__main__":
    key = jax.random.PRNGKey(0)
    k_board, k_special, k_target = jax.random.split(key, 3)
    board_state_tensor = jax.random.randint(
        k_board, (BATCH, BOARD_SEQ), 0, VOCAB, dtype=jnp.int32)
    special_token_tensor = jax.random.randint(
        k_special, (BATCH, 1), 0, VOCAB, dtype=jnp.int32)
    target_p_tensor = jax.random.randint(
        k_target, (BATCH,), 0, NUM_MOVES, dtype=jnp.int32)

    params = init_params(jax.random.PRNGKey(42))

    num_matches = chess_forward(params, TOP_K, board_state_tensor,
                                special_token_tensor, target_p_tensor)
    num_matches = jax.block_until_ready(num_matches)
    num_matches = int(num_matches)   # mirrors `.item()` -> Python int
    print("KERNEL_OK")
</pallas_src>

<mosaic_0001>
module attributes {stable_mosaic.version = 11 : i64} {
  func.func @_chess_fwd_kernel(%arg0: i32, %arg1: memref<1x65x32xf32, #tpu.memory_space<vmem>>, %arg2: memref<2x1x32xf32, #tpu.memory_space<vmem>>, %arg3: memref<2x1x32xf32, #tpu.memory_space<vmem>>, %arg4: memref<2x32x96xf32, #tpu.memory_space<vmem>>, %arg5: memref<2x1x96xf32, #tpu.memory_space<vmem>>, %arg6: memref<2x32x32xf32, #tpu.memory_space<vmem>>, %arg7: memref<2x1x32xf32, #tpu.memory_space<vmem>>, %arg8: memref<2x1x32xf32, #tpu.memory_space<vmem>>, %arg9: memref<2x1x32xf32, #tpu.memory_space<vmem>>, %arg10: memref<2x32x128xf32, #tpu.memory_space<vmem>>, %arg11: memref<2x1x128xf32, #tpu.memory_space<vmem>>, %arg12: memref<2x128x32xf32, #tpu.memory_space<vmem>>, %arg13: memref<2x1x32xf32, #tpu.memory_space<vmem>>, %arg14: memref<1x32xf32, #tpu.memory_space<vmem>>, %arg15: memref<1x32xf32, #tpu.memory_space<vmem>>, %arg16: memref<32x128xf32, #tpu.memory_space<vmem>>, %arg17: memref<1x128xf32, #tpu.memory_space<vmem>>, %arg18: memref<1x1x128xf32, #tpu.memory_space<vmem>>) attributes {dimension_semantics = [#tpu.dimension_semantics<parallel>], iteration_bounds = array<i64: 2>, scalar_prefetch = 0 : i64, scratch_operands = 0 : i64, tpu.core_type = #tpu.core_type<tc>, window_params = [{transform_indices = @transform_0, window_bounds = array<i64: 1, 65, 32>}, {pipeline_mode = #tpu.pipeline_mode<synchronous>, transform_indices = @transform_1, window_bounds = array<i64: 2, 1, 32>}, {pipeline_mode = #tpu.pipeline_mode<synchronous>, transform_indices = @transform_2, window_bounds = array<i64: 2, 1, 32>}, {pipeline_mode = #tpu.pipeline_mode<synchronous>, transform_indices = @transform_3, window_bounds = array<i64: 2, 32, 96>}, {pipeline_mode = #tpu.pipeline_mode<synchronous>, transform_indices = @transform_4, window_bounds = array<i64: 2, 1, 96>}, {pipeline_mode = #tpu.pipeline_mode<synchronous>, transform_indices = @transform_5, window_bounds = array<i64: 2, 32, 32>}, {pipeline_mode = #tpu.pipeline_mode<synchronous>, transform_indices = @transform_6, window_bounds = array<i64: 2, 1, 32>}, {pipeline_mode = #tpu.pipeline_mode<synchronous>, transform_indices = @transform_7, window_bounds = array<i64: 2, 1, 32>}, {pipeline_mode = #tpu.pipeline_mode<synchronous>, transform_indices = @transform_8, window_bounds = array<i64: 2, 1, 32>}, {pipeline_mode = #tpu.pipeline_mode<synchronous>, transform_indices = @transform_9, window_bounds = array<i64: 2, 32, 128>}, {pipeline_mode = #tpu.pipeline_mode<synchronous>, transform_indices = @transform_10, window_bounds = array<i64: 2, 1, 128>}, {pipeline_mode = #tpu.pipeline_mode<synchronous>, transform_indices = @transform_11, window_bounds = array<i64: 2, 128, 32>}, {pipeline_mode = #tpu.pipeline_mode<synchronous>, transform_indices = @transform_12, window_bounds = array<i64: 2, 1, 32>}, {pipeline_mode = #tpu.pipeline_mode<synchronous>, transform_indices = @transform_13, window_bounds = array<i64: 1, 32>}, {pipeline_mode = #tpu.pipeline_mode<synchronous>, transform_indices = @transform_14, window_bounds = array<i64: 1, 32>}, {pipeline_mode = #tpu.pipeline_mode<synchronous>, transform_indices = @transform_15, window_bounds = array<i64: 32, 128>}, {pipeline_mode = #tpu.pipeline_mode<synchronous>, transform_indices = @transform_16, window_bounds = array<i64: 1, 128>}, {transform_indices = @transform_17, window_bounds = array<i64: 1, 1, 128>}]} {
    %c0 = arith.constant 0 : index
    %c0_0 = arith.constant 0 : index
    %c0_1 = arith.constant 0 : index
    %0 = vector.load %arg1[%c0, %c0_0, %c0_1] : memref<1x65x32xf32, #tpu.memory_space<vmem>>, vector<1x65x32xf32>
    %1 = vector.shape_cast %0 : vector<1x65x32xf32> to vector<65x32xf32>
    %c0_2 = arith.constant 0 : index
    %c0_3 = arith.constant 0 : index
    %c0_4 = arith.constant 0 : index
    %2 = vector.load %arg2[%c0_2, %c0_3, %c0_4] : memref<2x1x32xf32, #tpu.memory_space<vmem>>, vector<1x1x32xf32>
    %3 = vector.shape_cast %2 : vector<1x1x32xf32> to vector<1x32xf32>
    %c0_5 = arith.constant 0 : index
    %c0_6 = arith.constant 0 : index
    %c0_7 = arith.constant 0 : index
    %4 = vector.load %arg3[%c0_5, %c0_6, %c0_7] : memref<2x1x32xf32, #tpu.memory_space<vmem>>, vector<1x1x32xf32>
    %5 = vector.shape_cast %4 : vector<1x1x32xf32> to vector<1x32xf32>
    %cst = arith.constant dense<0.000000e+00> : vector<65xf32>
    %6 = vector.multi_reduction <add>, %1, %cst [1] : vector<65x32xf32> to vector<65xf32>
    %7 = vector.shape_cast %6 : vector<65xf32> to vector<65x1xf32>
    %cst_8 = arith.constant 3.200000e+01 : f32
    %8 = vector.broadcast %cst_8 : f32 to vector<65x1xf32>
    %9 = arith.divf %7, %8 : vector<65x1xf32>
    %10 = vector.broadcast %9 : vector<65x1xf32> to vector<65x32xf32>
    %11 = arith.subf %1, %10 : vector<65x32xf32>
    %12 = arith.mulf %11, %11 : vector<65x32xf32>
    %cst_9 = arith.constant dense<0.000000e+00> : vector<65xf32>
    %13 = vector.multi_reduction <add>, %12, %cst_9 [1] : vector<65x32xf32> to vector<65xf32>
    %14 = vector.shape_cast %13 : vector<65xf32> to vector<65x1xf32>
    %cst_10 = arith.constant 3.200000e+01 : f32
    %15 = vector.broadcast %cst_10 : f32 to vector<65x1xf32>
    %16 = arith.divf %14, %15 : vector<65x1xf32>
    %17 = vector.broadcast %9 : vector<65x1xf32> to vector<65x32xf32>
    %18 = arith.subf %1, %17 : vector<65x32xf32>
    %cst_11 = arith.constant 9.99999974E-6 : f32
    %19 = vector.broadcast %cst_11 : f32 to vector<65x1xf32>
    %20 = arith.addf %16, %19 : vector<65x1xf32>
    %21 = math.rsqrt %20 : vector<65x1xf32>
    %22 = vector.broadcast %21 : vector<65x1xf32> to vector<65x32xf32>
    %23 = arith.mulf %18, %22 : vector<65x32xf32>
    %24 = vector.broadcast %3 : vector<1x32xf32> to vector<65x32xf32>
    %25 = arith.mulf %23, %24 : vector<65x32xf32>
    %26 = vector.broadcast %5 : vector<1x32xf32> to vector<65x32xf32>
    %27 = arith.addf %25, %26 : vector<65x32xf32>
    %c0_12 = arith.constant 0 : index
    %c0_13 = arith.constant 0 : index
    %c0_14 = arith.constant 0 : index
    %28 = vector.load %arg4[%c0_12, %c0_13, %c0_14] : memref<2x32x96xf32, #tpu.memory_space<vmem>>, vector<1x32x96xf32>
    %29 = vector.shape_cast %28 : vector<1x32x96xf32> to vector<32x96xf32>
    %cst_15 = arith.constant dense<0.000000e+00> : vector<65x96xf32>
    %30 = tpu.matmul %27, %29, %cst_15 {dimension_numbers = #tpu.dot_dimension_numbers<[1], [0], [0], [1], [0, 0, 1, 1], [], []>} : vector<65x32xf32>, vector<32x96xf32>, vector<65x96xf32> -> vector<65x96xf32>
    %c0_16 = arith.constant 0 : index
    %c0_17 = arith.constant 0 : index
    %c0_18 = arith.constant 0 : index
    %31 = vector.load %arg5[%c0_16, %c0_17, %c0_18] : memref<2x1x96xf32, #tpu.memory_space<vmem>>, vector<1x1x96xf32>
    %32 = vector.shape_cast %31 : vector<1x1x96xf32> to vector<1x96xf32>
    %33 = vector.broadcast %32 : vector<1x96xf32> to vector<65x96xf32>
    %34 = arith.addf %30, %33 : vector<65x96xf32>
    %35 = vector.extract_strided_slice %34 {offsets = [0, 0], sizes = [65, 8], strides = [1, 1]} : vector<65x96xf32> to vector<65x8xf32>
    %cst_19 = arith.constant 0.353553385 : f32
    %36 = vector.broadcast %cst_19 : f32 to vector<65x8xf32>
    %37 = arith.mulf %35, %36 : vector<65x8xf32>
    %38 = vector.extract_strided_slice %34 {offsets = [0, 32], sizes = [65, 8], strides = [1, 1]} : vector<65x96xf32> to vector<65x8xf32>
    %39 = vector.extract_strided_slice %34 {offsets = [0, 64], sizes = [65, 8], strides = [1, 1]} : vector<65x96xf32> to vector<65x8xf32>
    %cst_20 = arith.constant dense<0.000000e+00> : vector<65x65xf32>
    %40 = tpu.matmul %37, %38, %cst_20 {dimension_numbers = #tpu.dot_dimension_numbers<[1], [1], [0], [0], [0, 0, 1, 0], [], []>} : vector<65x8xf32>, vector<65x8xf32>, vector<65x65xf32> -> vector<65x65xf32>
    %cst_21 = arith.constant dense<0xFF800000> : vector<65xf32>
    %41 = vector.multi_reduction <maximumf>, %40, %cst_21 [1] : vector<65x65xf32> to vector<65xf32>
    %42 = vector.shape_cast %41 : vector<65xf32> to vector<65x1xf32>
    %43 = vector.broadcast %42 : vector<65x1xf32> to vector<65x65xf32>
    %44 = arith.subf %40, %43 : vector<65x65xf32>
    %45 = math.exp %44 : vector<65x65xf32>
    %cst_22 = arith.constant dense<0.000000e+00> : vector<65xf32>
    %46 = vector.multi_reduction <add>, %45, %cst_22 [1] : vector<65x65xf32> to vector<65xf32>
    %47 = vector.shape_cast %46 : vector<65xf32> to vector<65x1xf32>
    %48 = vector.broadcast %47 : vector<65x1xf32> to vector<65x65xf32>
    %49 = arith.divf %45, %48 : vector<65x65xf32>
    %cst_23 = arith.constant dense<0.000000e+00> : vector<65x8xf32>
    %50 = tpu.matmul %49, %39, %cst_23 {dimension_numbers = #tpu.dot_dimension_numbers<[1], [0], [0], [1], [0, 0, 1, 1], [], []>} : vector<65x65xf32>, vector<65x8xf32>, vector<65x8xf32> -> vector<65x8xf32>
    %51 = vector.extract_strided_slice %34 {offsets = [0, 8], sizes = [65, 8], strides = [1, 1]} : vector<65x96xf32> to vector<65x8xf32>
    %cst_24 = arith.constant 0.353553385 : f32
    %52 = vector.broadcast %cst_24 : f32 to vector<65x8xf32>
    %53 = arith.mulf %51, %52 : vector<65x8xf32>
    %54 = vector.extract_strided_slice %34 {offsets = [0, 40], sizes = [65, 8], strides = [1, 1]} : vector<65x96xf32> to vector<65x8xf32>
    %55 = vector.extract_strided_slice %34 {offsets = [0, 72], sizes = [65, 8], strides = [1, 1]} : vector<65x96xf32> to vector<65x8xf32>
    %cst_25 = arith.constant dense<0.000000e+00> : vector<65x65xf32>
    %56 = tpu.matmul %53, %54, %cst_25 {dimension_numbers = #tpu.dot_dimension_numbers<[1], [1], [0], [0], [0, 0, 1, 0], [], []>} : vector<65x8xf32>, vector<65x8xf32>, vector<65x65xf32> -> vector<65x65xf32>
    %cst_26 = arith.constant dense<0xFF800000> : vector<65xf32>
    %57 = vector.multi_reduction <maximumf>, %56, %cst_26 [1] : vector<65x65xf32> to vector<65xf32>
    %58 = vector.shape_cast %57 : vector<65xf32> to vector<65x1xf32>
    %59 = vector.broadcast %58 : vector<65x1xf32> to vector<65x65xf32>
    %60 = arith.subf %56, %59 : vector<65x65xf32>
    %61 = math.exp %60 : vector<65x65xf32>
    %cst_27 = arith.constant dense<0.000000e+00> : vector<65xf32>
    %62 = vector.multi_reduction <add>, %61, %cst_27 [1] : vector<65x65xf32> to vector<65xf32>
    %63 = vector.shape_cast %62 : vector<65xf32> to vector<65x1xf32>
    %64 = vector.broadcast %63 : vector<65x1xf32> to vector<65x65xf32>
    %65 = arith.divf %61, %64 : vector<65x65xf32>
    %cst_28 = arith.constant dense<0.000000e+00> : vector<65x8xf32>
    %66 = tpu.matmul %65, %55, %cst_28 {dimension_numbers = #tpu.dot_dimension_numbers<[1], [0], [0], [1], [0, 0, 1, 1], [], []>} : vector<65x65xf32>, vector<65x8xf32>, vector<65x8xf32> -> vector<65x8xf32>
    %67 = vector.extract_strided_slice %34 {offsets = [0, 16], sizes = [65, 8], strides = [1, 1]} : vector<65x96xf32> to vector<65x8xf32>
    %cst_29 = arith.constant 0.353553385 : f32
    %68 = vector.broadcast %cst_29 : f32 to vector<65x8xf32>
    %69 = arith.mulf %67, %68 : vector<65x8xf32>
    %70 = vector.extract_strided_slice %34 {offsets = [0, 48], sizes = [65, 8], strides = [1, 1]} : vector<65x96xf32> to vector<65x8xf32>
    %71 = vector.extract_strided_slice %34 {offsets = [0, 80], sizes = [65, 8], strides = [1, 1]} : vector<65x96xf32> to vector<65x8xf32>
    %cst_30 = arith.constant dense<0.000000e+00> : vector<65x65xf32>
    %72 = tpu.matmul %69, %70, %cst_30 {dimension_numbers = #tpu.dot_dimension_numbers<[1], [1], [0], [0], [0, 0, 1, 0], [], []>} : vector<65x8xf32>, vector<65x8xf32>, vector<65x65xf32> -> vector<65x65xf32>
    %cst_31 = arith.constant dense<0xFF800000> : vector<65xf32>
    %73 = vector.multi_reduction <maximumf>, %72, %cst_31 [1] : vector<65x65xf32> to vector<65xf32>
    %74 = vector.shape_cast %73 : vector<65xf32> to vector<65x1xf32>
    %75 = vector.broadcast %74 : vector<65x1xf32> to vector<65x65xf32>
    %76 = arith.subf %72, %75 : vector<65x65xf32>
    %77 = math.exp %76 : vector<65x65xf32>
    %cst_32 = arith.constant dense<0.000000e+00> : vector<65xf32>
    %78 = vector.multi_reduction <add>, %77, %cst_32 [1] : vector<65x65xf32> to vector<65xf32>
    %79 = vector.shape_cast %78 : vector<65xf32> to vector<65x1xf32>
    %80 = vector.broadcast %79 : vector<65x1xf32> to vector<65x65xf32>
    %81 = arith.divf %77, %80 : vector<65x65xf32>
    %cst_33 = arith.constant dense<0.000000e+00> : vector<65x8xf32>
    %82 = tpu.matmul %81, %71, %cst_33 {dimension_numbers = #tpu.dot_dimension_numbers<[1], [0], [0], [1], [0, 0, 1, 1], [], []>} : vector<65x65xf32>, vector<65x8xf32>, vector<65x8xf32> -> vector<65x8xf32>
    %83 = vector.extract_strided_slice %34 {offsets = [0, 24], sizes = [65, 8], strides = [1, 1]} : vector<65x96xf32> to vector<65x8xf32>
    %cst_34 = arith.constant 0.353553385 : f32
    %84 = vector.broadcast %cst_34 : f32 to vector<65x8xf32>
    %85 = arith.mulf %83, %84 : vector<65x8xf32>
    %86 = vector.extract_strided_slice %34 {offsets = [0, 56], sizes = [65, 8], strides = [1, 1]} : vector<65x96xf32> to vector<65x8xf32>
    %87 = vector.extract_strided_slice %34 {offsets = [0, 88], sizes = [65, 8], strides = [1, 1]} : vector<65x96xf32> to vector<65x8xf32>
    %cst_35 = arith.constant dense<0.000000e+00> : vector<65x65xf32>
    %88 = tpu.matmul %85, %86, %cst_35 {dimension_numbers = #tpu.dot_dimension_numbers<[1], [1], [0], [0], [0, 0, 1, 0], [], []>} : vector<65x8xf32>, vector<65x8xf32>, vector<65x65xf32> -> vector<65x65xf32>
    %cst_36 = arith.constant dense<0xFF800000> : vector<65xf32>
    %89 = vector.multi_reduction <maximumf>, %88, %cst_36 [1] : vector<65x65xf32> to vector<65xf32>
    %90 = vector.shape_cast %89 : vector<65xf32> to vector<65x1xf32>
    %91 = vector.broadcast %90 : vector<65x1xf32> to vector<65x65xf32>
    %92 = arith.subf %88, %91 : vector<65x65xf32>
    %93 = math.exp %92 : vector<65x65xf32>
    %cst_37 = arith.constant dense<0.000000e+00> : vector<65xf32>
    %94 = vector.multi_reduction <add>, %93, %cst_37 [1] : vector<65x65xf32> to vector<65xf32>
    %95 = vector.shape_cast %94 : vector<65xf32> to vector<65x1xf32>
    %96 = vector.broadcast %95 : vector<65x1xf32> to vector<65x65xf32>
    %97 = arith.divf %93, %96 : vector<65x65xf32>
    %cst_38 = arith.constant dense<0.000000e+00> : vector<65x8xf32>
    %98 = tpu.matmul %97, %87, %cst_38 {dimension_numbers = #tpu.dot_dimension_numbers<[1], [0], [0], [1], [0, 0, 1, 1], [], []>} : vector<65x65xf32>, vector<65x8xf32>, vector<65x8xf32> -> vector<65x8xf32>
    %99 = tpu.concatenate %50, %66, %82, %98 in 1 : vector<65x8xf32>, vector<65x8xf32>, vector<65x8xf32>, vector<65x8xf32> -> vector<65x32xf32>
    %c0_39 = arith.constant 0 : index
    %c0_40 = arith.constant 0 : index
    %c0_41 = arith.constant 0 : index
    %100 = vector.load %arg6[%c0_39, %c0_40, %c0_41] : memref<2x32x32xf32, #tpu.memory_space<vmem>>, vector<1x32x32xf32>
    %101 = vector.shape_cast %100 : vector<1x32x32xf32> to vector<32x32xf32>
    %cst_42 = arith.constant dense<0.000000e+00> : vector<65x32xf32>
    %102 = tpu.matmul %99, %101, %cst_42 {dimension_numbers = #tpu.dot_dimension_numbers<[1], [0], [0], [1], [0, 0, 1, 1], [], []>} : vector<65x32xf32>, vector<32x32xf32>, vector<65x32xf32> -> vector<65x32xf32>
    %103 = arith.addf %1, %102 : vector<65x32xf32>
    %c0_43 = arith.constant 0 : index
    %c0_44 = arith.constant 0 : index
    %c0_45 = arith.constant 0 : index
    %104 = vector.load %arg7[%c0_43, %c0_44, %c0_45] : memref<2x1x32xf32, #tpu.memory_space<vmem>>, vector<1x1x32xf32>
    %105 = vector.shape_cast %104 : vector<1x1x32xf32> to vector<1x32xf32>
    %106 = vector.broadcast %105 : vector<1x32xf32> to vector<65x32xf32>
    %107 = arith.addf %103, %106 : vector<65x32xf32>
    %c0_46 = arith.constant 0 : index
    %c0_47 = arith.constant 0 : index
    %c0_48 = arith.constant 0 : index
    %108 = vector.load %arg8[%c0_46, %c0_47, %c0_48] : memref<2x1x32xf32, #tpu.memory_space<vmem>>, vector<1x1x32xf32>
    %109 = vector.shape_cast %108 : vector<1x1x32xf32> to vector<1x32xf32>
    %c0_49 = arith.constant 0 : index
    %c0_50 = arith.constant 0 : index
    %c0_51 = arith.constant 0 : index
    %110 = vector.load %arg9[%c0_49, %c0_50, %c0_51] : memref<2x1x32xf32, #tpu.memory_space<vmem>>, vector<1x1x32xf32>
    %111 = vector.shape_cast %110 : vector<1x1x32xf32> to vector<1x32xf32>
    %cst_52 = arith.constant dense<0.000000e+00> : vector<65xf32>
    %112 = vector.multi_reduction <add>, %107, %cst_52 [1] : vector<65x32xf32> to vector<65xf32>
    %113 = vector.shape_cast %112 : vector<65xf32> to vector<65x1xf32>
    %cst_53 = arith.constant 3.200000e+01 : f32
    %114 = vector.broadcast %cst_53 : f32 to vector<65x1xf32>
    %115 = arith.divf %113, %114 : vector<65x1xf32>
    %116 = vector.broadcast %115 : vector<65x1xf32> to vector<65x32xf32>
    %117 = arith.subf %107, %116 : vector<65x32xf32>
    %118 = arith.mulf %117, %117 : vector<65x32xf32>
    %cst_54 = arith.constant dense<0.000000e+00> : vector<65xf32>
    %119 = vector.multi_reduction <add>, %118, %cst_54 [1] : vector<65x32xf32> to vector<65xf32>
    %120 = vector.shape_cast %119 : vector<65xf32> to vector<65x1xf32>
    %cst_55 = arith.constant 3.200000e+01 : f32
    %121 = vector.broadcast %cst_55 : f32 to vector<65x1xf32>
    %122 = arith.divf %120, %121 : vector<65x1xf32>
    %123 = vector.broadcast %115 : vector<65x1xf32> to vector<65x32xf32>
    %124 = arith.subf %107, %123 : vector<65x32xf32>
    %cst_56 = arith.constant 9.99999974E-6 : f32
    %125 = vector.broadcast %cst_56 : f32 to vector<65x1xf32>
    %126 = arith.addf %122, %125 : vector<65x1xf32>
    %127 = math.rsqrt %126 : vector<65x1xf32>
    %128 = vector.broadcast %127 : vector<65x1xf32> to vector<65x32xf32>
    %129 = arith.mulf %124, %128 : vector<65x32xf32>
    %130 = vector.broadcast %109 : vector<1x32xf32> to vector<65x32xf32>
    %131 = arith.mulf %129, %130 : vector<65x32xf32>
    %132 = vector.broadcast %111 : vector<1x32xf32> to vector<65x32xf32>
    %133 = arith.addf %131, %132 : vector<65x32xf32>
    %c0_57 = arith.constant 0 : index
    %c0_58 = arith.constant 0 : index
    %c0_59 = arith.constant 0 : index
    %134 = vector.load %arg10[%c0_57, %c0_58, %c0_59] : memref<2x32x128xf32, #tpu.memory_space<vmem>>, vector<1x32x128xf32>
    %135 = vector.shape_cast %134 : vector<1x32x128xf32> to vector<32x128xf32>
    %cst_60 = arith.constant dense<0.000000e+00> : vector<65x128xf32>
    %136 = tpu.matmul %133, %135, %cst_60 {dimension_numbers = #tpu.dot_dimension_numbers<[1], [0], [0], [1], [0, 0, 1, 1], [], []>} : vector<65x32xf32>, vector<32x128xf32>, vector<65x128xf32> -> vector<65x128xf32>
    %c0_61 = arith.constant 0 : index
    %c0_62 = arith.constant 0 : index
    %c0_63 = arith.constant 0 : index
    %137 = vector.load %arg11[%c0_61, %c0_62, %c0_63] : memref<2x1x128xf32, #tpu.memory_space<vmem>>, vector<1x1x128xf32>
    %138 = vector.shape_cast %137 : vector<1x1x128xf32> to vector<1x128xf32>
    %139 = vector.broadcast %138 : vector<1x128xf32> to vector<65x128xf32>
    %140 = arith.addf %136, %139 : vector<65x128xf32>
    %141 = arith.mulf %140, %140 : vector<65x128xf32>
    %142 = arith.mulf %140, %141 : vector<65x128xf32>
    %cst_64 = arith.constant 4.471500e-02 : f32
    %143 = vector.broadcast %cst_64 : f32 to vector<65x128xf32>
    %144 = arith.mulf %143, %142 : vector<65x128xf32>
    %145 = arith.addf %140, %144 : vector<65x128xf32>
    %cst_65 = arith.constant 0.797884583 : f32
    %146 = vector.broadcast %cst_65 : f32 to vector<65x128xf32>
    %147 = arith.mulf %146, %145 : vector<65x128xf32>
    %148 = math.tanh %147 : vector<65x128xf32>
    %cst_66 = arith.constant 1.000000e+00 : f32
    %149 = vector.broadcast %cst_66 : f32 to vector<65x128xf32>
    %150 = arith.addf %149, %148 : vector<65x128xf32>
    %cst_67 = arith.constant 5.000000e-01 : f32
    %151 = vector.broadcast %cst_67 : f32 to vector<65x128xf32>
    %152 = arith.mulf %151, %150 : vector<65x128xf32>
    %153 = arith.mulf %140, %152 : vector<65x128xf32>
    %c0_68 = arith.constant 0 : index
    %c0_69 = arith.constant 0 : index
    %c0_70 = arith.constant 0 : index
    %154 = vector.load %arg12[%c0_68, %c0_69, %c0_70] : memref<2x128x32xf32, #tpu.memory_space<vmem>>, vector<1x128x32xf32>
    %155 = vector.shape_cast %154 : vector<1x128x32xf32> to vector<128x32xf32>
    %cst_71 = arith.constant dense<0.000000e+00> : vector<65x32xf32>
    %156 = tpu.matmul %153, %155, %cst_71 {dimension_numbers = #tpu.dot_dimension_numbers<[1], [0], [0], [1], [0, 0, 1, 1], [], []>} : vector<65x128xf32>, vector<128x32xf32>, vector<65x32xf32> -> vector<65x32xf32>
    %157 = arith.addf %107, %156 : vector<65x32xf32>
    %c0_72 = arith.constant 0 : index
    %c0_73 = arith.constant 0 : index
    %c0_74 = arith.constant 0 : index
    %158 = vector.load %arg13[%c0_72, %c0_73, %c0_74] : memref<2x1x32xf32, #tpu.memory_space<vmem>>, vector<1x1x32xf32>
    %159 = vector.shape_cast %158 : vector<1x1x32xf32> to vector<1x32xf32>
    %160 = vector.broadcast %159 : vector<1x32xf32> to vector<65x32xf32>
    %161 = arith.addf %157, %160 : vector<65x32xf32>
    %c1 = arith.constant 1 : index
    %c0_75 = arith.constant 0 : index
    %c0_76 = arith.constant 0 : index
    %162 = vector.load %arg2[%c1, %c0_75, %c0_76] : memref<2x1x32xf32, #tpu.memory_space<vmem>>, vector<1x1x32xf32>
    %163 = vector.shape_cast %162 : vector<1x1x32xf32> to vector<1x32xf32>
    %c1_77 = arith.constant 1 : index
    %c0_78 = arith.constant 0 : index
    %c0_79 = arith.constant 0 : index
    %164 = vector.load %arg3[%c1_77, %c0_78, %c0_79] : memref<2x1x32xf32, #tpu.memory_space<vmem>>, vector<1x1x32xf32>
    %165 = vector.shape_cast %164 : vector<1x1x32xf32> to vector<1x32xf32>
    %cst_80 = arith.constant dense<0.000000e+00> : vector<65xf32>
    %166 = vector.multi_reduction <add>, %161, %cst_80 [1] : vector<65x32xf32> to vector<65xf32>
    %167 = vector.shape_cast %166 : vector<65xf32> to vector<65x1xf32>
    %cst_81 = arith.constant 3.200000e+01 : f32
    %168 = vector.broadcast %cst_81 : f32 to vector<65x1xf32>
    %169 = arith.divf %167, %168 : vector<65x1xf32>
    %170 = vector.broadcast %169 : vector<65x1xf32> to vector<65x32xf32>
    %171 = arith.subf %161, %170 : vector<65x32xf32>
    %172 = arith.mulf %171, %171 : vector<65x32xf32>
    %cst_82 = arith.constant dense<0.000000e+00> : vector<65xf32>
    %173 = vector.multi_reduction <add>, %172, %cst_82 [1] : vector<65x32xf32> to vector<65xf32>
    %174 = vector.shape_cast %173 : vector<65xf32> to vector<65x1xf32>
    %cst_83 = arith.constant 3.200000e+01 : f32
    %175 = vector.broadcast %cst_83 : f32 to vector<65x1xf32>
    %176 = arith.divf %174, %175 : vector<65x1xf32>
    %177 = vector.broadcast %169 : vector<65x1xf32> to vector<65x32xf32>
    %178 = arith.subf %161, %177 : vector<65x32xf32>
    %cst_84 = arith.constant 9.99999974E-6 : f32
    %179 = vector.broadcast %cst_84 : f32 to vector<65x1xf32>
    %180 = arith.addf %176, %179 : vector<65x1xf32>
    %181 = math.rsqrt %180 : vector<65x1xf32>
    %182 = vector.broadcast %181 : vector<65x1xf32> to vector<65x32xf32>
    %183 = arith.mulf %178, %182 : vector<65x32xf32>
    %184 = vector.broadcast %163 : vector<1x32xf32> to vector<65x32xf32>
    %185 = arith.mulf %183, %184 : vector<65x32xf32>
    %186 = vector.broadcast %165 : vector<1x32xf32> to vector<65x32xf32>
    %187 = arith.addf %185, %186 : vector<65x32xf32>
    %c1_85 = arith.constant 1 : index
    %c0_86 = arith.constant 0 : index
    %c0_87 = arith.constant 0 : index
    %188 = vector.load %arg4[%c1_85, %c0_86, %c0_87] : memref<2x32x96xf32, #tpu.memory_space<vmem>>, vector<1x32x96xf32>
    %189 = vector.shape_cast %188 : vector<1x32x96xf32> to vector<32x96xf32>
    %cst_88 = arith.constant dense<0.000000e+00> : vector<65x96xf32>
    %190 = tpu.matmul %187, %189, %cst_88 {dimension_numbers = #tpu.dot_dimension_numbers<[1], [0], [0], [1], [0, 0, 1, 1], [], []>} : vector<65x32xf32>, vector<32x96xf32>, vector<65x96xf32> -> vector<65x96xf32>
    %c1_89 = arith.constant 1 : index
    %c0_90 = arith.constant 0 : index
    %c0_91 = arith.constant 0 : index
    %191 = vector.load %arg5[%c1_89, %c0_90, %c0_91] : memref<2x1x96xf32, #tpu.memory_space<vmem>>, vector<1x1x96xf32>
    %192 = vector.shape_cast %191 : vector<1x1x96xf32> to vector<1x96xf32>
    %193 = vector.broadcast %192 : vector<1x96xf32> to vector<65x96xf32>
    %194 = arith.addf %190, %193 : vector<65x96xf32>
    %195 = vector.extract_strided_slice %194 {offsets = [0, 0], sizes = [65, 8], strides = [1, 1]} : vector<65x96xf32> to vector<65x8xf32>
    %cst_92 = arith.constant 0.353553385 : f32
    %196 = vector.broadcast %cst_92 : f32 to vector<65x8xf32>
    %197 = arith.mulf %195, %196 : vector<65x8xf32>
    %198 = vector.extract_strided_slice %194 {offsets = [0, 32], sizes = [65, 8], strides = [1, 1]} : vector<65x96xf32> to vector<65x8xf32>
    %199 = vector.extract_strided_slice %194 {offsets = [0, 64], sizes = [65, 8], strides = [1, 1]} : vector<65x96xf32> to vector<65x8xf32>
    %cst_93 = arith.constant dense<0.000000e+00> : vector<65x65xf32>
    %200 = tpu.matmul %197, %198, %cst_93 {dimension_numbers = #tpu.dot_dimension_numbers<[1], [1], [0], [0], [0, 0, 1, 0], [], []>} : vector<65x8xf32>, vector<65x8xf32>, vector<65x65xf32> -> vector<65x65xf32>
    %cst_94 = arith.constant dense<0xFF800000> : vector<65xf32>
    %201 = vector.multi_reduction <maximumf>, %200, %cst_94 [1] : vector<65x65xf32> to vector<65xf32>
    %202 = vector.shape_cast %201 : vector<65xf32> to vector<65x1xf32>
    %203 = vector.broadcast %202 : vector<65x1xf32> to vector<65x65xf32>
    %204 = arith.subf %200, %203 : vector<65x65xf32>
    %205 = math.exp %204 : vector<65x65xf32>
    %cst_95 = arith.constant dense<0.000000e+00> : vector<65xf32>
    %206 = vector.multi_reduction <add>, %205, %cst_95 [1] : vector<65x65xf32> to vector<65xf32>
    %207 = vector.shape_cast %206 : vector<65xf32> to vector<65x1xf32>
    %208 = vector.broadcast %207 : vector<65x1xf32> to vector<65x65xf32>
    %209 = arith.divf %205, %208 : vector<65x65xf32>
    %cst_96 = arith.constant dense<0.000000e+00> : vector<65x8xf32>
    %210 = tpu.matmul %209, %199, %cst_96 {dimension_numbers = #tpu.dot_dimension_numbers<[1], [0], [0], [1], [0, 0, 1, 1], [], []>} : vector<65x65xf32>, vector<65x8xf32>, vector<65x8xf32> -> vector<65x8xf32>
    %211 = vector.extract_strided_slice %194 {offsets = [0, 8], sizes = [65, 8], strides = [1, 1]} : vector<65x96xf32> to vector<65x8xf32>
    %cst_97 = arith.constant 0.353553385 : f32
    %212 = vector.broadcast %cst_97 : f32 to vector<65x8xf32>
    %213 = arith.mulf %211, %212 : vector<65x8xf32>
    %214 = vector.extract_strided_slice %194 {offsets = [0, 40], sizes = [65, 8], strides = [1, 1]} : vector<65x96xf32> to vector<65x8xf32>
    %215 = vector.extract_strided_slice %194 {offsets = [0, 72], sizes = [65, 8], strides = [1, 1]} : vector<65x96xf32> to vector<65x8xf32>
    %cst_98 = arith.constant dense<0.000000e+00> : vector<65x65xf32>
    %216 = tpu.matmul %213, %214, %cst_98 {dimension_numbers = #tpu.dot_dimension_numbers<[1], [1], [0], [0], [0, 0, 1, 0], [], []>} : vector<65x8xf32>, vector<65x8xf32>, vector<65x65xf32> -> vector<65x65xf32>
    %cst_99 = arith.constant dense<0xFF800000> : vector<65xf32>
    %217 = vector.multi_reduction <maximumf>, %216, %cst_99 [1] : vector<65x65xf32> to vector<65xf32>
    %218 = vector.shape_cast %217 : vector<65xf32> to vector<65x1xf32>
    %219 = vector.broadcast %218 : vector<65x1xf32> to vector<65x65xf32>
    %220 = arith.subf %216, %219 : vector<65x65xf32>
    %221 = math.exp %220 : vector<65x65xf32>
    %cst_100 = arith.constant dense<0.000000e+00> : vector<65xf32>
    %222 = vector.multi_reduction <add>, %221, %cst_100 [1] : vector<65x65xf32> to vector<65xf32>
    %223 = vector.shape_cast %222 : vector<65xf32> to vector<65x1xf32>
    %224 = vector.broadcast %223 : vector<65x1xf32> to vector<65x65xf32>
    %225 = arith.divf %221, %224 : vector<65x65xf32>
    %cst_101 = arith.constant dense<0.000000e+00> : vector<65x8xf32>
    %226 = tpu.matmul %225, %215, %cst_101 {dimension_numbers = #tpu.dot_dimension_numbers<[1], [0], [0], [1], [0, 0, 1, 1], [], []>} : vector<65x65xf32>, vector<65x8xf32>, vector<65x8xf32> -> vector<65x8xf32>
    %227 = vector.extract_strided_slice %194 {offsets = [0, 16], sizes = [65, 8], strides = [1, 1]} : vector<65x96xf32> to vector<65x8xf32>
    %cst_102 = arith.constant 0.353553385 : f32
    %228 = vector.broadcast %cst_102 : f32 to vector<65x8xf32>
    %229 = arith.mulf %227, %228 : vector<65x8xf32>
    %230 = vector.extract_strided_slice %194 {offsets = [0, 48], sizes = [65, 8], strides = [1, 1]} : vector<65x96xf32> to vector<65x8xf32>
    %231 = vector.extract_strided_slice %194 {offsets = [0, 80], sizes = [65, 8], strides = [1, 1]} : vector<65x96xf32> to vector<65x8xf32>
    %cst_103 = arith.constant dense<0.000000e+00> : vector<65x65xf32>
    %232 = tpu.matmul %229, %230, %cst_103 {dimension_numbers = #tpu.dot_dimension_numbers<[1], [1], [0], [0], [0, 0, 1, 0], [], []>} : vector<65x8xf32>, vector<65x8xf32>, vector<65x65xf32> -> vector<65x65xf32>
    %cst_104 = arith.constant dense<0xFF800000> : vector<65xf32>
    %233 = vector.multi_reduction <maximumf>, %232, %cst_104 [1] : vector<65x65xf32> to vector<65xf32>
    %234 = vector.shape_cast %233 : vector<65xf32> to vector<65x1xf32>
    %235 = vector.broadcast %234 : vector<65x1xf32> to vector<65x65xf32>
    %236 = arith.subf %232, %235 : vector<65x65xf32>
    %237 = math.exp %236 : vector<65x65xf32>
    %cst_105 = arith.constant dense<0.000000e+00> : vector<65xf32>
    %238 = vector.multi_reduction <add>, %237, %cst_105 [1] : vector<65x65xf32> to vector<65xf32>
    %239 = vector.shape_cast %238 : vector<65xf32> to vector<65x1xf32>
    %240 = vector.broadcast %239 : vector<65x1xf32> to vector<65x65xf32>
    %241 = arith.divf %237, %240 : vector<65x65xf32>
    %cst_106 = arith.constant dense<0.000000e+00> : vector<65x8xf32>
    %242 = tpu.matmul %241, %231, %cst_106 {dimension_numbers = #tpu.dot_dimension_numbers<[1], [0], [0], [1], [0, 0, 1, 1], [], []>} : vector<65x65xf32>, vector<65x8xf32>, vector<65x8xf32> -> vector<65x8xf32>
    %243 = vector.extract_strided_slice %194 {offsets = [0, 24], sizes = [65, 8], strides = [1, 1]} : vector<65x96xf32> to vector<65x8xf32>
    %cst_107 = arith.constant 0.353553385 : f32
    %244 = vector.broadcast %cst_107 : f32 to vector<65x8xf32>
    %245 = arith.mulf %243, %244 : vector<65x8xf32>
    %246 = vector.extract_strided_slice %194 {offsets = [0, 56], sizes = [65, 8], strides = [1, 1]} : vector<65x96xf32> to vector<65x8xf32>
    %247 = vector.extract_strided_slice %194 {offsets = [0, 88], sizes = [65, 8], strides = [1, 1]} : vector<65x96xf32> to vector<65x8xf32>
    %cst_108 = arith.constant dense<0.000000e+00> : vector<65x65xf32>
    %248 = tpu.matmul %245, %246, %cst_108 {dimension_numbers = #tpu.dot_dimension_numbers<[1], [1], [0], [0], [0, 0, 1, 0], [], []>} : vector<65x8xf32>, vector<65x8xf32>, vector<65x65xf32> -> vector<65x65xf32>
    %cst_109 = arith.constant dense<0xFF800000> : vector<65xf32>
    %249 = vector.multi_reduction <maximumf>, %248, %cst_109 [1] : vector<65x65xf32> to vector<65xf32>
    %250 = vector.shape_cast %249 : vector<65xf32> to vector<65x1xf32>
    %251 = vector.broadcast %250 : vector<65x1xf32> to vector<65x65xf32>
    %252 = arith.subf %248, %251 : vector<65x65xf32>
    %253 = math.exp %252 : vector<65x65xf32>
    %cst_110 = arith.constant dense<0.000000e+00> : vector<65xf32>
    %254 = vector.multi_reduction <add>, %253, %cst_110 [1] : vector<65x65xf32> to vector<65xf32>
    %255 = vector.shape_cast %254 : vector<65xf32> to vector<65x1xf32>
    %256 = vector.broadcast %255 : vector<65x1xf32> to vector<65x65xf32>
    %257 = arith.divf %253, %256 : vector<65x65xf32>
    %cst_111 = arith.constant dense<0.000000e+00> : vector<65x8xf32>
    %258 = tpu.matmul %257, %247, %cst_111 {dimension_numbers = #tpu.dot_dimension_numbers<[1], [0], [0], [1], [0, 0, 1, 1], [], []>} : vector<65x65xf32>, vector<65x8xf32>, vector<65x8xf32> -> vector<65x8xf32>
    %259 = tpu.concatenate %210, %226, %242, %258 in 1 : vector<65x8xf32>, vector<65x8xf32>, vector<65x8xf32>, vector<65x8xf32> -> vector<65x32xf32>
    %c1_112 = arith.constant 1 : index
    %c0_113 = arith.constant 0 : index
    %c0_114 = arith.constant 0 : index
    %260 = vector.load %arg6[%c1_112, %c0_113, %c0_114] : memref<2x32x32xf32, #tpu.memory_space<vmem>>, vector<1x32x32xf32>
    %261 = vector.shape_cast %260 : vector<1x32x32xf32> to vector<32x32xf32>
    %cst_115 = arith.constant dense<0.000000e+00> : vector<65x32xf32>
    %262 = tpu.matmul %259, %261, %cst_115 {dimension_numbers = #tpu.dot_dimension_numbers<[1], [0], [0], [1], [0, 0, 1, 1], [], []>} : vector<65x32xf32>, vector<32x32xf32>, vector<65x32xf32> -> vector<65x32xf32>
    %263 = arith.addf %161, %262 : vector<65x32xf32>
    %c1_116 = arith.constant 1 : index
    %c0_117 = arith.constant 0 : index
    %c0_118 = arith.constant 0 : index
    %264 = vector.load %arg7[%c1_116, %c0_117, %c0_118] : memref<2x1x32xf32, #tpu.memory_space<vmem>>, vector<1x1x32xf32>
    %265 = vector.shape_cast %264 : vector<1x1x32xf32> to vector<1x32xf32>
    %266 = vector.broadcast %265 : vector<1x32xf32> to vector<65x32xf32>
    %267 = arith.addf %263, %266 : vector<65x32xf32>
    %c1_119 = arith.constant 1 : index
    %c0_120 = arith.constant 0 : index
    %c0_121 = arith.constant 0 : index
    %268 = vector.load %arg8[%c1_119, %c0_120, %c0_121] : memref<2x1x32xf32, #tpu.memory_space<vmem>>, vector<1x1x32xf32>
    %269 = vector.shape_cast %268 : vector<1x1x32xf32> to vector<1x32xf32>
    %c1_122 = arith.constant 1 : index
    %c0_123 = arith.constant 0 : index
    %c0_124 = arith.constant 0 : index
    %270 = vector.load %arg9[%c1_122, %c0_123, %c0_124] : memref<2x1x32xf32, #tpu.memory_space<vmem>>, vector<1x1x32xf32>
    %271 = vector.shape_cast %270 : vector<1x1x32xf32> to vector<1x32xf32>
    %cst_125 = arith.constant dense<0.000000e+00> : vector<65xf32>
    %272 = vector.multi_reduction <add>, %267, %cst_125 [1] : vector<65x32xf32> to vector<65xf32>
    %273 = vector.shape_cast %272 : vector<65xf32> to vector<65x1xf32>
    %cst_126 = arith.constant 3.200000e+01 : f32
    %274 = vector.broadcast %cst_126 : f32 to vector<65x1xf32>
    %275 = arith.divf %273, %274 : vector<65x1xf32>
    %276 = vector.broadcast %275 : vector<65x1xf32> to vector<65x32xf32>
    %277 = arith.subf %267, %276 : vector<65x32xf32>
    %278 = arith.mulf %277, %277 : vector<65x32xf32>
    %cst_127 = arith.constant dense<0.000000e+00> : vector<65xf32>
    %279 = vector.multi_reduction <add>, %278, %cst_127 [1] : vector<65x32xf32> to vector<65xf32>
    %280 = vector.shape_cast %279 : vector<65xf32> to vector<65x1xf32>
    %cst_128 = arith.constant 3.200000e+01 : f32
    %281 = vector.broadcast %cst_128 : f32 to vector<65x1xf32>
    %282 = arith.divf %280, %281 : vector<65x1xf32>
    %283 = vector.broadcast %275 : vector<65x1xf32> to vector<65x32xf32>
    %284 = arith.subf %267, %283 : vector<65x32xf32>
    %cst_129 = arith.constant 9.99999974E-6 : f32
    %285 = vector.broadcast %cst_129 : f32 to vector<65x1xf32>
    %286 = arith.addf %282, %285 : vector<65x1xf32>
    %287 = math.rsqrt %286 : vector<65x1xf32>
    %288 = vector.broadcast %287 : vector<65x1xf32> to vector<65x32xf32>
    %289 = arith.mulf %284, %288 : vector<65x32xf32>
    %290 = vector.broadcast %269 : vector<1x32xf32> to vector<65x32xf32>
    %291 = arith.mulf %289, %290 : vector<65x32xf32>
    %292 = vector.broadcast %271 : vector<1x32xf32> to vector<65x32xf32>
    %293 = arith.addf %291, %292 : vector<65x32xf32>
    %c1_130 = arith.constant 1 : index
    %c0_131 = arith.constant 0 : index
    %c0_132 = arith.constant 0 : index
    %294 = vector.load %arg10[%c1_130, %c0_131, %c0_132] : memref<2x32x128xf32, #tpu.memory_space<vmem>>, vector<1x32x128xf32>
    %295 = vector.shape_cast %294 : vector<1x32x128xf32> to vector<32x128xf32>
    %cst_133 = arith.constant dense<0.000000e+00> : vector<65x128xf32>
    %296 = tpu.matmul %293, %295, %cst_133 {dimension_numbers = #tpu.dot_dimension_numbers<[1], [0], [0], [1], [0, 0, 1, 1], [], []>} : vector<65x32xf32>, vector<32x128xf32>, vector<65x128xf32> -> vector<65x128xf32>
    %c1_134 = arith.constant 1 : index
    %c0_135 = arith.constant 0 : index
    %c0_136 = arith.constant 0 : index
    %297 = vector.load %arg11[%c1_134, %c0_135, %c0_136] : memref<2x1x128xf32, #tpu.memory_space<vmem>>, vector<1x1x128xf32>
    %298 = vector.shape_cast %297 : vector<1x1x128xf32> to vector<1x128xf32>
    %299 = vector.broadcast %298 : vector<1x128xf32> to vector<65x128xf32>
    %300 = arith.addf %296, %299 : vector<65x128xf32>
    %301 = arith.mulf %300, %300 : vector<65x128xf32>
    %302 = arith.mulf %300, %301 : vector<65x128xf32>
    %cst_137 = arith.constant 4.471500e-02 : f32
    %303 = vector.broadcast %cst_137 : f32 to vector<65x128xf32>
    %304 = arith.mulf %303, %302 : vector<65x128xf32>
    %305 = arith.addf %300, %304 : vector<65x128xf32>
    %cst_138 = arith.constant 0.797884583 : f32
    %306 = vector.broadcast %cst_138 : f32 to vector<65x128xf32>
    %307 = arith.mulf %306, %305 : vector<65x128xf32>
    %308 = math.tanh %307 : vector<65x128xf32>
    %cst_139 = arith.constant 1.000000e+00 : f32
    %309 = vector.broadcast %cst_139 : f32 to vector<65x128xf32>
    %310 = arith.addf %309, %308 : vector<65x128xf32>
    %cst_140 = arith.constant 5.000000e-01 : f32
    %311 = vector.broadcast %cst_140 : f32 to vector<65x128xf32>
    %312 = arith.mulf %311, %310 : vector<65x128xf32>
    %313 = arith.mulf %300, %312 : vector<65x128xf32>
    %c1_141 = arith.constant 1 : index
    %c0_142 = arith.constant 0 : index
    %c0_143 = arith.constant 0 : index
    %314 = vector.load %arg12[%c1_141, %c0_142, %c0_143] : memref<2x128x32xf32, #tpu.memory_space<vmem>>, vector<1x128x32xf32>
    %315 = vector.shape_cast %314 : vector<1x128x32xf32> to vector<128x32xf32>
    %cst_144 = arith.constant dense<0.000000e+00> : vector<65x32xf32>
    %316 = tpu.matmul %313, %315, %cst_144 {dimension_numbers = #tpu.dot_dimension_numbers<[1], [0], [0], [1], [0, 0, 1, 1], [], []>} : vector<65x128xf32>, vector<128x32xf32>, vector<65x32xf32> -> vector<65x32xf32>
    %317 = arith.addf %267, %316 : vector<65x32xf32>
    %c1_145 = arith.constant 1 : index
    %c0_146 = arith.constant 0 : index
    %c0_147 = arith.constant 0 : index
    %318 = vector.load %arg13[%c1_145, %c0_146, %c0_147] : memref<2x1x32xf32, #tpu.memory_space<vmem>>, vector<1x1x32xf32>
    %319 = vector.shape_cast %318 : vector<1x1x32xf32> to vector<1x32xf32>
    %320 = vector.broadcast %319 : vector<1x32xf32> to vector<65x32xf32>
    %321 = arith.addf %317, %320 : vector<65x32xf32>
    %322 = vector.extract_strided_slice %321 {offsets = [0, 0], sizes = [1, 32], strides = [1, 1]} : vector<65x32xf32> to vector<1x32xf32>
    %c0_148 = arith.constant 0 : index
    %c0_149 = arith.constant 0 : index
    %323 = vector.load %arg14[%c0_148, %c0_149] : memref<1x32xf32, #tpu.memory_space<vmem>>, vector<1x32xf32>
    %c0_150 = arith.constant 0 : index
    %c0_151 = arith.constant 0 : index
    %324 = vector.load %arg15[%c0_150, %c0_151] : memref<1x32xf32, #tpu.memory_space<vmem>>, vector<1x32xf32>
    %cst_152 = arith.constant dense<0.000000e+00> : vector<1xf32>
    %325 = vector.multi_reduction <add>, %322, %cst_152 [1] : vector<1x32xf32> to vector<1xf32>
    %326 = vector.shape_cast %325 : vector<1xf32> to vector<1x1xf32>
    %cst_153 = arith.constant 3.200000e+01 : f32
    %327 = vector.broadcast %cst_153 : f32 to vector<1x1xf32>
    %328 = arith.divf %326, %327 : vector<1x1xf32>
    %329 = vector.broadcast %328 : vector<1x1xf32> to vector<1x32xf32>
    %330 = arith.subf %322, %329 : vector<1x32xf32>
    %331 = arith.mulf %330, %330 : vector<1x32xf32>
    %cst_154 = arith.constant dense<0.000000e+00> : vector<1xf32>
    %332 = vector.multi_reduction <add>, %331, %cst_154 [1] : vector<1x32xf32> to vector<1xf32>
    %333 = vector.shape_cast %332 : vector<1xf32> to vector<1x1xf32>
    %cst_155 = arith.constant 3.200000e+01 : f32
    %334 = vector.broadcast %cst_155 : f32 to vector<1x1xf32>
    %335 = arith.divf %333, %334 : vector<1x1xf32>
    %336 = vector.broadcast %328 : vector<1x1xf32> to vector<1x32xf32>
    %337 = arith.subf %322, %336 : vector<1x32xf32>
    %cst_156 = arith.constant 9.99999974E-6 : f32
    %338 = vector.broadcast %cst_156 : f32 to vector<1x1xf32>
    %339 = arith.addf %335, %338 : vector<1x1xf32>
    %340 = math.rsqrt %339 : vector<1x1xf32>
    %341 = vector.broadcast %340 : vector<1x1xf32> to vector<1x32xf32>
    %342 = arith.mulf %337, %341 : vector<1x32xf32>
    %343 = arith.mulf %342, %323 : vector<1x32xf32>
    %344 = arith.addf %343, %324 : vector<1x32xf32>
    %c0_157 = arith.constant 0 : index
    %c0_158 = arith.constant 0 : index
    %345 = vector.load %arg16[%c0_157, %c0_158] : memref<32x128xf32, #tpu.memory_space<vmem>>, vector<32x128xf32>
    %cst_159 = arith.constant dense<0.000000e+00> : vector<1x128xf32>
    %346 = tpu.matmul %344, %345, %cst_159 {dimension_numbers = #tpu.dot_dimension_numbers<[1], [0], [0], [1], [0, 0, 1, 1], [], []>} : vector<1x32xf32>, vector<32x128xf32>, vector<1x128xf32> -> vector<1x128xf32>
    %c0_160 = arith.constant 0 : index
    %c0_161 = arith.constant 0 : index
    %347 = vector.load %arg17[%c0_160, %c0_161] : memref<1x128xf32, #tpu.memory_space<vmem>>, vector<1x128xf32>
    %348 = arith.addf %346, %347 : vector<1x128xf32>
    %c0_162 = arith.constant 0 : index
    %c0_163 = arith.constant 0 : index
    %c0_164 = arith.constant 0 : index
    %349 = vector.load %arg18[%c0_162, %c0_163, %c0_164] : memref<1x1x128xf32, #tpu.memory_space<vmem>>, vector<1x1x128xf32>
    %350 = vector.shape_cast %349 : vector<1x1x128xf32> to vector<1x128xf32>
    %351 = vector.shape_cast %348 : vector<1x128xf32> to vector<1x1x128xf32>
    tpu.vector_store %arg18[%c0_162, %c0_163, %c0_164], %351 {strides = array<i32>} : memref<1x1x128xf32, #tpu.memory_space<vmem>>, vector<1x1x128xf32>,
    return
  }
  func.func @transform_0(%arg0: i32) -> (i32, i32, i32) {
    %c0_i32 = arith.constant 0 : i32
    %c0_i32_0 = arith.constant 0 : i32
    %c0_i32_1 = arith.constant 0 : i32
    return %arg0, %c0_i32, %c0_i32_0 : i32, i32, i32
  }
  func.func @transform_1(%arg0: i32) -> (i32, i32, i32) {
    %c0_i32 = arith.constant 0 : i32
    %c0_i32_0 = arith.constant 0 : i32
    %c0_i32_1 = arith.constant 0 : i32
    %c0_i32_2 = arith.constant 0 : i32
    return %c0_i32, %c0_i32_0, %c0_i32_1 : i32, i32, i32
  }
  func.func @transform_2(%arg0: i32) -> (i32, i32, i32) {
    %c0_i32 = arith.constant 0 : i32
    %c0_i32_0 = arith.constant 0 : i32
    %c0_i32_1 = arith.constant 0 : i32
    %c0_i32_2 = arith.constant 0 : i32
    return %c0_i32, %c0_i32_0, %c0_i32_1 : i32, i32, i32
  }
  func.func @transform_3(%arg0: i32) -> (i32, i32, i32) {
    %c0_i32 = arith.constant 0 : i32
    %c0_i32_0 = arith.constant 0 : i32
    %c0_i32_1 = arith.constant 0 : i32
    %c0_i32_2 = arith.constant 0 : i32
    return %c0_i32, %c0_i32_0, %c0_i32_1 : i32, i32, i32
  }
  func.func @transform_4(%arg0: i32) -> (i32, i32, i32) {
    %c0_i32 = arith.constant 0 : i32
    %c0_i32_0 = arith.constant 0 : i32
    %c0_i32_1 = arith.constant 0 : i32
    %c0_i32_2 = arith.constant 0 : i32
    return %c0_i32, %c0_i32_0, %c0_i32_1 : i32, i32, i32
  }
  func.func @transform_5(%arg0: i32) -> (i32, i32, i32) {
    %c0_i32 = arith.constant 0 : i32
    %c0_i32_0 = arith.constant 0 : i32
    %c0_i32_1 = arith.constant 0 : i32
    %c0_i32_2 = arith.constant 0 : i32
    return %c0_i32, %c0_i32_0, %c0_i32_1 : i32, i32, i32
  }
  func.func @transform_6(%arg0: i32) -> (i32, i32, i32) {
    %c0_i32 = arith.constant 0 : i32
    %c0_i32_0 = arith.constant 0 : i32
    %c0_i32_1 = arith.constant 0 : i32
    %c0_i32_2 = arith.constant 0 : i32
    return %c0_i32, %c0_i32_0, %c0_i32_1 : i32, i32, i32
  }
  func.func @transform_7(%arg0: i32) -> (i32, i32, i32) {
    %c0_i32 = arith.constant 0 : i32
    %c0_i32_0 = arith.constant 0 : i32
    %c0_i32_1 = arith.constant 0 : i32
    %c0_i32_2 = arith.constant 0 : i32
    return %c0_i32, %c0_i32_0, %c0_i32_1 : i32, i32, i32
  }
  func.func @transform_8(%arg0: i32) -> (i32, i32, i32) {
    %c0_i32 = arith.constant 0 : i32
    %c0_i32_0 = arith.constant 0 : i32
    %c0_i32_1 = arith.constant 0 : i32
    %c0_i32_2 = arith.constant 0 : i32
    return %c0_i32, %c0_i32_0, %c0_i32_1 : i32, i32, i32
  }
  func.func @transform_9(%arg0: i32) -> (i32, i32, i32) {
    %c0_i32 = arith.constant 0 : i32
    %c0_i32_0 = arith.constant 0 : i32
    %c0_i32_1 = arith.constant 0 : i32
    %c0_i32_2 = arith.constant 0 : i32
    return %c0_i32, %c0_i32_0, %c0_i32_1 : i32, i32, i32
  }
  func.func @transform_10(%arg0: i32) -> (i32, i32, i32) {
    %c0_i32 = arith.constant 0 : i32
    %c0_i32_0 = arith.constant 0 : i32
    %c0_i32_1 = arith.constant 0 : i32
    %c0_i32_2 = arith.constant 0 : i32
    return %c0_i32, %c0_i32_0, %c0_i32_1 : i32, i32, i32
  }
  func.func @transform_11(%arg0: i32) -> (i32, i32, i32) {
    %c0_i32 = arith.constant 0 : i32
    %c0_i32_0 = arith.constant 0 : i32
    %c0_i32_1 = arith.constant 0 : i32
    %c0_i32_2 = arith.constant 0 : i32
    return %c0_i32, %c0_i32_0, %c0_i32_1 : i32, i32, i32
  }
  func.func @transform_12(%arg0: i32) -> (i32, i32, i32) {
    %c0_i32 = arith.constant 0 : i32
    %c0_i32_0 = arith.constant 0 : i32
    %c0_i32_1 = arith.constant 0 : i32
    %c0_i32_2 = arith.constant 0 : i32
    return %c0_i32, %c0_i32_0, %c0_i32_1 : i32, i32, i32
  }
  func.func @transform_13(%arg0: i32) -> (i32, i32) {
    %c0_i32 = arith.constant 0 : i32
    %c0_i32_0 = arith.constant 0 : i32
    %c0_i32_1 = arith.constant 0 : i32
    return %c0_i32, %c0_i32_0 : i32, i32
  }
  func.func @transform_14(%arg0: i32) -> (i32, i32) {
    %c0_i32 = arith.constant 0 : i32
    %c0_i32_0 = arith.constant 0 : i32
    %c0_i32_1 = arith.constant 0 : i32
    return %c0_i32, %c0_i32_0 : i32, i32
  }
  func.func @transform_15(%arg0: i32) -> (i32, i32) {
    %c0_i32 = arith.constant 0 : i32
    %c0_i32_0 = arith.constant 0 : i32
    %c0_i32_1 = arith.constant 0 : i32
    return %c0_i32, %c0_i32_0 : i32, i32
  }
  func.func @transform_16(%arg0: i32) -> (i32, i32) {
    %c0_i32 = arith.constant 0 : i32
    %c0_i32_0 = arith.constant 0 : i32
    %c0_i32_1 = arith.constant 0 : i32
    return %c0_i32, %c0_i32_0 : i32, i32
  }
  func.func @transform_17(%arg0: i32) -> (i32, i32, i32) {
    %c0_i32 = arith.constant 0 : i32
    %c0_i32_0 = arith.constant 0 : i32
    %c0_i32_1 = arith.constant 0 : i32
    return %arg0, %c0_i32, %c0_i32_0 : i32, i32, i32
  }
}

</mosaic_0001>

<llo_original>
// kernel: chess_forward.1
$region0: #{chess_forward.1}
  #allocation0 [shape = 'u32[]', space=smem, size = 0x4, offset = 0x4, fixed_abs, tag = 'smem constant byte address 0x4 - core index']
  #allocation1 [shape = 'u32[144,128]{1,0:T(1,128)}', space=vmem, size = 0x12000, scoped, tag = 'internal scratch']
  %s0 = inlined_call_operand.vmem [shape: f32[2,65,32], index: 0, kind: input, shape index: {}]
  %s1 = inlined_call_operand.vmem [shape: f32[2,1,32], index: 1, kind: input, shape index: {}]
  %s2 = inlined_call_operand.vmem [shape: f32[2,1,32], index: 2, kind: input, shape index: {}]
  %s3 = inlined_call_operand.vmem [shape: f32[2,32,96], index: 3, kind: input, shape index: {}]
  %s4 = inlined_call_operand.vmem [shape: f32[2,1,96], index: 4, kind: input, shape index: {}]
  %s5 = inlined_call_operand.vmem [shape: f32[2,32,32], index: 5, kind: input, shape index: {}]
  %s6 = inlined_call_operand.vmem [shape: f32[2,1,32], index: 6, kind: input, shape index: {}]
  %s7 = inlined_call_operand.vmem [shape: f32[2,1,32], index: 7, kind: input, shape index: {}]
  %s8 = inlined_call_operand.vmem [shape: f32[2,1,32], index: 8, kind: input, shape index: {}]
  %s9 = inlined_call_operand.vmem [shape: f32[2,32,128], index: 9, kind: input, shape index: {}]
  %s10 = inlined_call_operand.vmem [shape: f32[2,1,128], index: 10, kind: input, shape index: {}]
  %s11 = inlined_call_operand.vmem [shape: f32[2,128,32], index: 11, kind: input, shape index: {}]
  %s12 = inlined_call_operand.vmem [shape: f32[2,1,32], index: 12, kind: input, shape index: {}]
  %s13 = inlined_call_operand.vmem [shape: f32[1,32], index: 13, kind: input, shape index: {}]
  %s14 = inlined_call_operand.vmem [shape: f32[1,32], index: 14, kind: input, shape index: {}]
  %s15 = inlined_call_operand.vmem [shape: f32[32,128], index: 15, kind: input, shape index: {}]
  %s16 = inlined_call_operand.vmem [shape: f32[1,128], index: 16, kind: input, shape index: {}]
  %s17 = inlined_call_operand.vmem [shape: f32[2,1,128], index: 17, kind: output, shape index: {}]
  %s18 = sld [smem:[#allocation0]]
  $region101: #{chess_forward.1} parent=0
    _
  %s20 = ssub.s32 1, %s18
  %s21 = scalar_select 0, %s20, %s18
  loop: start=0, step=1, limit=4
  $region2: #{chess_forward.1} parent=0 // loop_pre_header
    _
  $region3: #{chess_forward.1} parent=0 // loop_header
    %s23 = sphi 0, %s27
    %p24 = scmp.ge.s32.totalorder %s23, 4
    %s33 = sphi 0, %s35
    %s36 = sphi 0, %s33
    %s37 = sphi 0, %s36
    %s53 = sphi 0, %s37
    %s57 = sphi 0, %s57
    %s59 = sphi 0, %s57
    %s60 = sphi 0, %s59
    %s74 = sphi 0, %s60
    %s78 = sphi 0, %s78
    %s80 = sphi 0, %s78
    %s81 = sphi 0, %s80
    %s95 = sphi 0, %s81
    %s99 = sphi 0, %s99
    %s101 = sphi 0, %s99
    %s102 = sphi 0, %s101
    %s116 = sphi 0, %s102
    %s120 = sphi 0, %s120
    %s122 = sphi 0, %s120
    %s123 = sphi 0, %s122
    %s137 = sphi 0, %s123
    %s141 = sphi 0, %s141
    %s143 = sphi 0, %s141
    %s144 = sphi 0, %s143
    %s158 = sphi 0, %s144
    %s162 = sphi 0, %s162
    %s164 = sphi 0, %s162
    %s165 = sphi 0, %s164
    %s179 = sphi 0, %s165
    %s183 = sphi 0, %s183
    %s185 = sphi 0, %s183
    %s186 = sphi 0, %s185
    %s200 = sphi 0, %s186
    %s204 = sphi 0, %s204
    %s206 = sphi 0, %s204
    %s207 = sphi 0, %s206
    %s221 = sphi 0, %s207
    %s225 = sphi 0, %s225
    %s227 = sphi 0, %s225
    %s228 = sphi 0, %s227
    %s242 = sphi 0, %s228
    %s246 = sphi 0, %s246
    %s248 = sphi 0, %s246
    %s249 = sphi 0, %s248
    %s263 = sphi 0, %s249
    %s267 = sphi 0, %s267
    %s269 = sphi 0, %s267
    %s270 = sphi 0, %s269
    %s284 = sphi 0, %s270
    %s288 = sphi 0, %s288
    %s290 = sphi 0, %s288
    %s291 = sphi 0, %s290
    %s305 = sphi 0, %s291
    %s309 = sphi 0, %s309
    %s311 = sphi 0, %s309
    %s312 = sphi 0, %s311
    %s326 = sphi 0, %s312
    %s330 = sphi 0, %s330
    %s332 = sphi 0, %s330
    %s333 = sphi 0, %s332
    %s347 = sphi 0, %s333
    %s351 = sphi 0, %s351
    %s353 = sphi 0, %s351
    %s354 = sphi 0, %s353
    %s368 = sphi 0, %s354
    %s372 = sphi 0, %s372
    %s374 = sphi 0, %s372
    %s375 = sphi 0, %s374
    %s389 = sphi 0, %s375
    %s395 = sphi 0, %s397
    %s398 = sphi 0, %s395
    %s399 = sphi 0, %s398
    %s415 = sphi 0, %s399
  $region4: #{chess_forward.1} parent=0 // loop_header_branch
    %26 = sbr.rel (%p24) target = $region8
  $region5: #{chess_forward.1} parent=0 // loop_body
    %s28 = ssub.s32 %s23, 1
    %s29 = ssub.s32 %s23, 2
    %s30 = sadd.s32 %s23, 1
    %s31 = ssub.s32 %s23, %s30
    %p32 = scmp.eq.s32.totalorder %s31, 0
    %s34 = sadd.s32 %s33, 1
    %s35 = scalar_select %p32, %s33, %s34
    %p38 = pneg %p32
    %p39 = scmp.eq.s32.totalorder %s23, 1
    %p40 = por %p38, %p39
    %p41 = scmp.ne.s32.totalorder %s33, %s36
    %p42 = scmp.eq.s32.totalorder %s23, 0
    %p43 = por %p41, %p42
    %p44 = scmp.ne.s32.totalorder %s33, %s36
    %p45 = scmp.eq.s32.totalorder %s28, 1
    %p46 = por %p44, %p45
    %p47 = scmp.ne.s32.totalorder %s36, %s37
    %p48 = scmp.eq.s32.totalorder %s28, 0
    %p49 = por %p47, %p48
    %p50 = scmp.ne.s32.totalorder %s36, %s37
    %p51 = scmp.eq.s32.totalorder %s29, 1
    %p52 = por %p50, %p51
    %p54 = scmp.ne.s32.totalorder %s37, %s53
    %p55 = scmp.eq.s32.totalorder %s29, 0
    %p56 = por %p54, %p55
    %s58 = sadd.s32 %s57, 1
    %p61 = scmp.eq.s32.totalorder %s23, 1
    %p62 = scmp.ne.s32.totalorder %s57, %s59
    %p63 = scmp.eq.s32.totalorder %s23, 0
    %p64 = por %p62, %p63
    %p65 = scmp.ne.s32.totalorder %s57, %s59
    %p66 = scmp.eq.s32.totalorder %s28, 1
    %p67 = por %p65, %p66
    %p68 = scmp.ne.s32.totalorder %s59, %s60
    %p69 = scmp.eq.s32.totalorder %s28, 0
    %p70 = por %p68, %p69
    %p71 = scmp.ne.s32.totalorder %s59, %s60
    %p72 = scmp.eq.s32.totalorder %s29, 1
    %p73 = por %p71, %p72
    %p75 = scmp.ne.s32.totalorder %s60, %s74
    %p76 = scmp.eq.s32.totalorder %s29, 0
    %p77 = por %p75, %p76
    %s79 = sadd.s32 %s78, 1
    %p82 = scmp.eq.s32.totalorder %s23, 1
    %p83 = scmp.ne.s32.totalorder %s78, %s80
    %p84 = scmp.eq.s32.totalorder %s23, 0
    %p85 = por %p83, %p84
    %p86 = scmp.ne.s32.totalorder %s78, %s80
    %p87 = scmp.eq.s32.totalorder %s28, 1
    %p88 = por %p86, %p87
    %p89 = scmp.ne.s32.totalorder %s80, %s81
    %p90 = scmp.eq.s32.totalorder %s28, 0
    %p91 = por %p89, %p90
    %p92 = scmp.ne.s32.totalorder %s80, %s81
    %p93 = scmp.eq.s32.totalorder %s29, 1
    %p94 = por %p92, %p93
    %p96 = scmp.ne.s32.totalorder %s81, %s95
    %p97 = scmp.eq.s32.totalorder %s29, 0
    %p98 = por %p96, %p97
    %s100 = sadd.s32 %s99, 1
    %p103 = scmp.eq.s32.totalorder %s23, 1
    %p104 = scmp.ne.s32.totalorder %s99, %s101
    %p105 = scmp.eq.s32.totalorder %s23, 0
    %p106 = por %p104, %p105
    %p107 = scmp.ne.s32.totalorder %s99, %s101
    %p108 = scmp.eq.s32.totalorder %s28, 1
    %p109 = por %p107, %p108
    %p110 = scmp.ne.s32.totalorder %s101, %s102
    %p111 = scmp.eq.s32.totalorder %s28, 0
    %p112 = por %p110, %p111
    %p113 = scmp.ne.s32.totalorder %s101, %s102
    %p114 = scmp.eq.s32.totalorder %s29, 1
    %p115 = por %p113, %p114
    %p117 = scmp.ne.s32.totalorder %s102, %s116
    %p118 = scmp.eq.s32.totalorder %s29, 0
    %p119 = por %p117, %p118
    %s121 = sadd.s32 %s120, 1
    %p124 = scmp.eq.s32.totalorder %s23, 1
    %p125 = scmp.ne.s32.totalorder %s120, %s122
    %p126 = scmp.eq.s32.totalorder %s23, 0
    %p127 = por %p125, %p126
    %p128 = scmp.ne.s32.totalorder %s120, %s122
    %p129 = scmp.eq.s32.totalorder %s28, 1
    %p130 = por %p128, %p129
    %p131 = scmp.ne.s32.totalorder %s122, %s123
    %p132 = scmp.eq.s32.totalorder %s28, 0
    %p133 = por %p131, %p132
    %p134 = scmp.ne.s32.totalorder %s122, %s123
    %p135 = scmp.eq.s32.totalorder %s29, 1
    %p136 = por %p134, %p135
    %p138 = scmp.ne.s32.totalorder %s123, %s137
    %p139 = scmp.eq.s32.totalorder %s29, 0
    %p140 = por %p138, %p139
    %s142 = sadd.s32 %s141, 1
    %p145 = scmp.eq.s32.totalorder %s23, 1
    %p146 = scmp.ne.s32.totalorder %s141, %s143
    %p147 = scmp.eq.s32.totalorder %s23, 0
    %p148 = por %p146, %p147
    %p149 = scmp.ne.s32.totalorder %s141, %s143
    %p150 = scmp.eq.s32.totalorder %s28, 1
    %p151 = por %p149, %p150
    %p152 = scmp.ne.s32.totalorder %s143, %s144
    %p153 = scmp.eq.s32.totalorder %s28, 0
    %p154 = por %p152, %p153
    %p155 = scmp.ne.s32.totalorder %s143, %s144
    %p156 = scmp.eq.s32.totalorder %s29, 1
    %p157 = por %p155, %p156
    %p159 = scmp.ne.s32.totalorder %s144, %s158
    %p160 = scmp.eq.s32.totalorder %s29, 0
    %p161 = por %p159, %p160
    %s163 = sadd.s32 %s162, 1
    %p166 = scmp.eq.s32.totalorder %s23, 1
    %p167 = scmp.ne.s32.totalorder %s162, %s164
    %p168 = scmp.eq.s32.totalorder %s23, 0
    %p169 = por %p167, %p168
    %p170 = scmp.ne.s32.totalorder %s162, %s164
    %p171 = scmp.eq.s32.totalorder %s28, 1
    %p172 = por %p170, %p171
    %p173 = scmp.ne.s32.totalorder %s164, %s165
    %p174 = scmp.eq.s32.totalorder %s28, 0
    %p175 = por %p173, %p174
    %p176 = scmp.ne.s32.totalorder %s164, %s165
    %p177 = scmp.eq.s32.totalorder %s29, 1
    %p178 = por %p176, %p177
    %p180 = scmp.ne.s32.totalorder %s165, %s179
    %p181 = scmp.eq.s32.totalorder %s29, 0
    %p182 = por %p180, %p181
    %s184 = sadd.s32 %s183, 1
    %p187 = scmp.eq.s32.totalorder %s23, 1
    %p188 = scmp.ne.s32.totalorder %s183, %s185
    %p189 = scmp.eq.s32.totalorder %s23, 0
    %p190 = por %p188, %p189
    %p191 = scmp.ne.s32.totalorder %s183, %s185
    %p192 = scmp.eq.s32.totalorder %s28, 1
    %p193 = por %p191, %p192
    %p194 = scmp.ne.s32.totalorder %s185, %s186
    %p195 = scmp.eq.s32.totalorder %s28, 0
    %p196 = por %p194, %p195
    %p197 = scmp.ne.s32.totalorder %s185, %s186
    %p198 = scmp.eq.s32.totalorder %s29, 1
    %p199 = por %p197, %p198
    %p201 = scmp.ne.s32.totalorder %s186, %s200
    %p202 = scmp.eq.s32.totalorder %s29, 0
    %p203 = por %p201, %p202
    %s205 = sadd.s32 %s204, 1
    %p208 = scmp.eq.s32.totalorder %s23, 1
    %p209 = scmp.ne.s32.totalorder %s204, %s206
    %p210 = scmp.eq.s32.totalorder %s23, 0
    %p211 = por %p209, %p210
    %p212 = scmp.ne.s32.totalorder %s204, %s206
    %p213 = scmp.eq.s32.totalorder %s28, 1
    %p214 = por %p212, %p213
    %p215 = scmp.ne.s32.totalorder %s206, %s207
    %p216 = scmp.eq.s32.totalorder %s28, 0
    %p217 = por %p215, %p216
    %p218 = scmp.ne.s32.totalorder %s206, %s207
    %p219 = scmp.eq.s32.totalorder %s29, 1
    %p220 = por %p218, %p219
    %p222 = scmp.ne.s32.totalorder %s207, %s221
    %p223 = scmp.eq.s32.totalorder %s29, 0
    %p224 = por %p222, %p223
    %s226 = sadd.s32 %s225, 1
    %p229 = scmp.eq.s32.totalorder %s23, 1
    %p230 = scmp.ne.s32.totalorder %s225, %s227
    %p231 = scmp.eq.s32.totalorder %s23, 0
    %p232 = por %p230, %p231
    %p233 = scmp.ne.s32.totalorder %s225, %s227
    %p234 = scmp.eq.s32.totalorder %s28, 1
    %p235 = por %p233, %p234
    %p236 = scmp.ne.s32.totalorder %s227, %s228
    %p237 = scmp.eq.s32.totalorder %s28, 0
    %p238 = por %p236, %p237
    %p239 = scmp.ne.s32.totalorder %s227, %s228
    %p240 = scmp.eq.s32.totalorder %s29, 1
    %p241 = por %p239, %p240
    %p243 = scmp.ne.s32.totalorder %s228, %s242
    %p244 = scmp.eq.s32.totalorder %s29, 0
    %p245 = por %p243, %p244
    %s247 = sadd.s32 %s246, 1
    %p250 = scmp.eq.s32.totalorder %s23, 1
    %p251 = scmp.ne.s32.totalorder %s246, %s248
    %p252 = scmp.eq.s32.totalorder %s23, 0
    %p253 = por %p251, %p252
    %p254 = scmp.ne.s32.totalorder %s246, %s248
    %p255 = scmp.eq.s32.totalorder %s28, 1
    %p256 = por %p254, %p255
    %p257 = scmp.ne.s32.totalorder %s248, %s249
    %p258 = scmp.eq.s32.totalorder %s28, 0
    %p259 = por %p257, %p258
    %p260 = scmp.ne.s32.totalorder %s248, %s249
    %p261 = scmp.eq.s32.totalorder %s29, 1
    %p262 = por %p260, %p261
    %p264 = scmp.ne.s32.totalorder %s249, %s263
    %p265 = scmp.eq.s32.totalorder %s29, 0
    %p266 = por %p264, %p265
    %s268 = sadd.s32 %s267, 1
    %p271 = scmp.eq.s32.totalorder %s23, 1
    %p272 = scmp.ne.s32.totalorder %s267, %s269
    %p273 = scmp.eq.s32.totalorder %s23, 0
    %p274 = por %p272, %p273
    %p275 = scmp.ne.s32.totalorder %s267, %s269
    %p276 = scmp.eq.s32.totalorder %s28, 1
    %p277 = por %p275, %p276
    %p278 = scmp.ne.s32.totalorder %s269, %s270
    %p279 = scmp.eq.s32.totalorder %s28, 0
    %p280 = por %p278, %p279
    %p281 = scmp.ne.s32.totalorder %s269, %s270
    %p282 = scmp.eq.s32.totalorder %s29, 1
    %p283 = por %p281, %p282
    %p285 = scmp.ne.s32.totalorder %s270, %s284
    %p286 = scmp.eq.s32.totalorder %s29, 0
    %p287 = por %p285, %p286
    %s289 = sadd.s32 %s288, 1
    %p292 = scmp.eq.s32.totalorder %s23, 1
    %p293 = scmp.ne.s32.totalorder %s288, %s290
    %p294 = scmp.eq.s32.totalorder %s23, 0
    %p295 = por %p293, %p294
    %p296 = scmp.ne.s32.totalorder %s288, %s290
    %p297 = scmp.eq.s32.totalorder %s28, 1
    %p298 = por %p296, %p297
    %p299 = scmp.ne.s32.totalorder %s290, %s291
    %p300 = scmp.eq.s32.totalorder %s28, 0
    %p301 = por %p299, %p300
    %p302 = scmp.ne.s32.totalorder %s290, %s291
    %p303 = scmp.eq.s32.totalorder %s29, 1
    %p304 = por %p302, %p303
    %p306 = scmp.ne.s32.totalorder %s291, %s305
    %p307 = scmp.eq.s32.totalorder %s29, 0
    %p308 = por %p306, %p307
    %s310 = sadd.s32 %s309, 1
    %p313 = scmp.eq.s32.totalorder %s23, 1
    %p314 = scmp.ne.s32.totalorder %s309, %s311
    %p315 = scmp.eq.s32.totalorder %s23, 0
    %p316 = por %p314, %p315
    %p317 = scmp.ne.s32.totalorder %s309, %s311
    %p318 = scmp.eq.s32.totalorder %s28, 1
    %p319 = por %p317, %p318
    %p320 = scmp.ne.s32.totalorder %s311, %s312
    %p321 = scmp.eq.s32.totalorder %s28, 0
    %p322 = por %p320, %p321
    %p323 = scmp.ne.s32.totalorder %s311, %s312
    %p324 = scmp.eq.s32.totalorder %s29, 1
    %p325 = por %p323, %p324
    %p327 = scmp.ne.s32.totalorder %s312, %s326
    %p328 = scmp.eq.s32.totalorder %s29, 0
    %p329 = por %p327, %p328
    %s331 = sadd.s32 %s330, 1
    %p334 = scmp.eq.s32.totalorder %s23, 1
    %p335 = scmp.ne.s32.totalorder %s330, %s332
    %p336 = scmp.eq.s32.totalorder %s23, 0
    %p337 = por %p335, %p336
    %p338 = scmp.ne.s32.totalorder %s330, %s332
    %p339 = scmp.eq.s32.totalorder %s28, 1
    %p340 = por %p338, %p339
    %p341 = scmp.ne.s32.totalorder %s332, %s333
    %p342 = scmp.eq.s32.totalorder %s28, 0
    %p343 = por %p341, %p342
    %p344 = scmp.ne.s32.totalorder %s332, %s333
    %p345 = scmp.eq.s32.totalorder %s29, 1
    %p346 = por %p344, %p345
    %p348 = scmp.ne.s32.totalorder %s333, %s347
    %p349 = scmp.eq.s32.totalorder %s29, 0
    %p350 = por %p348, %p349
    %s352 = sadd.s32 %s351, 1
    %p355 = scmp.eq.s32.totalorder %s23, 1
    %p356 = scmp.ne.s32.totalorder %s351, %s353
    %p357 = scmp.eq.s32.totalorder %s23, 0
    %p358 = por %p356, %p357
    %p359 = scmp.ne.s32.totalorder %s351, %s353
    %p360 = scmp.eq.s32.totalorder %s28, 1
    %p361 = por %p359, %p360
    %p362 = scmp.ne.s32.totalorder %s353, %s354
    %p363 = scmp.eq.s32.totalorder %s28, 0
    %p364 = por %p362, %p363
    %p365 = scmp.ne.s32.totalorder %s353, %s354
    %p366 = scmp.eq.s32.totalorder %s29, 1
    %p367 = por %p365, %p366
    %p369 = scmp.ne.s32.totalorder %s354, %s368
    %p370 = scmp.eq.s32.totalorder %s29, 0
    %p371 = por %p369, %p370
    %s373 = sadd.s32 %s372, 1
    %p376 = scmp.eq.s32.totalorder %s23, 1
    %p377 = scmp.ne.s32.totalorder %s372, %s374
    %p378 = scmp.eq.s32.totalorder %s23, 0
    %p379 = por %p377, %p378
    %p380 = scmp.ne.s32.totalorder %s372, %s374
    %p381 = scmp.eq.s32.totalorder %s28, 1
    %p382 = por %p380, %p381
    %p383 = scmp.ne.s32.totalorder %s374, %s375
    %p384 = scmp.eq.s32.totalorder %s28, 0
    %p385 = por %p383, %p384
    %p386 = scmp.ne.s32.totalorder %s374, %s375
    %p387 = scmp.eq.s32.totalorder %s29, 1
    %p388 = por %p386, %p387
    %p390 = scmp.ne.s32.totalorder %s375, %s389
    %p391 = scmp.eq.s32.totalorder %s29, 0
    %p392 = por %p390, %p391
    %s393 = ssub.s32 %s23, %s30
    %p394 = scmp.eq.s32.totalorder %s393, 0
    %s396 = sadd.s32 %s395, 1
    %s397 = scalar_select %p394, %s395, %s396
    %p400 = pneg %p394
    %p401 = scmp.eq.s32.totalorder %s23, 1
    %p402 = por %p400, %p401
    %p403 = scmp.ne.s32.totalorder %s395, %s398
    %p404 = scmp.eq.s32.totalorder %s23, 0
    %p405 = por %p403, %p404
    %p406 = scmp.ne.s32.totalorder %s395, %s398
    %p407 = scmp.eq.s32.totalorder %s28, 1
    %p408 = por %p406, %p407
    %p409 = scmp.ne.s32.totalorder %s398, %s399
    %p410 = scmp.eq.s32.totalorder %s28, 0
    %p411 = por %p409, %p410
    %p412 = scmp.ne.s32.totalorder %s398, %s399
    %p413 = scmp.eq.s32.totalorder %s29, 1
    %p414 = por %p412, %p413
    %p416 = scmp.ne.s32.totalorder %s399, %s415
    %p417 = scmp.eq.s32.totalorder %s29, 0
    %p418 = por %p416, %p417
    %p419 = scmp.le.s32.totalorder 1, %s23
    %p420 = scmp.lt.s32.totalorder %s23, 3
    %p421 = pnand %p419, %p420
    %p422 = pneg %p421
    // Predicated region
    $region9: #{chess_forward.1} parent=5 // pred_check
      _
    $region10: #{chess_forward.1} parent=5 // pred_check_branch
      %424 = sbr.rel (%p421) target = $region12
    $region11: #{chess_forward.1} parent=5 // pred_region
      %s425 = ssub.s32 %s23, 1
      // Predicated region
      $region13: #{chess_forward.1} parent=11 // pred_check
        %p426 = pneg %p70
      $region14: #{chess_forward.1} parent=11 // pred_check_branch
        %428 = sbr.rel (%p426) target = $region16
      $region15: #{chess_forward.1} parent=11 // pred_region
        _
      $region16: #{chess_forward.1} parent=11 // pred_fallthru
        _
      // Predicated region
      $region17: #{chess_forward.1} parent=11 // pred_check
        %p429 = pneg %p91
      $region18: #{chess_forward.1} parent=11 // pred_check_branch
        %431 = sbr.rel (%p429) target = $region20
      $region19: #{chess_forward.1} parent=11 // pred_region
        _
      $region20: #{chess_forward.1} parent=11 // pred_fallthru
        _
      // Predicated region
      $region21: #{chess_forward.1} parent=11 // pred_check
        %p432 = pneg %p112
      $region22: #{chess_forward.1} parent=11 // pred_check_branch
        %434 = sbr.rel (%p432) target = $region24
      $region23: #{chess_forward.1} parent=11 // pred_region
        _
      $region24: #{chess_forward.1} parent=11 // pred_fallthru
        _
      // Predicated region
      $region25: #{chess_forward.1} parent=11 // pred_check
        %p435 = pneg %p133
      $region26: #{chess_forward.1} parent=11 // pred_check_branch
        %437 = sbr.rel (%p435) target = $region28
      $region27: #{chess_forward.1} parent=11 // pred_region
        _
      $region28: #{chess_forward.1} parent=11 // pred_fallthru
        _
      // Predicated region
      $region29: #{chess_forward.1} parent=11 // pred_check
        %p438 = pneg %p154
      $region30: #{chess_forward.1} parent=11 // pred_check_branch
        %440 = sbr.rel (%p438) target = $region32
      $region31: #{chess_forward.1} parent=11 // pred_region
        _
      $region32: #{chess_forward.1} parent=11 // pred_fallthru
        _
      // Predicated region
      $region33: #{chess_forward.1} parent=11 // pred_check
        %p441 = pneg %p175
      $region34: #{chess_forward.1} parent=11 // pred_check_branch
        %443 = sbr.rel (%p441) target = $region36
      $region35: #{chess_forward.1} parent=11 // pred_region
        _
      $region36: #{chess_forward.1} parent=11 // pred_fallthru
        _
      // Predicated region
      $region37: #{chess_forward.1} parent=11 // pred_check
        %p444 = pneg %p196
      $region38: #{chess_forward.1} parent=11 // pred_check_branch
        %446 = sbr.rel (%p444) target = $region40
      $region39: #{chess_forward.1} parent=11 // pred_region
        _
      $region40: #{chess_forward.1} parent=11 // pred_fallthru
        _
      // Predicated region
      $region41: #{chess_forward.1} parent=11 // pred_check
        %p447 = pneg %p217
      $region42: #{chess_forward.1} parent=11 // pred_check_branch
        %449 = sbr.rel (%p447) target = $region44
      $region43: #{chess_forward.1} parent=11 // pred_region
        _
      $region44: #{chess_forward.1} parent=11 // pred_fallthru
        _
      // Predicated region
      $region45: #{chess_forward.1} parent=11 // pred_check
        %p450 = pneg %p238
      $region46: #{chess_forward.1} parent=11 // pred_check_branch
        %452 = sbr.rel (%p450) target = $region48
      $region47: #{chess_forward.1} parent=11 // pred_region
        _
      $region48: #{chess_forward.1} parent=11 // pred_fallthru
        _
      // Predicated region
      $region49: #{chess_forward.1} parent=11 // pred_check
        %p453 = pneg %p259
      $region50: #{chess_forward.1} parent=11 // pred_check_branch
        %455 = sbr.rel (%p453) target = $region52
      $region51: #{chess_forward.1} parent=11 // pred_region
        _
      $region52: #{chess_forward.1} parent=11 // pred_fallthru
        _
      // Predicated region
      $region53: #{chess_forward.1} parent=11 // pred_check
        %p456 = pneg %p280
      $region54: #{chess_forward.1} parent=11 // pred_check_branch
        %458 = sbr.rel (%p456) target = $region56
      $region55: #{chess_forward.1} parent=11 // pred_region
        _
      $region56: #{chess_forward.1} parent=11 // pred_fallthru
        _
      // Predicated region
      $region57: #{chess_forward.1} parent=11 // pred_check
        %p459 = pneg %p301
      $region58: #{chess_forward.1} parent=11 // pred_check_branch
        %461 = sbr.rel (%p459) target = $region60
      $region59: #{chess_forward.1} parent=11 // pred_region
        _
      $region60: #{chess_forward.1} parent=11 // pred_fallthru
        _
      // Predicated region
      $region61: #{chess_forward.1} parent=11 // pred_check
        %p462 = pneg %p322
      $region62: #{chess_forward.1} parent=11 // pred_check_branch
        %464 = sbr.rel (%p462) target = $region64
      $region63: #{chess_forward.1} parent=11 // pred_region
        _
      $region64: #{chess_forward.1} parent=11 // pred_fallthru
        _
      // Predicated region
      $region65: #{chess_forward.1} parent=11 // pred_check
        %p465 = pneg %p343
      $region66: #{chess_forward.1} parent=11 // pred_check_branch
        %467 = sbr.rel (%p465) target = $region68
      $region67: #{chess_forward.1} parent=11 // pred_region
        _
      $region68: #{chess_forward.1} parent=11 // pred_fallthru
        _
      // Predicated region
      $region69: #{chess_forward.1} parent=11 // pred_check
        %p468 = pneg %p364
      $region70: #{chess_forward.1} parent=11 // pred_check_branch
        %470 = sbr.rel (%p468) target = $region72
      $region71: #{chess_forward.1} parent=11 // pred_region
        _
      $region72: #{chess_forward.1} parent=11 // pred_fallthru
        _
      // Predicated region
      $region73: #{chess_forward.1} parent=11 // pred_check
        %p471 = pneg %p385
      $region74: #{chess_forward.1} parent=11 // pred_check_branch
        %473 = sbr.rel (%p471) target = $region76
      $region75: #{chess_forward.1} parent=11 // pred_region
        _
      $region76: #{chess_forward.1} parent=11 // pred_fallthru
        _
    $region12: #{chess_forward.1} parent=5 // pred_fallthru
      _
    %p474 = scmp.lt.s32.totalorder %s23, 2
    // Predicated region
    $region77: #{chess_forward.1} parent=5 // pred_check
      %p475 = pneg %p474
    $region78: #{chess_forward.1} parent=5 // pred_check_branch
      %477 = sbr.rel (%p475) target = $region80
    $region79: #{chess_forward.1} parent=5 // pred_region
      // Predicated region
      $region81: #{chess_forward.1} parent=79 // pred_check
        %p478 = pneg %p43
      $region82: #{chess_forward.1} parent=79 // pred_check_branch
        %480 = sbr.rel (%p478) target = $region84
      $region83: #{chess_forward.1} parent=79 // pred_region
        %p481 = scmp.lt.s32.totalorder %s23, 1
        %s482 = scalar_select %p481, %s23, 1
        %s483 = smul.addr %s482, 9
        %s484 = smul.addr %s483, 8
        %s485 = scalar_lea.vmem %s0, %s484
      $region84: #{chess_forward.1} parent=79 // pred_fallthru
        _
    $region80: #{chess_forward.1} parent=5 // pred_fallthru
      _
    %p486 = scmp.le.s32.totalorder 1, %s23
    %p487 = scmp.lt.s32.totalorder %s23, 3
    %p488 = pnand %p486, %p487
    %p489 = pneg %p488
    // Predicated region
    $region85: #{chess_forward.1} parent=5 // pred_check
      _
    $region86: #{chess_forward.1} parent=5 // pred_check_branch
      %491 = sbr.rel (%p488) target = $region88
    $region87: #{chess_forward.1} parent=5 // pred_region
      %s492 = ssub.s32 %s23, 1
      %p493 = scmp.lt.s32.totalorder %s28, 1
      %s494 = scalar_select %p493, %s28, 1
      %s495 = smul.addr %s494, 9
      %s496 = smul.addr %s495, 8
      %s497 = scalar_lea.vmem %s0, %s496
      %p498 = pneg %p49
      %p499 = pneg %p46
      %p500 = pneg %p70
      %p501 = pneg %p67
      %p502 = pneg %p91
      %p503 = pneg %p88
      %p504 = pneg %p112
      %p505 = pneg %p109
      %p506 = pneg %p133
      %p507 = pneg %p130
      %p508 = pneg %p154
      %p509 = pneg %p151
      %p510 = pneg %p175
      %p511 = pneg %p172
      %p512 = pneg %p196
      %p513 = pneg %p193
      %p514 = pneg %p217
      %p515 = pneg %p214
      %p516 = pneg %p238
      %p517 = pneg %p235
      %p518 = pneg %p259
      %p519 = pneg %p256
      %p520 = pneg %p280
      %p521 = pneg %p277
      %p522 = pneg %p301
      %p523 = pneg %p298
      %p524 = pneg %p322
      %p525 = pneg %p319
      %p526 = pneg %p343
      %p527 = pneg %p340
      %p528 = pneg %p364
      %p529 = pneg %p361
      %p530 = pneg %p385
      %p531 = pneg %p382
      %p532 = pneg %p411
      %p533 = pneg %p408
      %p534 = scmp.lt.s32.totalorder %s28, 1
      %s535 = scalar_select %p534, %s28, 1
      %s536 = scalar_lea.vmem %s17, %s535
      %p537 = scmp.lt.s32.totalorder %s28, 1
      %s538 = scalar_select %p537, %s28, 1
      %s539 = smul.addr %s538, 9
      %s540 = smul.addr %s539, 8
      %s541 = scalar_lea.vmem %s0, %s540
      %p542 = scmp.lt.s32.totalorder %s28, 1
      %s543 = scalar_select %p542, %s28, 1
      %s544 = scalar_lea.vmem %s17, %s543
      %v545 = vld [vmem:[%s541] sm:$0xff]
      %v546 = vld [vmem:[%s541 + $0x8] sm:$0xff]
      %v547 = vld [vmem:[%s541 + $0x10] sm:$0xff]
      %v548 = vld [vmem:[%s541 + $0x18] sm:$0xff]
      %v549 = vld [vmem:[%s541 + $0x20] sm:$0xff]
      %v550 = vld [vmem:[%s541 + $0x28] sm:$0xff]
      %v551 = vld [vmem:[%s541 + $0x30] sm:$0xff]
      %v552 = vld [vmem:[%s541 + $0x38] sm:$0xff]
      %v553 = vld [vmem:[%s541 + $0x40] sm:$0x1]
      %v554 = vld [vmem:[%s1] sm:$0x1]
      %v555 = vld [vmem:[%s2] sm:$0x1]
      %vm556 = vcmask 261120
      %v557 = vsel %vm556, %v545, 0.0
      %558 = vadd.xlane.f32.xlu0 %v557
      %v559 = vpop.xlane.xlu0 %558
      %v560 = vsel %vm556, %v546, 0.0
      %561 = vadd.xlane.f32.xlu0 %v560
      %v562 = vpop.xlane.xlu0 %561
      %v563 = vsel %vm556, %v547, 0.0
      %564 = vadd.xlane.f32.xlu0 %v563
      %v565 = vpop.xlane.xlu0 %564
      %v566 = vsel %vm556, %v548, 0.0
      %567 = vadd.xlane.f32.xlu0 %v566
      %v568 = vpop.xlane.xlu0 %567
      %v569 = vsel %vm556, %v549, 0.0
      %570 = vadd.xlane.f32.xlu0 %v569
      %v571 = vpop.xlane.xlu0 %570
      %v572 = vsel %vm556, %v550, 0.0
      %573 = vadd.xlane.f32.xlu0 %v572
      %v574 = vpop.xlane.xlu0 %573
      %v575 = vsel %vm556, %v551, 0.0
      %576 = vadd.xlane.f32.xlu0 %v575
      %v577 = vpop.xlane.xlu0 %576
      %v578 = vsel %vm556, %v552, 0.0
      %579 = vadd.xlane.f32.xlu0 %v578
      %v580 = vpop.xlane.xlu0 %579
      %vm581 = vcmask 253952
      %v582 = vsel %vm581, %v553, 0.0
      %583 = vadd.xlane.f32.xlu0 %v582
      %v584 = vpop.xlane.xlu0 %583
      %v585 = vrcp.pop 32.0
      %v586 = vmul.f32 %v559, %v585
      %v587 = vmul.f32 %v562, %v585
      %v588 = vmul.f32 %v565, %v585
      %v589 = vmul.f32 %v568, %v585
      %v590 = vmul.f32 %v571, %v585
      %v591 = vmul.f32 %v574, %v585
      %v592 = vmul.f32 %v577, %v585
      %v593 = vmul.f32 %v580, %v585
      %v594 = vmul.f32 %v584, %v585
      %v595 = vsub.f32 %v545, %v586
      %v596 = vsub.f32 %v546, %v587
      %v597 = vsub.f32 %v547, %v588
      %v598 = vsub.f32 %v548, %v589
      %v599 = vsub.f32 %v549, %v590
      %v600 = vsub.f32 %v550, %v591
      %v601 = vsub.f32 %v551, %v592
      %v602 = vsub.f32 %v552, %v593
      %v603 = vsub.f32 %v553, %v594
      %v604 = vmul.f32 %v595, %v595
      %v605 = vmul.f32 %v596, %v596
      %v606 = vmul.f32 %v597, %v597
      %v607 = vmul.f32 %v598, %v598
      %v608 = vmul.f32 %v599, %v599
      %v609 = vmul.f32 %v600, %v600
      %v610 = vmul.f32 %v601, %v601
      %v611 = vmul.f32 %v602, %v602
      %v612 = vmul.f32 %v603, %v603
      %v613 = vsel %vm556, %v604, 0.0
      %614 = vadd.xlane.f32.xlu0 %v613
      %v615 = vpop.xlane.xlu0 %614
      %v616 = vsel %vm556, %v605, 0.0
      %617 = vadd.xlane.f32.xlu0 %v616
      %v618 = vpop.xlane.xlu0 %617
      %v619 = vsel %vm556, %v606, 0.0
      %620 = vadd.xlane.f32.xlu0 %v619
      %v621 = vpop.xlane.xlu0 %620
      %v622 = vsel %vm556, %v607, 0.0
      %623 = vadd.xlane.f32.xlu0 %v622
      %v624 = vpop.xlane.xlu0 %623
      %v625 = vsel %vm556, %v608, 0.0
      %626 = vadd.xlane.f32.xlu0 %v625
      %v627 = vpop.xlane.xlu0 %626
      %v628 = vsel %vm556, %v609, 0.0
      %629 = vadd.xlane.f32.xlu0 %v628
      %v630 = vpop.xlane.xlu0 %629
      %v631 = vsel %vm556, %v610, 0.0
      %632 = vadd.xlane.f32.xlu0 %v631
      %v633 = vpop.xlane.xlu0 %632
      %v634 = vsel %vm556, %v611, 0.0
      %635 = vadd.xlane.f32.xlu0 %v634
      %v636 = vpop.xlane.xlu0 %635
      %v637 = vsel %vm581, %v612, 0.0
      %638 = vadd.xlane.f32.xlu0 %v637
      %v639 = vpop.xlane.xlu0 %638
      %v640 = vmul.f32 %v615, %v585
      %v641 = vmul.f32 %v618, %v585
      %v642 = vmul.f32 %v621, %v585
      %v643 = vmul.f32 %v624, %v585
      %v644 = vmul.f32 %v627, %v585
      %v645 = vmul.f32 %v630, %v585
      %v646 = vmul.f32 %v633, %v585
      %v647 = vmul.f32 %v636, %v585
      %v648 = vmul.f32 %v639, %v585
      %v649 = vadd.f32 %v640, 1e-05
      %v650 = vadd.f32 %v641, 1e-05
      %v651 = vadd.f32 %v642, 1e-05
      %v652 = vadd.f32 %v643, 1e-05
      %v653 = vadd.f32 %v644, 1e-05
      %v654 = vadd.f32 %v645, 1e-05
      %v655 = vadd.f32 %v646, 1e-05
      %v656 = vadd.f32 %v647, 1e-05
      %v657 = vadd.f32 %v648, 1e-05
      %v658 = vrsqrt.pop %v649
      %v659 = vrsqrt.pop %v650
      %v660 = vrsqrt.pop %v651
      %v661 = vrsqrt.pop %v652
      %v662 = vrsqrt.pop %v653
      %v663 = vrsqrt.pop %v654
      %v664 = vrsqrt.pop %v655
      %v665 = vrsqrt.pop %v656
      %v666 = vrsqrt.pop %v657
      %v667 = vmul.f32 %v595, %v658
      %v668 = vmul.f32 %v596, %v659
      %v669 = vmul.f32 %v597, %v660
      %v670 = vmul.f32 %v598, %v661
      %v671 = vmul.f32 %v599, %v662
      %v672 = vmul.f32 %v600, %v663
      %v673 = vmul.f32 %v601, %v664
      %v674 = vmul.f32 %v602, %v665
      %v675 = vmul.f32 %v603, %v666
      %v677 = vlaneseq
      %v678 = vshrl.u32 %v677, 7
      %v679 = vsub.s32 0, %v678
      %v680 = vrot.slane %v554, %v679
      %v682 = vmul.f32 %v667, %v680
      %v683 = vmul.f32 %v668, %v680
      %v684 = vmul.f32 %v669, %v680
      %v685 = vmul.f32 %v670, %v680
      %v686 = vmul.f32 %v671, %v680
      %v687 = vmul.f32 %v672, %v680
      %v688 = vmul.f32 %v673, %v680
      %v689 = vmul.f32 %v674, %v680
      %v690 = vmul.f32 %v675, %v680
      %v692 = vlaneseq
      %v693 = vshrl.u32 %v692, 7
      %v694 = vsub.s32 0, %v693
      %v695 = vrot.slane %v555, %v694
      %v697 = vadd.f32 %v682, %v695
      %v698 = vadd.f32 %v683, %v695
      %v699 = vadd.f32 %v684, %v695
      %v700 = vadd.f32 %v685, %v695
      %v701 = vadd.f32 %v686, %v695
      %v702 = vadd.f32 %v687, %v695
      %v703 = vadd.f32 %v688, %v695
      %v704 = vadd.f32 %v689, %v695
      %v705 = vadd.f32 %v690, %v695
      %v706 = vld [vmem:[%s3] sm:$0xff]
      %v707 = vld [vmem:[%s3 + $0x8] sm:$0xff]
      %v708 = vld [vmem:[%s3 + $0x10] sm:$0xff]
      %v709 = vld [vmem:[%s3 + $0x18] sm:$0xff]
      %v710 = vld [vmem:[%s4] sm:$0x1]
      %v712 = vlaneseq
      %v713 = vshrl.u32 %v712, 7
      %v714 = vsub.s32 0, %v713
      %v715 = vrot.slane %v710, %v714
      %v718 = vsel %vm556, %v697, 0
      %v721 = vsel %vm556, %v698, 0
      %v724 = vsel %vm556, %v699, 0
      %v727 = vsel %vm556, %v700, 0
      %v730 = vsel %vm556, %v701, 0
      %v733 = vsel %vm556, %v702, 0
      %v736 = vsel %vm556, %v703, 0
      %v739 = vsel %vm556, %v704, 0
      %v742 = vsel %vm556, %v705, 0
      %744 = vmatprep.subr.mxu0 0.0
      %745 = vmatpush1.msra.mxu0 0.0
      %746 = vmatprep.subr.mxu0 0.0
      %747 = vmatpush1.msra.mxu0 0.0
      %748 = vmatprep.subr.mxu0 0.0
      %749 = vmatpush1.msra.mxu0 0.0
      %750 = vmatprep.subr.mxu0 0.0
      %751 = vmatpush1.msra.mxu0 0.0
      %752 = vmatprep.subr.mxu0 0.0
      %753 = vmatpush1.msra.mxu0 0.0
      %754 = vmatprep.subr.mxu0 0.0
      %755 = vmatpush1.msra.mxu0 0.0
      %756 = vmatprep.subr.mxu0 0.0
      %757 = vmatpush1.msra.mxu0 0.0
      %758 = vmatprep.subr.mxu0 0.0
      %759 = vmatpush1.msra.mxu0 0.0
      %760 = vmatprep.subr.mxu0 0.0
      %761 = vmatpush1.msra.mxu0 0.0
      %762 = vmatprep.subr.mxu0 0.0
      %763 = vmatpush1.msra.mxu0 0.0
      %764 = vmatprep.subr.mxu0 0.0
      %765 = vmatpush1.msra.mxu0 0.0
      %766 = vmatprep.subr.mxu0 0.0
      %767 = vmatpush1.msra.mxu0 0.0
      %768 = vmatprep.subr.mxu0 0.0
      %769 = vmatpush1.msra.mxu0 %v709
      %770 = vmatprep.subr.mxu0 0.0
      %771 = vmatpush1.msra.mxu0 %v708
      %772 = vmatprep.subr.mxu0 0.0
      %773 = vmatpush1.msra.mxu0 %v707
      %774 = vmatprep.subr.mxu0 0.0
      %775 = vmatpush1.msra.mxu0 %v706
      %776 = vmatprep.subr.mxu0 0.0
      %777 = vmatpush2.msra.mxu0 0.0
      %778 = vmatprep.subr.mxu0 0.0
      %779 = vmatpush2.msra.mxu0 0.0
      %780 = vmatprep.subr.mxu0 0.0
      %781 = vmatpush2.msra.mxu0 0.0
      %782 = vmatprep.subr.mxu0 0.0
      %783 = vmatpush2.msra.mxu0 0.0
      %784 = vmatprep.subr.mxu0 0.0
      %785 = vmatpush2.msra.mxu0 0.0
      %786 = vmatprep.subr.mxu0 0.0
      %787 = vmatpush2.msra.mxu0 0.0
      %788 = vmatprep.subr.mxu0 0.0
      %789 = vmatpush2.msra.mxu0 0.0
      %790 = vmatprep.subr.mxu0 0.0
      %791 = vmatpush2.msra.mxu0 0.0
      %792 = vmatprep.subr.mxu0 0.0
      %793 = vmatpush2.msra.mxu0 0.0
      %794 = vmatprep.subr.mxu0 0.0
      %795 = vmatpush2.msra.mxu0 0.0
      %796 = vmatprep.subr.mxu0 0.0
      %797 = vmatpush2.msra.mxu0 0.0
      %798 = vmatprep.subr.mxu0 0.0
      %799 = vmatpush2.msra.mxu0 0.0
      %800 = vmatprep.subr.mxu0 0.0
      %801 = vmatpush2.msra.mxu0 0.0
      %802 = vmatprep.subr.mxu0 0.0
      %803 = vmatpush2.msra.mxu0 0.0
      %804 = vmatprep.subr.mxu0 0.0
      %805 = vmatpush2.msra.mxu0 0.0
      %806 = vmatprep.subr.mxu0 0.0
      %807 = vmatpush2.msra.mxu0 0.0
      %808 = vmatprep.mubr.f32.mxu0 0.0
      %809 = vmatmul.mubr.f32.gmra.mxu0 %v718
      %v810 = vpop.f32.mrf.mxu0
      %v811 = vadd.f32 %v715, %v810
      %v812 = vpop.f32.mrf.mxu0
      %813 = vmatprep.mubr.f32.mxu0 0.0
      %814 = vmatmul.mubr.f32.gmra.mxu0 %v721
      %v815 = vpop.f32.mrf.mxu0
      %v816 = vadd.f32 %v715, %v815
      %v817 = vpop.f32.mrf.mxu0
      %818 = vmatprep.mubr.f32.mxu0 0.0
      %819 = vmatmul.mubr.f32.gmra.mxu0 %v724
      %v820 = vpop.f32.mrf.mxu0
      %v821 = vadd.f32 %v715, %v820
      %v822 = vpop.f32.mrf.mxu0
      %823 = vmatprep.mubr.f32.mxu0 0.0
      %824 = vmatmul.mubr.f32.gmra.mxu0 %v727
      %v825 = vpop.f32.mrf.mxu0
      %v826 = vadd.f32 %v715, %v825
      %v827 = vpop.f32.mrf.mxu0
      %828 = vmatprep.mubr.f32.mxu0 0.0
      %829 = vmatmul.mubr.f32.gmra.mxu0 %v730
      %v830 = vpop.f32.mrf.mxu0
      %v831 = vadd.f32 %v715, %v830
      %v832 = vpop.f32.mrf.mxu0
      %833 = vmatprep.mubr.f32.mxu0 0.0
      %834 = vmatmul.mubr.f32.gmra.mxu0 %v733
      %v835 = vpop.f32.mrf.mxu0
      %v836 = vadd.f32 %v715, %v835
      %v837 = vpop.f32.mrf.mxu0
      %838 = vmatprep.mubr.f32.mxu0 0.0
      %839 = vmatmul.mubr.f32.gmra.mxu0 %v736
      %v840 = vpop.f32.mrf.mxu0
      %v841 = vadd.f32 %v715, %v840
      %v842 = vpop.f32.mrf.mxu0
      %843 = vmatprep.mubr.f32.mxu0 0.0
      %844 = vmatmul.mubr.f32.gmra.mxu0 %v739
      %v845 = vpop.f32.mrf.mxu0
      %v846 = vadd.f32 %v715, %v845
      %v847 = vpop.f32.mrf.mxu0
      %848 = vmatprep.mubr.f32.mxu0 0.0
      %849 = vmatmul.mubr.f32.gmra.mxu0 %v742
      %v850 = vpop.f32.mrf.mxu0
      %v851 = vadd.f32 %v715, %v850
      %v852 = vpop.f32.mrf.mxu0
      %853 = vdwg.mxu0
      %v854 = vmul.f32 %v811, 0.35355338
      %v855 = vmul.f32 %v816, 0.35355338
      %v856 = vmul.f32 %v821, 0.35355338
      %v857 = vmul.f32 %v826, 0.35355338
      %v858 = vmul.f32 %v831, 0.35355338
      %v859 = vmul.f32 %v836, 0.35355338
      %v860 = vmul.f32 %v841, 0.35355338
      %v861 = vmul.f32 %v846, 0.35355338
      %v862 = vmul.f32 %v851, 0.35355338
      %872 = vrot.lane.b32.xlu0 %v811, 96
      %v873 = vpop.permute.xlu0 %872
      %874 = vrot.lane.b32.xlu0 %v816, 96
      %v875 = vpop.permute.xlu0 %874
      %876 = vrot.lane.b32.xlu0 %v821, 96
      %v877 = vpop.permute.xlu0 %876
      %878 = vrot.lane.b32.xlu0 %v826, 96
      %v879 = vpop.permute.xlu0 %878
      %880 = vrot.lane.b32.xlu0 %v831, 96
      %v881 = vpop.permute.xlu0 %880
      %882 = vrot.lane.b32.xlu0 %v836, 96
      %v883 = vpop.permute.xlu0 %882
      %884 = vrot.lane.b32.xlu0 %v841, 96
      %v885 = vpop.permute.xlu0 %884
      %886 = vrot.lane.b32.xlu0 %v846, 96
      %v887 = vpop.permute.xlu0 %886
      %888 = vrot.lane.b32.xlu0 %v851, 96
      %v889 = vpop.permute.xlu0 %888
      %vm890 = vcmask 64512
      %v892 = vsel %vm890, %v854, 0
      %v895 = vsel %vm890, %v855, 0
      %v898 = vsel %vm890, %v856, 0
      %v901 = vsel %vm890, %v857, 0
      %v904 = vsel %vm890, %v858, 0
      %v907 = vsel %vm890, %v859, 0
      %v910 = vsel %vm890, %v860, 0
      %v913 = vsel %vm890, %v861, 0
      %v916 = vsel %vm890, %v862, 0
      %v918 = vsel %vm890, %v873, 0
      %v920 = vsel %vm890, %v875, 0
      %v922 = vsel %vm890, %v877, 0
      %v924 = vsel %vm890, %v879, 0
      %v926 = vsel %vm890, %v881, 0
      %v928 = vsel %vm890, %v883, 0
      %v930 = vsel %vm890, %v885, 0
      %v932 = vsel %vm890, %v887, 0
      %v934 = vsel %vm890, %v889, 0
      %936 = vmatprep.subr.mxu0 0.0
      %937 = vmatpush1.xpose.msra.mxu0 0.0
      %938 = vmatprep.subr.mxu0 0.0
      %939 = vmatpush1.xpose.msra.mxu0 0.0
      %940 = vmatprep.subr.mxu0 0.0
      %941 = vmatpush1.xpose.msra.mxu0 0.0
      %942 = vmatprep.subr.mxu0 0.0
      %943 = vmatpush1.xpose.msra.mxu0 0.0
      %944 = vmatprep.subr.mxu0 0.0
      %945 = vmatpush1.xpose.msra.mxu0 0.0
      %946 = vmatprep.subr.mxu0 0.0
      %947 = vmatpush1.xpose.msra.mxu0 0.0
      %948 = vmatprep.subr.mxu0 0.0
      %949 = vmatpush1.xpose.msra.mxu0 0.0
      %950 = vmatprep.subr.mxu0 0.0
      %951 = vmatpush1.xpose.msra.mxu0 %v934
      %952 = vmatprep.subr.mxu0 0.0
      %953 = vmatpush1.xpose.msra.mxu0 %v932
      %954 = vmatprep.subr.mxu0 0.0
      %955 = vmatpush1.xpose.msra.mxu0 %v930
      %956 = vmatprep.subr.mxu0 0.0
      %957 = vmatpush1.xpose.msra.mxu0 %v928
      %958 = vmatprep.subr.mxu0 0.0
      %959 = vmatpush1.xpose.msra.mxu0 %v926
      %960 = vmatprep.subr.mxu0 0.0
      %961 = vmatpush1.xpose.msra.mxu0 %v924
      %962 = vmatprep.subr.mxu0 0.0
      %963 = vmatpush1.xpose.msra.mxu0 %v922
      %964 = vmatprep.subr.mxu0 0.0
      %965 = vmatpush1.xpose.msra.mxu0 %v920
      %966 = vmatprep.subr.mxu0 0.0
      %967 = vmatpush1.xpose.msra.mxu0 %v918
      %968 = vmatprep.subr.mxu0 0.0
      %969 = vmatpush2.xpose.msra.mxu0 0.0
      %970 = vmatprep.subr.mxu0 0.0
      %971 = vmatpush2.xpose.msra.mxu0 0.0
      %972 = vmatprep.subr.mxu0 0.0
      %973 = vmatpush2.xpose.msra.mxu0 0.0
      %974 = vmatprep.subr.mxu0 0.0
      %975 = vmatpush2.xpose.msra.mxu0 0.0
      %976 = vmatprep.subr.mxu0 0.0
      %977 = vmatpush2.xpose.msra.mxu0 0.0
      %978 = vmatprep.subr.mxu0 0.0
      %979 = vmatpush2.xpose.msra.mxu0 0.0
      %980 = vmatprep.subr.mxu0 0.0
      %981 = vmatpush2.xpose.msra.mxu0 0.0
      %982 = vmatprep.subr.mxu0 0.0
      %983 = vmatpush2.xpose.msra.mxu0 0.0
      %984 = vmatprep.subr.mxu0 0.0
      %985 = vmatpush2.xpose.msra.mxu0 0.0
      %986 = vmatprep.subr.mxu0 0.0
      %987 = vmatpush2.xpose.msra.mxu0 0.0
      %988 = vmatprep.subr.mxu0 0.0
      %989 = vmatpush2.xpose.msra.mxu0 0.0
      %990 = vmatprep.subr.mxu0 0.0
      %991 = vmatpush2.xpose.msra.mxu0 0.0
      %992 = vmatprep.subr.mxu0 0.0
      %993 = vmatpush2.xpose.msra.mxu0 0.0
      %994 = vmatprep.subr.mxu0 0.0
      %995 = vmatpush2.xpose.msra.mxu0 0.0
      %996 = vmatprep.subr.mxu0 0.0
      %997 = vmatpush2.xpose.msra.mxu0 0.0
      %998 = vmatprep.subr.mxu0 0.0
      %999 = vmatpush2.xpose.msra.mxu0 0.0
      %1000 = vmatprep.mubr.f32.mxu0 0.0
      %1001 = vmatmul.mubr.f32.gmra.mxu0 %v892
      %v1002 = vpop.f32.mrf.mxu0
      %v1003 = vadd.f32 0.0, %v1002
      %v1004 = vpop.f32.mrf.mxu0
      %1005 = vmatprep.mubr.f32.mxu0 0.0
      %1006 = vmatmul.mubr.f32.gmra.mxu0 %v895
      %v1007 = vpop.f32.mrf.mxu0
      %v1008 = vadd.f32 0.0, %v1007
      %v1009 = vpop.f32.mrf.mxu0
      %1010 = vmatprep.mubr.f32.mxu0 0.0
      %1011 = vmatmul.mubr.f32.gmra.mxu0 %v898
      %v1012 = vpop.f32.mrf.mxu0
      %v1013 = vadd.f32 0.0, %v1012
      %v1014 = vpop.f32.mrf.mxu0
      %1015 = vmatprep.mubr.f32.mxu0 0.0
      %1016 = vmatmul.mubr.f32.gmra.mxu0 %v901
      %v1017 = vpop.f32.mrf.mxu0
      %v1018 = vadd.f32 0.0, %v1017
      %v1019 = vpop.f32.mrf.mxu0
      %1020 = vmatprep.mubr.f32.mxu0 0.0
      %1021 = vmatmul.mubr.f32.gmra.mxu0 %v904
      %v1022 = vpop.f32.mrf.mxu0
      %v1023 = vadd.f32 0.0, %v1022
      %v1024 = vpop.f32.mrf.mxu0
      %1025 = vmatprep.mubr.f32.mxu0 0.0
      %1026 = vmatmul.mubr.f32.gmra.mxu0 %v907
      %v1027 = vpop.f32.mrf.mxu0
      %v1028 = vadd.f32 0.0, %v1027
      %v1029 = vpop.f32.mrf.mxu0
      %1030 = vmatprep.mubr.f32.mxu0 0.0
      %1031 = vmatmul.mubr.f32.gmra.mxu0 %v910
      %v1032 = vpop.f32.mrf.mxu0
      %v1033 = vadd.f32 0.0, %v1032
      %v1034 = vpop.f32.mrf.mxu0
      %1035 = vmatprep.mubr.f32.mxu0 0.0
      %1036 = vmatmul.mubr.f32.gmra.mxu0 %v913
      %v1037 = vpop.f32.mrf.mxu0
      %v1038 = vadd.f32 0.0, %v1037
      %v1039 = vpop.f32.mrf.mxu0
      %1040 = vmatprep.mubr.f32.mxu0 0.0
      %1041 = vmatmul.mubr.f32.gmra.mxu0 %v916
      %v1042 = vpop.f32.mrf.mxu0
      %v1043 = vadd.f32 0.0, %v1042
      %v1044 = vpop.f32.mrf.mxu0
      %1045 = vdwg.mxu0
      %vm1046 = vcmask 531456
      %v1047 = vsel %vm1046, %v1003, -inf
      %1048 = vmax.xlane.f32.xlu0 %v1047
      %v1049 = vpop.xlane.xlu0 %1048
      %v1050 = vsel %vm1046, %v1008, -inf
      %1051 = vmax.xlane.f32.xlu0 %v1050
      %v1052 = vpop.xlane.xlu0 %1051
      %v1053 = vsel %vm1046, %v1013, -inf
      %1054 = vmax.xlane.f32.xlu0 %v1053
      %v1055 = vpop.xlane.xlu0 %1054
      %v1056 = vsel %vm1046, %v1018, -inf
      %1057 = vmax.xlane.f32.xlu0 %v1056
      %v1058 = vpop.xlane.xlu0 %1057
      %v1059 = vsel %vm1046, %v1023, -inf
      %1060 = vmax.xlane.f32.xlu0 %v1059
      %v1061 = vpop.xlane.xlu0 %1060
      %v1062 = vsel %vm1046, %v1028, -inf
      %1063 = vmax.xlane.f32.xlu0 %v1062
      %v1064 = vpop.xlane.xlu0 %1063
      %v1065 = vsel %vm1046, %v1033, -inf
      %1066 = vmax.xlane.f32.xlu0 %v1065
      %v1067 = vpop.xlane.xlu0 %1066
      %v1068 = vsel %vm1046, %v1038, -inf
      %1069 = vmax.xlane.f32.xlu0 %v1068
      %v1070 = vpop.xlane.xlu0 %1069
      %vm1071 = vcmask 524288
      %v1072 = vsel %vm1071, %v1043, -inf
      %1073 = vmax.xlane.f32.xlu0 %v1072
      %v1074 = vpop.xlane.xlu0 %1073
      %v1075 = vsub.f32 %v1003, %v1049
      %v1076 = vsub.f32 %v1008, %v1052
      %v1077 = vsub.f32 %v1013, %v1055
      %v1078 = vsub.f32 %v1018, %v1058
      %v1079 = vsub.f32 %v1023, %v1061
      %v1080 = vsub.f32 %v1028, %v1064
      %v1081 = vsub.f32 %v1033, %v1067
      %v1082 = vsub.f32 %v1038, %v1070
      %v1083 = vsub.f32 %v1043, %v1074
      %v1084 = vmul.f32 %v1075, 1.442695
      %v1085 = vpow.pop %v1084
      %v1086 = vmul.f32 %v1076, 1.442695
      %v1087 = vpow.pop %v1086
      %v1088 = vmul.f32 %v1077, 1.442695
      %v1089 = vpow.pop %v1088
      %v1090 = vmul.f32 %v1078, 1.442695
      %v1091 = vpow.pop %v1090
      %v1092 = vmul.f32 %v1079, 1.442695
      %v1093 = vpow.pop %v1092
      %v1094 = vmul.f32 %v1080, 1.442695
      %v1095 = vpow.pop %v1094
      %v1096 = vmul.f32 %v1081, 1.442695
      %v1097 = vpow.pop %v1096
      %v1098 = vmul.f32 %v1082, 1.442695
      %v1099 = vpow.pop %v1098
      %v1100 = vmul.f32 %v1083, 1.442695
      %v1101 = vpow.pop %v1100
      %v1102 = vsel %vm1046, %v1085, 0.0
      %1103 = vadd.xlane.f32.xlu0 %v1102
      %v1104 = vpop.xlane.xlu0 %1103
      %v1105 = vsel %vm1046, %v1087, 0.0
      %1106 = vadd.xlane.f32.xlu0 %v1105
      %v1107 = vpop.xlane.xlu0 %1106
      %v1108 = vsel %vm1046, %v1089, 0.0
      %1109 = vadd.xlane.f32.xlu0 %v1108
      %v1110 = vpop.xlane.xlu0 %1109
      %v1111 = vsel %vm1046, %v1091, 0.0
      %1112 = vadd.xlane.f32.xlu0 %v1111
      %v1113 = vpop.xlane.xlu0 %1112
      %v1114 = vsel %vm1046, %v1093, 0.0
      %1115 = vadd.xlane.f32.xlu0 %v1114
      %v1116 = vpop.xlane.xlu0 %1115
      %v1117 = vsel %vm1046, %v1095, 0.0
      %1118 = vadd.xlane.f32.xlu0 %v1117
      %v1119 = vpop.xlane.xlu0 %1118
      %v1120 = vsel %vm1046, %v1097, 0.0
      %1121 = vadd.xlane.f32.xlu0 %v1120
      %v1122 = vpop.xlane.xlu0 %1121
      %v1123 = vsel %vm1046, %v1099, 0.0
      %1124 = vadd.xlane.f32.xlu0 %v1123
      %v1125 = vpop.xlane.xlu0 %1124
      %v1126 = vsel %vm1071, %v1101, 0.0
      %1127 = vadd.xlane.f32.xlu0 %v1126
      %v1128 = vpop.xlane.xlu0 %1127
      %v1129 = vrcp.pop %v1104
      %v1130 = vmul.f32 %v1085, %v1129
      %v1131 = vrcp.pop %v1107
      %v1132 = vmul.f32 %v1087, %v1131
      %v1133 = vrcp.pop %v1110
      %v1134 = vmul.f32 %v1089, %v1133
      %v1135 = vrcp.pop %v1113
      %v1136 = vmul.f32 %v1091, %v1135
      %v1137 = vrcp.pop %v1116
      %v1138 = vmul.f32 %v1093, %v1137
      %v1139 = vrcp.pop %v1119
      %v1140 = vmul.f32 %v1095, %v1139
      %v1141 = vrcp.pop %v1122
      %v1142 = vmul.f32 %v1097, %v1141
      %v1143 = vrcp.pop %v1125
      %v1144 = vmul.f32 %v1099, %v1143
      %v1145 = vrcp.pop %v1128
      %v1146 = vmul.f32 %v1101, %v1145
      %1147 = vrot.lane.b32.xlu0 %v811, 64
      %v1148 = vpop.permute.xlu0 %1147
      %1149 = vrot.lane.b32.xlu0 %v816, 64
      %v1150 = vpop.permute.xlu0 %1149
      %1151 = vrot.lane.b32.xlu0 %v821, 64
      %v1152 = vpop.permute.xlu0 %1151
      %1153 = vrot.lane.b32.xlu0 %v826, 64
      %v1154 = vpop.permute.xlu0 %1153
      %1155 = vrot.lane.b32.xlu0 %v831, 64
      %v1156 = vpop.permute.xlu0 %1155
      %1157 = vrot.lane.b32.xlu0 %v836, 64
      %v1158 = vpop.permute.xlu0 %1157
      %1159 = vrot.lane.b32.xlu0 %v841, 64
      %v1160 = vpop.permute.xlu0 %1159
      %1161 = vrot.lane.b32.xlu0 %v846, 64
      %v1162 = vpop.permute.xlu0 %1161
      %1163 = vrot.lane.b32.xlu0 %v851, 64
      %v1164 = vpop.permute.xlu0 %1163
      %v1174 = vsel %vm1046, %v1130, 0
      %v1177 = vsel %vm1046, %v1132, 0
      %v1180 = vsel %vm1046, %v1134, 0
      %v1183 = vsel %vm1046, %v1136, 0
      %v1186 = vsel %vm1046, %v1138, 0
      %v1189 = vsel %vm1046, %v1140, 0
      %v1192 = vsel %vm1046, %v1142, 0
      %v1195 = vsel %vm1046, %v1144, 0
      %v1198 = vsel %vm1046, %v1146, 0
      %vm1200 = vcmask 1040384
      %v1201 = vsel %vm1200, %v1164, 0
      %1203 = vmatprep.subr.mxu0 0.0
      %1204 = vmatpush1.msra.mxu0 0.0
      %1205 = vmatprep.subr.mxu0 0.0
      %1206 = vmatpush1.msra.mxu0 0.0
      %1207 = vmatprep.subr.mxu0 0.0
      %1208 = vmatpush1.msra.mxu0 0.0
      %1209 = vmatprep.subr.mxu0 0.0
      %1210 = vmatpush1.msra.mxu0 0.0
      %1211 = vmatprep.subr.mxu0 0.0
      %1212 = vmatpush1.msra.mxu0 0.0
      %1213 = vmatprep.subr.mxu0 0.0
      %1214 = vmatpush1.msra.mxu0 0.0
      %1215 = vmatprep.subr.mxu0 0.0
      %1216 = vmatpush1.msra.mxu0 0.0
      %1217 = vmatprep.subr.mxu0 0.0
      %1218 = vmatpush1.msra.mxu0 %v1201
      %1219 = vmatprep.subr.mxu0 0.0
      %1220 = vmatpush1.msra.mxu0 %v1162
      %1221 = vmatprep.subr.mxu0 0.0
      %1222 = vmatpush1.msra.mxu0 %v1160
      %1223 = vmatprep.subr.mxu0 0.0
      %1224 = vmatpush1.msra.mxu0 %v1158
      %1225 = vmatprep.subr.mxu0 0.0
      %1226 = vmatpush1.msra.mxu0 %v1156
      %1227 = vmatprep.subr.mxu0 0.0
      %1228 = vmatpush1.msra.mxu0 %v1154
      %1229 = vmatprep.subr.mxu0 0.0
      %1230 = vmatpush1.msra.mxu0 %v1152
      %1231 = vmatprep.subr.mxu0 0.0
      %1232 = vmatpush1.msra.mxu0 %v1150
      %1233 = vmatprep.subr.mxu0 0.0
      %1234 = vmatpush1.msra.mxu0 %v1148
      %1235 = vmatprep.subr.mxu0 0.0
      %1236 = vmatpush2.msra.mxu0 0.0
      %1237 = vmatprep.subr.mxu0 0.0
      %1238 = vmatpush2.msra.mxu0 0.0
      %1239 = vmatprep.subr.mxu0 0.0
      %1240 = vmatpush2.msra.mxu0 0.0
      %1241 = vmatprep.subr.mxu0 0.0
      %1242 = vmatpush2.msra.mxu0 0.0
      %1243 = vmatprep.subr.mxu0 0.0
      %1244 = vmatpush2.msra.mxu0 0.0
      %1245 = vmatprep.subr.mxu0 0.0
      %1246 = vmatpush2.msra.mxu0 0.0
      %1247 = vmatprep.subr.mxu0 0.0
      %1248 = vmatpush2.msra.mxu0 0.0
      %1249 = vmatprep.subr.mxu0 0.0
      %1250 = vmatpush2.msra.mxu0 0.0
      %1251 = vmatprep.subr.mxu0 0.0
      %1252 = vmatpush2.msra.mxu0 0.0
      %1253 = vmatprep.subr.mxu0 0.0
      %1254 = vmatpush2.msra.mxu0 0.0
      %1255 = vmatprep.subr.mxu0 0.0
      %1256 = vmatpush2.msra.mxu0 0.0
      %1257 = vmatprep.subr.mxu0 0.0
      %1258 = vmatpush2.msra.mxu0 0.0
      %1259 = vmatprep.subr.mxu0 0.0
      %1260 = vmatpush2.msra.mxu0 0.0
      %1261 = vmatprep.subr.mxu0 0.0
      %1262 = vmatpush2.msra.mxu0 0.0
      %1263 = vmatprep.subr.mxu0 0.0
      %1264 = vmatpush2.msra.mxu0 0.0
      %1265 = vmatprep.subr.mxu0 0.0
      %1266 = vmatpush2.msra.mxu0 0.0
      %1267 = vmatprep.mubr.f32.mxu0 0.0
      %1268 = vmatmul.mubr.f32.gmra.mxu0 %v1174
      %v1269 = vpop.f32.mrf.mxu0
      %v1270 = vadd.f32 0.0, %v1269
      %v1271 = vpop.f32.mrf.mxu0
      %1272 = vmatprep.mubr.f32.mxu0 0.0
      %1273 = vmatmul.mubr.f32.gmra.mxu0 %v1177
      %v1274 = vpop.f32.mrf.mxu0
      %v1275 = vadd.f32 0.0, %v1274
      %v1276 = vpop.f32.mrf.mxu0
      %1277 = vmatprep.mubr.f32.mxu0 0.0
      %1278 = vmatmul.mubr.f32.gmra.mxu0 %v1180
      %v1279 = vpop.f32.mrf.mxu0
      %v1280 = vadd.f32 0.0, %v1279
      %v1281 = vpop.f32.mrf.mxu0
      %1282 = vmatprep.mubr.f32.mxu0 0.0
      %1283 = vmatmul.mubr.f32.gmra.mxu0 %v1183
      %v1284 = vpop.f32.mrf.mxu0
      %v1285 = vadd.f32 0.0, %v1284
      %v1286 = vpop.f32.mrf.mxu0
      %1287 = vmatprep.mubr.f32.mxu0 0.0
      %1288 = vmatmul.mubr.f32.gmra.mxu0 %v1186
      %v1289 = vpop.f32.mrf.mxu0
      %v1290 = vadd.f32 0.0, %v1289
      %v1291 = vpop.f32.mrf.mxu0
      %1292 = vmatprep.mubr.f32.mxu0 0.0
      %1293 = vmatmul.mubr.f32.gmra.mxu0 %v1189
      %v1294 = vpop.f32.mrf.mxu0
      %v1295 = vadd.f32 0.0, %v1294
      %v1296 = vpop.f32.mrf.mxu0
      %1297 = vmatprep.mubr.f32.mxu0 0.0
      %1298 = vmatmul.mubr.f32.gmra.mxu0 %v1192
      %v1299 = vpop.f32.mrf.mxu0
      %v1300 = vadd.f32 0.0, %v1299
      %v1301 = vpop.f32.mrf.mxu0
      %1302 = vmatprep.mubr.f32.mxu0 0.0
      %1303 = vmatmul.mubr.f32.gmra.mxu0 %v1195
      %v1304 = vpop.f32.mrf.mxu0
      %v1305 = vadd.f32 0.0, %v1304
      %v1306 = vpop.f32.mrf.mxu0
      %1307 = vmatprep.mubr.f32.mxu0 0.0
      %1308 = vmatmul.mubr.f32.gmra.mxu0 %v1198
      %v1309 = vpop.f32.mrf.mxu0
      %v1310 = vadd.f32 0.0, %v1309
      %v1311 = vpop.f32.mrf.mxu0
      %1312 = vdwg.mxu0
      %1313 = vrot.lane.b32.xlu0 %v854, 120
      %v1314 = vpop.permute.xlu0 %1313
      %1315 = vrot.lane.b32.xlu0 %v855, 120
      %v1316 = vpop.permute.xlu0 %1315
      %1317 = vrot.lane.b32.xlu0 %v856, 120
      %v1318 = vpop.permute.xlu0 %1317
      %1319 = vrot.lane.b32.xlu0 %v857, 120
      %v1320 = vpop.permute.xlu0 %1319
      %1321 = vrot.lane.b32.xlu0 %v858, 120
      %v1322 = vpop.permute.xlu0 %1321
      %1323 = vrot.lane.b32.xlu0 %v859, 120
      %v1324 = vpop.permute.xlu0 %1323
      %1325 = vrot.lane.b32.xlu0 %v860, 120
      %v1326 = vpop.permute.xlu0 %1325
      %1327 = vrot.lane.b32.xlu0 %v861, 120
      %v1328 = vpop.permute.xlu0 %1327
      %1329 = vrot.lane.b32.xlu0 %v862, 120
      %v1330 = vpop.permute.xlu0 %1329
      %1331 = vrot.lane.b32.xlu0 %v811, 88
      %v1332 = vpop.permute.xlu0 %1331
      %1333 = vrot.lane.b32.xlu0 %v816, 88
      %v1334 = vpop.permute.xlu0 %1333
      %1335 = vrot.lane.b32.xlu0 %v821, 88
      %v1336 = vpop.permute.xlu0 %1335
      %1337 = vrot.lane.b32.xlu0 %v826, 88
      %v1338 = vpop.permute.xlu0 %1337
      %1339 = vrot.lane.b32.xlu0 %v831, 88
      %v1340 = vpop.permute.xlu0 %1339
      %1341 = vrot.lane.b32.xlu0 %v836, 88
      %v1342 = vpop.permute.xlu0 %1341
      %1343 = vrot.lane.b32.xlu0 %v841, 88
      %v1344 = vpop.permute.xlu0 %1343
      %1345 = vrot.lane.b32.xlu0 %v846, 88
      %v1346 = vpop.permute.xlu0 %1345
      %1347 = vrot.lane.b32.xlu0 %v851, 88
      %v1348 = vpop.permute.xlu0 %1347
      %v1349 = vsel %vm890, %v1314, 0
      %v1351 = vsel %vm890, %v1316, 0
      %v1353 = vsel %vm890, %v1318, 0
      %v1355 = vsel %vm890, %v1320, 0
      %v1357 = vsel %vm890, %v1322, 0
      %v1359 = vsel %vm890, %v1324, 0
      %v1361 = vsel %vm890, %v1326, 0
      %v1363 = vsel %vm890, %v1328, 0
      %v1365 = vsel %vm890, %v1330, 0
      %v1367 = vsel %vm890, %v1332, 0
      %v1369 = vsel %vm890, %v1334, 0
      %v1371 = vsel %vm890, %v1336, 0
      %v1373 = vsel %vm890, %v1338, 0
      %v1375 = vsel %vm890, %v1340, 0
      %v1377 = vsel %vm890, %v1342, 0
      %v1379 = vsel %vm890, %v1344, 0
      %v1381 = vsel %vm890, %v1346, 0
      %v1383 = vsel %vm890, %v1348, 0
      %1385 = vmatprep.subr.mxu0 0.0
      %1386 = vmatpush1.xpose.msra.mxu0 0.0
      %1387 = vmatprep.subr.mxu0 0.0
      %1388 = vmatpush1.xpose.msra.mxu0 0.0
      %1389 = vmatprep.subr.mxu0 0.0
      %1390 = vmatpush1.xpose.msra.mxu0 0.0
      %1391 = vmatprep.subr.mxu0 0.0
      %1392 = vmatpush1.xpose.msra.mxu0 0.0
      %1393 = vmatprep.subr.mxu0 0.0
      %1394 = vmatpush1.xpose.msra.mxu0 0.0
      %1395 = vmatprep.subr.mxu0 0.0
      %1396 = vmatpush1.xpose.msra.mxu0 0.0
      %1397 = vmatprep.subr.mxu0 0.0
      %1398 = vmatpush1.xpose.msra.mxu0 0.0
      %1399 = vmatprep.subr.mxu0 0.0
      %1400 = vmatpush1.xpose.msra.mxu0 %v1383
      %1401 = vmatprep.subr.mxu0 0.0
      %1402 = vmatpush1.xpose.msra.mxu0 %v1381
      %1403 = vmatprep.subr.mxu0 0.0
      %1404 = vmatpush1.xpose.msra.mxu0 %v1379
      %1405 = vmatprep.subr.mxu0 0.0
      %1406 = vmatpush1.xpose.msra.mxu0 %v1377
      %1407 = vmatprep.subr.mxu0 0.0
      %1408 = vmatpush1.xpose.msra.mxu0 %v1375
      %1409 = vmatprep.subr.mxu0 0.0
      %1410 = vmatpush1.xpose.msra.mxu0 %v1373
      %1411 = vmatprep.subr.mxu0 0.0
      %1412 = vmatpush1.xpose.msra.mxu0 %v1371
      %1413 = vmatprep.subr.mxu0 0.0
      %1414 = vmatpush1.xpose.msra.mxu0 %v1369
      %1415 = vmatprep.subr.mxu0 0.0
      %1416 = vmatpush1.xpose.msra.mxu0 %v1367
      %1417 = vmatprep.subr.mxu0 0.0
      %1418 = vmatpush2.xpose.msra.mxu0 0.0
      %1419 = vmatprep.subr.mxu0 0.0
      %1420 = vmatpush2.xpose.msra.mxu0 0.0
      %1421 = vmatprep.subr.mxu0 0.0
      %1422 = vmatpush2.xpose.msra.mxu0 0.0
      %1423 = vmatprep.subr.mxu0 0.0
      %1424 = vmatpush2.xpose.msra.mxu0 0.0
      %1425 = vmatprep.subr.mxu0 0.0
      %1426 = vmatpush2.xpose.msra.mxu0 0.0
      %1427 = vmatprep.subr.mxu0 0.0
      %1428 = vmatpush2.xpose.msra.mxu0 0.0
      %1429 = vmatprep.subr.mxu0 0.0
      %1430 = vmatpush2.xpose.msra.mxu0 0.0
      %1431 = vmatprep.subr.mxu0 0.0
      %1432 = vmatpush2.xpose.msra.mxu0 0.0
      %1433 = vmatprep.subr.mxu0 0.0
      %1434 = vmatpush2.xpose.msra.mxu0 0.0
      %1435 = vmatprep.subr.mxu0 0.0
      %1436 = vmatpush2.xpose.msra.mxu0 0.0
      %1437 = vmatprep.subr.mxu0 0.0
      %1438 = vmatpush2.xpose.msra.mxu0 0.0
      %1439 = vmatprep.subr.mxu0 0.0
      %1440 = vmatpush2.xpose.msra.mxu0 0.0
      %1441 = vmatprep.subr.mxu0 0.0
      %1442 = vmatpush2.xpose.msra.mxu0 0.0
      %1443 = vmatprep.subr.mxu0 0.0
      %1444 = vmatpush2.xpose.msra.mxu0 0.0
      %1445 = vmatprep.subr.mxu0 0.0
      %1446 = vmatpush2.xpose.msra.mxu0 0.0
      %1447 = vmatprep.subr.mxu0 0.0
      %1448 = vmatpush2.xpose.msra.mxu0 0.0
      %1449 = vmatprep.mubr.f32.mxu0 0.0
      %1450 = vmatmul.mubr.f32.gmra.mxu0 %v1349
      %v1451 = vpop.f32.mrf.mxu0
      %v1452 = vadd.f32 0.0, %v1451
      %v1453 = vpop.f32.mrf.mxu0
      %1454 = vmatprep.mubr.f32.mxu0 0.0
      %1455 = vmatmul.mubr.f32.gmra.mxu0 %v1351
      %v1456 = vpop.f32.mrf.mxu0
      %v1457 = vadd.f32 0.0, %v1456
      %v1458 = vpop.f32.mrf.mxu0
      %1459 = vmatprep.mubr.f32.mxu0 0.0
      %1460 = vmatmul.mubr.f32.gmra.mxu0 %v1353
      %v1461 = vpop.f32.mrf.mxu0
      %v1462 = vadd.f32 0.0, %v1461
      %v1463 = vpop.f32.mrf.mxu0
      %1464 = vmatprep.mubr.f32.mxu0 0.0
      %1465 = vmatmul.mubr.f32.gmra.mxu0 %v1355
      %v1466 = vpop.f32.mrf.mxu0
      %v1467 = vadd.f32 0.0, %v1466
      %v1468 = vpop.f32.mrf.mxu0
      %1469 = vmatprep.mubr.f32.mxu0 0.0
      %1470 = vmatmul.mubr.f32.gmra.mxu0 %v1357
      %v1471 = vpop.f32.mrf.mxu0
      %v1472 = vadd.f32 0.0, %v1471
      %v1473 = vpop.f32.mrf.mxu0
      %1474 = vmatprep.mubr.f32.mxu0 0.0
      %1475 = vmatmul.mubr.f32.gmra.mxu0 %v1359
      %v1476 = vpop.f32.mrf.mxu0
      %v1477 = vadd.f32 0.0, %v1476
      %v1478 = vpop.f32.mrf.mxu0
      %1479 = vmatprep.mubr.f32.mxu0 0.0
      %1480 = vmatmul.mubr.f32.gmra.mxu0 %v1361
      %v1481 = vpop.f32.mrf.mxu0
      %v1482 = vadd.f32 0.0, %v1481
      %v1483 = vpop.f32.mrf.mxu0
      %1484 = vmatprep.mubr.f32.mxu0 0.0
      %1485 = vmatmul.mubr.f32.gmra.mxu0 %v1363
      %v1486 = vpop.f32.mrf.mxu0
      %v1487 = vadd.f32 0.0, %v1486
      %v1488 = vpop.f32.mrf.mxu0
      %1489 = vmatprep.mubr.f32.mxu0 0.0
      %1490 = vmatmul.mubr.f32.gmra.mxu0 %v1365
      %v1491 = vpop.f32.mrf.mxu0
      %v1492 = vadd.f32 0.0, %v1491
      %v1493 = vpop.f32.mrf.mxu0
      %1494 = vdwg.mxu0
      %v1495 = vsel %vm1046, %v1452, -inf
      %1496 = vmax.xlane.f32.xlu0 %v1495
      %v1497 = vpop.xlane.xlu0 %1496
      %v1498 = vsel %vm1046, %v1457, -inf
      %1499 = vmax.xlane.f32.xlu0 %v1498
      %v1500 = vpop.xlane.xlu0 %1499
      %v1501 = vsel %vm1046, %v1462, -inf
      %1502 = vmax.xlane.f32.xlu0 %v1501
      %v1503 = vpop.xlane.xlu0 %1502
      %v1504 = vsel %vm1046, %v1467, -inf
      %1505 = vmax.xlane.f32.xlu0 %v1504
      %v1506 = vpop.xlane.xlu0 %1505
      %v1507 = vsel %vm1046, %v1472, -inf
      %1508 = vmax.xlane.f32.xlu0 %v1507
      %v1509 = vpop.xlane.xlu0 %1508
      %v1510 = vsel %vm1046, %v1477, -inf
      %1511 = vmax.xlane.f32.xlu0 %v1510
      %v1512 = vpop.xlane.xlu0 %1511
      %v1513 = vsel %vm1046, %v1482, -inf
      %1514 = vmax.xlane.f32.xlu0 %v1513
      %v1515 = vpop.xlane.xlu0 %1514
      %v1516 = vsel %vm1046, %v1487, -inf
      %1517 = vmax.xlane.f32.xlu0 %v1516
      %v1518 = vpop.xlane.xlu0 %1517
      %v1519 = vsel %vm1071, %v1492, -inf
      %1520 = vmax.xlane.f32.xlu0 %v1519
      %v1521 = vpop.xlane.xlu0 %1520
      %v1522 = vsub.f32 %v1452, %v1497
      %v1523 = vsub.f32 %v1457, %v1500
      %v1524 = vsub.f32 %v1462, %v1503
      %v1525 = vsub.f32 %v1467, %v1506
      %v1526 = vsub.f32 %v1472, %v1509
      %v1527 = vsub.f32 %v1477, %v1512
      %v1528 = vsub.f32 %v1482, %v1515
      %v1529 = vsub.f32 %v1487, %v1518
      %v1530 = vsub.f32 %v1492, %v1521
      %v1531 = vmul.f32 %v1522, 1.442695
      %v1532 = vpow.pop %v1531
      %v1533 = vmul.f32 %v1523, 1.442695
      %v1534 = vpow.pop %v1533
      %v1535 = vmul.f32 %v1524, 1.442695
      %v1536 = vpow.pop %v1535
      %v1537 = vmul.f32 %v1525, 1.442695
      %v1538 = vpow.pop %v1537
      %v1539 = vmul.f32 %v1526, 1.442695
      %v1540 = vpow.pop %v1539
      %v1541 = vmul.f32 %v1527, 1.442695
      %v1542 = vpow.pop %v1541
      %v1543 = vmul.f32 %v1528, 1.442695
      %v1544 = vpow.pop %v1543
      %v1545 = vmul.f32 %v1529, 1.442695
      %v1546 = vpow.pop %v1545
      %v1547 = vmul.f32 %v1530, 1.442695
      %v1548 = vpow.pop %v1547
      %v1549 = vsel %vm1046, %v1532, 0.0
      %1550 = vadd.xlane.f32.xlu0 %v1549
      %v1551 = vpop.xlane.xlu0 %1550
      %v1552 = vsel %vm1046, %v1534, 0.0
      %1553 = vadd.xlane.f32.xlu0 %v1552
      %v1554 = vpop.xlane.xlu0 %1553
      %v1555 = vsel %vm1046, %v1536, 0.0
      %1556 = vadd.xlane.f32.xlu0 %v1555
      %v1557 = vpop.xlane.xlu0 %1556
      %v1558 = vsel %vm1046, %v1538, 0.0
      %1559 = vadd.xlane.f32.xlu0 %v1558
      %v1560 = vpop.xlane.xlu0 %1559
      %v1561 = vsel %vm1046, %v1540, 0.0
      %1562 = vadd.xlane.f32.xlu0 %v1561
      %v1563 = vpop.xlane.xlu0 %1562
      %v1564 = vsel %vm1046, %v1542, 0.0
      %1565 = vadd.xlane.f32.xlu0 %v1564
      %v1566 = vpop.xlane.xlu0 %1565
      %v1567 = vsel %vm1046, %v1544, 0.0
      %1568 = vadd.xlane.f32.xlu0 %v1567
      %v1569 = vpop.xlane.xlu0 %1568
      %v1570 = vsel %vm1046, %v1546, 0.0
      %1571 = vadd.xlane.f32.xlu0 %v1570
      %v1572 = vpop.xlane.xlu0 %1571
      %v1573 = vsel %vm1071, %v1548, 0.0
      %1574 = vadd.xlane.f32.xlu0 %v1573
      %v1575 = vpop.xlane.xlu0 %1574
      %v1576 = vrcp.pop %v1551
      %v1577 = vmul.f32 %v1532, %v1576
      %v1578 = vrcp.pop %v1554
      %v1579 = vmul.f32 %v1534, %v1578
      %v1580 = vrcp.pop %v1557
      %v1581 = vmul.f32 %v1536, %v1580
      %v1582 = vrcp.pop %v1560
      %v1583 = vmul.f32 %v1538, %v1582
      %v1584 = vrcp.pop %v1563
      %v1585 = vmul.f32 %v1540, %v1584
      %v1586 = vrcp.pop %v1566
      %v1587 = vmul.f32 %v1542, %v1586
      %v1588 = vrcp.pop %v1569
      %v1589 = vmul.f32 %v1544, %v1588
      %v1590 = vrcp.pop %v1572
      %v1591 = vmul.f32 %v1546, %v1590
      %v1592 = vrcp.pop %v1575
      %v1593 = vmul.f32 %v1548, %v1592
      %1594 = vrot.lane.b32.xlu0 %v811, 56
      %v1595 = vpop.permute.xlu0 %1594
      %1596 = vrot.lane.b32.xlu0 %v816, 56
      %v1597 = vpop.permute.xlu0 %1596
      %1598 = vrot.lane.b32.xlu0 %v821, 56
      %v1599 = vpop.permute.xlu0 %1598
      %1600 = vrot.lane.b32.xlu0 %v826, 56
      %v1601 = vpop.permute.xlu0 %1600
      %1602 = vrot.lane.b32.xlu0 %v831, 56
      %v1603 = vpop.permute.xlu0 %1602
      %1604 = vrot.lane.b32.xlu0 %v836, 56
      %v1605 = vpop.permute.xlu0 %1604
      %1606 = vrot.lane.b32.xlu0 %v841, 56
      %v1607 = vpop.permute.xlu0 %1606
      %1608 = vrot.lane.b32.xlu0 %v846, 56
      %v1609 = vpop.permute.xlu0 %1608
      %1610 = vrot.lane.b32.xlu0 %v851, 56
      %v1611 = vpop.permute.xlu0 %1610
      %v1621 = vsel %vm1046, %v1577, 0
      %v1624 = vsel %vm1046, %v1579, 0
      %v1627 = vsel %vm1046, %v1581, 0
      %v1630 = vsel %vm1046, %v1583, 0
      %v1633 = vsel %vm1046, %v1585, 0
      %v1636 = vsel %vm1046, %v1587, 0
      %v1639 = vsel %vm1046, %v1589, 0
      %v1642 = vsel %vm1046, %v1591, 0
      %v1645 = vsel %vm1046, %v1593, 0
      %v1647 = vsel %vm1200, %v1611, 0
      %1649 = vmatprep.subr.mxu0 0.0
      %1650 = vmatpush1.msra.mxu0 0.0
      %1651 = vmatprep.subr.mxu0 0.0
      %1652 = vmatpush1.msra.mxu0 0.0
      %1653 = vmatprep.subr.mxu0 0.0
      %1654 = vmatpush1.msra.mxu0 0.0
      %1655 = vmatprep.subr.mxu0 0.0
      %1656 = vmatpush1.msra.mxu0 0.0
      %1657 = vmatprep.subr.mxu0 0.0
      %1658 = vmatpush1.msra.mxu0 0.0
      %1659 = vmatprep.subr.mxu0 0.0
      %1660 = vmatpush1.msra.mxu0 0.0
      %1661 = vmatprep.subr.mxu0 0.0
      %1662 = vmatpush1.msra.mxu0 0.0
      %1663 = vmatprep.subr.mxu0 0.0
      %1664 = vmatpush1.msra.mxu0 %v1647
      %1665 = vmatprep.subr.mxu0 0.0
      %1666 = vmatpush1.msra.mxu0 %v1609
      %1667 = vmatprep.subr.mxu0 0.0
      %1668 = vmatpush1.msra.mxu0 %v1607
      %1669 = vmatprep.subr.mxu0 0.0
      %1670 = vmatpush1.msra.mxu0 %v1605
      %1671 = vmatprep.subr.mxu0 0.0
      %1672 = vmatpush1.msra.mxu0 %v1603
      %1673 = vmatprep.subr.mxu0 0.0
      %1674 = vmatpush1.msra.mxu0 %v1601
      %1675 = vmatprep.subr.mxu0 0.0
      %1676 = vmatpush1.msra.mxu0 %v1599
      %1677 = vmatprep.subr.mxu0 0.0
      %1678 = vmatpush1.msra.mxu0 %v1597
      %1679 = vmatprep.subr.mxu0 0.0
      %1680 = vmatpush1.msra.mxu0 %v1595
      %1681 = vmatprep.subr.mxu0 0.0
      %1682 = vmatpush2.msra.mxu0 0.0
      %1683 = vmatprep.subr.mxu0 0.0
      %1684 = vmatpush2.msra.mxu0 0.0
      %1685 = vmatprep.subr.mxu0 0.0
      %1686 = vmatpush2.msra.mxu0 0.0
      %1687 = vmatprep.subr.mxu0 0.0
      %1688 = vmatpush2.msra.mxu0 0.0
      %1689 = vmatprep.subr.mxu0 0.0
      %1690 = vmatpush2.msra.mxu0 0.0
      %1691 = vmatprep.subr.mxu0 0.0
      %1692 = vmatpush2.msra.mxu0 0.0
      %1693 = vmatprep.subr.mxu0 0.0
      %1694 = vmatpush2.msra.mxu0 0.0
      %1695 = vmatprep.subr.mxu0 0.0
      %1696 = vmatpush2.msra.mxu0 0.0
      %1697 = vmatprep.subr.mxu0 0.0
      %1698 = vmatpush2.msra.mxu0 0.0
      %1699 = vmatprep.subr.mxu0 0.0
      %1700 = vmatpush2.msra.mxu0 0.0
      %1701 = vmatprep.subr.mxu0 0.0
      %1702 = vmatpush2.msra.mxu0 0.0
      %1703 = vmatprep.subr.mxu0 0.0
      %1704 = vmatpush2.msra.mxu0 0.0
      %1705 = vmatprep.subr.mxu0 0.0
      %1706 = vmatpush2.msra.mxu0 0.0
      %1707 = vmatprep.subr.mxu0 0.0
      %1708 = vmatpush2.msra.mxu0 0.0
      %1709 = vmatprep.subr.mxu0 0.0
      %1710 = vmatpush2.msra.mxu0 0.0
      %1711 = vmatprep.subr.mxu0 0.0
      %1712 = vmatpush2.msra.mxu0 0.0
      %1713 = vmatprep.mubr.f32.mxu0 0.0
      %1714 = vmatmul.mubr.f32.gmra.mxu0 %v1621
      %v1715 = vpop.f32.mrf.mxu0
      %v1716 = vadd.f32 0.0, %v1715
      %v1717 = vpop.f32.mrf.mxu0
      %1718 = vmatprep.mubr.f32.mxu0 0.0
      %1719 = vmatmul.mubr.f32.gmra.mxu0 %v1624
      %v1720 = vpop.f32.mrf.mxu0
      %v1721 = vadd.f32 0.0, %v1720
      %v1722 = vpop.f32.mrf.mxu0
      %1723 = vmatprep.mubr.f32.mxu0 0.0
      %1724 = vmatmul.mubr.f32.gmra.mxu0 %v1627
      %v1725 = vpop.f32.mrf.mxu0
      %v1726 = vadd.f32 0.0, %v1725
      %v1727 = vpop.f32.mrf.mxu0
      %1728 = vmatprep.mubr.f32.mxu0 0.0
      %1729 = vmatmul.mubr.f32.gmra.mxu0 %v1630
      %v1730 = vpop.f32.mrf.mxu0
      %v1731 = vadd.f32 0.0, %v1730
      %v1732 = vpop.f32.mrf.mxu0
      %1733 = vmatprep.mubr.f32.mxu0 0.0
      %1734 = vmatmul.mubr.f32.gmra.mxu0 %v1633
      %v1735 = vpop.f32.mrf.mxu0
      %v1736 = vadd.f32 0.0, %v1735
      %v1737 = vpop.f32.mrf.mxu0
      %1738 = vmatprep.mubr.f32.mxu0 0.0
      %1739 = vmatmul.mubr.f32.gmra.mxu0 %v1636
      %v1740 = vpop.f32.mrf.mxu0
      %v1741 = vadd.f32 0.0, %v1740
      %v1742 = vpop.f32.mrf.mxu0
      %1743 = vmatprep.mubr.f32.mxu0 0.0
      %1744 = vmatmul.mubr.f32.gmra.mxu0 %v1639
      %v1745 = vpop.f32.mrf.mxu0
      %v1746 = vadd.f32 0.0, %v1745
      %v1747 = vpop.f32.mrf.mxu0
      %1748 = vmatprep.mubr.f32.mxu0 0.0
      %1749 = vmatmul.mubr.f32.gmra.mxu0 %v1642
      %v1750 = vpop.f32.mrf.mxu0
      %v1751 = vadd.f32 0.0, %v1750
      %v1752 = vpop.f32.mrf.mxu0
      %1753 = vmatprep.mubr.f32.mxu0 0.0
      %1754 = vmatmul.mubr.f32.gmra.mxu0 %v1645
      %v1755 = vpop.f32.mrf.mxu0
      %v1756 = vadd.f32 0.0, %v1755
      %v1757 = vpop.f32.mrf.mxu0
      %1758 = vdwg.mxu0
      %1759 = vrot.lane.b32.xlu0 %v854, 112
      %v1760 = vpop.permute.xlu0 %1759
      %1761 = vrot.lane.b32.xlu0 %v855, 112
      %v1762 = vpop.permute.xlu0 %1761
      %1763 = vrot.lane.b32.xlu0 %v856, 112
      %v1764 = vpop.permute.xlu0 %1763
      %1765 = vrot.lane.b32.xlu0 %v857, 112
      %v1766 = vpop.permute.xlu0 %1765
      %1767 = vrot.lane.b32.xlu0 %v858, 112
      %v1768 = vpop.permute.xlu0 %1767
      %1769 = vrot.lane.b32.xlu0 %v859, 112
      %v1770 = vpop.permute.xlu0 %1769
      %1771 = vrot.lane.b32.xlu0 %v860, 112
      %v1772 = vpop.permute.xlu0 %1771
      %1773 = vrot.lane.b32.xlu0 %v861, 112
      %v1774 = vpop.permute.xlu0 %1773
      %1775 = vrot.lane.b32.xlu0 %v862, 112
      %v1776 = vpop.permute.xlu0 %1775
      %1777 = vrot.lane.b32.xlu0 %v811, 80
      %v1778 = vpop.permute.xlu0 %1777
      %1779 = vrot.lane.b32.xlu0 %v816, 80
      %v1780 = vpop.permute.xlu0 %1779
      %1781 = vrot.lane.b32.xlu0 %v821, 80
      %v1782 = vpop.permute.xlu0 %1781
      %1783 = vrot.lane.b32.xlu0 %v826, 80
      %v1784 = vpop.permute.xlu0 %1783
      %1785 = vrot.lane.b32.xlu0 %v831, 80
      %v1786 = vpop.permute.xlu0 %1785
      %1787 = vrot.lane.b32.xlu0 %v836, 80
      %v1788 = vpop.permute.xlu0 %1787
      %1789 = vrot.lane.b32.xlu0 %v841, 80
      %v1790 = vpop.permute.xlu0 %1789
      %1791 = vrot.lane.b32.xlu0 %v846, 80
      %v1792 = vpop.permute.xlu0 %1791
      %1793 = vrot.lane.b32.xlu0 %v851, 80
      %v1794 = vpop.permute.xlu0 %1793
      %v1795 = vsel %vm890, %v1760, 0
      %v1797 = vsel %vm890, %v1762, 0
      %v1799 = vsel %vm890, %v1764, 0
      %v1801 = vsel %vm890, %v1766, 0
      %v1803 = vsel %vm890, %v1768, 0
      %v1805 = vsel %vm890, %v1770, 0
      %v1807 = vsel %vm890, %v1772, 0
      %v1809 = vsel %vm890, %v1774, 0
      %v1811 = vsel %vm890, %v1776, 0
      %v1813 = vsel %vm890, %v1778, 0
      %v1815 = vsel %vm890, %v1780, 0
      %v1817 = vsel %vm890, %v1782, 0
      %v1819 = vsel %vm890, %v1784, 0
      %v1821 = vsel %vm890, %v1786, 0
      %v1823 = vsel %vm890, %v1788, 0
      %v1825 = vsel %vm890, %v1790, 0
      %v1827 = vsel %vm890, %v1792, 0
      %v1829 = vsel %vm890, %v1794, 0
      %1831 = vmatprep.subr.mxu0 0.0
      %1832 = vmatpush1.xpose.msra.mxu0 0.0
      %1833 = vmatprep.subr.mxu0 0.0
      %1834 = vmatpush1.xpose.msra.mxu0 0.0
      %1835 = vmatprep.subr.mxu0 0.0
      %1836 = vmatpush1.xpose.msra.mxu0 0.0
      %1837 = vmatprep.subr.mxu0 0.0
      %1838 = vmatpush1.xpose.msra.mxu0 0.0
      %1839 = vmatprep.subr.mxu0 0.0
      %1840 = vmatpush1.xpose.msra.mxu0 0.0
      %1841 = vmatprep.subr.mxu0 0.0
      %1842 = vmatpush1.xpose.msra.mxu0 0.0
      %1843 = vmatprep.subr.mxu0 0.0
      %1844 = vmatpush1.xpose.msra.mxu0 0.0
      %1845 = vmatprep.subr.mxu0 0.0
      %1846 = vmatpush1.xpose.msra.mxu0 %v1829
      %1847 = vmatprep.subr.mxu0 0.0
      %1848 = vmatpush1.xpose.msra.mxu0 %v1827
      %1849 = vmatprep.subr.mxu0 0.0
      %1850 = vmatpush1.xpose.msra.mxu0 %v1825
      %1851 = vmatprep.subr.mxu0 0.0
      %1852 = vmatpush1.xpose.msra.mxu0 %v1823
      %1853 = vmatprep.subr.mxu0 0.0
      %1854 = vmatpush1.xpose.msra.mxu0 %v1821
      %1855 = vmatprep.subr.mxu0 0.0
      %1856 = vmatpush1.xpose.msra.mxu0 %v1819
      %1857 = vmatprep.subr.mxu0 0.0
      %1858 = vmatpush1.xpose.msra.mxu0 %v1817
      %1859 = vmatprep.subr.mxu0 0.0
      %1860 = vmatpush1.xpose.msra.mxu0 %v1815
      %1861 = vmatprep.subr.mxu0 0.0
      %1862 = vmatpush1.xpose.msra.mxu0 %v1813
      %1863 = vmatprep.subr.mxu0 0.0
      %1864 = vmatpush2.xpose.msra.mxu0 0.0
      %1865 = vmatprep.subr.mxu0 0.0
      %1866 = vmatpush2.xpose.msra.mxu0 0.0
      %1867 = vmatprep.subr.mxu0 0.0
      %1868 = vmatpush2.xpose.msra.mxu0 0.0
      %1869 = vmatprep.subr.mxu0 0.0
      %1870 = vmatpush2.xpose.msra.mxu0 0.0
      %1871 = vmatprep.subr.mxu0 0.0
      %1872 = vmatpush2.xpose.msra.mxu0 0.0
      %1873 = vmatprep.subr.mxu0 0.0
      %1874 = vmatpush2.xpose.msra.mxu0 0.0
      %1875 = vmatprep.subr.mxu0 0.0
      %1876 = vmatpush2.xpose.msra.mxu0 0.0
      %1877 = vmatprep.subr.mxu0 0.0
      %1878 = vmatpush2.xpose.msra.mxu0 0.0
      %1879 = vmatprep.subr.mxu0 0.0
      %1880 = vmatpush2.xpose.msra.mxu0 0.0
      %1881 = vmatprep.subr.mxu0 0.0
      %1882 = vmatpush2.xpose.msra.mxu0 0.0
      %1883 = vmatprep.subr.mxu0 0.0
      %1884 = vmatpush2.xpose.msra.mxu0 0.0
      %1885 = vmatprep.subr.mxu0 0.0
      %1886 = vmatpush2.xpose.msra.mxu0 0.0
      %1887 = vmatprep.subr.mxu0 0.0
      %1888 = vmatpush2.xpose.msra.mxu0 0.0
      %1889 = vmatprep.subr.mxu0 0.0
      %1890 = vmatpush2.xpose.msra.mxu0 0.0
      %1891 = vmatprep.subr.mxu0 0.0
      %1892 = vmatpush2.xpose.msra.mxu0 0.0
      %1893 = vmatprep.subr.mxu0 0.0
      %1894 = vmatpush2.xpose.msra.mxu0 0.0
      %1895 = vmatprep.mubr.f32.mxu0 0.0
      %1896 = vmatmul.mubr.f32.gmra.mxu0 %v1795
      %v1897 = vpop.f32.mrf.mxu0
      %v1898 = vadd.f32 0.0, %v1897
      %v1899 = vpop.f32.mrf.mxu0
      %1900 = vmatprep.mubr.f32.mxu0 0.0
      %1901 = vmatmul.mubr.f32.gmra.mxu0 %v1797
      %v1902 = vpop.f32.mrf.mxu0
      %v1903 = vadd.f32 0.0, %v1902
      %v1904 = vpop.f32.mrf.mxu0
      %1905 = vmatprep.mubr.f32.mxu0 0.0
      %1906 = vmatmul.mubr.f32.gmra.mxu0 %v1799
      %v1907 = vpop.f32.mrf.mxu0
      %v1908 = vadd.f32 0.0, %v1907
      %v1909 = vpop.f32.mrf.mxu0
      %1910 = vmatprep.mubr.f32.mxu0 0.0
      %1911 = vmatmul.mubr.f32.gmra.mxu0 %v1801
      %v1912 = vpop.f32.mrf.mxu0
      %v1913 = vadd.f32 0.0, %v1912
      %v1914 = vpop.f32.mrf.mxu0
      %1915 = vmatprep.mubr.f32.mxu0 0.0
      %1916 = vmatmul.mubr.f32.gmra.mxu0 %v1803
      %v1917 = vpop.f32.mrf.mxu0
      %v1918 = vadd.f32 0.0, %v1917
      %v1919 = vpop.f32.mrf.mxu0
      %1920 = vmatprep.mubr.f32.mxu0 0.0
      %1921 = vmatmul.mubr.f32.gmra.mxu0 %v1805
      %v1922 = vpop.f32.mrf.mxu0
      %v1923 = vadd.f32 0.0, %v1922
      %v1924 = vpop.f32.mrf.mxu0
      %1925 = vmatprep.mubr.f32.mxu0 0.0
      %1926 = vmatmul.mubr.f32.gmra.mxu0 %v1807
      %v1927 = vpop.f32.mrf.mxu0
      %v1928 = vadd.f32 0.0, %v1927
      %v1929 = vpop.f32.mrf.mxu0
      %1930 = vmatprep.mubr.f32.mxu0 0.0
      %1931 = vmatmul.mubr.f32.gmra.mxu0 %v1809
      %v1932 = vpop.f32.mrf.mxu0
      %v1933 = vadd.f32 0.0, %v1932
      %v1934 = vpop.f32.mrf.mxu0
      %1935 = vmatprep.mubr.f32.mxu0 0.0
      %1936 = vmatmul.mubr.f32.gmra.mxu0 %v1811
      %v1937 = vpop.f32.mrf.mxu0
      %v1938 = vadd.f32 0.0, %v1937
      %v1939 = vpop.f32.mrf.mxu0
      %1940 = vdwg.mxu0
      %v1941 = vsel %vm1046, %v1898, -inf
      %1942 = vmax.xlane.f32.xlu0 %v1941
      %v1943 = vpop.xlane.xlu0 %1942
      %v1944 = vsel %vm1046, %v1903, -inf
      %1945 = vmax.xlane.f32.xlu0 %v1944
      %v1946 = vpop.xlane.xlu0 %1945
      %v1947 = vsel %vm1046, %v1908, -inf
      %1948 = vmax.xlane.f32.xlu0 %v1947
      %v1949 = vpop.xlane.xlu0 %1948
      %v1950 = vsel %vm1046, %v1913, -inf
      %1951 = vmax.xlane.f32.xlu0 %v1950
      %v1952 = vpop.xlane.xlu0 %1951
      %v1953 = vsel %vm1046, %v1918, -inf
      %1954 = vmax.xlane.f32.xlu0 %v1953
      %v1955 = vpop.xlane.xlu0 %1954
      %v1956 = vsel %vm1046, %v1923, -inf
      %1957 = vmax.xlane.f32.xlu0 %v1956
      %v1958 = vpop.xlane.xlu0 %1957
      %v1959 = vsel %vm1046, %v1928, -inf
      %1960 = vmax.xlane.f32.xlu0 %v1959
      %v1961 = vpop.xlane.xlu0 %1960
      %v1962 = vsel %vm1046, %v1933, -inf
      %1963 = vmax.xlane.f32.xlu0 %v1962
      %v1964 = vpop.xlane.xlu0 %1963
      %v1965 = vsel %vm1071, %v1938, -inf
      %1966 = vmax.xlane.f32.xlu0 %v1965
      %v1967 = vpop.xlane.xlu0 %1966
      %v1968 = vsub.f32 %v1898, %v1943
      %v1969 = vsub.f32 %v1903, %v1946
      %v1970 = vsub.f32 %v1908, %v1949
      %v1971 = vsub.f32 %v1913, %v1952
      %v1972 = vsub.f32 %v1918, %v1955
      %v1973 = vsub.f32 %v1923, %v1958
      %v1974 = vsub.f32 %v1928, %v1961
      %v1975 = vsub.f32 %v1933, %v1964
      %v1976 = vsub.f32 %v1938, %v1967
      %v1977 = vmul.f32 %v1968, 1.442695
      %v1978 = vpow.pop %v1977
      %v1979 = vmul.f32 %v1969, 1.442695
      %v1980 = vpow.pop %v1979
      %v1981 = vmul.f32 %v1970, 1.442695
      %v1982 = vpow.pop %v1981
      %v1983 = vmul.f32 %v1971, 1.442695
      %v1984 = vpow.pop %v1983
      %v1985 = vmul.f32 %v1972, 1.442695
      %v1986 = vpow.pop %v1985
      %v1987 = vmul.f32 %v1973, 1.442695
      %v1988 = vpow.pop %v1987
      %v1989 = vmul.f32 %v1974, 1.442695
      %v1990 = vpow.pop %v1989
      %v1991 = vmul.f32 %v1975, 1.442695
      %v1992 = vpow.pop %v1991
      %v1993 = vmul.f32 %v1976, 1.442695
      %v1994 = vpow.pop %v1993
      %v1995 = vsel %vm1046, %v1978, 0.0
      %1996 = vadd.xlane.f32.xlu0 %v1995
      %v1997 = vpop.xlane.xlu0 %1996
      %v1998 = vsel %vm1046, %v1980, 0.0
      %1999 = vadd.xlane.f32.xlu0 %v1998
      %v2000 = vpop.xlane.xlu0 %1999
      %v2001 = vsel %vm1046, %v1982, 0.0
      %2002 = vadd.xlane.f32.xlu0 %v2001
      %v2003 = vpop.xlane.xlu0 %2002
      %v2004 = vsel %vm1046, %v1984, 0.0
      %2005 = vadd.xlane.f32.xlu0 %v2004
      %v2006 = vpop.xlane.xlu0 %2005
      %v2007 = vsel %vm1046, %v1986, 0.0
      %2008 = vadd.xlane.f32.xlu0 %v2007
      %v2009 = vpop.xlane.xlu0 %2008
      %v2010 = vsel %vm1046, %v1988, 0.0
      %2011 = vadd.xlane.f32.xlu0 %v2010
      %v2012 = vpop.xlane.xlu0 %2011
      %v2013 = vsel %vm1046, %v1990, 0.0
      %2014 = vadd.xlane.f32.xlu0 %v2013
      %v2015 = vpop.xlane.xlu0 %2014
      %v2016 = vsel %vm1046, %v1992, 0.0
      %2017 = vadd.xlane.f32.xlu0 %v2016
      %v2018 = vpop.xlane.xlu0 %2017
      %v2019 = vsel %vm1071, %v1994, 0.0
      %2020 = vadd.xlane.f32.xlu0 %v2019
      %v2021 = vpop.xlane.xlu0 %2020
      %v2022 = vrcp.pop %v1997
      %v2023 = vmul.f32 %v1978, %v2022
      %v2024 = vrcp.pop %v2000
      %v2025 = vmul.f32 %v1980, %v2024
      %v2026 = vrcp.pop %v2003
      %v2027 = vmul.f32 %v1982, %v2026
      %v2028 = vrcp.pop %v2006
      %v2029 = vmul.f32 %v1984, %v2028
      %v2030 = vrcp.pop %v2009
      %v2031 = vmul.f32 %v1986, %v2030
      %v2032 = vrcp.pop %v2012
      %v2033 = vmul.f32 %v1988, %v2032
      %v2034 = vrcp.pop %v2015
      %v2035 = vmul.f32 %v1990, %v2034
      %v2036 = vrcp.pop %v2018
      %v2037 = vmul.f32 %v1992, %v2036
      %v2038 = vrcp.pop %v2021
      %v2039 = vmul.f32 %v1994, %v2038
      %2040 = vrot.lane.b32.xlu0 %v811, 48
      %v2041 = vpop.permute.xlu0 %2040
      %2042 = vrot.lane.b32.xlu0 %v816, 48
      %v2043 = vpop.permute.xlu0 %2042
      %2044 = vrot.lane.b32.xlu0 %v821, 48
      %v2045 = vpop.permute.xlu0 %2044
      %2046 = vrot.lane.b32.xlu0 %v826, 48
      %v2047 = vpop.permute.xlu0 %2046
      %2048 = vrot.lane.b32.xlu0 %v831, 48
      %v2049 = vpop.permute.xlu0 %2048
      %2050 = vrot.lane.b32.xlu0 %v836, 48
      %v2051 = vpop.permute.xlu0 %2050
      %2052 = vrot.lane.b32.xlu0 %v841, 48
      %v2053 = vpop.permute.xlu0 %2052
      %2054 = vrot.lane.b32.xlu0 %v846, 48
      %v2055 = vpop.permute.xlu0 %2054
      %2056 = vrot.lane.b32.xlu0 %v851, 48
      %v2057 = vpop.permute.xlu0 %2056
      %v2067 = vsel %vm1046, %v2023, 0
      %v2070 = vsel %vm1046, %v2025, 0
      %v2073 = vsel %vm1046, %v2027, 0
      %v2076 = vsel %vm1046, %v2029, 0
      %v2079 = vsel %vm1046, %v2031, 0
      %v2082 = vsel %vm1046, %v2033, 0
      %v2085 = vsel %vm1046, %v2035, 0
      %v2088 = vsel %vm1046, %v2037, 0
      %v2091 = vsel %vm1046, %v2039, 0
      %v2093 = vsel %vm1200, %v2057, 0
      %2095 = vmatprep.subr.mxu0 0.0
      %2096 = vmatpush1.msra.mxu0 0.0
      %2097 = vmatprep.subr.mxu0 0.0
      %2098 = vmatpush1.msra.mxu0 0.0
      %2099 = vmatprep.subr.mxu0 0.0
      %2100 = vmatpush1.msra.mxu0 0.0
      %2101 = vmatprep.subr.mxu0 0.0
      %2102 = vmatpush1.msra.mxu0 0.0
      %2103 = vmatprep.subr.mxu0 0.0
      %2104 = vmatpush1.msra.mxu0 0.0
      %2105 = vmatprep.subr.mxu0 0.0
      %2106 = vmatpush1.msra.mxu0 0.0
      %2107 = vmatprep.subr.mxu0 0.0
      %2108 = vmatpush1.msra.mxu0 0.0
      %2109 = vmatprep.subr.mxu0 0.0
      %2110 = vmatpush1.msra.mxu0 %v2093
      %2111 = vmatprep.subr.mxu0 0.0
      %2112 = vmatpush1.msra.mxu0 %v2055
      %2113 = vmatprep.subr.mxu0 0.0
      %2114 = vmatpush1.msra.mxu0 %v2053
      %2115 = vmatprep.subr.mxu0 0.0
      %2116 = vmatpush1.msra.mxu0 %v2051
      %2117 = vmatprep.subr.mxu0 0.0
      %2118 = vmatpush1.msra.mxu0 %v2049
      %2119 = vmatprep.subr.mxu0 0.0
      %2120 = vmatpush1.msra.mxu0 %v2047
      %2121 = vmatprep.subr.mxu0 0.0
      %2122 = vmatpush1.msra.mxu0 %v2045
      %2123 = vmatprep.subr.mxu0 0.0
      %2124 = vmatpush1.msra.mxu0 %v2043
      %2125 = vmatprep.subr.mxu0 0.0
      %2126 = vmatpush1.msra.mxu0 %v2041
      %2127 = vmatprep.subr.mxu0 0.0
      %2128 = vmatpush2.msra.mxu0 0.0
      %2129 = vmatprep.subr.mxu0 0.0
      %2130 = vmatpush2.msra.mxu0 0.0
      %2131 = vmatprep.subr.mxu0 0.0
      %2132 = vmatpush2.msra.mxu0 0.0
      %2133 = vmatprep.subr.mxu0 0.0
      %2134 = vmatpush2.msra.mxu0 0.0
      %2135 = vmatprep.subr.mxu0 0.0
      %2136 = vmatpush2.msra.mxu0 0.0
      %2137 = vmatprep.subr.mxu0 0.0
      %2138 = vmatpush2.msra.mxu0 0.0
      %2139 = vmatprep.subr.mxu0 0.0
      %2140 = vmatpush2.msra.mxu0 0.0
      %2141 = vmatprep.subr.mxu0 0.0
      %2142 = vmatpush2.msra.mxu0 0.0
      %2143 = vmatprep.subr.mxu0 0.0
      %2144 = vmatpush2.msra.mxu0 0.0
      %2145 = vmatprep.subr.mxu0 0.0
      %2146 = vmatpush2.msra.mxu0 0.0
      %2147 = vmatprep.subr.mxu0 0.0
      %2148 = vmatpush2.msra.mxu0 0.0
      %2149 = vmatprep.subr.mxu0 0.0
      %2150 = vmatpush2.msra.mxu0 0.0
      %2151 = vmatprep.subr.mxu0 0.0
      %2152 = vmatpush2.msra.mxu0 0.0
      %2153 = vmatprep.subr.mxu0 0.0
      %2154 = vmatpush2.msra.mxu0 0.0
      %2155 = vmatprep.subr.mxu0 0.0
      %2156 = vmatpush2.msra.mxu0 0.0
      %2157 = vmatprep.subr.mxu0 0.0
      %2158 = vmatpush2.msra.mxu0 0.0
      %2159 = vmatprep.mubr.f32.mxu0 0.0
      %2160 = vmatmul.mubr.f32.gmra.mxu0 %v2067
      %v2161 = vpop.f32.mrf.mxu0
      %v2162 = vadd.f32 0.0, %v2161
      %v2163 = vpop.f32.mrf.mxu0
      %2164 = vmatprep.mubr.f32.mxu0 0.0
      %2165 = vmatmul.mubr.f32.gmra.mxu0 %v2070
      %v2166 = vpop.f32.mrf.mxu0
      %v2167 = vadd.f32 0.0, %v2166
      %v2168 = vpop.f32.mrf.mxu0
      %2169 = vmatprep.mubr.f32.mxu0 0.0
      %2170 = vmatmul.mubr.f32.gmra.mxu0 %v2073
      %v2171 = vpop.f32.mrf.mxu0
      %v2172 = vadd.f32 0.0, %v2171
      %v2173 = vpop.f32.mrf.mxu0
      %2174 = vmatprep.mubr.f32.mxu0 0.0
      %2175 = vmatmul.mubr.f32.gmra.mxu0 %v2076
      %v2176 = vpop.f32.mrf.mxu0
      %v2177 = vadd.f32 0.0, %v2176
      %v2178 = vpop.f32.mrf.mxu0
      %2179 = vmatprep.mubr.f32.mxu0 0.0
      %2180 = vmatmul.mubr.f32.gmra.mxu0 %v2079
      %v2181 = vpop.f32.mrf.mxu0
      %v2182 = vadd.f32 0.0, %v2181
      %v2183 = vpop.f32.mrf.mxu0
      %2184 = vmatprep.mubr.f32.mxu0 0.0
      %2185 = vmatmul.mubr.f32.gmra.mxu0 %v2082
      %v2186 = vpop.f32.mrf.mxu0
      %v2187 = vadd.f32 0.0, %v2186
      %v2188 = vpop.f32.mrf.mxu0
      %2189 = vmatprep.mubr.f32.mxu0 0.0
      %2190 = vmatmul.mubr.f32.gmra.mxu0 %v2085
      %v2191 = vpop.f32.mrf.mxu0
      %v2192 = vadd.f32 0.0, %v2191
      %v2193 = vpop.f32.mrf.mxu0
      %2194 = vmatprep.mubr.f32.mxu0 0.0
      %2195 = vmatmul.mubr.f32.gmra.mxu0 %v2088
      %v2196 = vpop.f32.mrf.mxu0
      %v2197 = vadd.f32 0.0, %v2196
      %v2198 = vpop.f32.mrf.mxu0
      %2199 = vmatprep.mubr.f32.mxu0 0.0
      %2200 = vmatmul.mubr.f32.gmra.mxu0 %v2091
      %v2201 = vpop.f32.mrf.mxu0
      %v2202 = vadd.f32 0.0, %v2201
      %v2203 = vpop.f32.mrf.mxu0
      %2204 = vdwg.mxu0
      %2205 = vrot.lane.b32.xlu0 %v854, 104
      %v2206 = vpop.permute.xlu0 %2205
      %2207 = vrot.lane.b32.xlu0 %v855, 104
      %v2208 = vpop.permute.xlu0 %2207
      %2209 = vrot.lane.b32.xlu0 %v856, 104
      %v2210 = vpop.permute.xlu0 %2209
      %2211 = vrot.lane.b32.xlu0 %v857, 104
      %v2212 = vpop.permute.xlu0 %2211
      %2213 = vrot.lane.b32.xlu0 %v858, 104
      %v2214 = vpop.permute.xlu0 %2213
      %2215 = vrot.lane.b32.xlu0 %v859, 104
      %v2216 = vpop.permute.xlu0 %2215
      %2217 = vrot.lane.b32.xlu0 %v860, 104
      %v2218 = vpop.permute.xlu0 %2217
      %2219 = vrot.lane.b32.xlu0 %v861, 104
      %v2220 = vpop.permute.xlu0 %2219
      %2221 = vrot.lane.b32.xlu0 %v862, 104
      %v2222 = vpop.permute.xlu0 %2221
      %2223 = vrot.lane.b32.xlu0 %v811, 72
      %v2224 = vpop.permute.xlu0 %2223
      %2225 = vrot.lane.b32.xlu0 %v816, 72
      %v2226 = vpop.permute.xlu0 %2225
      %2227 = vrot.lane.b32.xlu0 %v821, 72
      %v2228 = vpop.permute.xlu0 %2227
      %2229 = vrot.lane.b32.xlu0 %v826, 72
      %v2230 = vpop.permute.xlu0 %2229
      %2231 = vrot.lane.b32.xlu0 %v831, 72
      %v2232 = vpop.permute.xlu0 %2231
      %2233 = vrot.lane.b32.xlu0 %v836, 72
      %v2234 = vpop.permute.xlu0 %2233
      %2235 = vrot.lane.b32.xlu0 %v841, 72
      %v2236 = vpop.permute.xlu0 %2235
      %2237 = vrot.lane.b32.xlu0 %v846, 72
      %v2238 = vpop.permute.xlu0 %2237
      %2239 = vrot.lane.b32.xlu0 %v851, 72
      %v2240 = vpop.permute.xlu0 %2239
      %v2241 = vsel %vm890, %v2206, 0
      %v2243 = vsel %vm890, %v2208, 0
      %v2245 = vsel %vm890, %v2210, 0
      %v2247 = vsel %vm890, %v2212, 0
      %v2249 = vsel %vm890, %v2214, 0
      %v2251 = vsel %vm890, %v2216, 0
      %v2253 = vsel %vm890, %v2218, 0
      %v2255 = vsel %vm890, %v2220, 0
      %v2257 = vsel %vm890, %v2222, 0
      %v2259 = vsel %vm890, %v2224, 0
      %v2261 = vsel %vm890, %v2226, 0
      %v2263 = vsel %vm890, %v2228, 0
      %v2265 = vsel %vm890, %v2230, 0
      %v2267 = vsel %vm890, %v2232, 0
      %v2269 = vsel %vm890, %v2234, 0
      %v2271 = vsel %vm890, %v2236, 0
      %v2273 = vsel %vm890, %v2238, 0
      %v2275 = vsel %vm890, %v2240, 0
      %2277 = vmatprep.subr.mxu0 0.0
      %2278 = vmatpush1.xpose.msra.mxu0 0.0
      %2279 = vmatprep.subr.mxu0 0.0
      %2280 = vmatpush1.xpose.msra.mxu0 0.0
      %2281 = vmatprep.subr.mxu0 0.0
      %2282 = vmatpush1.xpose.msra.mxu0 0.0
      %2283 = vmatprep.subr.mxu0 0.0
      %2284 = vmatpush1.xpose.msra.mxu0 0.0
      %2285 = vmatprep.subr.mxu0 0.0
      %2286 = vmatpush1.xpose.msra.mxu0 0.0
      %2287 = vmatprep.subr.mxu0 0.0
      %2288 = vmatpush1.xpose.msra.mxu0 0.0
      %2289 = vmatprep.subr.mxu0 0.0
      %2290 = vmatpush1.xpose.msra.mxu0 0.0
      %2291 = vmatprep.subr.mxu0 0.0
      %2292 = vmatpush1.xpose.msra.mxu0 %v2275
      %2293 = vmatprep.subr.mxu0 0.0
      %2294 = vmatpush1.xpose.msra.mxu0 %v2273
      %2295 = vmatprep.subr.mxu0 0.0
      %2296 = vmatpush1.xpose.msra.mxu0 %v2271
      %2297 = vmatprep.subr.mxu0 0.0
      %2298 = vmatpush1.xpose.msra.mxu0 %v2269
      %2299 = vmatprep.subr.mxu0 0.0
      %2300 = vmatpush1.xpose.msra.mxu0 %v2267
      %2301 = vmatprep.subr.mxu0 0.0
      %2302 = vmatpush1.xpose.msra.mxu0 %v2265
      %2303 = vmatprep.subr.mxu0 0.0
      %2304 = vmatpush1.xpose.msra.mxu0 %v2263
      %2305 = vmatprep.subr.mxu0 0.0
      %2306 = vmatpush1.xpose.msra.mxu0 %v2261
      %2307 = vmatprep.subr.mxu0 0.0
      %2308 = vmatpush1.xpose.msra.mxu0 %v2259
      %2309 = vmatprep.subr.mxu0 0.0
      %2310 = vmatpush2.xpose.msra.mxu0 0.0
      %2311 = vmatprep.subr.mxu0 0.0
      %2312 = vmatpush2.xpose.msra.mxu0 0.0
      %2313 = vmatprep.subr.mxu0 0.0
      %2314 = vmatpush2.xpose.msra.mxu0 0.0
      %2315 = vmatprep.subr.mxu0 0.0
      %2316 = vmatpush2.xpose.msra.mxu0 0.0
      %2317 = vmatprep.subr.mxu0 0.0
      %2318 = vmatpush2.xpose.msra.mxu0 0.0
      %2319 = vmatprep.subr.mxu0 0.0
      %2320 = vmatpush2.xpose.msra.mxu0 0.0
      %2321 = vmatprep.subr.mxu0 0.0
      %2322 = vmatpush2.xpose.msra.mxu0 0.0
      %2323 = vmatprep.subr.mxu0 0.0
      %2324 = vmatpush2.xpose.msra.mxu0 0.0
      %2325 = vmatprep.subr.mxu0 0.0
      %2326 = vmatpush2.xpose.msra.mxu0 0.0
      %2327 = vmatprep.subr.mxu0 0.0
      %2328 = vmatpush2.xpose.msra.mxu0 0.0
      %2329 = vmatprep.subr.mxu0 0.0
      %2330 = vmatpush2.xpose.msra.mxu0 0.0
      %2331 = vmatprep.subr.mxu0 0.0
      %2332 = vmatpush2.xpose.msra.mxu0 0.0
      %2333 = vmatprep.subr.mxu0 0.0
      %2334 = vmatpush2.xpose.msra.mxu0 0.0
      %2335 = vmatprep.subr.mxu0 0.0
      %2336 = vmatpush2.xpose.msra.mxu0 0.0
      %2337 = vmatprep.subr.mxu0 0.0
      %2338 = vmatpush2.xpose.msra.mxu0 0.0
      %2339 = vmatprep.subr.mxu0 0.0
      %2340 = vmatpush2.xpose.msra.mxu0 0.0
      %2341 = vmatprep.mubr.f32.mxu0 0.0
      %2342 = vmatmul.mubr.f32.gmra.mxu0 %v2241
      %v2343 = vpop.f32.mrf.mxu0
      %v2344 = vadd.f32 0.0, %v2343
      %v2345 = vpop.f32.mrf.mxu0
      %2346 = vmatprep.mubr.f32.mxu0 0.0
      %2347 = vmatmul.mubr.f32.gmra.mxu0 %v2243
      %v2348 = vpop.f32.mrf.mxu0
      %v2349 = vadd.f32 0.0, %v2348
      %v2350 = vpop.f32.mrf.mxu0
      %2351 = vmatprep.mubr.f32.mxu0 0.0
      %2352 = vmatmul.mubr.f32.gmra.mxu0 %v2245
      %v2353 = vpop.f32.mrf.mxu0
      %v2354 = vadd.f32 0.0, %v2353
      %v2355 = vpop.f32.mrf.mxu0
      %2356 = vmatprep.mubr.f32.mxu0 0.0
      %2357 = vmatmul.mubr.f32.gmra.mxu0 %v2247
      %v2358 = vpop.f32.mrf.mxu0
      %v2359 = vadd.f32 0.0, %v2358
      %v2360 = vpop.f32.mrf.mxu0
      %2361 = vmatprep.mubr.f32.mxu0 0.0
      %2362 = vmatmul.mubr.f32.gmra.mxu0 %v2249
      %v2363 = vpop.f32.mrf.mxu0
      %v2364 = vadd.f32 0.0, %v2363
      %v2365 = vpop.f32.mrf.mxu0
      %2366 = vmatprep.mubr.f32.mxu0 0.0
      %2367 = vmatmul.mubr.f32.gmra.mxu0 %v2251
      %v2368 = vpop.f32.mrf.mxu0
      %v2369 = vadd.f32 0.0, %v2368
      %v2370 = vpop.f32.mrf.mxu0
      %2371 = vmatprep.mubr.f32.mxu0 0.0
      %2372 = vmatmul.mubr.f32.gmra.mxu0 %v2253
      %v2373 = vpop.f32.mrf.mxu0
      %v2374 = vadd.f32 0.0, %v2373
      %v2375 = vpop.f32.mrf.mxu0
      %2376 = vmatprep.mubr.f32.mxu0 0.0
      %2377 = vmatmul.mubr.f32.gmra.mxu0 %v2255
      %v2378 = vpop.f32.mrf.mxu0
      %v2379 = vadd.f32 0.0, %v2378
      %v2380 = vpop.f32.mrf.mxu0
      %2381 = vmatprep.mubr.f32.mxu0 0.0
      %2382 = vmatmul.mubr.f32.gmra.mxu0 %v2257
      %v2383 = vpop.f32.mrf.mxu0
      %v2384 = vadd.f32 0.0, %v2383
      %v2385 = vpop.f32.mrf.mxu0
      %2386 = vdwg.mxu0
      %v2387 = vsel %vm1046, %v2344, -inf
      %2388 = vmax.xlane.f32.xlu0 %v2387
      %v2389 = vpop.xlane.xlu0 %2388
      %v2390 = vsel %vm1046, %v2349, -inf
      %2391 = vmax.xlane.f32.xlu0 %v2390
      %v2392 = vpop.xlane.xlu0 %2391
      %v2393 = vsel %vm1046, %v2354, -inf
      %2394 = vmax.xlane.f32.xlu0 %v2393
      %v2395 = vpop.xlane.xlu0 %2394
      %v2396 = vsel %vm1046, %v2359, -inf
      %2397 = vmax.xlane.f32.xlu0 %v2396
      %v2398 = vpop.xlane.xlu0 %2397
      %v2399 = vsel %vm1046, %v2364, -inf
      %2400 = vmax.xlane.f32.xlu0 %v2399
      %v2401 = vpop.xlane.xlu0 %2400
      %v2402 = vsel %vm1046, %v2369, -inf
      %2403 = vmax.xlane.f32.xlu0 %v2402
      %v2404 = vpop.xlane.xlu0 %2403
      %v2405 = vsel %vm1046, %v2374, -inf
      %2406 = vmax.xlane.f32.xlu0 %v2405
      %v2407 = vpop.xlane.xlu0 %2406
      %v2408 = vsel %vm1046, %v2379, -inf
      %2409 = vmax.xlane.f32.xlu0 %v2408
      %v2410 = vpop.xlane.xlu0 %2409
      %v2411 = vsel %vm1071, %v2384, -inf
      %2412 = vmax.xlane.f32.xlu0 %v2411
      %v2413 = vpop.xlane.xlu0 %2412
      %v2414 = vsub.f32 %v2344, %v2389
      %v2415 = vsub.f32 %v2349, %v2392
      %v2416 = vsub.f32 %v2354, %v2395
      %v2417 = vsub.f32 %v2359, %v2398
      %v2418 = vsub.f32 %v2364, %v2401
      %v2419 = vsub.f32 %v2369, %v2404
      %v2420 = vsub.f32 %v2374, %v2407
      %v2421 = vsub.f32 %v2379, %v2410
      %v2422 = vsub.f32 %v2384, %v2413
      %v2423 = vmul.f32 %v2414, 1.442695
      %v2424 = vpow.pop %v2423
      %v2425 = vmul.f32 %v2415, 1.442695
      %v2426 = vpow.pop %v2425
      %v2427 = vmul.f32 %v2416, 1.442695
      %v2428 = vpow.pop %v2427
      %v2429 = vmul.f32 %v2417, 1.442695
      %v2430 = vpow.pop %v2429
      %v2431 = vmul.f32 %v2418, 1.442695
      %v2432 = vpow.pop %v2431
      %v2433 = vmul.f32 %v2419, 1.442695
      %v2434 = vpow.pop %v2433
      %v2435 = vmul.f32 %v2420, 1.442695
      %v2436 = vpow.pop %v2435
      %v2437 = vmul.f32 %v2421, 1.442695
      %v2438 = vpow.pop %v2437
      %v2439 = vmul.f32 %v2422, 1.442695
      %v2440 = vpow.pop %v2439
      %v2441 = vsel %vm1046, %v2424, 0.0
      %2442 = vadd.xlane.f32.xlu0 %v2441
      %v2443 = vpop.xlane.xlu0 %2442
      %v2444 = vsel %vm1046, %v2426, 0.0
      %2445 = vadd.xlane.f32.xlu0 %v2444
      %v2446 = vpop.xlane.xlu0 %2445
      %v2447 = vsel %vm1046, %v2428, 0.0
      %2448 = vadd.xlane.f32.xlu0 %v2447
      %v2449 = vpop.xlane.xlu0 %2448
      %v2450 = vsel %vm1046, %v2430, 0.0
      %2451 = vadd.xlane.f32.xlu0 %v2450
      %v2452 = vpop.xlane.xlu0 %2451
      %v2453 = vsel %vm1046, %v2432, 0.0
      %2454 = vadd.xlane.f32.xlu0 %v2453
      %v2455 = vpop.xlane.xlu0 %2454
      %v2456 = vsel %vm1046, %v2434, 0.0
      %2457 = vadd.xlane.f32.xlu0 %v2456
      %v2458 = vpop.xlane.xlu0 %2457
      %v2459 = vsel %vm1046, %v2436, 0.0
      %2460 = vadd.xlane.f32.xlu0 %v2459
      %v2461 = vpop.xlane.xlu0 %2460
      %v2462 = vsel %vm1046, %v2438, 0.0
      %2463 = vadd.xlane.f32.xlu0 %v2462
      %v2464 = vpop.xlane.xlu0 %2463
      %v2465 = vsel %vm1071, %v2440, 0.0
      %2466 = vadd.xlane.f32.xlu0 %v2465
      %v2467 = vpop.xlane.xlu0 %2466
      %v2468 = vrcp.pop %v2443
      %v2469 = vmul.f32 %v2424, %v2468
      %v2470 = vrcp.pop %v2446
      %v2471 = vmul.f32 %v2426, %v2470
      %v2472 = vrcp.pop %v2449
      %v2473 = vmul.f32 %v2428, %v2472
      %v2474 = vrcp.pop %v2452
      %v2475 = vmul.f32 %v2430, %v2474
      %v2476 = vrcp.pop %v2455
      %v2477 = vmul.f32 %v2432, %v2476
      %v2478 = vrcp.pop %v2458
      %v2479 = vmul.f32 %v2434, %v2478
      %v2480 = vrcp.pop %v2461
      %v2481 = vmul.f32 %v2436, %v2480
      %v2482 = vrcp.pop %v2464
      %v2483 = vmul.f32 %v2438, %v2482
      %v2484 = vrcp.pop %v2467
      %v2485 = vmul.f32 %v2440, %v2484
      %2486 = vrot.lane.b32.xlu0 %v811, 40
      %v2487 = vpop.permute.xlu0 %2486
      %2488 = vrot.lane.b32.xlu0 %v816, 40
      %v2489 = vpop.permute.xlu0 %2488
      %2490 = vrot.lane.b32.xlu0 %v821, 40
      %v2491 = vpop.permute.xlu0 %2490
      %2492 = vrot.lane.b32.xlu0 %v826, 40
      %v2493 = vpop.permute.xlu0 %2492
      %2494 = vrot.lane.b32.xlu0 %v831, 40
      %v2495 = vpop.permute.xlu0 %2494
      %2496 = vrot.lane.b32.xlu0 %v836, 40
      %v2497 = vpop.permute.xlu0 %2496
      %2498 = vrot.lane.b32.xlu0 %v841, 40
      %v2499 = vpop.permute.xlu0 %2498
      %2500 = vrot.lane.b32.xlu0 %v846, 40
      %v2501 = vpop.permute.xlu0 %2500
      %2502 = vrot.lane.b32.xlu0 %v851, 40
      %v2503 = vpop.permute.xlu0 %2502
      %v2513 = vsel %vm1046, %v2469, 0
      %v2516 = vsel %vm1046, %v2471, 0
      %v2519 = vsel %vm1046, %v2473, 0
      %v2522 = vsel %vm1046, %v2475, 0
      %v2525 = vsel %vm1046, %v2477, 0
      %v2528 = vsel %vm1046, %v2479, 0
      %v2531 = vsel %vm1046, %v2481, 0
      %v2534 = vsel %vm1046, %v2483, 0
      %v2537 = vsel %vm1046, %v2485, 0
      %v2539 = vsel %vm1200, %v2503, 0
      %2541 = vmatprep.subr.mxu0 0.0
      %2542 = vmatpush1.msra.mxu0 0.0
      %2543 = vmatprep.subr.mxu0 0.0
      %2544 = vmatpush1.msra.mxu0 0.0
      %2545 = vmatprep.subr.mxu0 0.0
      %2546 = vmatpush1.msra.mxu0 0.0
      %2547 = vmatprep.subr.mxu0 0.0
      %2548 = vmatpush1.msra.mxu0 0.0
      %2549 = vmatprep.subr.mxu0 0.0
      %2550 = vmatpush1.msra.mxu0 0.0
      %2551 = vmatprep.subr.mxu0 0.0
      %2552 = vmatpush1.msra.mxu0 0.0
      %2553 = vmatprep.subr.mxu0 0.0
      %2554 = vmatpush1.msra.mxu0 0.0
      %2555 = vmatprep.subr.mxu0 0.0
      %2556 = vmatpush1.msra.mxu0 %v2539
      %2557 = vmatprep.subr.mxu0 0.0
      %2558 = vmatpush1.msra.mxu0 %v2501
      %2559 = vmatprep.subr.mxu0 0.0
      %2560 = vmatpush1.msra.mxu0 %v2499
      %2561 = vmatprep.subr.mxu0 0.0
      %2562 = vmatpush1.msra.mxu0 %v2497
      %2563 = vmatprep.subr.mxu0 0.0
      %2564 = vmatpush1.msra.mxu0 %v2495
      %2565 = vmatprep.subr.mxu0 0.0
      %2566 = vmatpush1.msra.mxu0 %v2493
      %2567 = vmatprep.subr.mxu0 0.0
      %2568 = vmatpush1.msra.mxu0 %v2491
      %2569 = vmatprep.subr.mxu0 0.0
      %2570 = vmatpush1.msra.mxu0 %v2489
      %2571 = vmatprep.subr.mxu0 0.0
      %2572 = vmatpush1.msra.mxu0 %v2487
      %2573 = vmatprep.subr.mxu0 0.0
      %2574 = vmatpush2.msra.mxu0 0.0
      %2575 = vmatprep.subr.mxu0 0.0
      %2576 = vmatpush2.msra.mxu0 0.0
      %2577 = vmatprep.subr.mxu0 0.0
      %2578 = vmatpush2.msra.mxu0 0.0
      %2579 = vmatprep.subr.mxu0 0.0
      %2580 = vmatpush2.msra.mxu0 0.0
      %2581 = vmatprep.subr.mxu0 0.0
      %2582 = vmatpush2.msra.mxu0 0.0
      %2583 = vmatprep.subr.mxu0 0.0
      %2584 = vmatpush2.msra.mxu0 0.0
      %2585 = vmatprep.subr.mxu0 0.0
      %2586 = vmatpush2.msra.mxu0 0.0
      %2587 = vmatprep.subr.mxu0 0.0
      %2588 = vmatpush2.msra.mxu0 0.0
      %2589 = vmatprep.subr.mxu0 0.0
      %2590 = vmatpush2.msra.mxu0 0.0
      %2591 = vmatprep.subr.mxu0 0.0
      %2592 = vmatpush2.msra.mxu0 0.0
      %2593 = vmatprep.subr.mxu0 0.0
      %2594 = vmatpush2.msra.mxu0 0.0
      %2595 = vmatprep.subr.mxu0 0.0
      %2596 = vmatpush2.msra.mxu0 0.0
      %2597 = vmatprep.subr.mxu0 0.0
      %2598 = vmatpush2.msra.mxu0 0.0
      %2599 = vmatprep.subr.mxu0 0.0
      %2600 = vmatpush2.msra.mxu0 0.0
      %2601 = vmatprep.subr.mxu0 0.0
      %2602 = vmatpush2.msra.mxu0 0.0
      %2603 = vmatprep.subr.mxu0 0.0
      %2604 = vmatpush2.msra.mxu0 0.0
      %2605 = vmatprep.mubr.f32.mxu0 0.0
      %2606 = vmatmul.mubr.f32.gmra.mxu0 %v2513
      %v2607 = vpop.f32.mrf.mxu0
      %v2608 = vadd.f32 0.0, %v2607
      %v2609 = vpop.f32.mrf.mxu0
      %2610 = vmatprep.mubr.f32.mxu0 0.0
      %2611 = vmatmul.mubr.f32.gmra.mxu0 %v2516
      %v2612 = vpop.f32.mrf.mxu0
      %v2613 = vadd.f32 0.0, %v2612
      %v2614 = vpop.f32.mrf.mxu0
      %2615 = vmatprep.mubr.f32.mxu0 0.0
      %2616 = vmatmul.mubr.f32.gmra.mxu0 %v2519
      %v2617 = vpop.f32.mrf.mxu0
      %v2618 = vadd.f32 0.0, %v2617
      %v2619 = vpop.f32.mrf.mxu0
      %2620 = vmatprep.mubr.f32.mxu0 0.0
      %2621 = vmatmul.mubr.f32.gmra.mxu0 %v2522
      %v2622 = vpop.f32.mrf.mxu0
      %v2623 = vadd.f32 0.0, %v2622
      %v2624 = vpop.f32.mrf.mxu0
      %2625 = vmatprep.mubr.f32.mxu0 0.0
      %2626 = vmatmul.mubr.f32.gmra.mxu0 %v2525
      %v2627 = vpop.f32.mrf.mxu0
      %v2628 = vadd.f32 0.0, %v2627
      %v2629 = vpop.f32.mrf.mxu0
      %2630 = vmatprep.mubr.f32.mxu0 0.0
      %2631 = vmatmul.mubr.f32.gmra.mxu0 %v2528
      %v2632 = vpop.f32.mrf.mxu0
      %v2633 = vadd.f32 0.0, %v2632
      %v2634 = vpop.f32.mrf.mxu0
      %2635 = vmatprep.mubr.f32.mxu0 0.0
      %2636 = vmatmul.mubr.f32.gmra.mxu0 %v2531
      %v2637 = vpop.f32.mrf.mxu0
      %v2638 = vadd.f32 0.0, %v2637
      %v2639 = vpop.f32.mrf.mxu0
      %2640 = vmatprep.mubr.f32.mxu0 0.0
      %2641 = vmatmul.mubr.f32.gmra.mxu0 %v2534
      %v2642 = vpop.f32.mrf.mxu0
      %v2643 = vadd.f32 0.0, %v2642
      %v2644 = vpop.f32.mrf.mxu0
      %2645 = vmatprep.mubr.f32.mxu0 0.0
      %2646 = vmatmul.mubr.f32.gmra.mxu0 %v2537
      %v2647 = vpop.f32.mrf.mxu0
      %v2648 = vadd.f32 0.0, %v2647
      %v2649 = vpop.f32.mrf.mxu0
      %2650 = vdwg.mxu0
      %2660 = vrot.lane.b32.xlu0 %v1716, 8
      %v2661 = vpop.permute.xlu0 %2660
      %2662 = vrot.lane.b32.xlu0 %v1721, 8
      %v2663 = vpop.permute.xlu0 %2662
      %2664 = vrot.lane.b32.xlu0 %v1726, 8
      %v2665 = vpop.permute.xlu0 %2664
      %2666 = vrot.lane.b32.xlu0 %v1731, 8
      %v2667 = vpop.permute.xlu0 %2666
      %2668 = vrot.lane.b32.xlu0 %v1736, 8
      %v2669 = vpop.permute.xlu0 %2668
      %2670 = vrot.lane.b32.xlu0 %v1741, 8
      %v2671 = vpop.permute.xlu0 %2670
      %2672 = vrot.lane.b32.xlu0 %v1746, 8
      %v2673 = vpop.permute.xlu0 %2672
      %2674 = vrot.lane.b32.xlu0 %v1751, 8
      %v2675 = vpop.permute.xlu0 %2674
      %2676 = vrot.lane.b32.xlu0 %v1756, 8
      %v2677 = vpop.permute.xlu0 %2676
      %2696 = vrot.lane.b32.xlu0 %v2162, 16
      %v2697 = vpop.permute.xlu0 %2696
      %2698 = vrot.lane.b32.xlu0 %v2167, 16
      %v2699 = vpop.permute.xlu0 %2698
      %2700 = vrot.lane.b32.xlu0 %v2172, 16
      %v2701 = vpop.permute.xlu0 %2700
      %2702 = vrot.lane.b32.xlu0 %v2177, 16
      %v2703 = vpop.permute.xlu0 %2702
      %2704 = vrot.lane.b32.xlu0 %v2182, 16
      %v2705 = vpop.permute.xlu0 %2704
      %2706 = vrot.lane.b32.xlu0 %v2187, 16
      %v2707 = vpop.permute.xlu0 %2706
      %2708 = vrot.lane.b32.xlu0 %v2192, 16
      %v2709 = vpop.permute.xlu0 %2708
      %2710 = vrot.lane.b32.xlu0 %v2197, 16
      %v2711 = vpop.permute.xlu0 %2710
      %2712 = vrot.lane.b32.xlu0 %v2202, 16
      %v2713 = vpop.permute.xlu0 %2712
      %2732 = vrot.lane.b32.xlu0 %v2608, 24
      %v2733 = vpop.permute.xlu0 %2732
      %2734 = vrot.lane.b32.xlu0 %v2613, 24
      %v2735 = vpop.permute.xlu0 %2734
      %2736 = vrot.lane.b32.xlu0 %v2618, 24
      %v2737 = vpop.permute.xlu0 %2736
      %2738 = vrot.lane.b32.xlu0 %v2623, 24
      %v2739 = vpop.permute.xlu0 %2738
      %2740 = vrot.lane.b32.xlu0 %v2628, 24
      %v2741 = vpop.permute.xlu0 %2740
      %2742 = vrot.lane.b32.xlu0 %v2633, 24
      %v2743 = vpop.permute.xlu0 %2742
      %2744 = vrot.lane.b32.xlu0 %v2638, 24
      %v2745 = vpop.permute.xlu0 %2744
      %2746 = vrot.lane.b32.xlu0 %v2643, 24
      %v2747 = vpop.permute.xlu0 %2746
      %2748 = vrot.lane.b32.xlu0 %v2648, 24
      %v2749 = vpop.permute.xlu0 %2748
      %v2759 = vsel %vm890, %v1270, %v2661
      %v2760 = vsel %vm890, %v1275, %v2663
      %v2761 = vsel %vm890, %v1280, %v2665
      %v2762 = vsel %vm890, %v1285, %v2667
      %v2763 = vsel %vm890, %v1290, %v2669
      %v2764 = vsel %vm890, %v1295, %v2671
      %v2765 = vsel %vm890, %v1300, %v2673
      %v2766 = vsel %vm890, %v1305, %v2675
      %v2767 = vsel %vm890, %v1310, %v2677
      %vm2768 = vcmask 130048
      %v2769 = vsel %vm2768, %v2759, %v2697
      %v2770 = vsel %vm2768, %v2760, %v2699
      %v2771 = vsel %vm2768, %v2761, %v2701
      %v2772 = vsel %vm2768, %v2762, %v2703
      %v2773 = vsel %vm2768, %v2763, %v2705
      %v2774 = vsel %vm2768, %v2764, %v2707
      %v2775 = vsel %vm2768, %v2765, %v2709
      %v2776 = vsel %vm2768, %v2766, %v2711
      %v2777 = vsel %vm2768, %v2767, %v2713
      %vm2778 = vcmask 195584
      %v2779 = vsel %vm2778, %v2769, %v2733
      %v2780 = vsel %vm2778, %v2770, %v2735
      %v2781 = vsel %vm2778, %v2771, %v2737
      %v2782 = vsel %vm2778, %v2772, %v2739
      %v2783 = vsel %vm2778, %v2773, %v2741
      %v2784 = vsel %vm2778, %v2774, %v2743
      %v2785 = vsel %vm2778, %v2775, %v2745
      %v2786 = vsel %vm2778, %v2776, %v2747
      %v2787 = vsel %vm2778, %v2777, %v2749
      %v2788 = vld [vmem:[%s5] sm:$0xff]
      %v2789 = vld [vmem:[%s5 + $0x8] sm:$0xff]
      %v2790 = vld [vmem:[%s5 + $0x10] sm:$0xff]
      %v2791 = vld [vmem:[%s5 + $0x18] sm:$0xff]
      %v2793 = vsel %vm556, %v2779, 0
      %v2796 = vsel %vm556, %v2780, 0
      %v2799 = vsel %vm556, %v2781, 0
      %v2802 = vsel %vm556, %v2782, 0
      %v2805 = vsel %vm556, %v2783, 0
      %v2808 = vsel %vm556, %v2784, 0
      %v2811 = vsel %vm556, %v2785, 0
      %v2814 = vsel %vm556, %v2786, 0
      %v2817 = vsel %vm556, %v2787, 0
      %2819 = vmatprep.subr.mxu0 0.0
      %2820 = vmatpush1.msra.mxu0 0.0
      %2821 = vmatprep.subr.mxu0 0.0
      %2822 = vmatpush1.msra.mxu0 0.0
      %2823 = vmatprep.subr.mxu0 0.0
      %2824 = vmatpush1.msra.mxu0 0.0
      %2825 = vmatprep.subr.mxu0 0.0
      %2826 = vmatpush1.msra.mxu0 0.0
      %2827 = vmatprep.subr.mxu0 0.0
      %2828 = vmatpush1.msra.mxu0 0.0
      %2829 = vmatprep.subr.mxu0 0.0
      %2830 = vmatpush1.msra.mxu0 0.0
      %2831 = vmatprep.subr.mxu0 0.0
      %2832 = vmatpush1.msra.mxu0 0.0
      %2833 = vmatprep.subr.mxu0 0.0
      %2834 = vmatpush1.msra.mxu0 0.0
      %2835 = vmatprep.subr.mxu0 0.0
      %2836 = vmatpush1.msra.mxu0 0.0
      %2837 = vmatprep.subr.mxu0 0.0
      %2838 = vmatpush1.msra.mxu0 0.0
      %2839 = vmatprep.subr.mxu0 0.0
      %2840 = vmatpush1.msra.mxu0 0.0
      %2841 = vmatprep.subr.mxu0 0.0
      %2842 = vmatpush1.msra.mxu0 0.0
      %2843 = vmatprep.subr.mxu0 0.0
      %2844 = vmatpush1.msra.mxu0 %v2791
      %2845 = vmatprep.subr.mxu0 0.0
      %2846 = vmatpush1.msra.mxu0 %v2790
      %2847 = vmatprep.subr.mxu0 0.0
      %2848 = vmatpush1.msra.mxu0 %v2789
      %2849 = vmatprep.subr.mxu0 0.0
      %2850 = vmatpush1.msra.mxu0 %v2788
      %2851 = vmatprep.subr.mxu0 0.0
      %2852 = vmatpush2.msra.mxu0 0.0
      %2853 = vmatprep.subr.mxu0 0.0
      %2854 = vmatpush2.msra.mxu0 0.0
      %2855 = vmatprep.subr.mxu0 0.0
      %2856 = vmatpush2.msra.mxu0 0.0
      %2857 = vmatprep.subr.mxu0 0.0
      %2858 = vmatpush2.msra.mxu0 0.0
      %2859 = vmatprep.subr.mxu0 0.0
      %2860 = vmatpush2.msra.mxu0 0.0
      %2861 = vmatprep.subr.mxu0 0.0
      %2862 = vmatpush2.msra.mxu0 0.0
      %2863 = vmatprep.subr.mxu0 0.0
      %2864 = vmatpush2.msra.mxu0 0.0
      %2865 = vmatprep.subr.mxu0 0.0
      %2866 = vmatpush2.msra.mxu0 0.0
      %2867 = vmatprep.subr.mxu0 0.0
      %2868 = vmatpush2.msra.mxu0 0.0
      %2869 = vmatprep.subr.mxu0 0.0
      %2870 = vmatpush2.msra.mxu0 0.0
      %2871 = vmatprep.subr.mxu0 0.0
      %2872 = vmatpush2.msra.mxu0 0.0
      %2873 = vmatprep.subr.mxu0 0.0
      %2874 = vmatpush2.msra.mxu0 0.0
      %2875 = vmatprep.subr.mxu0 0.0
      %2876 = vmatpush2.msra.mxu0 0.0
      %2877 = vmatprep.subr.mxu0 0.0
      %2878 = vmatpush2.msra.mxu0 0.0
      %2879 = vmatprep.subr.mxu0 0.0
      %2880 = vmatpush2.msra.mxu0 0.0
      %2881 = vmatprep.subr.mxu0 0.0
      %2882 = vmatpush2.msra.mxu0 0.0
      %2883 = vmatprep.mubr.f32.mxu0 0.0
      %2884 = vmatmul.mubr.f32.gmra.mxu0 %v2793
      %v2885 = vpop.f32.mrf.mxu0
      %v2886 = vadd.f32 0.0, %v2885
      %v2887 = vpop.f32.mrf.mxu0
      %2888 = vmatprep.mubr.f32.mxu0 0.0
      %2889 = vmatmul.mubr.f32.gmra.mxu0 %v2796
      %v2890 = vpop.f32.mrf.mxu0
      %v2891 = vadd.f32 0.0, %v2890
      %v2892 = vpop.f32.mrf.mxu0
      %2893 = vmatprep.mubr.f32.mxu0 0.0
      %2894 = vmatmul.mubr.f32.gmra.mxu0 %v2799
      %v2895 = vpop.f32.mrf.mxu0
      %v2896 = vadd.f32 0.0, %v2895
      %v2897 = vpop.f32.mrf.mxu0
      %2898 = vmatprep.mubr.f32.mxu0 0.0
      %2899 = vmatmul.mubr.f32.gmra.mxu0 %v2802
      %v2900 = vpop.f32.mrf.mxu0
      %v2901 = vadd.f32 0.0, %v2900
      %v2902 = vpop.f32.mrf.mxu0
      %2903 = vmatprep.mubr.f32.mxu0 0.0
      %2904 = vmatmul.mubr.f32.gmra.mxu0 %v2805
      %v2905 = vpop.f32.mrf.mxu0
      %v2906 = vadd.f32 0.0, %v2905
      %v2907 = vpop.f32.mrf.mxu0
      %2908 = vmatprep.mubr.f32.mxu0 0.0
      %2909 = vmatmul.mubr.f32.gmra.mxu0 %v2808
      %v2910 = vpop.f32.mrf.mxu0
      %v2911 = vadd.f32 0.0, %v2910
      %v2912 = vpop.f32.mrf.mxu0
      %2913 = vmatprep.mubr.f32.mxu0 0.0
      %2914 = vmatmul.mubr.f32.gmra.mxu0 %v2811
      %v2915 = vpop.f32.mrf.mxu0
      %v2916 = vadd.f32 0.0, %v2915
      %v2917 = vpop.f32.mrf.mxu0
      %2918 = vmatprep.mubr.f32.mxu0 0.0
      %2919 = vmatmul.mubr.f32.gmra.mxu0 %v2814
      %v2920 = vpop.f32.mrf.mxu0
      %v2921 = vadd.f32 0.0, %v2920
      %v2922 = vpop.f32.mrf.mxu0
      %2923 = vmatprep.mubr.f32.mxu0 0.0
      %2924 = vmatmul.mubr.f32.gmra.mxu0 %v2817
      %v2925 = vpop.f32.mrf.mxu0
      %v2926 = vadd.f32 0.0, %v2925
      %v2927 = vpop.f32.mrf.mxu0
      %2928 = vdwg.mxu0
      %v2929 = vadd.f32 %v545, %v2886
      %v2930 = vadd.f32 %v546, %v2891
      %v2931 = vadd.f32 %v547, %v2896
      %v2932 = vadd.f32 %v548, %v2901
      %v2933 = vadd.f32 %v549, %v2906
      %v2934 = vadd.f32 %v550, %v2911
      %v2935 = vadd.f32 %v551, %v2916
      %v2936 = vadd.f32 %v552, %v2921
      %v2937 = vadd.f32 %v553, %v2926
      %v2938 = vld [vmem:[%s6] sm:$0x1]
      %v2940 = vlaneseq
      %v2941 = vshrl.u32 %v2940, 7
      %v2942 = vsub.s32 0, %v2941
      %v2943 = vrot.slane %v2938, %v2942
      %v2945 = vadd.f32 %v2929, %v2943
      %v2946 = vadd.f32 %v2930, %v2943
      %v2947 = vadd.f32 %v2931, %v2943
      %v2948 = vadd.f32 %v2932, %v2943
      %v2949 = vadd.f32 %v2933, %v2943
      %v2950 = vadd.f32 %v2934, %v2943
      %v2951 = vadd.f32 %v2935, %v2943
      %v2952 = vadd.f32 %v2936, %v2943
      %v2953 = vadd.f32 %v2937, %v2943
      %v2954 = vld [vmem:[%s7] sm:$0x1]
      %v2955 = vld [vmem:[%s8] sm:$0x1]
      %v2956 = vsel %vm556, %v2945, 0.0
      %2957 = vadd.xlane.f32.xlu0 %v2956
      %v2958 = vpop.xlane.xlu0 %2957
      %v2959 = vsel %vm556, %v2946, 0.0
      %2960 = vadd.xlane.f32.xlu0 %v2959
      %v2961 = vpop.xlane.xlu0 %2960
      %v2962 = vsel %vm556, %v2947, 0.0
      %2963 = vadd.xlane.f32.xlu0 %v2962
      %v2964 = vpop.xlane.xlu0 %2963
      %v2965 = vsel %vm556, %v2948, 0.0
      %2966 = vadd.xlane.f32.xlu0 %v2965
      %v2967 = vpop.xlane.xlu0 %2966
      %v2968 = vsel %vm556, %v2949, 0.0
      %2969 = vadd.xlane.f32.xlu0 %v2968
      %v2970 = vpop.xlane.xlu0 %2969
      %v2971 = vsel %vm556, %v2950, 0.0
      %2972 = vadd.xlane.f32.xlu0 %v2971
      %v2973 = vpop.xlane.xlu0 %2972
      %v2974 = vsel %vm556, %v2951, 0.0
      %2975 = vadd.xlane.f32.xlu0 %v2974
      %v2976 = vpop.xlane.xlu0 %2975
      %v2977 = vsel %vm556, %v2952, 0.0
      %2978 = vadd.xlane.f32.xlu0 %v2977
      %v2979 = vpop.xlane.xlu0 %2978
      %v2980 = vsel %vm581, %v2953, 0.0
      %2981 = vadd.xlane.f32.xlu0 %v2980
      %v2982 = vpop.xlane.xlu0 %2981
      %v2983 = vmul.f32 %v2958, %v585
      %v2984 = vmul.f32 %v2961, %v585
      %v2985 = vmul.f32 %v2964, %v585
      %v2986 = vmul.f32 %v2967, %v585
      %v2987 = vmul.f32 %v2970, %v585
      %v2988 = vmul.f32 %v2973, %v585
      %v2989 = vmul.f32 %v2976, %v585
      %v2990 = vmul.f32 %v2979, %v585
      %v2991 = vmul.f32 %v2982, %v585
      %v2992 = vsub.f32 %v2945, %v2983
      %v2993 = vsub.f32 %v2946, %v2984
      %v2994 = vsub.f32 %v2947, %v2985
      %v2995 = vsub.f32 %v2948, %v2986
      %v2996 = vsub.f32 %v2949, %v2987
      %v2997 = vsub.f32 %v2950, %v2988
      %v2998 = vsub.f32 %v2951, %v2989
      %v2999 = vsub.f32 %v2952, %v2990
      %v3000 = vsub.f32 %v2953, %v2991
      %v3001 = vmul.f32 %v2992, %v2992
      %v3002 = vmul.f32 %v2993, %v2993
      %v3003 = vmul.f32 %v2994, %v2994
      %v3004 = vmul.f32 %v2995, %v2995
      %v3005 = vmul.f32 %v2996, %v2996
      %v3006 = vmul.f32 %v2997, %v2997
      %v3007 = vmul.f32 %v2998, %v2998
      %v3008 = vmul.f32 %v2999, %v2999
      %v3009 = vmul.f32 %v3000, %v3000
      %v3010 = vsel %vm556, %v3001, 0.0
      %3011 = vadd.xlane.f32.xlu0 %v3010
      %v3012 = vpop.xlane.xlu0 %3011
      %v3013 = vsel %vm556, %v3002, 0.0
      %3014 = vadd.xlane.f32.xlu0 %v3013
      %v3015 = vpop.xlane.xlu0 %3014
      %v3016 = vsel %vm556, %v3003, 0.0
      %3017 = vadd.xlane.f32.xlu0 %v3016
      %v3018 = vpop.xlane.xlu0 %3017
      %v3019 = vsel %vm556, %v3004, 0.0
      %3020 = vadd.xlane.f32.xlu0 %v3019
      %v3021 = vpop.xlane.xlu0 %3020
      %v3022 = vsel %vm556, %v3005, 0.0
      %3023 = vadd.xlane.f32.xlu0 %v3022
      %v3024 = vpop.xlane.xlu0 %3023
      %v3025 = vsel %vm556, %v3006, 0.0
      %3026 = vadd.xlane.f32.xlu0 %v3025
      %v3027 = vpop.xlane.xlu0 %3026
      %v3028 = vsel %vm556, %v3007, 0.0
      %3029 = vadd.xlane.f32.xlu0 %v3028
      %v3030 = vpop.xlane.xlu0 %3029
      %v3031 = vsel %vm556, %v3008, 0.0
      %3032 = vadd.xlane.f32.xlu0 %v3031
      %v3033 = vpop.xlane.xlu0 %3032
      %v3034 = vsel %vm581, %v3009, 0.0
      %3035 = vadd.xlane.f32.xlu0 %v3034
      %v3036 = vpop.xlane.xlu0 %3035
      %v3037 = vmul.f32 %v3012, %v585
      %v3038 = vmul.f32 %v3015, %v585
      %v3039 = vmul.f32 %v3018, %v585
      %v3040 = vmul.f32 %v3021, %v585
      %v3041 = vmul.f32 %v3024, %v585
      %v3042 = vmul.f32 %v3027, %v585
      %v3043 = vmul.f32 %v3030, %v585
      %v3044 = vmul.f32 %v3033, %v585
      %v3045 = vmul.f32 %v3036, %v585
      %v3046 = vadd.f32 %v3037, 1e-05
      %v3047 = vadd.f32 %v3038, 1e-05
      %v3048 = vadd.f32 %v3039, 1e-05
      %v3049 = vadd.f32 %v3040, 1e-05
      %v3050 = vadd.f32 %v3041, 1e-05
      %v3051 = vadd.f32 %v3042, 1e-05
      %v3052 = vadd.f32 %v3043, 1e-05
      %v3053 = vadd.f32 %v3044, 1e-05
      %v3054 = vadd.f32 %v3045, 1e-05
      %v3055 = vrsqrt.pop %v3046
      %v3056 = vrsqrt.pop %v3047
      %v3057 = vrsqrt.pop %v3048
      %v3058 = vrsqrt.pop %v3049
      %v3059 = vrsqrt.pop %v3050
      %v3060 = vrsqrt.pop %v3051
      %v3061 = vrsqrt.pop %v3052
      %v3062 = vrsqrt.pop %v3053
      %v3063 = vrsqrt.pop %v3054
      %v3064 = vmul.f32 %v2992, %v3055
      %v3065 = vmul.f32 %v2993, %v3056
      %v3066 = vmul.f32 %v2994, %v3057
      %v3067 = vmul.f32 %v2995, %v3058
      %v3068 = vmul.f32 %v2996, %v3059
      %v3069 = vmul.f32 %v2997, %v3060
      %v3070 = vmul.f32 %v2998, %v3061
      %v3071 = vmul.f32 %v2999, %v3062
      %v3072 = vmul.f32 %v3000, %v3063
      %v3074 = vlaneseq
      %v3075 = vshrl.u32 %v3074, 7
      %v3076 = vsub.s32 0, %v3075
      %v3077 = vrot.slane %v2954, %v3076
      %v3079 = vmul.f32 %v3064, %v3077
      %v3080 = vmul.f32 %v3065, %v3077
      %v3081 = vmul.f32 %v3066, %v3077
      %v3082 = vmul.f32 %v3067, %v3077
      %v3083 = vmul.f32 %v3068, %v3077
      %v3084 = vmul.f32 %v3069, %v3077
      %v3085 = vmul.f32 %v3070, %v3077
      %v3086 = vmul.f32 %v3071, %v3077
      %v3087 = vmul.f32 %v3072, %v3077
      %v3089 = vlaneseq
      %v3090 = vshrl.u32 %v3089, 7
      %v3091 = vsub.s32 0, %v3090
      %v3092 = vrot.slane %v2955, %v3091
      %v3094 = vadd.f32 %v3079, %v3092
      %v3095 = vadd.f32 %v3080, %v3092
      %v3096 = vadd.f32 %v3081, %v3092
      %v3097 = vadd.f32 %v3082, %v3092
      %v3098 = vadd.f32 %v3083, %v3092
      %v3099 = vadd.f32 %v3084, %v3092
      %v3100 = vadd.f32 %v3085, %v3092
      %v3101 = vadd.f32 %v3086, %v3092
      %v3102 = vadd.f32 %v3087, %v3092
      %v3103 = vld [vmem:[%s9] sm:$0xff]
      %v3104 = vld [vmem:[%s9 + $0x8] sm:$0xff]
      %v3105 = vld [vmem:[%s9 + $0x10] sm:$0xff]
      %v3106 = vld [vmem:[%s9 + $0x18] sm:$0xff]
      %v3107 = vld [vmem:[%s10] sm:$0x1]
      %v3109 = vlaneseq
      %v3110 = vshrl.u32 %v3109, 7
      %v3111 = vsub.s32 0, %v3110
      %v3112 = vrot.slane %v3107, %v3111
      %v3115 = vsel %vm556, %v3094, 0
      %v3118 = vsel %vm556, %v3095, 0
      %v3121 = vsel %vm556, %v3096, 0
      %v3124 = vsel %vm556, %v3097, 0
      %v3127 = vsel %vm556, %v3098, 0
      %v3130 = vsel %vm556, %v3099, 0
      %v3133 = vsel %vm556, %v3100, 0
      %v3136 = vsel %vm556, %v3101, 0
      %v3139 = vsel %vm556, %v3102, 0
      %3141 = vmatprep.subr.mxu0 0.0
      %3142 = vmatpush1.msra.mxu0 0.0
      %3143 = vmatprep.subr.mxu0 0.0
      %3144 = vmatpush1.msra.mxu0 0.0
      %3145 = vmatprep.subr.mxu0 0.0
      %3146 = vmatpush1.msra.mxu0 0.0
      %3147 = vmatprep.subr.mxu0 0.0
      %3148 = vmatpush1.msra.mxu0 0.0
      %3149 = vmatprep.subr.mxu0 0.0
      %3150 = vmatpush1.msra.mxu0 0.0
      %3151 = vmatprep.subr.mxu0 0.0
      %3152 = vmatpush1.msra.mxu0 0.0
      %3153 = vmatprep.subr.mxu0 0.0
      %3154 = vmatpush1.msra.mxu0 0.0
      %3155 = vmatprep.subr.mxu0 0.0
      %3156 = vmatpush1.msra.mxu0 0.0
      %3157 = vmatprep.subr.mxu0 0.0
      %3158 = vmatpush1.msra.mxu0 0.0
      %3159 = vmatprep.subr.mxu0 0.0
      %3160 = vmatpush1.msra.mxu0 0.0
      %3161 = vmatprep.subr.mxu0 0.0
      %3162 = vmatpush1.msra.mxu0 0.0
      %3163 = vmatprep.subr.mxu0 0.0
      %3164 = vmatpush1.msra.mxu0 0.0
      %3165 = vmatprep.subr.mxu0 0.0
      %3166 = vmatpush1.msra.mxu0 %v3106
      %3167 = vmatprep.subr.mxu0 0.0
      %3168 = vmatpush1.msra.mxu0 %v3105
      %3169 = vmatprep.subr.mxu0 0.0
      %3170 = vmatpush1.msra.mxu0 %v3104
      %3171 = vmatprep.subr.mxu0 0.0
      %3172 = vmatpush1.msra.mxu0 %v3103
      %3173 = vmatprep.subr.mxu0 0.0
      %3174 = vmatpush2.msra.mxu0 0.0
      %3175 = vmatprep.subr.mxu0 0.0
      %3176 = vmatpush2.msra.mxu0 0.0
      %3177 = vmatprep.subr.mxu0 0.0
      %3178 = vmatpush2.msra.mxu0 0.0
      %3179 = vmatprep.subr.mxu0 0.0
      %3180 = vmatpush2.msra.mxu0 0.0
      %3181 = vmatprep.subr.mxu0 0.0
      %3182 = vmatpush2.msra.mxu0 0.0
      %3183 = vmatprep.subr.mxu0 0.0
      %3184 = vmatpush2.msra.mxu0 0.0
      %3185 = vmatprep.subr.mxu0 0.0
      %3186 = vmatpush2.msra.mxu0 0.0
      %3187 = vmatprep.subr.mxu0 0.0
      %3188 = vmatpush2.msra.mxu0 0.0
      %3189 = vmatprep.subr.mxu0 0.0
      %3190 = vmatpush2.msra.mxu0 0.0
      %3191 = vmatprep.subr.mxu0 0.0
      %3192 = vmatpush2.msra.mxu0 0.0
      %3193 = vmatprep.subr.mxu0 0.0
      %3194 = vmatpush2.msra.mxu0 0.0
      %3195 = vmatprep.subr.mxu0 0.0
      %3196 = vmatpush2.msra.mxu0 0.0
      %3197 = vmatprep.subr.mxu0 0.0
      %3198 = vmatpush2.msra.mxu0 0.0
      %3199 = vmatprep.subr.mxu0 0.0
      %3200 = vmatpush2.msra.mxu0 0.0
      %3201 = vmatprep.subr.mxu0 0.0
      %3202 = vmatpush2.msra.mxu0 0.0
      %3203 = vmatprep.subr.mxu0 0.0
      %3204 = vmatpush2.msra.mxu0 0.0
      %3205 = vmatprep.mubr.f32.mxu0 0.0
      %3206 = vmatmul.mubr.f32.gmra.mxu0 %v3115
      %v3207 = vpop.f32.mrf.mxu0
      %v3208 = vadd.f32 %v3112, %v3207
      %v3209 = vpop.f32.mrf.mxu0
      %3210 = vmatprep.mubr.f32.mxu0 0.0
      %3211 = vmatmul.mubr.f32.gmra.mxu0 %v3118
      %v3212 = vpop.f32.mrf.mxu0
      %v3213 = vadd.f32 %v3112, %v3212
      %v3214 = vpop.f32.mrf.mxu0
      %3215 = vmatprep.mubr.f32.mxu0 0.0
      %3216 = vmatmul.mubr.f32.gmra.mxu0 %v3121
      %v3217 = vpop.f32.mrf.mxu0
      %v3218 = vadd.f32 %v3112, %v3217
      %v3219 = vpop.f32.mrf.mxu0
      %3220 = vmatprep.mubr.f32.mxu0 0.0
      %3221 = vmatmul.mubr.f32.gmra.mxu0 %v3124
      %v3222 = vpop.f32.mrf.mxu0
      %v3223 = vadd.f32 %v3112, %v3222
      %v3224 = vpop.f32.mrf.mxu0
      %3225 = vmatprep.mubr.f32.mxu0 0.0
      %3226 = vmatmul.mubr.f32.gmra.mxu0 %v3127
      %v3227 = vpop.f32.mrf.mxu0
      %v3228 = vadd.f32 %v3112, %v3227
      %v3229 = vpop.f32.mrf.mxu0
      %3230 = vmatprep.mubr.f32.mxu0 0.0
      %3231 = vmatmul.mubr.f32.gmra.mxu0 %v3130
      %v3232 = vpop.f32.mrf.mxu0
      %v3233 = vadd.f32 %v3112, %v3232
      %v3234 = vpop.f32.mrf.mxu0
      %3235 = vmatprep.mubr.f32.mxu0 0.0
      %3236 = vmatmul.mubr.f32.gmra.mxu0 %v3133
      %v3237 = vpop.f32.mrf.mxu0
      %v3238 = vadd.f32 %v3112, %v3237
      %v3239 = vpop.f32.mrf.mxu0
      %3240 = vmatprep.mubr.f32.mxu0 0.0
      %3241 = vmatmul.mubr.f32.gmra.mxu0 %v3136
      %v3242 = vpop.f32.mrf.mxu0
      %v3243 = vadd.f32 %v3112, %v3242
      %v3244 = vpop.f32.mrf.mxu0
      %3245 = vmatprep.mubr.f32.mxu0 0.0
      %3246 = vmatmul.mubr.f32.gmra.mxu0 %v3139
      %v3247 = vpop.f32.mrf.mxu0
      %v3248 = vadd.f32 %v3112, %v3247
      %v3249 = vpop.f32.mrf.mxu0
      %3250 = vdwg.mxu0
      %v3251 = vmul.f32 %v3208, %v3208
      %v3252 = vmul.f32 %v3213, %v3213
      %v3253 = vmul.f32 %v3218, %v3218
      %v3254 = vmul.f32 %v3223, %v3223
      %v3255 = vmul.f32 %v3228, %v3228
      %v3256 = vmul.f32 %v3233, %v3233
      %v3257 = vmul.f32 %v3238, %v3238
      %v3258 = vmul.f32 %v3243, %v3243
      %v3259 = vmul.f32 %v3248, %v3248
      %v3260 = vmul.f32 %v3208, %v3251
      %v3261 = vmul.f32 %v3213, %v3252
      %v3262 = vmul.f32 %v3218, %v3253
      %v3263 = vmul.f32 %v3223, %v3254
      %v3264 = vmul.f32 %v3228, %v3255
      %v3265 = vmul.f32 %v3233, %v3256
      %v3266 = vmul.f32 %v3238, %v3257
      %v3267 = vmul.f32 %v3243, %v3258
      %v3268 = vmul.f32 %v3248, %v3259
      %v3269 = vmul.f32 %v3260, 0.044715
      %v3270 = vmul.f32 %v3261, 0.044715
      %v3271 = vmul.f32 %v3262, 0.044715
      %v3272 = vmul.f32 %v3263, 0.044715
      %v3273 = vmul.f32 %v3264, 0.044715
      %v3274 = vmul.f32 %v3265, 0.044715
      %v3275 = vmul.f32 %v3266, 0.044715
      %v3276 = vmul.f32 %v3267, 0.044715
      %v3277 = vmul.f32 %v3268, 0.044715
      %v3278 = vadd.f32 %v3208, %v3269
      %v3279 = vadd.f32 %v3213, %v3270
      %v3280 = vadd.f32 %v3218, %v3271
      %v3281 = vadd.f32 %v3223, %v3272
      %v3282 = vadd.f32 %v3228, %v3273
      %v3283 = vadd.f32 %v3233, %v3274
      %v3284 = vadd.f32 %v3238, %v3275
      %v3285 = vadd.f32 %v3243, %v3276
      %v3286 = vadd.f32 %v3248, %v3277
      %v3287 = vmul.f32 %v3278, 0.7978846
      %v3288 = vmul.f32 %v3279, 0.7978846
      %v3289 = vmul.f32 %v3280, 0.7978846
      %v3290 = vmul.f32 %v3281, 0.7978846
      %v3291 = vmul.f32 %v3282, 0.7978846
      %v3292 = vmul.f32 %v3283, 0.7978846
      %v3293 = vmul.f32 %v3284, 0.7978846
      %v3294 = vmul.f32 %v3285, 0.7978846
      %v3295 = vmul.f32 %v3286, 0.7978846
      %v3296 = vtanh.pop %v3287
      %v3297 = vtanh.pop %v3288
      %v3298 = vtanh.pop %v3289
      %v3299 = vtanh.pop %v3290
      %v3300 = vtanh.pop %v3291
      %v3301 = vtanh.pop %v3292
      %v3302 = vtanh.pop %v3293
      %v3303 = vtanh.pop %v3294
      %v3304 = vtanh.pop %v3295
      %v3305 = vadd.f32 %v3296, 1.0
      %v3306 = vadd.f32 %v3297, 1.0
      %v3307 = vadd.f32 %v3298, 1.0
      %v3308 = vadd.f32 %v3299, 1.0
      %v3309 = vadd.f32 %v3300, 1.0
      %v3310 = vadd.f32 %v3301, 1.0
      %v3311 = vadd.f32 %v3302, 1.0
      %v3312 = vadd.f32 %v3303, 1.0
      %v3313 = vadd.f32 %v3304, 1.0
      %v3314 = vmul.f32 %v3305, 0.5
      %v3315 = vmul.f32 %v3306, 0.5
      %v3316 = vmul.f32 %v3307, 0.5
      %v3317 = vmul.f32 %v3308, 0.5
      %v3318 = vmul.f32 %v3309, 0.5
      %v3319 = vmul.f32 %v3310, 0.5
      %v3320 = vmul.f32 %v3311, 0.5
      %v3321 = vmul.f32 %v3312, 0.5
      %v3322 = vmul.f32 %v3313, 0.5
      %v3323 = vmul.f32 %v3208, %v3314
      %v3324 = vmul.f32 %v3213, %v3315
      %v3325 = vmul.f32 %v3218, %v3316
      %v3326 = vmul.f32 %v3223, %v3317
      %v3327 = vmul.f32 %v3228, %v3318
      %v3328 = vmul.f32 %v3233, %v3319
      %v3329 = vmul.f32 %v3238, %v3320
      %v3330 = vmul.f32 %v3243, %v3321
      %v3331 = vmul.f32 %v3248, %v3322
      %v3332 = vld [vmem:[%s11] sm:$0xff]
      %v3333 = vld [vmem:[%s11 + $0x8] sm:$0xff]
      %v3334 = vld [vmem:[%s11 + $0x10] sm:$0xff]
      %v3335 = vld [vmem:[%s11 + $0x18] sm:$0xff]
      %v3336 = vld [vmem:[%s11 + $0x20] sm:$0xff]
      %v3337 = vld [vmem:[%s11 + $0x28] sm:$0xff]
      %v3338 = vld [vmem:[%s11 + $0x30] sm:$0xff]
      %v3339 = vld [vmem:[%s11 + $0x38] sm:$0xff]
      %v3340 = vld [vmem:[%s11 + $0x40] sm:$0xff]
      %v3341 = vld [vmem:[%s11 + $0x48] sm:$0xff]
      %v3342 = vld [vmem:[%s11 + $0x50] sm:$0xff]
      %v3343 = vld [vmem:[%s11 + $0x58] sm:$0xff]
      %v3344 = vld [vmem:[%s11 + $0x60] sm:$0xff]
      %v3345 = vld [vmem:[%s11 + $0x68] sm:$0xff]
      %v3346 = vld [vmem:[%s11 + $0x70] sm:$0xff]
      %v3347 = vld [vmem:[%s11 + $0x78] sm:$0xff]
      %3348 = vmatprep.subr.mxu0 0.0
      %3349 = vmatpush1.msra.mxu0 %v3347
      %3350 = vmatprep.subr.mxu0 0.0
      %3351 = vmatpush1.msra.mxu0 %v3346
      %3352 = vmatprep.subr.mxu0 0.0
      %3353 = vmatpush1.msra.mxu0 %v3345
      %3354 = vmatprep.subr.mxu0 0.0
      %3355 = vmatpush1.msra.mxu0 %v3344
      %3356 = vmatprep.subr.mxu0 0.0
      %3357 = vmatpush1.msra.mxu0 %v3343
      %3358 = vmatprep.subr.mxu0 0.0
      %3359 = vmatpush1.msra.mxu0 %v3342
      %3360 = vmatprep.subr.mxu0 0.0
      %3361 = vmatpush1.msra.mxu0 %v3341
      %3362 = vmatprep.subr.mxu0 0.0
      %3363 = vmatpush1.msra.mxu0 %v3340
      %3364 = vmatprep.subr.mxu0 0.0
      %3365 = vmatpush1.msra.mxu0 %v3339
      %3366 = vmatprep.subr.mxu0 0.0
      %3367 = vmatpush1.msra.mxu0 %v3338
      %3368 = vmatprep.subr.mxu0 0.0
      %3369 = vmatpush1.msra.mxu0 %v3337
      %3370 = vmatprep.subr.mxu0 0.0
      %3371 = vmatpush1.msra.mxu0 %v3336
      %3372 = vmatprep.subr.mxu0 0.0
      %3373 = vmatpush1.msra.mxu0 %v3335
      %3374 = vmatprep.subr.mxu0 0.0
      %3375 = vmatpush1.msra.mxu0 %v3334
      %3376 = vmatprep.subr.mxu0 0.0
      %3377 = vmatpush1.msra.mxu0 %v3333
      %3378 = vmatprep.subr.mxu0 0.0
      %3379 = vmatpush1.msra.mxu0 %v3332
      %3380 = vmatprep.subr.mxu0 0.0
      %3381 = vmatpush2.msra.mxu0 0.0
      %3382 = vmatprep.subr.mxu0 0.0
      %3383 = vmatpush2.msra.mxu0 0.0
      %3384 = vmatprep.subr.mxu0 0.0
      %3385 = vmatpush2.msra.mxu0 0.0
      %3386 = vmatprep.subr.mxu0 0.0
      %3387 = vmatpush2.msra.mxu0 0.0
      %3388 = vmatprep.subr.mxu0 0.0
      %3389 = vmatpush2.msra.mxu0 0.0
      %3390 = vmatprep.subr.mxu0 0.0
      %3391 = vmatpush2.msra.mxu0 0.0
      %3392 = vmatprep.subr.mxu0 0.0
      %3393 = vmatpush2.msra.mxu0 0.0
      %3394 = vmatprep.subr.mxu0 0.0
      %3395 = vmatpush2.msra.mxu0 0.0
      %3396 = vmatprep.subr.mxu0 0.0
      %3397 = vmatpush2.msra.mxu0 0.0
      %3398 = vmatprep.subr.mxu0 0.0
      %3399 = vmatpush2.msra.mxu0 0.0
      %3400 = vmatprep.subr.mxu0 0.0
      %3401 = vmatpush2.msra.mxu0 0.0
      %3402 = vmatprep.subr.mxu0 0.0
      %3403 = vmatpush2.msra.mxu0 0.0
      %3404 = vmatprep.subr.mxu0 0.0
      %3405 = vmatpush2.msra.mxu0 0.0
      %3406 = vmatprep.subr.mxu0 0.0
      %3407 = vmatpush2.msra.mxu0 0.0
      %3408 = vmatprep.subr.mxu0 0.0
      %3409 = vmatpush2.msra.mxu0 0.0
      %3410 = vmatprep.subr.mxu0 0.0
      %3411 = vmatpush2.msra.mxu0 0.0
      %3412 = vmatprep.mubr.f32.mxu0 0.0
      %3413 = vmatmul.mubr.f32.gmra.mxu0 %v3323
      %v3414 = vpop.f32.mrf.mxu0
      %v3415 = vadd.f32 0.0, %v3414
      %v3416 = vpop.f32.mrf.mxu0
      %3417 = vmatprep.mubr.f32.mxu0 0.0
      %3418 = vmatmul.mubr.f32.gmra.mxu0 %v3324
      %v3419 = vpop.f32.mrf.mxu0
      %v3420 = vadd.f32 0.0, %v3419
      %v3421 = vpop.f32.mrf.mxu0
      %3422 = vmatprep.mubr.f32.mxu0 0.0
      %3423 = vmatmul.mubr.f32.gmra.mxu0 %v3325
      %v3424 = vpop.f32.mrf.mxu0
      %v3425 = vadd.f32 0.0, %v3424
      %v3426 = vpop.f32.mrf.mxu0
      %3427 = vmatprep.mubr.f32.mxu0 0.0
      %3428 = vmatmul.mubr.f32.gmra.mxu0 %v3326
      %v3429 = vpop.f32.mrf.mxu0
      %v3430 = vadd.f32 0.0, %v3429
      %v3431 = vpop.f32.mrf.mxu0
      %3432 = vmatprep.mubr.f32.mxu0 0.0
      %3433 = vmatmul.mubr.f32.gmra.mxu0 %v3327
      %v3434 = vpop.f32.mrf.mxu0
      %v3435 = vadd.f32 0.0, %v3434
      %v3436 = vpop.f32.mrf.mxu0
      %3437 = vmatprep.mubr.f32.mxu0 0.0
      %3438 = vmatmul.mubr.f32.gmra.mxu0 %v3328
      %v3439 = vpop.f32.mrf.mxu0
      %v3440 = vadd.f32 0.0, %v3439
      %v3441 = vpop.f32.mrf.mxu0
      %3442 = vmatprep.mubr.f32.mxu0 0.0
      %3443 = vmatmul.mubr.f32.gmra.mxu0 %v3329
      %v3444 = vpop.f32.mrf.mxu0
      %v3445 = vadd.f32 0.0, %v3444
      %v3446 = vpop.f32.mrf.mxu0
      %3447 = vmatprep.mubr.f32.mxu0 0.0
      %3448 = vmatmul.mubr.f32.gmra.mxu0 %v3330
      %v3449 = vpop.f32.mrf.mxu0
      %v3450 = vadd.f32 0.0, %v3449
      %v3451 = vpop.f32.mrf.mxu0
      %3452 = vmatprep.mubr.f32.mxu0 0.0
      %3453 = vmatmul.mubr.f32.gmra.mxu0 %v3331
      %v3454 = vpop.f32.mrf.mxu0
      %v3455 = vadd.f32 0.0, %v3454
      %v3456 = vpop.f32.mrf.mxu0
      %3457 = vdwg.mxu0
      %v3458 = vadd.f32 %v2945, %v3415
      %v3459 = vadd.f32 %v2946, %v3420
      %v3460 = vadd.f32 %v2947, %v3425
      %v3461 = vadd.f32 %v2948, %v3430
      %v3462 = vadd.f32 %v2949, %v3435
      %v3463 = vadd.f32 %v2950, %v3440
      %v3464 = vadd.f32 %v2951, %v3445
      %v3465 = vadd.f32 %v2952, %v3450
      %v3466 = vadd.f32 %v2953, %v3455
      %v3467 = vld [vmem:[%s12] sm:$0x1]
      %v3469 = vlaneseq
      %v3470 = vshrl.u32 %v3469, 7
      %v3471 = vsub.s32 0, %v3470
      %v3472 = vrot.slane %v3467, %v3471
      %v3474 = vadd.f32 %v3458, %v3472
      %v3475 = vadd.f32 %v3459, %v3472
      %v3476 = vadd.f32 %v3460, %v3472
      %v3477 = vadd.f32 %v3461, %v3472
      %v3478 = vadd.f32 %v3462, %v3472
      %v3479 = vadd.f32 %v3463, %v3472
      %v3480 = vadd.f32 %v3464, %v3472
      %v3481 = vadd.f32 %v3465, %v3472
      %v3482 = vadd.f32 %v3466, %v3472
      %s3483 = scalar_lea.vmem %s1, 1
      %v3484 = vld [vmem:[%s3483] sm:$0x1]
      %s3485 = scalar_lea.vmem %s2, 1
      %v3486 = vld [vmem:[%s3485] sm:$0x1]
      %v3487 = vsel %vm556, %v3474, 0.0
      %3488 = vadd.xlane.f32.xlu0 %v3487
      %v3489 = vpop.xlane.xlu0 %3488
      %v3490 = vsel %vm556, %v3475, 0.0
      %3491 = vadd.xlane.f32.xlu0 %v3490
      %v3492 = vpop.xlane.xlu0 %3491
      %v3493 = vsel %vm556, %v3476, 0.0
      %3494 = vadd.xlane.f32.xlu0 %v3493
      %v3495 = vpop.xlane.xlu0 %3494
      %v3496 = vsel %vm556, %v3477, 0.0
      %3497 = vadd.xlane.f32.xlu0 %v3496
      %v3498 = vpop.xlane.xlu0 %3497
      %v3499 = vsel %vm556, %v3478, 0.0
      %3500 = vadd.xlane.f32.xlu0 %v3499
      %v3501 = vpop.xlane.xlu0 %3500
      %v3502 = vsel %vm556, %v3479, 0.0
      %3503 = vadd.xlane.f32.xlu0 %v3502
      %v3504 = vpop.xlane.xlu0 %3503
      %v3505 = vsel %vm556, %v3480, 0.0
      %3506 = vadd.xlane.f32.xlu0 %v3505
      %v3507 = vpop.xlane.xlu0 %3506
      %v3508 = vsel %vm556, %v3481, 0.0
      %3509 = vadd.xlane.f32.xlu0 %v3508
      %v3510 = vpop.xlane.xlu0 %3509
      %v3511 = vsel %vm581, %v3482, 0.0
      %3512 = vadd.xlane.f32.xlu0 %v3511
      %v3513 = vpop.xlane.xlu0 %3512
      %v3514 = vmul.f32 %v3489, %v585
      %v3515 = vmul.f32 %v3492, %v585
      %v3516 = vmul.f32 %v3495, %v585
      %v3517 = vmul.f32 %v3498, %v585
      %v3518 = vmul.f32 %v3501, %v585
      %v3519 = vmul.f32 %v3504, %v585
      %v3520 = vmul.f32 %v3507, %v585
      %v3521 = vmul.f32 %v3510, %v585
      %v3522 = vmul.f32 %v3513, %v585
      %v3523 = vsub.f32 %v3474, %v3514
      %v3524 = vsub.f32 %v3475, %v3515
      %v3525 = vsub.f32 %v3476, %v3516
      %v3526 = vsub.f32 %v3477, %v3517
      %v3527 = vsub.f32 %v3478, %v3518
      %v3528 = vsub.f32 %v3479, %v3519
      %v3529 = vsub.f32 %v3480, %v3520
      %v3530 = vsub.f32 %v3481, %v3521
      %v3531 = vsub.f32 %v3482, %v3522
      %v3532 = vmul.f32 %v3523, %v3523
      %v3533 = vmul.f32 %v3524, %v3524
      %v3534 = vmul.f32 %v3525, %v3525
      %v3535 = vmul.f32 %v3526, %v3526
      %v3536 = vmul.f32 %v3527, %v3527
      %v3537 = vmul.f32 %v3528, %v3528
      %v3538 = vmul.f32 %v3529, %v3529
      %v3539 = vmul.f32 %v3530, %v3530
      %v3540 = vmul.f32 %v3531, %v3531
      %v3541 = vsel %vm556, %v3532, 0.0
      %3542 = vadd.xlane.f32.xlu0 %v3541
      %v3543 = vpop.xlane.xlu0 %3542
      %v3544 = vsel %vm556, %v3533, 0.0
      %3545 = vadd.xlane.f32.xlu0 %v3544
      %v3546 = vpop.xlane.xlu0 %3545
      %v3547 = vsel %vm556, %v3534, 0.0
      %3548 = vadd.xlane.f32.xlu0 %v3547
      %v3549 = vpop.xlane.xlu0 %3548
      %v3550 = vsel %vm556, %v3535, 0.0
      %3551 = vadd.xlane.f32.xlu0 %v3550
      %v3552 = vpop.xlane.xlu0 %3551
      %v3553 = vsel %vm556, %v3536, 0.0
      %3554 = vadd.xlane.f32.xlu0 %v3553
      %v3555 = vpop.xlane.xlu0 %3554
      %v3556 = vsel %vm556, %v3537, 0.0
      %3557 = vadd.xlane.f32.xlu0 %v3556
      %v3558 = vpop.xlane.xlu0 %3557
      %v3559 = vsel %vm556, %v3538, 0.0
      %3560 = vadd.xlane.f32.xlu0 %v3559
      %v3561 = vpop.xlane.xlu0 %3560
      %v3562 = vsel %vm556, %v3539, 0.0
      %3563 = vadd.xlane.f32.xlu0 %v3562
      %v3564 = vpop.xlane.xlu0 %3563
      %v3565 = vsel %vm581, %v3540, 0.0
      %3566 = vadd.xlane.f32.xlu0 %v3565
      %v3567 = vpop.xlane.xlu0 %3566
      %v3568 = vmul.f32 %v3543, %v585
      %v3569 = vmul.f32 %v3546, %v585
      %v3570 = vmul.f32 %v3549, %v585
      %v3571 = vmul.f32 %v3552, %v585
      %v3572 = vmul.f32 %v3555, %v585
      %v3573 = vmul.f32 %v3558, %v585
      %v3574 = vmul.f32 %v3561, %v585
      %v3575 = vmul.f32 %v3564, %v585
      %v3576 = vmul.f32 %v3567, %v585
      %v3577 = vadd.f32 %v3568, 1e-05
      %v3578 = vadd.f32 %v3569, 1e-05
      %v3579 = vadd.f32 %v3570, 1e-05
      %v3580 = vadd.f32 %v3571, 1e-05
      %v3581 = vadd.f32 %v3572, 1e-05
      %v3582 = vadd.f32 %v3573, 1e-05
      %v3583 = vadd.f32 %v3574, 1e-05
      %v3584 = vadd.f32 %v3575, 1e-05
      %v3585 = vadd.f32 %v3576, 1e-05
      %v3586 = vrsqrt.pop %v3577
      %v3587 = vrsqrt.pop %v3578
      %v3588 = vrsqrt.pop %v3579
      %v3589 = vrsqrt.pop %v3580
      %v3590 = vrsqrt.pop %v3581
      %v3591 = vrsqrt.pop %v3582
      %v3592 = vrsqrt.pop %v3583
      %v3593 = vrsqrt.pop %v3584
      %v3594 = vrsqrt.pop %v3585
      %v3595 = vmul.f32 %v3523, %v3586
      %v3596 = vmul.f32 %v3524, %v3587
      %v3597 = vmul.f32 %v3525, %v3588
      %v3598 = vmul.f32 %v3526, %v3589
      %v3599 = vmul.f32 %v3527, %v3590
      %v3600 = vmul.f32 %v3528, %v3591
      %v3601 = vmul.f32 %v3529, %v3592
      %v3602 = vmul.f32 %v3530, %v3593
      %v3603 = vmul.f32 %v3531, %v3594
      %v3605 = vlaneseq
      %v3606 = vshrl.u32 %v3605, 7
      %v3607 = vsub.s32 0, %v3606
      %v3608 = vrot.slane %v3484, %v3607
      %v3610 = vmul.f32 %v3595, %v3608
      %v3611 = vmul.f32 %v3596, %v3608
      %v3612 = vmul.f32 %v3597, %v3608
      %v3613 = vmul.f32 %v3598, %v3608
      %v3614 = vmul.f32 %v3599, %v3608
      %v3615 = vmul.f32 %v3600, %v3608
      %v3616 = vmul.f32 %v3601, %v3608
      %v3617 = vmul.f32 %v3602, %v3608
      %v3618 = vmul.f32 %v3603, %v3608
      %v3620 = vlaneseq
      %v3621 = vshrl.u32 %v3620, 7
      %v3622 = vsub.s32 0, %v3621
      %v3623 = vrot.slane %v3486, %v3622
      %v3625 = vadd.f32 %v3610, %v3623
      %v3626 = vadd.f32 %v3611, %v3623
      %v3627 = vadd.f32 %v3612, %v3623
      %v3628 = vadd.f32 %v3613, %v3623
      %v3629 = vadd.f32 %v3614, %v3623
      %v3630 = vadd.f32 %v3615, %v3623
      %v3631 = vadd.f32 %v3616, %v3623
      %v3632 = vadd.f32 %v3617, %v3623
      %v3633 = vadd.f32 %v3618, %v3623
      %s3634 = scalar_lea.vmem %s3, 32
      %v3635 = vld [vmem:[%s3634] sm:$0xff]
      %v3636 = vld [vmem:[%s3634 + $0x8] sm:$0xff]
      %v3637 = vld [vmem:[%s3634 + $0x10] sm:$0xff]
      %v3638 = vld [vmem:[%s3634 + $0x18] sm:$0xff]
      %s3639 = scalar_lea.vmem %s4, 1
      %v3640 = vld [vmem:[%s3639] sm:$0x1]
      %v3642 = vlaneseq
      %v3643 = vshrl.u32 %v3642, 7
      %v3644 = vsub.s32 0, %v3643
      %v3645 = vrot.slane %v3640, %v3644
      %v3648 = vsel %vm556, %v3625, 0
      %v3651 = vsel %vm556, %v3626, 0
      %v3654 = vsel %vm556, %v3627, 0
      %v3657 = vsel %vm556, %v3628, 0
      %v3660 = vsel %vm556, %v3629, 0
      %v3663 = vsel %vm556, %v3630, 0
      %v3666 = vsel %vm556, %v3631, 0
      %v3669 = vsel %vm556, %v3632, 0
      %v3672 = vsel %vm556, %v3633, 0
      %3674 = vmatprep.subr.mxu0 0.0
      %3675 = vmatpush1.msra.mxu0 0.0
      %3676 = vmatprep.subr.mxu0 0.0
      %3677 = vmatpush1.msra.mxu0 0.0
      %3678 = vmatprep.subr.mxu0 0.0
      %3679 = vmatpush1.msra.mxu0 0.0
      %3680 = vmatprep.subr.mxu0 0.0
      %3681 = vmatpush1.msra.mxu0 0.0
      %3682 = vmatprep.subr.mxu0 0.0
      %3683 = vmatpush1.msra.mxu0 0.0
      %3684 = vmatprep.subr.mxu0 0.0
      %3685 = vmatpush1.msra.mxu0 0.0
      %3686 = vmatprep.subr.mxu0 0.0
      %3687 = vmatpush1.msra.mxu0 0.0
      %3688 = vmatprep.subr.mxu0 0.0
      %3689 = vmatpush1.msra.mxu0 0.0
      %3690 = vmatprep.subr.mxu0 0.0
      %3691 = vmatpush1.msra.mxu0 0.0
      %3692 = vmatprep.subr.mxu0 0.0
      %3693 = vmatpush1.msra.mxu0 0.0
      %3694 = vmatprep.subr.mxu0 0.0
      %3695 = vmatpush1.msra.mxu0 0.0
      %3696 = vmatprep.subr.mxu0 0.0
      %3697 = vmatpush1.msra.mxu0 0.0
      %3698 = vmatprep.subr.mxu0 0.0
      %3699 = vmatpush1.msra.mxu0 %v3638
      %3700 = vmatprep.subr.mxu0 0.0
      %3701 = vmatpush1.msra.mxu0 %v3637
      %3702 = vmatprep.subr.mxu0 0.0
      %3703 = vmatpush1.msra.mxu0 %v3636
      %3704 = vmatprep.subr.mxu0 0.0
      %3705 = vmatpush1.msra.mxu0 %v3635
      %3706 = vmatprep.subr.mxu0 0.0
      %3707 = vmatpush2.msra.mxu0 0.0
      %3708 = vmatprep.subr.mxu0 0.0
      %3709 = vmatpush2.msra.mxu0 0.0
      %3710 = vmatprep.subr.mxu0 0.0
      %3711 = vmatpush2.msra.mxu0 0.0
      %3712 = vmatprep.subr.mxu0 0.0
      %3713 = vmatpush2.msra.mxu0 0.0
      %3714 = vmatprep.subr.mxu0 0.0
      %3715 = vmatpush2.msra.mxu0 0.0
      %3716 = vmatprep.subr.mxu0 0.0
      %3717 = vmatpush2.msra.mxu0 0.0
      %3718 = vmatprep.subr.mxu0 0.0
      %3719 = vmatpush2.msra.mxu0 0.0
      %3720 = vmatprep.subr.mxu0 0.0
      %3721 = vmatpush2.msra.mxu0 0.0
      %3722 = vmatprep.subr.mxu0 0.0
      %3723 = vmatpush2.msra.mxu0 0.0
      %3724 = vmatprep.subr.mxu0 0.0
      %3725 = vmatpush2.msra.mxu0 0.0
      %3726 = vmatprep.subr.mxu0 0.0
      %3727 = vmatpush2.msra.mxu0 0.0
      %3728 = vmatprep.subr.mxu0 0.0
      %3729 = vmatpush2.msra.mxu0 0.0
      %3730 = vmatprep.subr.mxu0 0.0
      %3731 = vmatpush2.msra.mxu0 0.0
      %3732 = vmatprep.subr.mxu0 0.0
      %3733 = vmatpush2.msra.mxu0 0.0
      %3734 = vmatprep.subr.mxu0 0.0
      %3735 = vmatpush2.msra.mxu0 0.0
      %3736 = vmatprep.subr.mxu0 0.0
      %3737 = vmatpush2.msra.mxu0 0.0
      %3738 = vmatprep.mubr.f32.mxu0 0.0
      %3739 = vmatmul.mubr.f32.gmra.mxu0 %v3648
      %v3740 = vpop.f32.mrf.mxu0
      %v3741 = vadd.f32 %v3645, %v3740
      %v3742 = vpop.f32.mrf.mxu0
      %3743 = vmatprep.mubr.f32.mxu0 0.0
      %3744 = vmatmul.mubr.f32.gmra.mxu0 %v3651
      %v3745 = vpop.f32.mrf.mxu0
      %v3746 = vadd.f32 %v3645, %v3745
      %v3747 = vpop.f32.mrf.mxu0
      %3748 = vmatprep.mubr.f32.mxu0 0.0
      %3749 = vmatmul.mubr.f32.gmra.mxu0 %v3654
      %v3750 = vpop.f32.mrf.mxu0
      %v3751 = vadd.f32 %v3645, %v3750
      %v3752 = vpop.f32.mrf.mxu0
      %3753 = vmatprep.mubr.f32.mxu0 0.0
      %3754 = vmatmul.mubr.f32.gmra.mxu0 %v3657
      %v3755 = vpop.f32.mrf.mxu0
      %v3756 = vadd.f32 %v3645, %v3755
      %v3757 = vpop.f32.mrf.mxu0
      %3758 = vmatprep.mubr.f32.mxu0 0.0
      %3759 = vmatmul.mubr.f32.gmra.mxu0 %v3660
      %v3760 = vpop.f32.mrf.mxu0
      %v3761 = vadd.f32 %v3645, %v3760
      %v3762 = vpop.f32.mrf.mxu0
      %3763 = vmatprep.mubr.f32.mxu0 0.0
      %3764 = vmatmul.mubr.f32.gmra.mxu0 %v3663
      %v3765 = vpop.f32.mrf.mxu0
      %v3766 = vadd.f32 %v3645, %v3765
      %v3767 = vpop.f32.mrf.mxu0
      %3768 = vmatprep.mubr.f32.mxu0 0.0
      %3769 = vmatmul.mubr.f32.gmra.mxu0 %v3666
      %v3770 = vpop.f32.mrf.mxu0
      %v3771 = vadd.f32 %v3645, %v3770
      %v3772 = vpop.f32.mrf.mxu0
      %3773 = vmatprep.mubr.f32.mxu0 0.0
      %3774 = vmatmul.mubr.f32.gmra.mxu0 %v3669
      %v3775 = vpop.f32.mrf.mxu0
      %v3776 = vadd.f32 %v3645, %v3775
      %v3777 = vpop.f32.mrf.mxu0
      %3778 = vmatprep.mubr.f32.mxu0 0.0
      %3779 = vmatmul.mubr.f32.gmra.mxu0 %v3672
      %v3780 = vpop.f32.mrf.mxu0
      %v3781 = vadd.f32 %v3645, %v3780
      %v3782 = vpop.f32.mrf.mxu0
      %3783 = vdwg.mxu0
      %v3784 = vmul.f32 %v3741, 0.35355338
      %v3785 = vmul.f32 %v3746, 0.35355338
      %v3786 = vmul.f32 %v3751, 0.35355338
      %v3787 = vmul.f32 %v3756, 0.35355338
      %v3788 = vmul.f32 %v3761, 0.35355338
      %v3789 = vmul.f32 %v3766, 0.35355338
      %v3790 = vmul.f32 %v3771, 0.35355338
      %v3791 = vmul.f32 %v3776, 0.35355338
      %v3792 = vmul.f32 %v3781, 0.35355338
      %3802 = vrot.lane.b32.xlu0 %v3741, 96
      %v3803 = vpop.permute.xlu0 %3802
      %3804 = vrot.lane.b32.xlu0 %v3746, 96
      %v3805 = vpop.permute.xlu0 %3804
      %3806 = vrot.lane.b32.xlu0 %v3751, 96
      %v3807 = vpop.permute.xlu0 %3806
      %3808 = vrot.lane.b32.xlu0 %v3756, 96
      %v3809 = vpop.permute.xlu0 %3808
      %3810 = vrot.lane.b32.xlu0 %v3761, 96
      %v3811 = vpop.permute.xlu0 %3810
      %3812 = vrot.lane.b32.xlu0 %v3766, 96
      %v3813 = vpop.permute.xlu0 %3812
      %3814 = vrot.lane.b32.xlu0 %v3771, 96
      %v3815 = vpop.permute.xlu0 %3814
      %3816 = vrot.lane.b32.xlu0 %v3776, 96
      %v3817 = vpop.permute.xlu0 %3816
      %3818 = vrot.lane.b32.xlu0 %v3781, 96
      %v3819 = vpop.permute.xlu0 %3818
      %v3821 = vsel %vm890, %v3784, 0
      %v3824 = vsel %vm890, %v3785, 0
      %v3827 = vsel %vm890, %v3786, 0
      %v3830 = vsel %vm890, %v3787, 0
      %v3833 = vsel %vm890, %v3788, 0
      %v3836 = vsel %vm890, %v3789, 0
      %v3839 = vsel %vm890, %v3790, 0
      %v3842 = vsel %vm890, %v3791, 0
      %v3845 = vsel %vm890, %v3792, 0
      %v3847 = vsel %vm890, %v3803, 0
      %v3849 = vsel %vm890, %v3805, 0
      %v3851 = vsel %vm890, %v3807, 0
      %v3853 = vsel %vm890, %v3809, 0
      %v3855 = vsel %vm890, %v3811, 0
      %v3857 = vsel %vm890, %v3813, 0
      %v3859 = vsel %vm890, %v3815, 0
      %v3861 = vsel %vm890, %v3817, 0
      %v3863 = vsel %vm890, %v3819, 0
      %3865 = vmatprep.subr.mxu0 0.0
      %3866 = vmatpush1.xpose.msra.mxu0 0.0
      %3867 = vmatprep.subr.mxu0 0.0
      %3868 = vmatpush1.xpose.msra.mxu0 0.0
      %3869 = vmatprep.subr.mxu0 0.0
      %3870 = vmatpush1.xpose.msra.mxu0 0.0
      %3871 = vmatprep.subr.mxu0 0.0
      %3872 = vmatpush1.xpose.msra.mxu0 0.0
      %3873 = vmatprep.subr.mxu0 0.0
      %3874 = vmatpush1.xpose.msra.mxu0 0.0
      %3875 = vmatprep.subr.mxu0 0.0
      %3876 = vmatpush1.xpose.msra.mxu0 0.0
      %3877 = vmatprep.subr.mxu0 0.0
      %3878 = vmatpush1.xpose.msra.mxu0 0.0
      %3879 = vmatprep.subr.mxu0 0.0
      %3880 = vmatpush1.xpose.msra.mxu0 %v3863
      %3881 = vmatprep.subr.mxu0 0.0
      %3882 = vmatpush1.xpose.msra.mxu0 %v3861
      %3883 = vmatprep.subr.mxu0 0.0
      %3884 = vmatpush1.xpose.msra.mxu0 %v3859
      %3885 = vmatprep.subr.mxu0 0.0
      %3886 = vmatpush1.xpose.msra.mxu0 %v3857
      %3887 = vmatprep.subr.mxu0 0.0
      %3888 = vmatpush1.xpose.msra.mxu0 %v3855
      %3889 = vmatprep.subr.mxu0 0.0
      %3890 = vmatpush1.xpose.msra.mxu0 %v3853
      %3891 = vmatprep.subr.mxu0 0.0
      %3892 = vmatpush1.xpose.msra.mxu0 %v3851
      %3893 = vmatprep.subr.mxu0 0.0
      %3894 = vmatpush1.xpose.msra.mxu0 %v3849
      %3895 = vmatprep.subr.mxu0 0.0
      %3896 = vmatpush1.xpose.msra.mxu0 %v3847
      %3897 = vmatprep.subr.mxu0 0.0
      %3898 = vmatpush2.xpose.msra.mxu0 0.0
      %3899 = vmatprep.subr.mxu0 0.0
      %3900 = vmatpush2.xpose.msra.mxu0 0.0
      %3901 = vmatprep.subr.mxu0 0.0
      %3902 = vmatpush2.xpose.msra.mxu0 0.0
      %3903 = vmatprep.subr.mxu0 0.0
      %3904 = vmatpush2.xpose.msra.mxu0 0.0
      %3905 = vmatprep.subr.mxu0 0.0
      %3906 = vmatpush2.xpose.msra.mxu0 0.0
      %3907 = vmatprep.subr.mxu0 0.0
      %3908 = vmatpush2.xpose.msra.mxu0 0.0
      %3909 = vmatprep.subr.mxu0 0.0
      %3910 = vmatpush2.xpose.msra.mxu0 0.0
      %3911 = vmatprep.subr.mxu0 0.0
      %3912 = vmatpush2.xpose.msra.mxu0 0.0
      %3913 = vmatprep.subr.mxu0 0.0
      %3914 = vmatpush2.xpose.msra.mxu0 0.0
      %3915 = vmatprep.subr.mxu0 0.0
      %3916 = vmatpush2.xpose.msra.mxu0 0.0
      %3917 = vmatprep.subr.mxu0 0.0
      %3918 = vmatpush2.xpose.msra.mxu0 0.0
      %3919 = vmatprep.subr.mxu0 0.0
      %3920 = vmatpush2.xpose.msra.mxu0 0.0
      %3921 = vmatprep.subr.mxu0 0.0
      %3922 = vmatpush2.xpose.msra.mxu0 0.0
      %3923 = vmatprep.subr.mxu0 0.0
      %3924 = vmatpush2.xpose.msra.mxu0 0.0
      %3925 = vmatprep.subr.mxu0 0.0
      %3926 = vmatpush2.xpose.msra.mxu0 0.0
      %3927 = vmatprep.subr.mxu0 0.0
      %3928 = vmatpush2.xpose.msra.mxu0 0.0
      %3929 = vmatprep.mubr.f32.mxu0 0.0
      %3930 = vmatmul.mubr.f32.gmra.mxu0 %v3821
      %v3931 = vpop.f32.mrf.mxu0
      %v3932 = vadd.f32 0.0, %v3931
      %v3933 = vpop.f32.mrf.mxu0
      %3934 = vmatprep.mubr.f32.mxu0 0.0
      %3935 = vmatmul.mubr.f32.gmra.mxu0 %v3824
      %v3936 = vpop.f32.mrf.mxu0
      %v3937 = vadd.f32 0.0, %v3936
      %v3938 = vpop.f32.mrf.mxu0
      %3939 = vmatprep.mubr.f32.mxu0 0.0
      %3940 = vmatmul.mubr.f32.gmra.mxu0 %v3827
      %v3941 = vpop.f32.mrf.mxu0
      %v3942 = vadd.f32 0.0, %v3941
      %v3943 = vpop.f32.mrf.mxu0
      %3944 = vmatprep.mubr.f32.mxu0 0.0
      %3945 = vmatmul.mubr.f32.gmra.mxu0 %v3830
      %v3946 = vpop.f32.mrf.mxu0
      %v3947 = vadd.f32 0.0, %v3946
      %v3948 = vpop.f32.mrf.mxu0
      %3949 = vmatprep.mubr.f32.mxu0 0.0
      %3950 = vmatmul.mubr.f32.gmra.mxu0 %v3833
      %v3951 = vpop.f32.mrf.mxu0
      %v3952 = vadd.f32 0.0, %v3951
      %v3953 = vpop.f32.mrf.mxu0
      %3954 = vmatprep.mubr.f32.mxu0 0.0
      %3955 = vmatmul.mubr.f32.gmra.mxu0 %v3836
      %v3956 = vpop.f32.mrf.mxu0
      %v3957 = vadd.f32 0.0, %v3956
      %v3958 = vpop.f32.mrf.mxu0
      %3959 = vmatprep.mubr.f32.mxu0 0.0
      %3960 = vmatmul.mubr.f32.gmra.mxu0 %v3839
      %v3961 = vpop.f32.mrf.mxu0
      %v3962 = vadd.f32 0.0, %v3961
      %v3963 = vpop.f32.mrf.mxu0
      %3964 = vmatprep.mubr.f32.mxu0 0.0
      %3965 = vmatmul.mubr.f32.gmra.mxu0 %v3842
      %v3966 = vpop.f32.mrf.mxu0
      %v3967 = vadd.f32 0.0, %v3966
      %v3968 = vpop.f32.mrf.mxu0
      %3969 = vmatprep.mubr.f32.mxu0 0.0
      %3970 = vmatmul.mubr.f32.gmra.mxu0 %v3845
      %v3971 = vpop.f32.mrf.mxu0
      %v3972 = vadd.f32 0.0, %v3971
      %v3973 = vpop.f32.mrf.mxu0
      %3974 = vdwg.mxu0
      %v3975 = vsel %vm1046, %v3932, -inf
      %3976 = vmax.xlane.f32.xlu0 %v3975
      %v3977 = vpop.xlane.xlu0 %3976
      %v3978 = vsel %vm1046, %v3937, -inf
      %3979 = vmax.xlane.f32.xlu0 %v3978
      %v3980 = vpop.xlane.xlu0 %3979
      %v3981 = vsel %vm1046, %v3942, -inf
      %3982 = vmax.xlane.f32.xlu0 %v3981
      %v3983 = vpop.xlane.xlu0 %3982
      %v3984 = vsel %vm1046, %v3947, -inf
      %3985 = vmax.xlane.f32.xlu0 %v3984
      %v3986 = vpop.xlane.xlu0 %3985
      %v3987 = vsel %vm1046, %v3952, -inf
      %3988 = vmax.xlane.f32.xlu0 %v3987
      %v3989 = vpop.xlane.xlu0 %3988
      %v3990 = vsel %vm1046, %v3957, -inf
      %3991 = vmax.xlane.f32.xlu0 %v3990
      %v3992 = vpop.xlane.xlu0 %3991
      %v3993 = vsel %vm1046, %v3962, -inf
      %3994 = vmax.xlane.f32.xlu0 %v3993
      %v3995 = vpop.xlane.xlu0 %3994
      %v3996 = vsel %vm1046, %v3967, -inf
      %3997 = vmax.xlane.f32.xlu0 %v3996
      %v3998 = vpop.xlane.xlu0 %3997
      %v3999 = vsel %vm1071, %v3972, -inf
      %4000 = vmax.xlane.f32.xlu0 %v3999
      %v4001 = vpop.xlane.xlu0 %4000
      %v4002 = vsub.f32 %v3932, %v3977
      %v4003 = vsub.f32 %v3937, %v3980
      %v4004 = vsub.f32 %v3942, %v3983
      %v4005 = vsub.f32 %v3947, %v3986
      %v4006 = vsub.f32 %v3952, %v3989
      %v4007 = vsub.f32 %v3957, %v3992
      %v4008 = vsub.f32 %v3962, %v3995
      %v4009 = vsub.f32 %v3967, %v3998
      %v4010 = vsub.f32 %v3972, %v4001
      %v4011 = vmul.f32 %v4002, 1.442695
      %v4012 = vpow.pop %v4011
      %v4013 = vmul.f32 %v4003, 1.442695
      %v4014 = vpow.pop %v4013
      %v4015 = vmul.f32 %v4004, 1.442695
      %v4016 = vpow.pop %v4015
      %v4017 = vmul.f32 %v4005, 1.442695
      %v4018 = vpow.pop %v4017
      %v4019 = vmul.f32 %v4006, 1.442695
      %v4020 = vpow.pop %v4019
      %v4021 = vmul.f32 %v4007, 1.442695
      %v4022 = vpow.pop %v4021
      %v4023 = vmul.f32 %v4008, 1.442695
      %v4024 = vpow.pop %v4023
      %v4025 = vmul.f32 %v4009, 1.442695
      %v4026 = vpow.pop %v4025
      %v4027 = vmul.f32 %v4010, 1.442695
      %v4028 = vpow.pop %v4027
      %v4029 = vsel %vm1046, %v4012, 0.0
      %4030 = vadd.xlane.f32.xlu0 %v4029
      %v4031 = vpop.xlane.xlu0 %4030
      %v4032 = vsel %vm1046, %v4014, 0.0
      %4033 = vadd.xlane.f32.xlu0 %v4032
      %v4034 = vpop.xlane.xlu0 %4033
      %v4035 = vsel %vm1046, %v4016, 0.0
      %4036 = vadd.xlane.f32.xlu0 %v4035
      %v4037 = vpop.xlane.xlu0 %4036
      %v4038 = vsel %vm1046, %v4018, 0.0
      %4039 = vadd.xlane.f32.xlu0 %v4038
      %v4040 = vpop.xlane.xlu0 %4039
      %v4041 = vsel %vm1046, %v4020, 0.0
      %4042 = vadd.xlane.f32.xlu0 %v4041
      %v4043 = vpop.xlane.xlu0 %4042
      %v4044 = vsel %vm1046, %v4022, 0.0
      %4045 = vadd.xlane.f32.xlu0 %v4044
      %v4046 = vpop.xlane.xlu0 %4045
      %v4047 = vsel %vm1046, %v4024, 0.0
      %4048 = vadd.xlane.f32.xlu0 %v4047
      %v4049 = vpop.xlane.xlu0 %4048
      %v4050 = vsel %vm1046, %v4026, 0.0
      %4051 = vadd.xlane.f32.xlu0 %v4050
      %v4052 = vpop.xlane.xlu0 %4051
      %v4053 = vsel %vm1071, %v4028, 0.0
      %4054 = vadd.xlane.f32.xlu0 %v4053
      %v4055 = vpop.xlane.xlu0 %4054
      %v4056 = vrcp.pop %v4031
      %v4057 = vmul.f32 %v4012, %v4056
      %v4058 = vrcp.pop %v4034
      %v4059 = vmul.f32 %v4014, %v4058
      %v4060 = vrcp.pop %v4037
      %v4061 = vmul.f32 %v4016, %v4060
      %v4062 = vrcp.pop %v4040
      %v4063 = vmul.f32 %v4018, %v4062
      %v4064 = vrcp.pop %v4043
      %v4065 = vmul.f32 %v4020, %v4064
      %v4066 = vrcp.pop %v4046
      %v4067 = vmul.f32 %v4022, %v4066
      %v4068 = vrcp.pop %v4049
      %v4069 = vmul.f32 %v4024, %v4068
      %v4070 = vrcp.pop %v4052
      %v4071 = vmul.f32 %v4026, %v4070
      %v4072 = vrcp.pop %v4055
      %v4073 = vmul.f32 %v4028, %v4072
      %4074 = vrot.lane.b32.xlu0 %v3741, 64
      %v4075 = vpop.permute.xlu0 %4074
      %4076 = vrot.lane.b32.xlu0 %v3746, 64
      %v4077 = vpop.permute.xlu0 %4076
      %4078 = vrot.lane.b32.xlu0 %v3751, 64
      %v4079 = vpop.permute.xlu0 %4078
      %4080 = vrot.lane.b32.xlu0 %v3756, 64
      %v4081 = vpop.permute.xlu0 %4080
      %4082 = vrot.lane.b32.xlu0 %v3761, 64
      %v4083 = vpop.permute.xlu0 %4082
      %4084 = vrot.lane.b32.xlu0 %v3766, 64
      %v4085 = vpop.permute.xlu0 %4084
      %4086 = vrot.lane.b32.xlu0 %v3771, 64
      %v4087 = vpop.permute.xlu0 %4086
      %4088 = vrot.lane.b32.xlu0 %v3776, 64
      %v4089 = vpop.permute.xlu0 %4088
      %4090 = vrot.lane.b32.xlu0 %v3781, 64
      %v4091 = vpop.permute.xlu0 %4090
      %v4101 = vsel %vm1046, %v4057, 0
      %v4104 = vsel %vm1046, %v4059, 0
      %v4107 = vsel %vm1046, %v4061, 0
      %v4110 = vsel %vm1046, %v4063, 0
      %v4113 = vsel %vm1046, %v4065, 0
      %v4116 = vsel %vm1046, %v4067, 0
      %v4119 = vsel %vm1046, %v4069, 0
      %v4122 = vsel %vm1046, %v4071, 0
      %v4125 = vsel %vm1046, %v4073, 0
      %v4127 = vsel %vm1200, %v4091, 0
      %4129 = vmatprep.subr.mxu0 0.0
      %4130 = vmatpush1.msra.mxu0 0.0
      %4131 = vmatprep.subr.mxu0 0.0
      %4132 = vmatpush1.msra.mxu0 0.0
      %4133 = vmatprep.subr.mxu0 0.0
      %4134 = vmatpush1.msra.mxu0 0.0
      %4135 = vmatprep.subr.mxu0 0.0
      %4136 = vmatpush1.msra.mxu0 0.0
      %4137 = vmatprep.subr.mxu0 0.0
      %4138 = vmatpush1.msra.mxu0 0.0
      %4139 = vmatprep.subr.mxu0 0.0
      %4140 = vmatpush1.msra.mxu0 0.0
      %4141 = vmatprep.subr.mxu0 0.0
      %4142 = vmatpush1.msra.mxu0 0.0
      %4143 = vmatprep.subr.mxu0 0.0
      %4144 = vmatpush1.msra.mxu0 %v4127
      %4145 = vmatprep.subr.mxu0 0.0
      %4146 = vmatpush1.msra.mxu0 %v4089
      %4147 = vmatprep.subr.mxu0 0.0
      %4148 = vmatpush1.msra.mxu0 %v4087
      %4149 = vmatprep.subr.mxu0 0.0
      %4150 = vmatpush1.msra.mxu0 %v4085
      %4151 = vmatprep.subr.mxu0 0.0
      %4152 = vmatpush1.msra.mxu0 %v4083
      %4153 = vmatprep.subr.mxu0 0.0
      %4154 = vmatpush1.msra.mxu0 %v4081
      %4155 = vmatprep.subr.mxu0 0.0
      %4156 = vmatpush1.msra.mxu0 %v4079
      %4157 = vmatprep.subr.mxu0 0.0
      %4158 = vmatpush1.msra.mxu0 %v4077
      %4159 = vmatprep.subr.mxu0 0.0
      %4160 = vmatpush1.msra.mxu0 %v4075
      %4161 = vmatprep.subr.mxu0 0.0
      %4162 = vmatpush2.msra.mxu0 0.0
      %4163 = vmatprep.subr.mxu0 0.0
      %4164 = vmatpush2.msra.mxu0 0.0
      %4165 = vmatprep.subr.mxu0 0.0
      %4166 = vmatpush2.msra.mxu0 0.0
      %4167 = vmatprep.subr.mxu0 0.0
      %4168 = vmatpush2.msra.mxu0 0.0
      %4169 = vmatprep.subr.mxu0 0.0
      %4170 = vmatpush2.msra.mxu0 0.0
      %4171 = vmatprep.subr.mxu0 0.0
      %4172 = vmatpush2.msra.mxu0 0.0
      %4173 = vmatprep.subr.mxu0 0.0
      %4174 = vmatpush2.msra.mxu0 0.0
      %4175 = vmatprep.subr.mxu0 0.0
      %4176 = vmatpush2.msra.mxu0 0.0
      %4177 = vmatprep.subr.mxu0 0.0
      %4178 = vmatpush2.msra.mxu0 0.0
      %4179 = vmatprep.subr.mxu0 0.0
      %4180 = vmatpush2.msra.mxu0 0.0
      %4181 = vmatprep.subr.mxu0 0.0
      %4182 = vmatpush2.msra.mxu0 0.0
      %4183 = vmatprep.subr.mxu0 0.0
      %4184 = vmatpush2.msra.mxu0 0.0
      %4185 = vmatprep.subr.mxu0 0.0
      %4186 = vmatpush2.msra.mxu0 0.0
      %4187 = vmatprep.subr.mxu0 0.0
      %4188 = vmatpush2.msra.mxu0 0.0
      %4189 = vmatprep.subr.mxu0 0.0
      %4190 = vmatpush2.msra.mxu0 0.0
      %4191 = vmatprep.subr.mxu0 0.0
      %4192 = vmatpush2.msra.mxu0 0.0
      %4193 = vmatprep.mubr.f32.mxu0 0.0
      %4194 = vmatmul.mubr.f32.gmra.mxu0 %v4101
      %v4195 = vpop.f32.mrf.mxu0
      %v4196 = vadd.f32 0.0, %v4195
      %v4197 = vpop.f32.mrf.mxu0
      %4198 = vmatprep.mubr.f32.mxu0 0.0
      %4199 = vmatmul.mubr.f32.gmra.mxu0 %v4104
      %v4200 = vpop.f32.mrf.mxu0
      %v4201 = vadd.f32 0.0, %v4200
      %v4202 = vpop.f32.mrf.mxu0
      %4203 = vmatprep.mubr.f32.mxu0 0.0
      %4204 = vmatmul.mubr.f32.gmra.mxu0 %v4107
      %v4205 = vpop.f32.mrf.mxu0
      %v4206 = vadd.f32 0.0, %v4205
      %v4207 = vpop.f32.mrf.mxu0
      %4208 = vmatprep.mubr.f32.mxu0 0.0
      %4209 = vmatmul.mubr.f32.gmra.mxu0 %v4110
      %v4210 = vpop.f32.mrf.mxu0
      %v4211 = vadd.f32 0.0, %v4210
      %v4212 = vpop.f32.mrf.mxu0
      %4213 = vmatprep.mubr.f32.mxu0 0.0
      %4214 = vmatmul.mubr.f32.gmra.mxu0 %v4113
      %v4215 = vpop.f32.mrf.mxu0
      %v4216 = vadd.f32 0.0, %v4215
      %v4217 = vpop.f32.mrf.mxu0
      %4218 = vmatprep.mubr.f32.mxu0 0.0
      %4219 = vmatmul.mubr.f32.gmra.mxu0 %v4116
      %v4220 = vpop.f32.mrf.mxu0
      %v4221 = vadd.f32 0.0, %v4220
      %v4222 = vpop.f32.mrf.mxu0
      %4223 = vmatprep.mubr.f32.mxu0 0.0
      %4224 = vmatmul.mubr.f32.gmra.mxu0 %v4119
      %v4225 = vpop.f32.mrf.mxu0
      %v4226 = vadd.f32 0.0, %v4225
      %v4227 = vpop.f32.mrf.mxu0
      %4228 = vmatprep.mubr.f32.mxu0 0.0
      %4229 = vmatmul.mubr.f32.gmra.mxu0 %v4122
      %v4230 = vpop.f32.mrf.mxu0
      %v4231 = vadd.f32 0.0, %v4230
      %v4232 = vpop.f32.mrf.mxu0
      %4233 = vmatprep.mubr.f32.mxu0 0.0
      %4234 = vmatmul.mubr.f32.gmra.mxu0 %v4125
      %v4235 = vpop.f32.mrf.mxu0
      %v4236 = vadd.f32 0.0, %v4235
      %v4237 = vpop.f32.mrf.mxu0
      %4238 = vdwg.mxu0
      %4239 = vrot.lane.b32.xlu0 %v3784, 120
      %v4240 = vpop.permute.xlu0 %4239
      %4241 = vrot.lane.b32.xlu0 %v3785, 120
      %v4242 = vpop.permute.xlu0 %4241
      %4243 = vrot.lane.b32.xlu0 %v3786, 120
      %v4244 = vpop.permute.xlu0 %4243
      %4245 = vrot.lane.b32.xlu0 %v3787, 120
      %v4246 = vpop.permute.xlu0 %4245
      %4247 = vrot.lane.b32.xlu0 %v3788, 120
      %v4248 = vpop.permute.xlu0 %4247
      %4249 = vrot.lane.b32.xlu0 %v3789, 120
      %v4250 = vpop.permute.xlu0 %4249
      %4251 = vrot.lane.b32.xlu0 %v3790, 120
      %v4252 = vpop.permute.xlu0 %4251
      %4253 = vrot.lane.b32.xlu0 %v3791, 120
      %v4254 = vpop.permute.xlu0 %4253
      %4255 = vrot.lane.b32.xlu0 %v3792, 120
      %v4256 = vpop.permute.xlu0 %4255
      %4257 = vrot.lane.b32.xlu0 %v3741, 88
      %v4258 = vpop.permute.xlu0 %4257
      %4259 = vrot.lane.b32.xlu0 %v3746, 88
      %v4260 = vpop.permute.xlu0 %4259
      %4261 = vrot.lane.b32.xlu0 %v3751, 88
      %v4262 = vpop.permute.xlu0 %4261
      %4263 = vrot.lane.b32.xlu0 %v3756, 88
      %v4264 = vpop.permute.xlu0 %4263
      %4265 = vrot.lane.b32.xlu0 %v3761, 88
      %v4266 = vpop.permute.xlu0 %4265
      %4267 = vrot.lane.b32.xlu0 %v3766, 88
      %v4268 = vpop.permute.xlu0 %4267
      %4269 = vrot.lane.b32.xlu0 %v3771, 88
      %v4270 = vpop.permute.xlu0 %4269
      %4271 = vrot.lane.b32.xlu0 %v3776, 88
      %v4272 = vpop.permute.xlu0 %4271
      %4273 = vrot.lane.b32.xlu0 %v3781, 88
      %v4274 = vpop.permute.xlu0 %4273
      %v4275 = vsel %vm890, %v4240, 0
      %v4277 = vsel %vm890, %v4242, 0
      %v4279 = vsel %vm890, %v4244, 0
      %v4281 = vsel %vm890, %v4246, 0
      %v4283 = vsel %vm890, %v4248, 0
      %v4285 = vsel %vm890, %v4250, 0
      %v4287 = vsel %vm890, %v4252, 0
      %v4289 = vsel %vm890, %v4254, 0
      %v4291 = vsel %vm890, %v4256, 0
      %v4293 = vsel %vm890, %v4258, 0
      %v4295 = vsel %vm890, %v4260, 0
      %v4297 = vsel %vm890, %v4262, 0
      %v4299 = vsel %vm890, %v4264, 0
      %v4301 = vsel %vm890, %v4266, 0
      %v4303 = vsel %vm890, %v4268, 0
      %v4305 = vsel %vm890, %v4270, 0
      %v4307 = vsel %vm890, %v4272, 0
      %v4309 = vsel %vm890, %v4274, 0
      %4311 = vmatprep.subr.mxu0 0.0
      %4312 = vmatpush1.xpose.msra.mxu0 0.0
      %4313 = vmatprep.subr.mxu0 0.0
      %4314 = vmatpush1.xpose.msra.mxu0 0.0
      %4315 = vmatprep.subr.mxu0 0.0
      %4316 = vmatpush1.xpose.msra.mxu0 0.0
      %4317 = vmatprep.subr.mxu0 0.0
      %4318 = vmatpush1.xpose.msra.mxu0 0.0
      %4319 = vmatprep.subr.mxu0 0.0
      %4320 = vmatpush1.xpose.msra.mxu0 0.0
      %4321 = vmatprep.subr.mxu0 0.0
      %4322 = vmatpush1.xpose.msra.mxu0 0.0
      %4323 = vmatprep.subr.mxu0 0.0
      %4324 = vmatpush1.xpose.msra.mxu0 0.0
      %4325 = vmatprep.subr.mxu0 0.0
      %4326 = vmatpush1.xpose.msra.mxu0 %v4309
      %4327 = vmatprep.subr.mxu0 0.0
      %4328 = vmatpush1.xpose.msra.mxu0 %v4307
      %4329 = vmatprep.subr.mxu0 0.0
      %4330 = vmatpush1.xpose.msra.mxu0 %v4305
      %4331 = vmatprep.subr.mxu0 0.0
      %4332 = vmatpush1.xpose.msra.mxu0 %v4303
      %4333 = vmatprep.subr.mxu0 0.0
      %4334 = vmatpush1.xpose.msra.mxu0 %v4301
      %4335 = vmatprep.subr.mxu0 0.0
      %4336 = vmatpush1.xpose.msra.mxu0 %v4299
      %4337 = vmatprep.subr.mxu0 0.0
      %4338 = vmatpush1.xpose.msra.mxu0 %v4297
      %4339 = vmatprep.subr.mxu0 0.0
      %4340 = vmatpush1.xpose.msra.mxu0 %v4295
      %4341 = vmatprep.subr.mxu0 0.0
      %4342 = vmatpush1.xpose.msra.mxu0 %v4293
      %4343 = vmatprep.subr.mxu0 0.0
      %4344 = vmatpush2.xpose.msra.mxu0 0.0
      %4345 = vmatprep.subr.mxu0 0.0
      %4346 = vmatpush2.xpose.msra.mxu0 0.0
      %4347 = vmatprep.subr.mxu0 0.0
      %4348 = vmatpush2.xpose.msra.mxu0 0.0
      %4349 = vmatprep.subr.mxu0 0.0
      %4350 = vmatpush2.xpose.msra.mxu0 0.0
      %4351 = vmatprep.subr.mxu0 0.0
      %4352 = vmatpush2.xpose.msra.mxu0 0.0
      %4353 = vmatprep.subr.mxu0 0.0
      %4354 = vmatpush2.xpose.msra.mxu0 0.0
      %4355 = vmatprep.subr.mxu0 0.0
      %4356 = vmatpush2.xpose.msra.mxu0 0.0
      %4357 = vmatprep.subr.mxu0 0.0
      %4358 = vmatpush2.xpose.msra.mxu0 0.0
      %4359 = vmatprep.subr.mxu0 0.0
      %4360 = vmatpush2.xpose.msra.mxu0 0.0
      %4361 = vmatprep.subr.mxu0 0.0
      %4362 = vmatpush2.xpose.msra.mxu0 0.0
      %4363 = vmatprep.subr.mxu0 0.0
      %4364 = vmatpush2.xpose.msra.mxu0 0.0
      %4365 = vmatprep.subr.mxu0 0.0
      %4366 = vmatpush2.xpose.msra.mxu0 0.0
      %4367 = vmatprep.subr.mxu0 0.0
      %4368 = vmatpush2.xpose.msra.mxu0 0.0
      %4369 = vmatprep.subr.mxu0 0.0
      %4370 = vmatpush2.xpose.msra.mxu0 0.0
      %4371 = vmatprep.subr.mxu0 0.0
      %4372 = vmatpush2.xpose.msra.mxu0 0.0
      %4373 = vmatprep.subr.mxu0 0.0
      %4374 = vmatpush2.xpose.msra.mxu0 0.0
      %4375 = vmatprep.mubr.f32.mxu0 0.0
      %4376 = vmatmul.mubr.f32.gmra.mxu0 %v4275
      %v4377 = vpop.f32.mrf.mxu0
      %v4378 = vadd.f32 0.0, %v4377
      %v4379 = vpop.f32.mrf.mxu0
      %4380 = vmatprep.mubr.f32.mxu0 0.0
      %4381 = vmatmul.mubr.f32.gmra.mxu0 %v4277
      %v4382 = vpop.f32.mrf.mxu0
      %v4383 = vadd.f32 0.0, %v4382
      %v4384 = vpop.f32.mrf.mxu0
      %4385 = vmatprep.mubr.f32.mxu0 0.0
      %4386 = vmatmul.mubr.f32.gmra.mxu0 %v4279
      %v4387 = vpop.f32.mrf.mxu0
      %v4388 = vadd.f32 0.0, %v4387
      %v4389 = vpop.f32.mrf.mxu0
      %4390 = vmatprep.mubr.f32.mxu0 0.0
      %4391 = vmatmul.mubr.f32.gmra.mxu0 %v4281
      %v4392 = vpop.f32.mrf.mxu0
      %v4393 = vadd.f32 0.0, %v4392
      %v4394 = vpop.f32.mrf.mxu0
      %4395 = vmatprep.mubr.f32.mxu0 0.0
      %4396 = vmatmul.mubr.f32.gmra.mxu0 %v4283
      %v4397 = vpop.f32.mrf.mxu0
      %v4398 = vadd.f32 0.0, %v4397
      %v4399 = vpop.f32.mrf.mxu0
      %4400 = vmatprep.mubr.f32.mxu0 0.0
      %4401 = vmatmul.mubr.f32.gmra.mxu0 %v4285
      %v4402 = vpop.f32.mrf.mxu0
      %v4403 = vadd.f32 0.0, %v4402
      %v4404 = vpop.f32.mrf.mxu0
      %4405 = vmatprep.mubr.f32.mxu0 0.0
      %4406 = vmatmul.mubr.f32.gmra.mxu0 %v4287
      %v4407 = vpop.f32.mrf.mxu0
      %v4408 = vadd.f32 0.0, %v4407
      %v4409 = vpop.f32.mrf.mxu0
      %4410 = vmatprep.mubr.f32.mxu0 0.0
      %4411 = vmatmul.mubr.f32.gmra.mxu0 %v4289
      %v4412 = vpop.f32.mrf.mxu0
      %v4413 = vadd.f32 0.0, %v4412
      %v4414 = vpop.f32.mrf.mxu0
      %4415 = vmatprep.mubr.f32.mxu0 0.0
      %4416 = vmatmul.mubr.f32.gmra.mxu0 %v4291
      %v4417 = vpop.f32.mrf.mxu0
      %v4418 = vadd.f32 0.0, %v4417
      %v4419 = vpop.f32.mrf.mxu0
      %4420 = vdwg.mxu0
      %v4421 = vsel %vm1046, %v4378, -inf
      %4422 = vmax.xlane.f32.xlu0 %v4421
      %v4423 = vpop.xlane.xlu0 %4422
      %v4424 = vsel %vm1046, %v4383, -inf
      %4425 = vmax.xlane.f32.xlu0 %v4424
      %v4426 = vpop.xlane.xlu0 %4425
      %v4427 = vsel %vm1046, %v4388, -inf
      %4428 = vmax.xlane.f32.xlu0 %v4427
      %v4429 = vpop.xlane.xlu0 %4428
      %v4430 = vsel %vm1046, %v4393, -inf
      %4431 = vmax.xlane.f32.xlu0 %v4430
      %v4432 = vpop.xlane.xlu0 %4431
      %v4433 = vsel %vm1046, %v4398, -inf
      %4434 = vmax.xlane.f32.xlu0 %v4433
      %v4435 = vpop.xlane.xlu0 %4434
      %v4436 = vsel %vm1046, %v4403, -inf
      %4437 = vmax.xlane.f32.xlu0 %v4436
      %v4438 = vpop.xlane.xlu0 %4437
      %v4439 = vsel %vm1046, %v4408, -inf
      %4440 = vmax.xlane.f32.xlu0 %v4439
      %v4441 = vpop.xlane.xlu0 %4440
      %v4442 = vsel %vm1046, %v4413, -inf
      %4443 = vmax.xlane.f32.xlu0 %v4442
      %v4444 = vpop.xlane.xlu0 %4443
      %v4445 = vsel %vm1071, %v4418, -inf
      %4446 = vmax.xlane.f32.xlu0 %v4445
      %v4447 = vpop.xlane.xlu0 %4446
      %v4448 = vsub.f32 %v4378, %v4423
      %v4449 = vsub.f32 %v4383, %v4426
      %v4450 = vsub.f32 %v4388, %v4429
      %v4451 = vsub.f32 %v4393, %v4432
      %v4452 = vsub.f32 %v4398, %v4435
      %v4453 = vsub.f32 %v4403, %v4438
      %v4454 = vsub.f32 %v4408, %v4441
      %v4455 = vsub.f32 %v4413, %v4444
      %v4456 = vsub.f32 %v4418, %v4447
      %v4457 = vmul.f32 %v4448, 1.442695
      %v4458 = vpow.pop %v4457
      %v4459 = vmul.f32 %v4449, 1.442695
      %v4460 = vpow.pop %v4459
      %v4461 = vmul.f32 %v4450, 1.442695
      %v4462 = vpow.pop %v4461
      %v4463 = vmul.f32 %v4451, 1.442695
      %v4464 = vpow.pop %v4463
      %v4465 = vmul.f32 %v4452, 1.442695
      %v4466 = vpow.pop %v4465
      %v4467 = vmul.f32 %v4453, 1.442695
      %v4468 = vpow.pop %v4467
      %v4469 = vmul.f32 %v4454, 1.442695
      %v4470 = vpow.pop %v4469
      %v4471 = vmul.f32 %v4455, 1.442695
      %v4472 = vpow.pop %v4471
      %v4473 = vmul.f32 %v4456, 1.442695
      %v4474 = vpow.pop %v4473
      %v4475 = vsel %vm1046, %v4458, 0.0
      %4476 = vadd.xlane.f32.xlu0 %v4475
      %v4477 = vpop.xlane.xlu0 %4476
      %v4478 = vsel %vm1046, %v4460, 0.0
      %4479 = vadd.xlane.f32.xlu0 %v4478
      %v4480 = vpop.xlane.xlu0 %4479
      %v4481 = vsel %vm1046, %v4462, 0.0
      %4482 = vadd.xlane.f32.xlu0 %v4481
      %v4483 = vpop.xlane.xlu0 %4482
      %v4484 = vsel %vm1046, %v4464, 0.0
      %4485 = vadd.xlane.f32.xlu0 %v4484
      %v4486 = vpop.xlane.xlu0 %4485
      %v4487 = vsel %vm1046, %v4466, 0.0
      %4488 = vadd.xlane.f32.xlu0 %v4487
      %v4489 = vpop.xlane.xlu0 %4488
      %v4490 = vsel %vm1046, %v4468, 0.0
      %4491 = vadd.xlane.f32.xlu0 %v4490
      %v4492 = vpop.xlane.xlu0 %4491
      %v4493 = vsel %vm1046, %v4470, 0.0
      %4494 = vadd.xlane.f32.xlu0 %v4493
      %v4495 = vpop.xlane.xlu0 %4494
      %v4496 = vsel %vm1046, %v4472, 0.0
      %4497 = vadd.xlane.f32.xlu0 %v4496
      %v4498 = vpop.xlane.xlu0 %4497
      %v4499 = vsel %vm1071, %v4474, 0.0
      %4500 = vadd.xlane.f32.xlu0 %v4499
      %v4501 = vpop.xlane.xlu0 %4500
      %v4502 = vrcp.pop %v4477
      %v4503 = vmul.f32 %v4458, %v4502
      %v4504 = vrcp.pop %v4480
      %v4505 = vmul.f32 %v4460, %v4504
      %v4506 = vrcp.pop %v4483
      %v4507 = vmul.f32 %v4462, %v4506
      %v4508 = vrcp.pop %v4486
      %v4509 = vmul.f32 %v4464, %v4508
      %v4510 = vrcp.pop %v4489
      %v4511 = vmul.f32 %v4466, %v4510
      %v4512 = vrcp.pop %v4492
      %v4513 = vmul.f32 %v4468, %v4512
      %v4514 = vrcp.pop %v4495
      %v4515 = vmul.f32 %v4470, %v4514
      %v4516 = vrcp.pop %v4498
      %v4517 = vmul.f32 %v4472, %v4516
      %v4518 = vrcp.pop %v4501
      %v4519 = vmul.f32 %v4474, %v4518
      %4520 = vrot.lane.b32.xlu0 %v3741, 56
      %v4521 = vpop.permute.xlu0 %4520
      %4522 = vrot.lane.b32.xlu0 %v3746, 56
      %v4523 = vpop.permute.xlu0 %4522
      %4524 = vrot.lane.b32.xlu0 %v3751, 56
      %v4525 = vpop.permute.xlu0 %4524
      %4526 = vrot.lane.b32.xlu0 %v3756, 56
      %v4527 = vpop.permute.xlu0 %4526
      %4528 = vrot.lane.b32.xlu0 %v3761, 56
      %v4529 = vpop.permute.xlu0 %4528
      %4530 = vrot.lane.b32.xlu0 %v3766, 56
      %v4531 = vpop.permute.xlu0 %4530
      %4532 = vrot.lane.b32.xlu0 %v3771, 56
      %v4533 = vpop.permute.xlu0 %4532
      %4534 = vrot.lane.b32.xlu0 %v3776, 56
      %v4535 = vpop.permute.xlu0 %4534
      %4536 = vrot.lane.b32.xlu0 %v3781, 56
      %v4537 = vpop.permute.xlu0 %4536
      %v4547 = vsel %vm1046, %v4503, 0
      %v4550 = vsel %vm1046, %v4505, 0
      %v4553 = vsel %vm1046, %v4507, 0
      %v4556 = vsel %vm1046, %v4509, 0
      %v4559 = vsel %vm1046, %v4511, 0
      %v4562 = vsel %vm1046, %v4513, 0
      %v4565 = vsel %vm1046, %v4515, 0
      %v4568 = vsel %vm1046, %v4517, 0
      %v4571 = vsel %vm1046, %v4519, 0
      %v4573 = vsel %vm1200, %v4537, 0
      %4575 = vmatprep.subr.mxu0 0.0
      %4576 = vmatpush1.msra.mxu0 0.0
      %4577 = vmatprep.subr.mxu0 0.0
      %4578 = vmatpush1.msra.mxu0 0.0
      %4579 = vmatprep.subr.mxu0 0.0
      %4580 = vmatpush1.msra.mxu0 0.0
      %4581 = vmatprep.subr.mxu0 0.0
      %4582 = vmatpush1.msra.mxu0 0.0
      %4583 = vmatprep.subr.mxu0 0.0
      %4584 = vmatpush1.msra.mxu0 0.0
      %4585 = vmatprep.subr.mxu0 0.0
      %4586 = vmatpush1.msra.mxu0 0.0
      %4587 = vmatprep.subr.mxu0 0.0
      %4588 = vmatpush1.msra.mxu0 0.0
      %4589 = vmatprep.subr.mxu0 0.0
      %4590 = vmatpush1.msra.mxu0 %v4573
      %4591 = vmatprep.subr.mxu0 0.0
      %4592 = vmatpush1.msra.mxu0 %v4535
      %4593 = vmatprep.subr.mxu0 0.0
      %4594 = vmatpush1.msra.mxu0 %v4533
      %4595 = vmatprep.subr.mxu0 0.0
      %4596 = vmatpush1.msra.mxu0 %v4531
      %4597 = vmatprep.subr.mxu0 0.0
      %4598 = vmatpush1.msra.mxu0 %v4529
      %4599 = vmatprep.subr.mxu0 0.0
      %4600 = vmatpush1.msra.mxu0 %v4527
      %4601 = vmatprep.subr.mxu0 0.0
      %4602 = vmatpush1.msra.mxu0 %v4525
      %4603 = vmatprep.subr.mxu0 0.0
      %4604 = vmatpush1.msra.mxu0 %v4523
      %4605 = vmatprep.subr.mxu0 0.0
      %4606 = vmatpush1.msra.mxu0 %v4521
      %4607 = vmatprep.subr.mxu0 0.0
      %4608 = vmatpush2.msra.mxu0 0.0
      %4609 = vmatprep.subr.mxu0 0.0
      %4610 = vmatpush2.msra.mxu0 0.0
      %4611 = vmatprep.subr.mxu0 0.0
      %4612 = vmatpush2.msra.mxu0 0.0
      %4613 = vmatprep.subr.mxu0 0.0
      %4614 = vmatpush2.msra.mxu0 0.0
      %4615 = vmatprep.subr.mxu0 0.0
      %4616 = vmatpush2.msra.mxu0 0.0
      %4617 = vmatprep.subr.mxu0 0.0
      %4618 = vmatpush2.msra.mxu0 0.0
      %4619 = vmatprep.subr.mxu0 0.0
      %4620 = vmatpush2.msra.mxu0 0.0
      %4621 = vmatprep.subr.mxu0 0.0
      %4622 = vmatpush2.msra.mxu0 0.0
      %4623 = vmatprep.subr.mxu0 0.0
      %4624 = vmatpush2.msra.mxu0 0.0
      %4625 = vmatprep.subr.mxu0 0.0
      %4626 = vmatpush2.msra.mxu0 0.0
      %4627 = vmatprep.subr.mxu0 0.0
      %4628 = vmatpush2.msra.mxu0 0.0
      %4629 = vmatprep.subr.mxu0 0.0
      %4630 = vmatpush2.msra.mxu0 0.0
      %4631 = vmatprep.subr.mxu0 0.0
      %4632 = vmatpush2.msra.mxu0 0.0
      %4633 = vmatprep.subr.mxu0 0.0
      %4634 = vmatpush2.msra.mxu0 0.0
      %4635 = vmatprep.subr.mxu0 0.0
      %4636 = vmatpush2.msra.mxu0 0.0
      %4637 = vmatprep.subr.mxu0 0.0
      %4638 = vmatpush2.msra.mxu0 0.0
      %4639 = vmatprep.mubr.f32.mxu0 0.0
      %4640 = vmatmul.mubr.f32.gmra.mxu0 %v4547
      %v4641 = vpop.f32.mrf.mxu0
      %v4642 = vadd.f32 0.0, %v4641
      %v4643 = vpop.f32.mrf.mxu0
      %4644 = vmatprep.mubr.f32.mxu0 0.0
      %4645 = vmatmul.mubr.f32.gmra.mxu0 %v4550
      %v4646 = vpop.f32.mrf.mxu0
      %v4647 = vadd.f32 0.0, %v4646
      %v4648 = vpop.f32.mrf.mxu0
      %4649 = vmatprep.mubr.f32.mxu0 0.0
      %4650 = vmatmul.mubr.f32.gmra.mxu0 %v4553
      %v4651 = vpop.f32.mrf.mxu0
      %v4652 = vadd.f32 0.0, %v4651
      %v4653 = vpop.f32.mrf.mxu0
      %4654 = vmatprep.mubr.f32.mxu0 0.0
      %4655 = vmatmul.mubr.f32.gmra.mxu0 %v4556
      %v4656 = vpop.f32.mrf.mxu0
      %v4657 = vadd.f32 0.0, %v4656
      %v4658 = vpop.f32.mrf.mxu0
      %4659 = vmatprep.mubr.f32.mxu0 0.0
      %4660 = vmatmul.mubr.f32.gmra.mxu0 %v4559
      %v4661 = vpop.f32.mrf.mxu0
      %v4662 = vadd.f32 0.0, %v4661
      %v4663 = vpop.f32.mrf.mxu0
      %4664 = vmatprep.mubr.f32.mxu0 0.0
      %4665 = vmatmul.mubr.f32.gmra.mxu0 %v4562
      %v4666 = vpop.f32.mrf.mxu0
      %v4667 = vadd.f32 0.0, %v4666
      %v4668 = vpop.f32.mrf.mxu0
      %4669 = vmatprep.mubr.f32.mxu0 0.0
      %4670 = vmatmul.mubr.f32.gmra.mxu0 %v4565
      %v4671 = vpop.f32.mrf.mxu0
      %v4672 = vadd.f32 0.0, %v4671
      %v4673 = vpop.f32.mrf.mxu0
      %4674 = vmatprep.mubr.f32.mxu0 0.0
      %4675 = vmatmul.mubr.f32.gmra.mxu0 %v4568
      %v4676 = vpop.f32.mrf.mxu0
      %v4677 = vadd.f32 0.0, %v4676
      %v4678 = vpop.f32.mrf.mxu0
      %4679 = vmatprep.mubr.f32.mxu0 0.0
      %4680 = vmatmul.mubr.f32.gmra.mxu0 %v4571
      %v4681 = vpop.f32.mrf.mxu0
      %v4682 = vadd.f32 0.0, %v4681
      %v4683 = vpop.f32.mrf.mxu0
      %4684 = vdwg.mxu0
      %4685 = vrot.lane.b32.xlu0 %v3784, 112
      %v4686 = vpop.permute.xlu0 %4685
      %4687 = vrot.lane.b32.xlu0 %v3785, 112
      %v4688 = vpop.permute.xlu0 %4687
      %4689 = vrot.lane.b32.xlu0 %v3786, 112
      %v4690 = vpop.permute.xlu0 %4689
      %4691 = vrot.lane.b32.xlu0 %v3787, 112
      %v4692 = vpop.permute.xlu0 %4691
      %4693 = vrot.lane.b32.xlu0 %v3788, 112
      %v4694 = vpop.permute.xlu0 %4693
      %4695 = vrot.lane.b32.xlu0 %v3789, 112
      %v4696 = vpop.permute.xlu0 %4695
      %4697 = vrot.lane.b32.xlu0 %v3790, 112
      %v4698 = vpop.permute.xlu0 %4697
      %4699 = vrot.lane.b32.xlu0 %v3791, 112
      %v4700 = vpop.permute.xlu0 %4699
      %4701 = vrot.lane.b32.xlu0 %v3792, 112
      %v4702 = vpop.permute.xlu0 %4701
      %4703 = vrot.lane.b32.xlu0 %v3741, 80
      %v4704 = vpop.permute.xlu0 %4703
      %4705 = vrot.lane.b32.xlu0 %v3746, 80
      %v4706 = vpop.permute.xlu0 %4705
      %4707 = vrot.lane.b32.xlu0 %v3751, 80
      %v4708 = vpop.permute.xlu0 %4707
      %4709 = vrot.lane.b32.xlu0 %v3756, 80
      %v4710 = vpop.permute.xlu0 %4709
      %4711 = vrot.lane.b32.xlu0 %v3761, 80
      %v4712 = vpop.permute.xlu0 %4711
      %4713 = vrot.lane.b32.xlu0 %v3766, 80
      %v4714 = vpop.permute.xlu0 %4713
      %4715 = vrot.lane.b32.xlu0 %v3771, 80
      %v4716 = vpop.permute.xlu0 %4715
      %4717 = vrot.lane.b32.xlu0 %v3776, 80
      %v4718 = vpop.permute.xlu0 %4717
      %4719 = vrot.lane.b32.xlu0 %v3781, 80
      %v4720 = vpop.permute.xlu0 %4719
      %v4721 = vsel %vm890, %v4686, 0
      %v4723 = vsel %vm890, %v4688, 0
      %v4725 = vsel %vm890, %v4690, 0
      %v4727 = vsel %vm890, %v4692, 0
      %v4729 = vsel %vm890, %v4694, 0
      %v4731 = vsel %vm890, %v4696, 0
      %v4733 = vsel %vm890, %v4698, 0
      %v4735 = vsel %vm890, %v4700, 0
      %v4737 = vsel %vm890, %v4702, 0
      %v4739 = vsel %vm890, %v4704, 0
      %v4741 = vsel %vm890, %v4706, 0
      %v4743 = vsel %vm890, %v4708, 0
      %v4745 = vsel %vm890, %v4710, 0
      %v4747 = vsel %vm890, %v4712, 0
      %v4749 = vsel %vm890, %v4714, 0
      %v4751 = vsel %vm890, %v4716, 0
      %v4753 = vsel %vm890, %v4718, 0
      %v4755 = vsel %vm890, %v4720, 0
      %4757 = vmatprep.subr.mxu0 0.0
      %4758 = vmatpush1.xpose.msra.mxu0 0.0
      %4759 = vmatprep.subr.mxu0 0.0
      %4760 = vmatpush1.xpose.msra.mxu0 0.0
      %4761 = vmatprep.subr.mxu0 0.0
      %4762 = vmatpush1.xpose.msra.mxu0 0.0
      %4763 = vmatprep.subr.mxu0 0.0
      %4764 = vmatpush1.xpose.msra.mxu0 0.0
      %4765 = vmatprep.subr.mxu0 0.0
      %4766 = vmatpush1.xpose.msra.mxu0 0.0
      %4767 = vmatprep.subr.mxu0 0.0
      %4768 = vmatpush1.xpose.msra.mxu0 0.0
      %4769 = vmatprep.subr.mxu0 0.0
      %4770 = vmatpush1.xpose.msra.mxu0 0.0
      %4771 = vmatprep.subr.mxu0 0.0
      %4772 = vmatpush1.xpose.msra.mxu0 %v4755
      %4773 = vmatprep.subr.mxu0 0.0
      %4774 = vmatpush1.xpose.msra.mxu0 %v4753
      %4775 = vmatprep.subr.mxu0 0.0
      %4776 = vmatpush1.xpose.msra.mxu0 %v4751
      %4777 = vmatprep.subr.mxu0 0.0
      %4778 = vmatpush1.xpose.msra.mxu0 %v4749
      %4779 = vmatprep.subr.mxu0 0.0
      %4780 = vmatpush1.xpose.msra.mxu0 %v4747
      %4781 = vmatprep.subr.mxu0 0.0
      %4782 = vmatpush1.xpose.msra.mxu0 %v4745
      %4783 = vmatprep.subr.mxu0 0.0
      %4784 = vmatpush1.xpose.msra.mxu0 %v4743
      %4785 = vmatprep.subr.mxu0 0.0
      %4786 = vmatpush1.xpose.msra.mxu0 %v4741
      %4787 = vmatprep.subr.mxu0 0.0
      %4788 = vmatpush1.xpose.msra.mxu0 %v4739
      %4789 = vmatprep.subr.mxu0 0.0
      %4790 = vmatpush2.xpose.msra.mxu0 0.0
      %4791 = vmatprep.subr.mxu0 0.0
      %4792 = vmatpush2.xpose.msra.mxu0 0.0
      %4793 = vmatprep.subr.mxu0 0.0
      %4794 = vmatpush2.xpose.msra.mxu0 0.0
      %4795 = vmatprep.subr.mxu0 0.0
      %4796 = vmatpush2.xpose.msra.mxu0 0.0
      %4797 = vmatprep.subr.mxu0 0.0
      %4798 = vmatpush2.xpose.msra.mxu0 0.0
      %4799 = vmatprep.subr.mxu0 0.0
      %4800 = vmatpush2.xpose.msra.mxu0 0.0
      %4801 = vmatprep.subr.mxu0 0.0
      %4802 = vmatpush2.xpose.msra.mxu0 0.0
      %4803 = vmatprep.subr.mxu0 0.0
      %4804 = vmatpush2.xpose.msra.mxu0 0.0
      %4805 = vmatprep.subr.mxu0 0.0
      %4806 = vmatpush2.xpose.msra.mxu0 0.0
      %4807 = vmatprep.subr.mxu0 0.0
      %4808 = vmatpush2.xpose.msra.mxu0 0.0
      %4809 = vmatprep.subr.mxu0 0.0
      %4810 = vmatpush2.xpose.msra.mxu0 0.0
      %4811 = vmatprep.subr.mxu0 0.0
      %4812 = vmatpush2.xpose.msra.mxu0 0.0
      %4813 = vmatprep.subr.mxu0 0.0
      %4814 = vmatpush2.xpose.msra.mxu0 0.0
      %4815 = vmatprep.subr.mxu0 0.0
      %4816 = vmatpush2.xpose.msra.mxu0 0.0
      %4817 = vmatprep.subr.mxu0 0.0
      %4818 = vmatpush2.xpose.msra.mxu0 0.0
      %4819 = vmatprep.subr.mxu0 0.0
      %4820 = vmatpush2.xpose.msra.mxu0 0.0
      %4821 = vmatprep.mubr.f32.mxu0 0.0
      %4822 = vmatmul.mubr.f32.gmra.mxu0 %v4721
      %v4823 = vpop.f32.mrf.mxu0
      %v4824 = vadd.f32 0.0, %v4823
      %v4825 = vpop.f32.mrf.mxu0
      %4826 = vmatprep.mubr.f32.mxu0 0.0
      %4827 = vmatmul.mubr.f32.gmra.mxu0 %v4723
      %v4828 = vpop.f32.mrf.mxu0
      %v4829 = vadd.f32 0.0, %v4828
      %v4830 = vpop.f32.mrf.mxu0
      %4831 = vmatprep.mubr.f32.mxu0 0.0
      %4832 = vmatmul.mubr.f32.gmra.mxu0 %v4725
      %v4833 = vpop.f32.mrf.mxu0
      %v4834 = vadd.f32 0.0, %v4833
      %v4835 = vpop.f32.mrf.mxu0
      %4836 = vmatprep.mubr.f32.mxu0 0.0
      %4837 = vmatmul.mubr.f32.gmra.mxu0 %v4727
      %v4838 = vpop.f32.mrf.mxu0
      %v4839 = vadd.f32 0.0, %v4838
      %v4840 = vpop.f32.mrf.mxu0
      %4841 = vmatprep.mubr.f32.mxu0 0.0
      %4842 = vmatmul.mubr.f32.gmra.mxu0 %v4729
      %v4843 = vpop.f32.mrf.mxu0
      %v4844 = vadd.f32 0.0, %v4843
      %v4845 = vpop.f32.mrf.mxu0
      %4846 = vmatprep.mubr.f32.mxu0 0.0
      %4847 = vmatmul.mubr.f32.gmra.mxu0 %v4731
      %v4848 = vpop.f32.mrf.mxu0
      %v4849 = vadd.f32 0.0, %v4848
      %v4850 = vpop.f32.mrf.mxu0
      %4851 = vmatprep.mubr.f32.mxu0 0.0
      %4852 = vmatmul.mubr.f32.gmra.mxu0 %v4733
      %v4853 = vpop.f32.mrf.mxu0
      %v4854 = vadd.f32 0.0, %v4853
      %v4855 = vpop.f32.mrf.mxu0
      %4856 = vmatprep.mubr.f32.mxu0 0.0
      %4857 = vmatmul.mubr.f32.gmra.mxu0 %v4735
      %v4858 = vpop.f32.mrf.mxu0
      %v4859 = vadd.f32 0.0, %v4858
      %v4860 = vpop.f32.mrf.mxu0
      %4861 = vmatprep.mubr.f32.mxu0 0.0
      %4862 = vmatmul.mubr.f32.gmra.mxu0 %v4737
      %v4863 = vpop.f32.mrf.mxu0
      %v4864 = vadd.f32 0.0, %v4863
      %v4865 = vpop.f32.mrf.mxu0
      %4866 = vdwg.mxu0
      %v4867 = vsel %vm1046, %v4824, -inf
      %4868 = vmax.xlane.f32.xlu0 %v4867
      %v4869 = vpop.xlane.xlu0 %4868
      %v4870 = vsel %vm1046, %v4829, -inf
      %4871 = vmax.xlane.f32.xlu0 %v4870
      %v4872 = vpop.xlane.xlu0 %4871
      %v4873 = vsel %vm1046, %v4834, -inf
      %4874 = vmax.xlane.f32.xlu0 %v4873
      %v4875 = vpop.xlane.xlu0 %4874
      %v4876 = vsel %vm1046, %v4839, -inf
      %4877 = vmax.xlane.f32.xlu0 %v4876
      %v4878 = vpop.xlane.xlu0 %4877
      %v4879 = vsel %vm1046, %v4844, -inf
      %4880 = vmax.xlane.f32.xlu0 %v4879
      %v4881 = vpop.xlane.xlu0 %4880
      %v4882 = vsel %vm1046, %v4849, -inf
      %4883 = vmax.xlane.f32.xlu0 %v4882
      %v4884 = vpop.xlane.xlu0 %4883
      %v4885 = vsel %vm1046, %v4854, -inf
      %4886 = vmax.xlane.f32.xlu0 %v4885
      %v4887 = vpop.xlane.xlu0 %4886
      %v4888 = vsel %vm1046, %v4859, -inf
      %4889 = vmax.xlane.f32.xlu0 %v4888
      %v4890 = vpop.xlane.xlu0 %4889
      %v4891 = vsel %vm1071, %v4864, -inf
      %4892 = vmax.xlane.f32.xlu0 %v4891
      %v4893 = vpop.xlane.xlu0 %4892
      %v4894 = vsub.f32 %v4824, %v4869
      %v4895 = vsub.f32 %v4829, %v4872
      %v4896 = vsub.f32 %v4834, %v4875
      %v4897 = vsub.f32 %v4839, %v4878
      %v4898 = vsub.f32 %v4844, %v4881
      %v4899 = vsub.f32 %v4849, %v4884
      %v4900 = vsub.f32 %v4854, %v4887
      %v4901 = vsub.f32 %v4859, %v4890
      %v4902 = vsub.f32 %v4864, %v4893
      %v4903 = vmul.f32 %v4894, 1.442695
      %v4904 = vpow.pop %v4903
      %v4905 = vmul.f32 %v4895, 1.442695
      %v4906 = vpow.pop %v4905
      %v4907 = vmul.f32 %v4896, 1.442695
      %v4908 = vpow.pop %v4907
      %v4909 = vmul.f32 %v4897, 1.442695
      %v4910 = vpow.pop %v4909
      %v4911 = vmul.f32 %v4898, 1.442695
      %v4912 = vpow.pop %v4911
      %v4913 = vmul.f32 %v4899, 1.442695
      %v4914 = vpow.pop %v4913
      %v4915 = vmul.f32 %v4900, 1.442695
      %v4916 = vpow.pop %v4915
      %v4917 = vmul.f32 %v4901, 1.442695
      %v4918 = vpow.pop %v4917
      %v4919 = vmul.f32 %v4902, 1.442695
      %v4920 = vpow.pop %v4919
      %v4921 = vsel %vm1046, %v4904, 0.0
      %4922 = vadd.xlane.f32.xlu0 %v4921
      %v4923 = vpop.xlane.xlu0 %4922
      %v4924 = vsel %vm1046, %v4906, 0.0
      %4925 = vadd.xlane.f32.xlu0 %v4924
      %v4926 = vpop.xlane.xlu0 %4925
      %v4927 = vsel %vm1046, %v4908, 0.0
      %4928 = vadd.xlane.f32.xlu0 %v4927
      %v4929 = vpop.xlane.xlu0 %4928
      %v4930 = vsel %vm1046, %v4910, 0.0
      %4931 = vadd.xlane.f32.xlu0 %v4930
      %v4932 = vpop.xlane.xlu0 %4931
      %v4933 = vsel %vm1046, %v4912, 0.0
      %4934 = vadd.xlane.f32.xlu0 %v4933
      %v4935 = vpop.xlane.xlu0 %4934
      %v4936 = vsel %vm1046, %v4914, 0.0
      %4937 = vadd.xlane.f32.xlu0 %v4936
      %v4938 = vpop.xlane.xlu0 %4937
      %v4939 = vsel %vm1046, %v4916, 0.0
      %4940 = vadd.xlane.f32.xlu0 %v4939
      %v4941 = vpop.xlane.xlu0 %4940
      %v4942 = vsel %vm1046, %v4918, 0.0
      %4943 = vadd.xlane.f32.xlu0 %v4942
      %v4944 = vpop.xlane.xlu0 %4943
      %v4945 = vsel %vm1071, %v4920, 0.0
      %4946 = vadd.xlane.f32.xlu0 %v4945
      %v4947 = vpop.xlane.xlu0 %4946
      %v4948 = vrcp.pop %v4923
      %v4949 = vmul.f32 %v4904, %v4948
      %v4950 = vrcp.pop %v4926
      %v4951 = vmul.f32 %v4906, %v4950
      %v4952 = vrcp.pop %v4929
      %v4953 = vmul.f32 %v4908, %v4952
      %v4954 = vrcp.pop %v4932
      %v4955 = vmul.f32 %v4910, %v4954
      %v4956 = vrcp.pop %v4935
      %v4957 = vmul.f32 %v4912, %v4956
      %v4958 = vrcp.pop %v4938
      %v4959 = vmul.f32 %v4914, %v4958
      %v4960 = vrcp.pop %v4941
      %v4961 = vmul.f32 %v4916, %v4960
      %v4962 = vrcp.pop %v4944
      %v4963 = vmul.f32 %v4918, %v4962
      %v4964 = vrcp.pop %v4947
      %v4965 = vmul.f32 %v4920, %v4964
      %4966 = vrot.lane.b32.xlu0 %v3741, 48
      %v4967 = vpop.permute.xlu0 %4966
      %4968 = vrot.lane.b32.xlu0 %v3746, 48
      %v4969 = vpop.permute.xlu0 %4968
      %4970 = vrot.lane.b32.xlu0 %v3751, 48
      %v4971 = vpop.permute.xlu0 %4970
      %4972 = vrot.lane.b32.xlu0 %v3756, 48
      %v4973 = vpop.permute.xlu0 %4972
      %4974 = vrot.lane.b32.xlu0 %v3761, 48
      %v4975 = vpop.permute.xlu0 %4974
      %4976 = vrot.lane.b32.xlu0 %v3766, 48
      %v4977 = vpop.permute.xlu0 %4976
      %4978 = vrot.lane.b32.xlu0 %v3771, 48
      %v4979 = vpop.permute.xlu0 %4978
      %4980 = vrot.lane.b32.xlu0 %v3776, 48
      %v4981 = vpop.permute.xlu0 %4980
      %4982 = vrot.lane.b32.xlu0 %v3781, 48
      %v4983 = vpop.permute.xlu0 %4982
      %v4993 = vsel %vm1046, %v4949, 0
      %v4996 = vsel %vm1046, %v4951, 0
      %v4999 = vsel %vm1046, %v4953, 0
      %v5002 = vsel %vm1046, %v4955, 0
      %v5005 = vsel %vm1046, %v4957, 0
      %v5008 = vsel %vm1046, %v4959, 0
      %v5011 = vsel %vm1046, %v4961, 0
      %v5014 = vsel %vm1046, %v4963, 0
      %v5017 = vsel %vm1046, %v4965, 0
      %v5019 = vsel %vm1200, %v4983, 0
      %5021 = vmatprep.subr.mxu0 0.0
      %5022 = vmatpush1.msra.mxu0 0.0
      %5023 = vmatprep.subr.mxu0 0.0
      %5024 = vmatpush1.msra.mxu0 0.0
      %5025 = vmatprep.subr.mxu0 0.0
      %5026 = vmatpush1.msra.mxu0 0.0
      %5027 = vmatprep.subr.mxu0 0.0
      %5028 = vmatpush1.msra.mxu0 0.0
      %5029 = vmatprep.subr.mxu0 0.0
      %5030 = vmatpush1.msra.mxu0 0.0
      %5031 = vmatprep.subr.mxu0 0.0
      %5032 = vmatpush1.msra.mxu0 0.0
      %5033 = vmatprep.subr.mxu0 0.0
      %5034 = vmatpush1.msra.mxu0 0.0
      %5035 = vmatprep.subr.mxu0 0.0
      %5036 = vmatpush1.msra.mxu0 %v5019
      %5037 = vmatprep.subr.mxu0 0.0
      %5038 = vmatpush1.msra.mxu0 %v4981
      %5039 = vmatprep.subr.mxu0 0.0
      %5040 = vmatpush1.msra.mxu0 %v4979
      %5041 = vmatprep.subr.mxu0 0.0
      %5042 = vmatpush1.msra.mxu0 %v4977
      %5043 = vmatprep.subr.mxu0 0.0
      %5044 = vmatpush1.msra.mxu0 %v4975
      %5045 = vmatprep.subr.mxu0 0.0
      %5046 = vmatpush1.msra.mxu0 %v4973
      %5047 = vmatprep.subr.mxu0 0.0
      %5048 = vmatpush1.msra.mxu0 %v4971
      %5049 = vmatprep.subr.mxu0 0.0
      %5050 = vmatpush1.msra.mxu0 %v4969
      %5051 = vmatprep.subr.mxu0 0.0
      %5052 = vmatpush1.msra.mxu0 %v4967
      %5053 = vmatprep.subr.mxu0 0.0
      %5054 = vmatpush2.msra.mxu0 0.0
      %5055 = vmatprep.subr.mxu0 0.0
      %5056 = vmatpush2.msra.mxu0 0.0
      %5057 = vmatprep.subr.mxu0 0.0
      %5058 = vmatpush2.msra.mxu0 0.0
      %5059 = vmatprep.subr.mxu0 0.0
      %5060 = vmatpush2.msra.mxu0 0.0
      %5061 = vmatprep.subr.mxu0 0.0
      %5062 = vmatpush2.msra.mxu0 0.0
      %5063 = vmatprep.subr.mxu0 0.0
      %5064 = vmatpush2.msra.mxu0 0.0
      %5065 = vmatprep.subr.mxu0 0.0
      %5066 = vmatpush2.msra.mxu0 0.0
      %5067 = vmatprep.subr.mxu0 0.0
      %5068 = vmatpush2.msra.mxu0 0.0
      %5069 = vmatprep.subr.mxu0 0.0
      %5070 = vmatpush2.msra.mxu0 0.0
      %5071 = vmatprep.subr.mxu0 0.0
      %5072 = vmatpush2.msra.mxu0 0.0
      %5073 = vmatprep.subr.mxu0 0.0
      %5074 = vmatpush2.msra.mxu0 0.0
      %5075 = vmatprep.subr.mxu0 0.0
      %5076 = vmatpush2.msra.mxu0 0.0
      %5077 = vmatprep.subr.mxu0 0.0
      %5078 = vmatpush2.msra.mxu0 0.0
      %5079 = vmatprep.subr.mxu0 0.0
      %5080 = vmatpush2.msra.mxu0 0.0
      %5081 = vmatprep.subr.mxu0 0.0
      %5082 = vmatpush2.msra.mxu0 0.0
      %5083 = vmatprep.subr.mxu0 0.0
      %5084 = vmatpush2.msra.mxu0 0.0
      %5085 = vmatprep.mubr.f32.mxu0 0.0
      %5086 = vmatmul.mubr.f32.gmra.mxu0 %v4993
      %v5087 = vpop.f32.mrf.mxu0
      %v5088 = vadd.f32 0.0, %v5087
      %v5089 = vpop.f32.mrf.mxu0
      %5090 = vmatprep.mubr.f32.mxu0 0.0
      %5091 = vmatmul.mubr.f32.gmra.mxu0 %v4996
      %v5092 = vpop.f32.mrf.mxu0
      %v5093 = vadd.f32 0.0, %v5092
      %v5094 = vpop.f32.mrf.mxu0
      %5095 = vmatprep.mubr.f32.mxu0 0.0
      %5096 = vmatmul.mubr.f32.gmra.mxu0 %v4999
      %v5097 = vpop.f32.mrf.mxu0
      %v5098 = vadd.f32 0.0, %v5097
      %v5099 = vpop.f32.mrf.mxu0
      %5100 = vmatprep.mubr.f32.mxu0 0.0
      %5101 = vmatmul.mubr.f32.gmra.mxu0 %v5002
      %v5102 = vpop.f32.mrf.mxu0
      %v5103 = vadd.f32 0.0, %v5102
      %v5104 = vpop.f32.mrf.mxu0
      %5105 = vmatprep.mubr.f32.mxu0 0.0
      %5106 = vmatmul.mubr.f32.gmra.mxu0 %v5005
      %v5107 = vpop.f32.mrf.mxu0
      %v5108 = vadd.f32 0.0, %v5107
      %v5109 = vpop.f32.mrf.mxu0
      %5110 = vmatprep.mubr.f32.mxu0 0.0
      %5111 = vmatmul.mubr.f32.gmra.mxu0 %v5008
      %v5112 = vpop.f32.mrf.mxu0
      %v5113 = vadd.f32 0.0, %v5112
      %v5114 = vpop.f32.mrf.mxu0
      %5115 = vmatprep.mubr.f32.mxu0 0.0
      %5116 = vmatmul.mubr.f32.gmra.mxu0 %v5011
      %v5117 = vpop.f32.mrf.mxu0
      %v5118 = vadd.f32 0.0, %v5117
      %v5119 = vpop.f32.mrf.mxu0
      %5120 = vmatprep.mubr.f32.mxu0 0.0
      %5121 = vmatmul.mubr.f32.gmra.mxu0 %v5014
      %v5122 = vpop.f32.mrf.mxu0
      %v5123 = vadd.f32 0.0, %v5122
      %v5124 = vpop.f32.mrf.mxu0
      %5125 = vmatprep.mubr.f32.mxu0 0.0
      %5126 = vmatmul.mubr.f32.gmra.mxu0 %v5017
      %v5127 = vpop.f32.mrf.mxu0
      %v5128 = vadd.f32 0.0, %v5127
      %v5129 = vpop.f32.mrf.mxu0
      %5130 = vdwg.mxu0
      %5131 = vrot.lane.b32.xlu0 %v3784, 104
      %v5132 = vpop.permute.xlu0 %5131
      %5133 = vrot.lane.b32.xlu0 %v3785, 104
      %v5134 = vpop.permute.xlu0 %5133
      %5135 = vrot.lane.b32.xlu0 %v3786, 104
      %v5136 = vpop.permute.xlu0 %5135
      %5137 = vrot.lane.b32.xlu0 %v3787, 104
      %v5138 = vpop.permute.xlu0 %5137
      %5139 = vrot.lane.b32.xlu0 %v3788, 104
      %v5140 = vpop.permute.xlu0 %5139
      %5141 = vrot.lane.b32.xlu0 %v3789, 104
      %v5142 = vpop.permute.xlu0 %5141
      %5143 = vrot.lane.b32.xlu0 %v3790, 104
      %v5144 = vpop.permute.xlu0 %5143
      %5145 = vrot.lane.b32.xlu0 %v3791, 104
      %v5146 = vpop.permute.xlu0 %5145
      %5147 = vrot.lane.b32.xlu0 %v3792, 104
      %v5148 = vpop.permute.xlu0 %5147
      %5149 = vrot.lane.b32.xlu0 %v3741, 72
      %v5150 = vpop.permute.xlu0 %5149
      %5151 = vrot.lane.b32.xlu0 %v3746, 72
      %v5152 = vpop.permute.xlu0 %5151
      %5153 = vrot.lane.b32.xlu0 %v3751, 72
      %v5154 = vpop.permute.xlu0 %5153
      %5155 = vrot.lane.b32.xlu0 %v3756, 72
      %v5156 = vpop.permute.xlu0 %5155
      %5157 = vrot.lane.b32.xlu0 %v3761, 72
      %v5158 = vpop.permute.xlu0 %5157
      %5159 = vrot.lane.b32.xlu0 %v3766, 72
      %v5160 = vpop.permute.xlu0 %5159
      %5161 = vrot.lane.b32.xlu0 %v3771, 72
      %v5162 = vpop.permute.xlu0 %5161
      %5163 = vrot.lane.b32.xlu0 %v3776, 72
      %v5164 = vpop.permute.xlu0 %5163
      %5165 = vrot.lane.b32.xlu0 %v3781, 72
      %v5166 = vpop.permute.xlu0 %5165
      %v5167 = vsel %vm890, %v5132, 0
      %v5169 = vsel %vm890, %v5134, 0
      %v5171 = vsel %vm890, %v5136, 0
      %v5173 = vsel %vm890, %v5138, 0
      %v5175 = vsel %vm890, %v5140, 0
      %v5177 = vsel %vm890, %v5142, 0
      %v5179 = vsel %vm890, %v5144, 0
      %v5181 = vsel %vm890, %v5146, 0
      %v5183 = vsel %vm890, %v5148, 0
      %v5185 = vsel %vm890, %v5150, 0
      %v5187 = vsel %vm890, %v5152, 0
      %v5189 = vsel %vm890, %v5154, 0
      %v5191 = vsel %vm890, %v5156, 0
      %v5193 = vsel %vm890, %v5158, 0
      %v5195 = vsel %vm890, %v5160, 0
      %v5197 = vsel %vm890, %v5162, 0
      %v5199 = vsel %vm890, %v5164, 0
      %v5201 = vsel %vm890, %v5166, 0
      %5203 = vmatprep.subr.mxu0 0.0
      %5204 = vmatpush1.xpose.msra.mxu0 0.0
      %5205 = vmatprep.subr.mxu0 0.0
      %5206 = vmatpush1.xpose.msra.mxu0 0.0
      %5207 = vmatprep.subr.mxu0 0.0
      %5208 = vmatpush1.xpose.msra.mxu0 0.0
      %5209 = vmatprep.subr.mxu0 0.0
      %5210 = vmatpush1.xpose.msra.mxu0 0.0
      %5211 = vmatprep.subr.mxu0 0.0
      %5212 = vmatpush1.xpose.msra.mxu0 0.0
      %5213 = vmatprep.subr.mxu0 0.0
      %5214 = vmatpush1.xpose.msra.mxu0 0.0
      %5215 = vmatprep.subr.mxu0 0.0
      %5216 = vmatpush1.xpose.msra.mxu0 0.0
      %5217 = vmatprep.subr.mxu0 0.0
      %5218 = vmatpush1.xpose.msra.mxu0 %v5201
      %5219 = vmatprep.subr.mxu0 0.0
      %5220 = vmatpush1.xpose.msra.mxu0 %v5199
      %5221 = vmatprep.subr.mxu0 0.0
      %5222 = vmatpush1.xpose.msra.mxu0 %v5197
      %5223 = vmatprep.subr.mxu0 0.0
      %5224 = vmatpush1.xpose.msra.mxu0 %v5195
      %5225 = vmatprep.subr.mxu0 0.0
      %5226 = vmatpush1.xpose.msra.mxu0 %v5193
      %5227 = vmatprep.subr.mxu0 0.0
      %5228 = vmatpush1.xpose.msra.mxu0 %v5191
      %5229 = vmatprep.subr.mxu0 0.0
      %5230 = vmatpush1.xpose.msra.mxu0 %v5189
      %5231 = vmatprep.subr.mxu0 0.0
      %5232 = vmatpush1.xpose.msra.mxu0 %v5187
      %5233 = vmatprep.subr.mxu0 0.0
      %5234 = vmatpush1.xpose.msra.mxu0 %v5185
      %5235 = vmatprep.subr.mxu0 0.0
      %5236 = vmatpush2.xpose.msra.mxu0 0.0
      %5237 = vmatprep.subr.mxu0 0.0
      %5238 = vmatpush2.xpose.msra.mxu0 0.0
      %5239 = vmatprep.subr.mxu0 0.0
      %5240 = vmatpush2.xpose.msra.mxu0 0.0
      %5241 = vmatprep.subr.mxu0 0.0
      %5242 = vmatpush2.xpose.msra.mxu0 0.0
      %5243 = vmatprep.subr.mxu0 0.0
      %5244 = vmatpush2.xpose.msra.mxu0 0.0
      %5245 = vmatprep.subr.mxu0 0.0
      %5246 = vmatpush2.xpose.msra.mxu0 0.0
      %5247 = vmatprep.subr.mxu0 0.0
      %5248 = vmatpush2.xpose.msra.mxu0 0.0
      %5249 = vmatprep.subr.mxu0 0.0
      %5250 = vmatpush2.xpose.msra.mxu0 0.0
      %5251 = vmatprep.subr.mxu0 0.0
      %5252 = vmatpush2.xpose.msra.mxu0 0.0
      %5253 = vmatprep.subr.mxu0 0.0
      %5254 = vmatpush2.xpose.msra.mxu0 0.0
      %5255 = vmatprep.subr.mxu0 0.0
      %5256 = vmatpush2.xpose.msra.mxu0 0.0
      %5257 = vmatprep.subr.mxu0 0.0
      %5258 = vmatpush2.xpose.msra.mxu0 0.0
      %5259 = vmatprep.subr.mxu0 0.0
      %5260 = vmatpush2.xpose.msra.mxu0 0.0
      %5261 = vmatprep.subr.mxu0 0.0
      %5262 = vmatpush2.xpose.msra.mxu0 0.0
      %5263 = vmatprep.subr.mxu0 0.0
      %5264 = vmatpush2.xpose.msra.mxu0 0.0
      %5265 = vmatprep.subr.mxu0 0.0
      %5266 = vmatpush2.xpose.msra.mxu0 0.0
      %5267 = vmatprep.mubr.f32.mxu0 0.0
      %5268 = vmatmul.mubr.f32.gmra.mxu0 %v5167
      %v5269 = vpop.f32.mrf.mxu0
      %v5270 = vadd.f32 0.0, %v5269
      %v5271 = vpop.f32.mrf.mxu0
      %5272 = vmatprep.mubr.f32.mxu0 0.0
      %5273 = vmatmul.mubr.f32.gmra.mxu0 %v5169
      %v5274 = vpop.f32.mrf.mxu0
      %v5275 = vadd.f32 0.0, %v5274
      %v5276 = vpop.f32.mrf.mxu0
      %5277 = vmatprep.mubr.f32.mxu0 0.0
      %5278 = vmatmul.mubr.f32.gmra.mxu0 %v5171
      %v5279 = vpop.f32.mrf.mxu0
      %v5280 = vadd.f32 0.0, %v5279
      %v5281 = vpop.f32.mrf.mxu0
      %5282 = vmatprep.mubr.f32.mxu0 0.0
      %5283 = vmatmul.mubr.f32.gmra.mxu0 %v5173
      %v5284 = vpop.f32.mrf.mxu0
      %v5285 = vadd.f32 0.0, %v5284
      %v5286 = vpop.f32.mrf.mxu0
      %5287 = vmatprep.mubr.f32.mxu0 0.0
      %5288 = vmatmul.mubr.f32.gmra.mxu0 %v5175
      %v5289 = vpop.f32.mrf.mxu0
      %v5290 = vadd.f32 0.0, %v5289
      %v5291 = vpop.f32.mrf.mxu0
      %5292 = vmatprep.mubr.f32.mxu0 0.0
      %5293 = vmatmul.mubr.f32.gmra.mxu0 %v5177
      %v5294 = vpop.f32.mrf.mxu0
      %v5295 = vadd.f32 0.0, %v5294
      %v5296 = vpop.f32.mrf.mxu0
      %5297 = vmatprep.mubr.f32.mxu0 0.0
      %5298 = vmatmul.mubr.f32.gmra.mxu0 %v5179
      %v5299 = vpop.f32.mrf.mxu0
      %v5300 = vadd.f32 0.0, %v5299
      %v5301 = vpop.f32.mrf.mxu0
      %5302 = vmatprep.mubr.f32.mxu0 0.0
      %5303 = vmatmul.mubr.f32.gmra.mxu0 %v5181
      %v5304 = vpop.f32.mrf.mxu0
      %v5305 = vadd.f32 0.0, %v5304
      %v5306 = vpop.f32.mrf.mxu0
      %5307 = vmatprep.mubr.f32.mxu0 0.0
      %5308 = vmatmul.mubr.f32.gmra.mxu0 %v5183
      %v5309 = vpop.f32.mrf.mxu0
      %v5310 = vadd.f32 0.0, %v5309
      %v5311 = vpop.f32.mrf.mxu0
      %5312 = vdwg.mxu0
      %v5313 = vsel %vm1046, %v5270, -inf
      %5314 = vmax.xlane.f32.xlu0 %v5313
      %v5315 = vpop.xlane.xlu0 %5314
      %v5316 = vsel %vm1046, %v5275, -inf
      %5317 = vmax.xlane.f32.xlu0 %v5316
      %v5318 = vpop.xlane.xlu0 %5317
      %v5319 = vsel %vm1046, %v5280, -inf
      %5320 = vmax.xlane.f32.xlu0 %v5319
      %v5321 = vpop.xlane.xlu0 %5320
      %v5322 = vsel %vm1046, %v5285, -inf
      %5323 = vmax.xlane.f32.xlu0 %v5322
      %v5324 = vpop.xlane.xlu0 %5323
      %v5325 = vsel %vm1046, %v5290, -inf
      %5326 = vmax.xlane.f32.xlu0 %v5325
      %v5327 = vpop.xlane.xlu0 %5326
      %v5328 = vsel %vm1046, %v5295, -inf
      %5329 = vmax.xlane.f32.xlu0 %v5328
      %v5330 = vpop.xlane.xlu0 %5329
      %v5331 = vsel %vm1046, %v5300, -inf
      %5332 = vmax.xlane.f32.xlu0 %v5331
      %v5333 = vpop.xlane.xlu0 %5332
      %v5334 = vsel %vm1046, %v5305, -inf
      %5335 = vmax.xlane.f32.xlu0 %v5334
      %v5336 = vpop.xlane.xlu0 %5335
      %v5337 = vsel %vm1071, %v5310, -inf
      %5338 = vmax.xlane.f32.xlu0 %v5337
      %v5339 = vpop.xlane.xlu0 %5338
      %v5340 = vsub.f32 %v5270, %v5315
      %v5341 = vsub.f32 %v5275, %v5318
      %v5342 = vsub.f32 %v5280, %v5321
      %v5343 = vsub.f32 %v5285, %v5324
      %v5344 = vsub.f32 %v5290, %v5327
      %v5345 = vsub.f32 %v5295, %v5330
      %v5346 = vsub.f32 %v5300, %v5333
      %v5347 = vsub.f32 %v5305, %v5336
      %v5348 = vsub.f32 %v5310, %v5339
      %v5349 = vmul.f32 %v5340, 1.442695
      %v5350 = vpow.pop %v5349
      %v5351 = vmul.f32 %v5341, 1.442695
      %v5352 = vpow.pop %v5351
      %v5353 = vmul.f32 %v5342, 1.442695
      %v5354 = vpow.pop %v5353
      %v5355 = vmul.f32 %v5343, 1.442695
      %v5356 = vpow.pop %v5355
      %v5357 = vmul.f32 %v5344, 1.442695
      %v5358 = vpow.pop %v5357
      %v5359 = vmul.f32 %v5345, 1.442695
      %v5360 = vpow.pop %v5359
      %v5361 = vmul.f32 %v5346, 1.442695
      %v5362 = vpow.pop %v5361
      %v5363 = vmul.f32 %v5347, 1.442695
      %v5364 = vpow.pop %v5363
      %v5365 = vmul.f32 %v5348, 1.442695
      %v5366 = vpow.pop %v5365
      %v5367 = vsel %vm1046, %v5350, 0.0
      %5368 = vadd.xlane.f32.xlu0 %v5367
      %v5369 = vpop.xlane.xlu0 %5368
      %v5370 = vsel %vm1046, %v5352, 0.0
      %5371 = vadd.xlane.f32.xlu0 %v5370
      %v5372 = vpop.xlane.xlu0 %5371
      %v5373 = vsel %vm1046, %v5354, 0.0
      %5374 = vadd.xlane.f32.xlu0 %v5373
      %v5375 = vpop.xlane.xlu0 %5374
      %v5376 = vsel %vm1046, %v5356, 0.0
      %5377 = vadd.xlane.f32.xlu0 %v5376
      %v5378 = vpop.xlane.xlu0 %5377
      %v5379 = vsel %vm1046, %v5358, 0.0
      %5380 = vadd.xlane.f32.xlu0 %v5379
      %v5381 = vpop.xlane.xlu0 %5380
      %v5382 = vsel %vm1046, %v5360, 0.0
      %5383 = vadd.xlane.f32.xlu0 %v5382
      %v5384 = vpop.xlane.xlu0 %5383
      %v5385 = vsel %vm1046, %v5362, 0.0
      %5386 = vadd.xlane.f32.xlu0 %v5385
      %v5387 = vpop.xlane.xlu0 %5386
      %v5388 = vsel %vm1046, %v5364, 0.0
      %5389 = vadd.xlane.f32.xlu0 %v5388
      %v5390 = vpop.xlane.xlu0 %5389
      %v5391 = vsel %vm1071, %v5366, 0.0
      %5392 = vadd.xlane.f32.xlu0 %v5391
      %v5393 = vpop.xlane.xlu0 %5392
      %v5394 = vrcp.pop %v5369
      %v5395 = vmul.f32 %v5350, %v5394
      %v5396 = vrcp.pop %v5372
      %v5397 = vmul.f32 %v5352, %v5396
      %v5398 = vrcp.pop %v5375
      %v5399 = vmul.f32 %v5354, %v5398
      %v5400 = vrcp.pop %v5378
      %v5401 = vmul.f32 %v5356, %v5400
      %v5402 = vrcp.pop %v5381
      %v5403 = vmul.f32 %v5358, %v5402
      %v5404 = vrcp.pop %v5384
      %v5405 = vmul.f32 %v5360, %v5404
      %v5406 = vrcp.pop %v5387
      %v5407 = vmul.f32 %v5362, %v5406
      %v5408 = vrcp.pop %v5390
      %v5409 = vmul.f32 %v5364, %v5408
      %v5410 = vrcp.pop %v5393
      %v5411 = vmul.f32 %v5366, %v5410
      %5412 = vrot.lane.b32.xlu0 %v3741, 40
      %v5413 = vpop.permute.xlu0 %5412
      %5414 = vrot.lane.b32.xlu0 %v3746, 40
      %v5415 = vpop.permute.xlu0 %5414
      %5416 = vrot.lane.b32.xlu0 %v3751, 40
      %v5417 = vpop.permute.xlu0 %5416
      %5418 = vrot.lane.b32.xlu0 %v3756, 40
      %v5419 = vpop.permute.xlu0 %5418
      %5420 = vrot.lane.b32.xlu0 %v3761, 40
      %v5421 = vpop.permute.xlu0 %5420
      %5422 = vrot.lane.b32.xlu0 %v3766, 40
      %v5423 = vpop.permute.xlu0 %5422
      %5424 = vrot.lane.b32.xlu0 %v3771, 40
      %v5425 = vpop.permute.xlu0 %5424
      %5426 = vrot.lane.b32.xlu0 %v3776, 40
      %v5427 = vpop.permute.xlu0 %5426
      %5428 = vrot.lane.b32.xlu0 %v3781, 40
      %v5429 = vpop.permute.xlu0 %5428
      %v5439 = vsel %vm1046, %v5395, 0
      %v5442 = vsel %vm1046, %v5397, 0
      %v5445 = vsel %vm1046, %v5399, 0
      %v5448 = vsel %vm1046, %v5401, 0
      %v5451 = vsel %vm1046, %v5403, 0
      %v5454 = vsel %vm1046, %v5405, 0
      %v5457 = vsel %vm1046, %v5407, 0
      %v5460 = vsel %vm1046, %v5409, 0
      %v5463 = vsel %vm1046, %v5411, 0
      %v5465 = vsel %vm1200, %v5429, 0
      %5467 = vmatprep.subr.mxu0 0.0
      %5468 = vmatpush1.msra.mxu0 0.0
      %5469 = vmatprep.subr.mxu0 0.0
      %5470 = vmatpush1.msra.mxu0 0.0
      %5471 = vmatprep.subr.mxu0 0.0
      %5472 = vmatpush1.msra.mxu0 0.0
      %5473 = vmatprep.subr.mxu0 0.0
      %5474 = vmatpush1.msra.mxu0 0.0
      %5475 = vmatprep.subr.mxu0 0.0
      %5476 = vmatpush1.msra.mxu0 0.0
      %5477 = vmatprep.subr.mxu0 0.0
      %5478 = vmatpush1.msra.mxu0 0.0
      %5479 = vmatprep.subr.mxu0 0.0
      %5480 = vmatpush1.msra.mxu0 0.0
      %5481 = vmatprep.subr.mxu0 0.0
      %5482 = vmatpush1.msra.mxu0 %v5465
      %5483 = vmatprep.subr.mxu0 0.0
      %5484 = vmatpush1.msra.mxu0 %v5427
      %5485 = vmatprep.subr.mxu0 0.0
      %5486 = vmatpush1.msra.mxu0 %v5425
      %5487 = vmatprep.subr.mxu0 0.0
      %5488 = vmatpush1.msra.mxu0 %v5423
      %5489 = vmatprep.subr.mxu0 0.0
      %5490 = vmatpush1.msra.mxu0 %v5421
      %5491 = vmatprep.subr.mxu0 0.0
      %5492 = vmatpush1.msra.mxu0 %v5419
      %5493 = vmatprep.subr.mxu0 0.0
      %5494 = vmatpush1.msra.mxu0 %v5417
      %5495 = vmatprep.subr.mxu0 0.0
      %5496 = vmatpush1.msra.mxu0 %v5415
      %5497 = vmatprep.subr.mxu0 0.0
      %5498 = vmatpush1.msra.mxu0 %v5413
      %5499 = vmatprep.subr.mxu0 0.0
      %5500 = vmatpush2.msra.mxu0 0.0
      %5501 = vmatprep.subr.mxu0 0.0
      %5502 = vmatpush2.msra.mxu0 0.0
      %5503 = vmatprep.subr.mxu0 0.0
      %5504 = vmatpush2.msra.mxu0 0.0
      %5505 = vmatprep.subr.mxu0 0.0
      %5506 = vmatpush2.msra.mxu0 0.0
      %5507 = vmatprep.subr.mxu0 0.0
      %5508 = vmatpush2.msra.mxu0 0.0
      %5509 = vmatprep.subr.mxu0 0.0
      %5510 = vmatpush2.msra.mxu0 0.0
      %5511 = vmatprep.subr.mxu0 0.0
      %5512 = vmatpush2.msra.mxu0 0.0
      %5513 = vmatprep.subr.mxu0 0.0
      %5514 = vmatpush2.msra.mxu0 0.0
      %5515 = vmatprep.subr.mxu0 0.0
      %5516 = vmatpush2.msra.mxu0 0.0
      %5517 = vmatprep.subr.mxu0 0.0
      %5518 = vmatpush2.msra.mxu0 0.0
      %5519 = vmatprep.subr.mxu0 0.0
      %5520 = vmatpush2.msra.mxu0 0.0
      %5521 = vmatprep.subr.mxu0 0.0
      %5522 = vmatpush2.msra.mxu0 0.0
      %5523 = vmatprep.subr.mxu0 0.0
      %5524 = vmatpush2.msra.mxu0 0.0
      %5525 = vmatprep.subr.mxu0 0.0
      %5526 = vmatpush2.msra.mxu0 0.0
      %5527 = vmatprep.subr.mxu0 0.0
      %5528 = vmatpush2.msra.mxu0 0.0
      %5529 = vmatprep.subr.mxu0 0.0
      %5530 = vmatpush2.msra.mxu0 0.0
      %5531 = vmatprep.mubr.f32.mxu0 0.0
      %5532 = vmatmul.mubr.f32.gmra.mxu0 %v5439
      %v5533 = vpop.f32.mrf.mxu0
      %v5534 = vadd.f32 0.0, %v5533
      %v5535 = vpop.f32.mrf.mxu0
      %5536 = vmatprep.mubr.f32.mxu0 0.0
      %5537 = vmatmul.mubr.f32.gmra.mxu0 %v5442
      %v5538 = vpop.f32.mrf.mxu0
      %v5539 = vadd.f32 0.0, %v5538
      %v5540 = vpop.f32.mrf.mxu0
      %5541 = vmatprep.mubr.f32.mxu0 0.0
      %5542 = vmatmul.mubr.f32.gmra.mxu0 %v5445
      %v5543 = vpop.f32.mrf.mxu0
      %v5544 = vadd.f32 0.0, %v5543
      %v5545 = vpop.f32.mrf.mxu0
      %5546 = vmatprep.mubr.f32.mxu0 0.0
      %5547 = vmatmul.mubr.f32.gmra.mxu0 %v5448
      %v5548 = vpop.f32.mrf.mxu0
      %v5549 = vadd.f32 0.0, %v5548
      %v5550 = vpop.f32.mrf.mxu0
      %5551 = vmatprep.mubr.f32.mxu0 0.0
      %5552 = vmatmul.mubr.f32.gmra.mxu0 %v5451
      %v5553 = vpop.f32.mrf.mxu0
      %v5554 = vadd.f32 0.0, %v5553
      %v5555 = vpop.f32.mrf.mxu0
      %5556 = vmatprep.mubr.f32.mxu0 0.0
      %5557 = vmatmul.mubr.f32.gmra.mxu0 %v5454
      %v5558 = vpop.f32.mrf.mxu0
      %v5559 = vadd.f32 0.0, %v5558
      %v5560 = vpop.f32.mrf.mxu0
      %5561 = vmatprep.mubr.f32.mxu0 0.0
      %5562 = vmatmul.mubr.f32.gmra.mxu0 %v5457
      %v5563 = vpop.f32.mrf.mxu0
      %v5564 = vadd.f32 0.0, %v5563
      %v5565 = vpop.f32.mrf.mxu0
      %5566 = vmatprep.mubr.f32.mxu0 0.0
      %5567 = vmatmul.mubr.f32.gmra.mxu0 %v5460
      %v5568 = vpop.f32.mrf.mxu0
      %v5569 = vadd.f32 0.0, %v5568
      %v5570 = vpop.f32.mrf.mxu0
      %5571 = vmatprep.mubr.f32.mxu0 0.0
      %5572 = vmatmul.mubr.f32.gmra.mxu0 %v5463
      %v5573 = vpop.f32.mrf.mxu0
      %v5574 = vadd.f32 0.0, %v5573
      %v5575 = vpop.f32.mrf.mxu0
      %5576 = vdwg.mxu0
      %5586 = vrot.lane.b32.xlu0 %v4642, 8
      %v5587 = vpop.permute.xlu0 %5586
      %5588 = vrot.lane.b32.xlu0 %v4647, 8
      %v5589 = vpop.permute.xlu0 %5588
      %5590 = vrot.lane.b32.xlu0 %v4652, 8
      %v5591 = vpop.permute.xlu0 %5590
      %5592 = vrot.lane.b32.xlu0 %v4657, 8
      %v5593 = vpop.permute.xlu0 %5592
      %5594 = vrot.lane.b32.xlu0 %v4662, 8
      %v5595 = vpop.permute.xlu0 %5594
      %5596 = vrot.lane.b32.xlu0 %v4667, 8
      %v5597 = vpop.permute.xlu0 %5596
      %5598 = vrot.lane.b32.xlu0 %v4672, 8
      %v5599 = vpop.permute.xlu0 %5598
      %5600 = vrot.lane.b32.xlu0 %v4677, 8
      %v5601 = vpop.permute.xlu0 %5600
      %5602 = vrot.lane.b32.xlu0 %v4682, 8
      %v5603 = vpop.permute.xlu0 %5602
      %5622 = vrot.lane.b32.xlu0 %v5088, 16
      %v5623 = vpop.permute.xlu0 %5622
      %5624 = vrot.lane.b32.xlu0 %v5093, 16
      %v5625 = vpop.permute.xlu0 %5624
      %5626 = vrot.lane.b32.xlu0 %v5098, 16
      %v5627 = vpop.permute.xlu0 %5626
      %5628 = vrot.lane.b32.xlu0 %v5103, 16
      %v5629 = vpop.permute.xlu0 %5628
      %5630 = vrot.lane.b32.xlu0 %v5108, 16
      %v5631 = vpop.permute.xlu0 %5630
      %5632 = vrot.lane.b32.xlu0 %v5113, 16
      %v5633 = vpop.permute.xlu0 %5632
      %5634 = vrot.lane.b32.xlu0 %v5118, 16
      %v5635 = vpop.permute.xlu0 %5634
      %5636 = vrot.lane.b32.xlu0 %v5123, 16
      %v5637 = vpop.permute.xlu0 %5636
      %5638 = vrot.lane.b32.xlu0 %v5128, 16
      %v5639 = vpop.permute.xlu0 %5638
      %5658 = vrot.lane.b32.xlu0 %v5534, 24
      %v5659 = vpop.permute.xlu0 %5658
      %5660 = vrot.lane.b32.xlu0 %v5539, 24
      %v5661 = vpop.permute.xlu0 %5660
      %5662 = vrot.lane.b32.xlu0 %v5544, 24
      %v5663 = vpop.permute.xlu0 %5662
      %5664 = vrot.lane.b32.xlu0 %v5549, 24
      %v5665 = vpop.permute.xlu0 %5664
      %5666 = vrot.lane.b32.xlu0 %v5554, 24
      %v5667 = vpop.permute.xlu0 %5666
      %5668 = vrot.lane.b32.xlu0 %v5559, 24
      %v5669 = vpop.permute.xlu0 %5668
      %5670 = vrot.lane.b32.xlu0 %v5564, 24
      %v5671 = vpop.permute.xlu0 %5670
      %5672 = vrot.lane.b32.xlu0 %v5569, 24
      %v5673 = vpop.permute.xlu0 %5672
      %5674 = vrot.lane.b32.xlu0 %v5574, 24
      %v5675 = vpop.permute.xlu0 %5674
      %v5685 = vsel %vm890, %v4196, %v5587
      %v5686 = vsel %vm890, %v4201, %v5589
      %v5687 = vsel %vm890, %v4206, %v5591
      %v5688 = vsel %vm890, %v4211, %v5593
      %v5689 = vsel %vm890, %v4216, %v5595
      %v5690 = vsel %vm890, %v4221, %v5597
      %v5691 = vsel %vm890, %v4226, %v5599
      %v5692 = vsel %vm890, %v4231, %v5601
      %v5693 = vsel %vm890, %v4236, %v5603
      %v5694 = vsel %vm2768, %v5685, %v5623
      %v5695 = vsel %vm2768, %v5686, %v5625
      %v5696 = vsel %vm2768, %v5687, %v5627
      %v5697 = vsel %vm2768, %v5688, %v5629
      %v5698 = vsel %vm2768, %v5689, %v5631
      %v5699 = vsel %vm2768, %v5690, %v5633
      %v5700 = vsel %vm2768, %v5691, %v5635
      %v5701 = vsel %vm2768, %v5692, %v5637
      %v5702 = vsel %vm2768, %v5693, %v5639
      %v5703 = vsel %vm2778, %v5694, %v5659
      %v5704 = vsel %vm2778, %v5695, %v5661
      %v5705 = vsel %vm2778, %v5696, %v5663
      %v5706 = vsel %vm2778, %v5697, %v5665
      %v5707 = vsel %vm2778, %v5698, %v5667
      %v5708 = vsel %vm2778, %v5699, %v5669
      %v5709 = vsel %vm2778, %v5700, %v5671
      %v5710 = vsel %vm2778, %v5701, %v5673
      %v5711 = vsel %vm2778, %v5702, %v5675
      %s5712 = scalar_lea.vmem %s5, 32
      %v5713 = vld [vmem:[%s5712] sm:$0xff]
      %v5714 = vld [vmem:[%s5712 + $0x8] sm:$0xff]
      %v5715 = vld [vmem:[%s5712 + $0x10] sm:$0xff]
      %v5716 = vld [vmem:[%s5712 + $0x18] sm:$0xff]
      %v5718 = vsel %vm556, %v5703, 0
      %v5721 = vsel %vm556, %v5704, 0
      %v5724 = vsel %vm556, %v5705, 0
      %v5727 = vsel %vm556, %v5706, 0
      %v5730 = vsel %vm556, %v5707, 0
      %v5733 = vsel %vm556, %v5708, 0
      %v5736 = vsel %vm556, %v5709, 0
      %v5739 = vsel %vm556, %v5710, 0
      %v5742 = vsel %vm556, %v5711, 0
      %5744 = vmatprep.subr.mxu0 0.0
      %5745 = vmatpush1.msra.mxu0 0.0
      %5746 = vmatprep.subr.mxu0 0.0
      %5747 = vmatpush1.msra.mxu0 0.0
      %5748 = vmatprep.subr.mxu0 0.0
      %5749 = vmatpush1.msra.mxu0 0.0
      %5750 = vmatprep.subr.mxu0 0.0
      %5751 = vmatpush1.msra.mxu0 0.0
      %5752 = vmatprep.subr.mxu0 0.0
      %5753 = vmatpush1.msra.mxu0 0.0
      %5754 = vmatprep.subr.mxu0 0.0
      %5755 = vmatpush1.msra.mxu0 0.0
      %5756 = vmatprep.subr.mxu0 0.0
      %5757 = vmatpush1.msra.mxu0 0.0
      %5758 = vmatprep.subr.mxu0 0.0
      %5759 = vmatpush1.msra.mxu0 0.0
      %5760 = vmatprep.subr.mxu0 0.0
      %5761 = vmatpush1.msra.mxu0 0.0
      %5762 = vmatprep.subr.mxu0 0.0
      %5763 = vmatpush1.msra.mxu0 0.0
      %5764 = vmatprep.subr.mxu0 0.0
      %5765 = vmatpush1.msra.mxu0 0.0
      %5766 = vmatprep.subr.mxu0 0.0
      %5767 = vmatpush1.msra.mxu0 0.0
      %5768 = vmatprep.subr.mxu0 0.0
      %5769 = vmatpush1.msra.mxu0 %v5716
      %5770 = vmatprep.subr.mxu0 0.0
      %5771 = vmatpush1.msra.mxu0 %v5715
      %5772 = vmatprep.subr.mxu0 0.0
      %5773 = vmatpush1.msra.mxu0 %v5714
      %5774 = vmatprep.subr.mxu0 0.0
      %5775 = vmatpush1.msra.mxu0 %v5713
      %5776 = vmatprep.subr.mxu0 0.0
      %5777 = vmatpush2.msra.mxu0 0.0
      %5778 = vmatprep.subr.mxu0 0.0
      %5779 = vmatpush2.msra.mxu0 0.0
      %5780 = vmatprep.subr.mxu0 0.0
      %5781 = vmatpush2.msra.mxu0 0.0
      %5782 = vmatprep.subr.mxu0 0.0
      %5783 = vmatpush2.msra.mxu0 0.0
      %5784 = vmatprep.subr.mxu0 0.0
      %5785 = vmatpush2.msra.mxu0 0.0
      %5786 = vmatprep.subr.mxu0 0.0
      %5787 = vmatpush2.msra.mxu0 0.0
      %5788 = vmatprep.subr.mxu0 0.0
      %5789 = vmatpush2.msra.mxu0 0.0
      %5790 = vmatprep.subr.mxu0 0.0
      %5791 = vmatpush2.msra.mxu0 0.0
      %5792 = vmatprep.subr.mxu0 0.0
      %5793 = vmatpush2.msra.mxu0 0.0
      %5794 = vmatprep.subr.mxu0 0.0
      %5795 = vmatpush2.msra.mxu0 0.0
      %5796 = vmatprep.subr.mxu0 0.0
      %5797 = vmatpush2.msra.mxu0 0.0
      %5798 = vmatprep.subr.mxu0 0.0
      %5799 = vmatpush2.msra.mxu0 0.0
      %5800 = vmatprep.subr.mxu0 0.0
      %5801 = vmatpush2.msra.mxu0 0.0
      %5802 = vmatprep.subr.mxu0 0.0
      %5803 = vmatpush2.msra.mxu0 0.0
      %5804 = vmatprep.subr.mxu0 0.0
      %5805 = vmatpush2.msra.mxu0 0.0
      %5806 = vmatprep.subr.mxu0 0.0
      %5807 = vmatpush2.msra.mxu0 0.0
      %5808 = vmatprep.mubr.f32.mxu0 0.0
      %5809 = vmatmul.mubr.f32.gmra.mxu0 %v5718
      %v5810 = vpop.f32.mrf.mxu0
      %v5811 = vadd.f32 0.0, %v5810
      %v5812 = vpop.f32.mrf.mxu0
      %5813 = vmatprep.mubr.f32.mxu0 0.0
      %5814 = vmatmul.mubr.f32.gmra.mxu0 %v5721
      %v5815 = vpop.f32.mrf.mxu0
      %v5816 = vadd.f32 0.0, %v5815
      %v5817 = vpop.f32.mrf.mxu0
      %5818 = vmatprep.mubr.f32.mxu0 0.0
      %5819 = vmatmul.mubr.f32.gmra.mxu0 %v5724
      %v5820 = vpop.f32.mrf.mxu0
      %v5821 = vadd.f32 0.0, %v5820
      %v5822 = vpop.f32.mrf.mxu0
      %5823 = vmatprep.mubr.f32.mxu0 0.0
      %5824 = vmatmul.mubr.f32.gmra.mxu0 %v5727
      %v5825 = vpop.f32.mrf.mxu0
      %v5826 = vadd.f32 0.0, %v5825
      %v5827 = vpop.f32.mrf.mxu0
      %5828 = vmatprep.mubr.f32.mxu0 0.0
      %5829 = vmatmul.mubr.f32.gmra.mxu0 %v5730
      %v5830 = vpop.f32.mrf.mxu0
      %v5831 = vadd.f32 0.0, %v5830
      %v5832 = vpop.f32.mrf.mxu0
      %5833 = vmatprep.mubr.f32.mxu0 0.0
      %5834 = vmatmul.mubr.f32.gmra.mxu0 %v5733
      %v5835 = vpop.f32.mrf.mxu0
      %v5836 = vadd.f32 0.0, %v5835
      %v5837 = vpop.f32.mrf.mxu0
      %5838 = vmatprep.mubr.f32.mxu0 0.0
      %5839 = vmatmul.mubr.f32.gmra.mxu0 %v5736
      %v5840 = vpop.f32.mrf.mxu0
      %v5841 = vadd.f32 0.0, %v5840
      %v5842 = vpop.f32.mrf.mxu0
      %5843 = vmatprep.mubr.f32.mxu0 0.0
      %5844 = vmatmul.mubr.f32.gmra.mxu0 %v5739
      %v5845 = vpop.f32.mrf.mxu0
      %v5846 = vadd.f32 0.0, %v5845
      %v5847 = vpop.f32.mrf.mxu0
      %5848 = vmatprep.mubr.f32.mxu0 0.0
      %5849 = vmatmul.mubr.f32.gmra.mxu0 %v5742
      %v5850 = vpop.f32.mrf.mxu0
      %v5851 = vadd.f32 0.0, %v5850
      %v5852 = vpop.f32.mrf.mxu0
      %5853 = vdwg.mxu0
      %v5854 = vadd.f32 %v3474, %v5811
      %v5855 = vadd.f32 %v3475, %v5816
      %v5856 = vadd.f32 %v3476, %v5821
      %v5857 = vadd.f32 %v3477, %v5826
      %v5858 = vadd.f32 %v3478, %v5831
      %v5859 = vadd.f32 %v3479, %v5836
      %v5860 = vadd.f32 %v3480, %v5841
      %v5861 = vadd.f32 %v3481, %v5846
      %v5862 = vadd.f32 %v3482, %v5851
      %s5863 = scalar_lea.vmem %s6, 1
      %v5864 = vld [vmem:[%s5863] sm:$0x1]
      %v5866 = vlaneseq
      %v5867 = vshrl.u32 %v5866, 7
      %v5868 = vsub.s32 0, %v5867
      %v5869 = vrot.slane %v5864, %v5868
      %v5871 = vadd.f32 %v5854, %v5869
      %v5872 = vadd.f32 %v5855, %v5869
      %v5873 = vadd.f32 %v5856, %v5869
      %v5874 = vadd.f32 %v5857, %v5869
      %v5875 = vadd.f32 %v5858, %v5869
      %v5876 = vadd.f32 %v5859, %v5869
      %v5877 = vadd.f32 %v5860, %v5869
      %v5878 = vadd.f32 %v5861, %v5869
      %v5879 = vadd.f32 %v5862, %v5869
      %s5880 = scalar_lea.vmem %s7, 1
      %v5881 = vld [vmem:[%s5880] sm:$0x1]
      %s5882 = scalar_lea.vmem %s8, 1
      %v5883 = vld [vmem:[%s5882] sm:$0x1]
      %v5884 = vsel %vm556, %v5871, 0.0
      %5885 = vadd.xlane.f32.xlu0 %v5884
      %v5886 = vpop.xlane.xlu0 %5885
      %v5887 = vsel %vm556, %v5872, 0.0
      %5888 = vadd.xlane.f32.xlu0 %v5887
      %v5889 = vpop.xlane.xlu0 %5888
      %v5890 = vsel %vm556, %v5873, 0.0
      %5891 = vadd.xlane.f32.xlu0 %v5890
      %v5892 = vpop.xlane.xlu0 %5891
      %v5893 = vsel %vm556, %v5874, 0.0
      %5894 = vadd.xlane.f32.xlu0 %v5893
      %v5895 = vpop.xlane.xlu0 %5894
      %v5896 = vsel %vm556, %v5875, 0.0
      %5897 = vadd.xlane.f32.xlu0 %v5896
      %v5898 = vpop.xlane.xlu0 %5897
      %v5899 = vsel %vm556, %v5876, 0.0
      %5900 = vadd.xlane.f32.xlu0 %v5899
      %v5901 = vpop.xlane.xlu0 %5900
      %v5902 = vsel %vm556, %v5877, 0.0
      %5903 = vadd.xlane.f32.xlu0 %v5902
      %v5904 = vpop.xlane.xlu0 %5903
      %v5905 = vsel %vm556, %v5878, 0.0
      %5906 = vadd.xlane.f32.xlu0 %v5905
      %v5907 = vpop.xlane.xlu0 %5906
      %v5908 = vsel %vm581, %v5879, 0.0
      %5909 = vadd.xlane.f32.xlu0 %v5908
      %v5910 = vpop.xlane.xlu0 %5909
      %v5911 = vmul.f32 %v5886, %v585
      %v5912 = vmul.f32 %v5889, %v585
      %v5913 = vmul.f32 %v5892, %v585
      %v5914 = vmul.f32 %v5895, %v585
      %v5915 = vmul.f32 %v5898, %v585
      %v5916 = vmul.f32 %v5901, %v585
      %v5917 = vmul.f32 %v5904, %v585
      %v5918 = vmul.f32 %v5907, %v585
      %v5919 = vmul.f32 %v5910, %v585
      %v5920 = vsub.f32 %v5871, %v5911
      %v5921 = vsub.f32 %v5872, %v5912
      %v5922 = vsub.f32 %v5873, %v5913
      %v5923 = vsub.f32 %v5874, %v5914
      %v5924 = vsub.f32 %v5875, %v5915
      %v5925 = vsub.f32 %v5876, %v5916
      %v5926 = vsub.f32 %v5877, %v5917
      %v5927 = vsub.f32 %v5878, %v5918
      %v5928 = vsub.f32 %v5879, %v5919
      %v5929 = vmul.f32 %v5920, %v5920
      %v5930 = vmul.f32 %v5921, %v5921
      %v5931 = vmul.f32 %v5922, %v5922
      %v5932 = vmul.f32 %v5923, %v5923
      %v5933 = vmul.f32 %v5924, %v5924
      %v5934 = vmul.f32 %v5925, %v5925
      %v5935 = vmul.f32 %v5926, %v5926
      %v5936 = vmul.f32 %v5927, %v5927
      %v5937 = vmul.f32 %v5928, %v5928
      %v5938 = vsel %vm556, %v5929, 0.0
      %5939 = vadd.xlane.f32.xlu0 %v5938
      %v5940 = vpop.xlane.xlu0 %5939
      %v5941 = vsel %vm556, %v5930, 0.0
      %5942 = vadd.xlane.f32.xlu0 %v5941
      %v5943 = vpop.xlane.xlu0 %5942
      %v5944 = vsel %vm556, %v5931, 0.0
      %5945 = vadd.xlane.f32.xlu0 %v5944
      %v5946 = vpop.xlane.xlu0 %5945
      %v5947 = vsel %vm556, %v5932, 0.0
      %5948 = vadd.xlane.f32.xlu0 %v5947
      %v5949 = vpop.xlane.xlu0 %5948
      %v5950 = vsel %vm556, %v5933, 0.0
      %5951 = vadd.xlane.f32.xlu0 %v5950
      %v5952 = vpop.xlane.xlu0 %5951
      %v5953 = vsel %vm556, %v5934, 0.0
      %5954 = vadd.xlane.f32.xlu0 %v5953
      %v5955 = vpop.xlane.xlu0 %5954
      %v5956 = vsel %vm556, %v5935, 0.0
      %5957 = vadd.xlane.f32.xlu0 %v5956
      %v5958 = vpop.xlane.xlu0 %5957
      %v5959 = vsel %vm556, %v5936, 0.0
      %5960 = vadd.xlane.f32.xlu0 %v5959
      %v5961 = vpop.xlane.xlu0 %5960
      %v5962 = vsel %vm581, %v5937, 0.0
      %5963 = vadd.xlane.f32.xlu0 %v5962
      %v5964 = vpop.xlane.xlu0 %5963
      %v5965 = vmul.f32 %v5940, %v585
      %v5966 = vmul.f32 %v5943, %v585
      %v5967 = vmul.f32 %v5946, %v585
      %v5968 = vmul.f32 %v5949, %v585
      %v5969 = vmul.f32 %v5952, %v585
      %v5970 = vmul.f32 %v5955, %v585
      %v5971 = vmul.f32 %v5958, %v585
      %v5972 = vmul.f32 %v5961, %v585
      %v5973 = vmul.f32 %v5964, %v585
      %v5974 = vadd.f32 %v5965, 1e-05
      %v5975 = vadd.f32 %v5966, 1e-05
      %v5976 = vadd.f32 %v5967, 1e-05
      %v5977 = vadd.f32 %v5968, 1e-05
      %v5978 = vadd.f32 %v5969, 1e-05
      %v5979 = vadd.f32 %v5970, 1e-05
      %v5980 = vadd.f32 %v5971, 1e-05
      %v5981 = vadd.f32 %v5972, 1e-05
      %v5982 = vadd.f32 %v5973, 1e-05
      %v5983 = vrsqrt.pop %v5974
      %v5984 = vrsqrt.pop %v5975
      %v5985 = vrsqrt.pop %v5976
      %v5986 = vrsqrt.pop %v5977
      %v5987 = vrsqrt.pop %v5978
      %v5988 = vrsqrt.pop %v5979
      %v5989 = vrsqrt.pop %v5980
      %v5990 = vrsqrt.pop %v5981
      %v5991 = vrsqrt.pop %v5982
      %v5992 = vmul.f32 %v5920, %v5983
      %v5993 = vmul.f32 %v5921, %v5984
      %v5994 = vmul.f32 %v5922, %v5985
      %v5995 = vmul.f32 %v5923, %v5986
      %v5996 = vmul.f32 %v5924, %v5987
      %v5997 = vmul.f32 %v5925, %v5988
      %v5998 = vmul.f32 %v5926, %v5989
      %v5999 = vmul.f32 %v5927, %v5990
      %v6000 = vmul.f32 %v5928, %v5991
      %v6002 = vlaneseq
      %v6003 = vshrl.u32 %v6002, 7
      %v6004 = vsub.s32 0, %v6003
      %v6005 = vrot.slane %v5881, %v6004
      %v6007 = vmul.f32 %v5992, %v6005
      %v6008 = vmul.f32 %v5993, %v6005
      %v6009 = vmul.f32 %v5994, %v6005
      %v6010 = vmul.f32 %v5995, %v6005
      %v6011 = vmul.f32 %v5996, %v6005
      %v6012 = vmul.f32 %v5997, %v6005
      %v6013 = vmul.f32 %v5998, %v6005
      %v6014 = vmul.f32 %v5999, %v6005
      %v6015 = vmul.f32 %v6000, %v6005
      %v6017 = vlaneseq
      %v6018 = vshrl.u32 %v6017, 7
      %v6019 = vsub.s32 0, %v6018
      %v6020 = vrot.slane %v5883, %v6019
      %v6022 = vadd.f32 %v6007, %v6020
      %v6023 = vadd.f32 %v6008, %v6020
      %v6024 = vadd.f32 %v6009, %v6020
      %v6025 = vadd.f32 %v6010, %v6020
      %v6026 = vadd.f32 %v6011, %v6020
      %v6027 = vadd.f32 %v6012, %v6020
      %v6028 = vadd.f32 %v6013, %v6020
      %v6029 = vadd.f32 %v6014, %v6020
      %v6030 = vadd.f32 %v6015, %v6020
      %s6031 = scalar_lea.vmem %s9, 32
      %v6032 = vld [vmem:[%s6031] sm:$0xff]
      %v6033 = vld [vmem:[%s6031 + $0x8] sm:$0xff]
      %v6034 = vld [vmem:[%s6031 + $0x10] sm:$0xff]
      %v6035 = vld [vmem:[%s6031 + $0x18] sm:$0xff]
      %s6036 = scalar_lea.vmem %s10, 1
      %v6037 = vld [vmem:[%s6036] sm:$0x1]
      %v6039 = vlaneseq
      %v6040 = vshrl.u32 %v6039, 7
      %v6041 = vsub.s32 0, %v6040
      %v6042 = vrot.slane %v6037, %v6041
      %v6045 = vsel %vm556, %v6022, 0
      %v6048 = vsel %vm556, %v6023, 0
      %v6051 = vsel %vm556, %v6024, 0
      %v6054 = vsel %vm556, %v6025, 0
      %v6057 = vsel %vm556, %v6026, 0
      %v6060 = vsel %vm556, %v6027, 0
      %v6063 = vsel %vm556, %v6028, 0
      %v6066 = vsel %vm556, %v6029, 0
      %v6069 = vsel %vm556, %v6030, 0
      %6071 = vmatprep.subr.mxu0 0.0
      %6072 = vmatpush1.msra.mxu0 0.0
      %6073 = vmatprep.subr.mxu0 0.0
      %6074 = vmatpush1.msra.mxu0 0.0
      %6075 = vmatprep.subr.mxu0 0.0
      %6076 = vmatpush1.msra.mxu0 0.0
      %6077 = vmatprep.subr.mxu0 0.0
      %6078 = vmatpush1.msra.mxu0 0.0
      %6079 = vmatprep.subr.mxu0 0.0
      %6080 = vmatpush1.msra.mxu0 0.0
      %6081 = vmatprep.subr.mxu0 0.0
      %6082 = vmatpush1.msra.mxu0 0.0
      %6083 = vmatprep.subr.mxu0 0.0
      %6084 = vmatpush1.msra.mxu0 0.0
      %6085 = vmatprep.subr.mxu0 0.0
      %6086 = vmatpush1.msra.mxu0 0.0
      %6087 = vmatprep.subr.mxu0 0.0
      %6088 = vmatpush1.msra.mxu0 0.0
      %6089 = vmatprep.subr.mxu0 0.0
      %6090 = vmatpush1.msra.mxu0 0.0
      %6091 = vmatprep.subr.mxu0 0.0
      %6092 = vmatpush1.msra.mxu0 0.0
      %6093 = vmatprep.subr.mxu0 0.0
      %6094 = vmatpush1.msra.mxu0 0.0
      %6095 = vmatprep.subr.mxu0 0.0
      %6096 = vmatpush1.msra.mxu0 %v6035
      %6097 = vmatprep.subr.mxu0 0.0
      %6098 = vmatpush1.msra.mxu0 %v6034
      %6099 = vmatprep.subr.mxu0 0.0
      %6100 = vmatpush1.msra.mxu0 %v6033
      %6101 = vmatprep.subr.mxu0 0.0
      %6102 = vmatpush1.msra.mxu0 %v6032
      %6103 = vmatprep.subr.mxu0 0.0
      %6104 = vmatpush2.msra.mxu0 0.0
      %6105 = vmatprep.subr.mxu0 0.0
      %6106 = vmatpush2.msra.mxu0 0.0
      %6107 = vmatprep.subr.mxu0 0.0
      %6108 = vmatpush2.msra.mxu0 0.0
      %6109 = vmatprep.subr.mxu0 0.0
      %6110 = vmatpush2.msra.mxu0 0.0
      %6111 = vmatprep.subr.mxu0 0.0
      %6112 = vmatpush2.msra.mxu0 0.0
      %6113 = vmatprep.subr.mxu0 0.0
      %6114 = vmatpush2.msra.mxu0 0.0
      %6115 = vmatprep.subr.mxu0 0.0
      %6116 = vmatpush2.msra.mxu0 0.0
      %6117 = vmatprep.subr.mxu0 0.0
      %6118 = vmatpush2.msra.mxu0 0.0
      %6119 = vmatprep.subr.mxu0 0.0
      %6120 = vmatpush2.msra.mxu0 0.0
      %6121 = vmatprep.subr.mxu0 0.0
      %6122 = vmatpush2.msra.mxu0 0.0
      %6123 = vmatprep.subr.mxu0 0.0
      %6124 = vmatpush2.msra.mxu0 0.0
      %6125 = vmatprep.subr.mxu0 0.0
      %6126 = vmatpush2.msra.mxu0 0.0
      %6127 = vmatprep.subr.mxu0 0.0
      %6128 = vmatpush2.msra.mxu0 0.0
      %6129 = vmatprep.subr.mxu0 0.0
      %6130 = vmatpush2.msra.mxu0 0.0
      %6131 = vmatprep.subr.mxu0 0.0
      %6132 = vmatpush2.msra.mxu0 0.0
      %6133 = vmatprep.subr.mxu0 0.0
      %6134 = vmatpush2.msra.mxu0 0.0
      %6135 = vmatprep.mubr.f32.mxu0 0.0
      %6136 = vmatmul.mubr.f32.gmra.mxu0 %v6045
      %v6137 = vpop.f32.mrf.mxu0
      %v6138 = vadd.f32 %v6042, %v6137
      %v6139 = vpop.f32.mrf.mxu0
      %6140 = vmatprep.mubr.f32.mxu0 0.0
      %6141 = vmatmul.mubr.f32.gmra.mxu0 %v6048
      %v6142 = vpop.f32.mrf.mxu0
      %v6143 = vadd.f32 %v6042, %v6142
      %v6144 = vpop.f32.mrf.mxu0
      %6145 = vmatprep.mubr.f32.mxu0 0.0
      %6146 = vmatmul.mubr.f32.gmra.mxu0 %v6051
      %v6147 = vpop.f32.mrf.mxu0
      %v6148 = vadd.f32 %v6042, %v6147
      %v6149 = vpop.f32.mrf.mxu0
      %6150 = vmatprep.mubr.f32.mxu0 0.0
      %6151 = vmatmul.mubr.f32.gmra.mxu0 %v6054
      %v6152 = vpop.f32.mrf.mxu0
      %v6153 = vadd.f32 %v6042, %v6152
      %v6154 = vpop.f32.mrf.mxu0
      %6155 = vmatprep.mubr.f32.mxu0 0.0
      %6156 = vmatmul.mubr.f32.gmra.mxu0 %v6057
      %v6157 = vpop.f32.mrf.mxu0
      %v6158 = vadd.f32 %v6042, %v6157
      %v6159 = vpop.f32.mrf.mxu0
      %6160 = vmatprep.mubr.f32.mxu0 0.0
      %6161 = vmatmul.mubr.f32.gmra.mxu0 %v6060
      %v6162 = vpop.f32.mrf.mxu0
      %v6163 = vadd.f32 %v6042, %v6162
      %v6164 = vpop.f32.mrf.mxu0
      %6165 = vmatprep.mubr.f32.mxu0 0.0
      %6166 = vmatmul.mubr.f32.gmra.mxu0 %v6063
      %v6167 = vpop.f32.mrf.mxu0
      %v6168 = vadd.f32 %v6042, %v6167
      %v6169 = vpop.f32.mrf.mxu0
      %6170 = vmatprep.mubr.f32.mxu0 0.0
      %6171 = vmatmul.mubr.f32.gmra.mxu0 %v6066
      %v6172 = vpop.f32.mrf.mxu0
      %v6173 = vadd.f32 %v6042, %v6172
      %v6174 = vpop.f32.mrf.mxu0
      %6175 = vmatprep.mubr.f32.mxu0 0.0
      %6176 = vmatmul.mubr.f32.gmra.mxu0 %v6069
      %v6177 = vpop.f32.mrf.mxu0
      %v6178 = vadd.f32 %v6042, %v6177
      %v6179 = vpop.f32.mrf.mxu0
      %6180 = vdwg.mxu0
      %v6181 = vmul.f32 %v6138, %v6138
      %v6182 = vmul.f32 %v6143, %v6143
      %v6183 = vmul.f32 %v6148, %v6148
      %v6184 = vmul.f32 %v6153, %v6153
      %v6185 = vmul.f32 %v6158, %v6158
      %v6186 = vmul.f32 %v6163, %v6163
      %v6187 = vmul.f32 %v6168, %v6168
      %v6188 = vmul.f32 %v6173, %v6173
      %v6189 = vmul.f32 %v6178, %v6178
      %v6190 = vmul.f32 %v6138, %v6181
      %v6191 = vmul.f32 %v6143, %v6182
      %v6192 = vmul.f32 %v6148, %v6183
      %v6193 = vmul.f32 %v6153, %v6184
      %v6194 = vmul.f32 %v6158, %v6185
      %v6195 = vmul.f32 %v6163, %v6186
      %v6196 = vmul.f32 %v6168, %v6187
      %v6197 = vmul.f32 %v6173, %v6188
      %v6198 = vmul.f32 %v6178, %v6189
      %v6199 = vmul.f32 %v6190, 0.044715
      %v6200 = vmul.f32 %v6191, 0.044715
      %v6201 = vmul.f32 %v6192, 0.044715
      %v6202 = vmul.f32 %v6193, 0.044715
      %v6203 = vmul.f32 %v6194, 0.044715
      %v6204 = vmul.f32 %v6195, 0.044715
      %v6205 = vmul.f32 %v6196, 0.044715
      %v6206 = vmul.f32 %v6197, 0.044715
      %v6207 = vmul.f32 %v6198, 0.044715
      %v6208 = vadd.f32 %v6138, %v6199
      %v6209 = vadd.f32 %v6143, %v6200
      %v6210 = vadd.f32 %v6148, %v6201
      %v6211 = vadd.f32 %v6153, %v6202
      %v6212 = vadd.f32 %v6158, %v6203
      %v6213 = vadd.f32 %v6163, %v6204
      %v6214 = vadd.f32 %v6168, %v6205
      %v6215 = vadd.f32 %v6173, %v6206
      %v6216 = vadd.f32 %v6178, %v6207
      %v6217 = vmul.f32 %v6208, 0.7978846
      %v6218 = vmul.f32 %v6209, 0.7978846
      %v6219 = vmul.f32 %v6210, 0.7978846
      %v6220 = vmul.f32 %v6211, 0.7978846
      %v6221 = vmul.f32 %v6212, 0.7978846
      %v6222 = vmul.f32 %v6213, 0.7978846
      %v6223 = vmul.f32 %v6214, 0.7978846
      %v6224 = vmul.f32 %v6215, 0.7978846
      %v6225 = vmul.f32 %v6216, 0.7978846
      %v6226 = vtanh.pop %v6217
      %v6227 = vtanh.pop %v6218
      %v6228 = vtanh.pop %v6219
      %v6229 = vtanh.pop %v6220
      %v6230 = vtanh.pop %v6221
      %v6231 = vtanh.pop %v6222
      %v6232 = vtanh.pop %v6223
      %v6233 = vtanh.pop %v6224
      %v6234 = vtanh.pop %v6225
      %v6235 = vadd.f32 %v6226, 1.0
      %v6236 = vadd.f32 %v6227, 1.0
      %v6237 = vadd.f32 %v6228, 1.0
      %v6238 = vadd.f32 %v6229, 1.0
      %v6239 = vadd.f32 %v6230, 1.0
      %v6240 = vadd.f32 %v6231, 1.0
      %v6241 = vadd.f32 %v6232, 1.0
      %v6242 = vadd.f32 %v6233, 1.0
      %v6243 = vadd.f32 %v6234, 1.0
      %v6244 = vmul.f32 %v6235, 0.5
      %v6245 = vmul.f32 %v6236, 0.5
      %v6246 = vmul.f32 %v6237, 0.5
      %v6247 = vmul.f32 %v6238, 0.5
      %v6248 = vmul.f32 %v6239, 0.5
      %v6249 = vmul.f32 %v6240, 0.5
      %v6250 = vmul.f32 %v6241, 0.5
      %v6251 = vmul.f32 %v6242, 0.5
      %v6252 = vmul.f32 %v6243, 0.5
      %v6253 = vmul.f32 %v6138, %v6244
      %v6254 = vmul.f32 %v6143, %v6245
      %v6255 = vmul.f32 %v6148, %v6246
      %v6256 = vmul.f32 %v6153, %v6247
      %v6257 = vmul.f32 %v6158, %v6248
      %v6258 = vmul.f32 %v6163, %v6249
      %v6259 = vmul.f32 %v6168, %v6250
      %v6260 = vmul.f32 %v6173, %v6251
      %v6261 = vmul.f32 %v6178, %v6252
      %s6262 = scalar_lea.vmem %s11, 128
      %v6263 = vld [vmem:[%s6262] sm:$0xff]
      %v6264 = vld [vmem:[%s6262 + $0x8] sm:$0xff]
      %v6265 = vld [vmem:[%s6262 + $0x10] sm:$0xff]
      %v6266 = vld [vmem:[%s6262 + $0x18] sm:$0xff]
      %v6267 = vld [vmem:[%s6262 + $0x20] sm:$0xff]
      %v6268 = vld [vmem:[%s6262 + $0x28] sm:$0xff]
      %v6269 = vld [vmem:[%s6262 + $0x30] sm:$0xff]
      %v6270 = vld [vmem:[%s6262 + $0x38] sm:$0xff]
      %v6271 = vld [vmem:[%s6262 + $0x40] sm:$0xff]
      %v6272 = vld [vmem:[%s6262 + $0x48] sm:$0xff]
      %v6273 = vld [vmem:[%s6262 + $0x50] sm:$0xff]
      %v6274 = vld [vmem:[%s6262 + $0x58] sm:$0xff]
      %v6275 = vld [vmem:[%s6262 + $0x60] sm:$0xff]
      %v6276 = vld [vmem:[%s6262 + $0x68] sm:$0xff]
      %v6277 = vld [vmem:[%s6262 + $0x70] sm:$0xff]
      %v6278 = vld [vmem:[%s6262 + $0x78] sm:$0xff]
      %6279 = vmatprep.subr.mxu0 0.0
      %6280 = vmatpush1.msra.mxu0 %v6278
      %6281 = vmatprep.subr.mxu0 0.0
      %6282 = vmatpush1.msra.mxu0 %v6277
      %6283 = vmatprep.subr.mxu0 0.0
      %6284 = vmatpush1.msra.mxu0 %v6276
      %6285 = vmatprep.subr.mxu0 0.0
      %6286 = vmatpush1.msra.mxu0 %v6275
      %6287 = vmatprep.subr.mxu0 0.0
      %6288 = vmatpush1.msra.mxu0 %v6274
      %6289 = vmatprep.subr.mxu0 0.0
      %6290 = vmatpush1.msra.mxu0 %v6273
      %6291 = vmatprep.subr.mxu0 0.0
      %6292 = vmatpush1.msra.mxu0 %v6272
      %6293 = vmatprep.subr.mxu0 0.0
      %6294 = vmatpush1.msra.mxu0 %v6271
      %6295 = vmatprep.subr.mxu0 0.0
      %6296 = vmatpush1.msra.mxu0 %v6270
      %6297 = vmatprep.subr.mxu0 0.0
      %6298 = vmatpush1.msra.mxu0 %v6269
      %6299 = vmatprep.subr.mxu0 0.0
      %6300 = vmatpush1.msra.mxu0 %v6268
      %6301 = vmatprep.subr.mxu0 0.0
      %6302 = vmatpush1.msra.mxu0 %v6267
      %6303 = vmatprep.subr.mxu0 0.0
      %6304 = vmatpush1.msra.mxu0 %v6266
      %6305 = vmatprep.subr.mxu0 0.0
      %6306 = vmatpush1.msra.mxu0 %v6265
      %6307 = vmatprep.subr.mxu0 0.0
      %6308 = vmatpush1.msra.mxu0 %v6264
      %6309 = vmatprep.subr.mxu0 0.0
      %6310 = vmatpush1.msra.mxu0 %v6263
      %6311 = vmatprep.subr.mxu0 0.0
      %6312 = vmatpush2.msra.mxu0 0.0
      %6313 = vmatprep.subr.mxu0 0.0
      %6314 = vmatpush2.msra.mxu0 0.0
      %6315 = vmatprep.subr.mxu0 0.0
      %6316 = vmatpush2.msra.mxu0 0.0
      %6317 = vmatprep.subr.mxu0 0.0
      %6318 = vmatpush2.msra.mxu0 0.0
      %6319 = vmatprep.subr.mxu0 0.0
      %6320 = vmatpush2.msra.mxu0 0.0
      %6321 = vmatprep.subr.mxu0 0.0
      %6322 = vmatpush2.msra.mxu0 0.0
      %6323 = vmatprep.subr.mxu0 0.0
      %6324 = vmatpush2.msra.mxu0 0.0
      %6325 = vmatprep.subr.mxu0 0.0
      %6326 = vmatpush2.msra.mxu0 0.0
      %6327 = vmatprep.subr.mxu0 0.0
      %6328 = vmatpush2.msra.mxu0 0.0
      %6329 = vmatprep.subr.mxu0 0.0
      %6330 = vmatpush2.msra.mxu0 0.0
      %6331 = vmatprep.subr.mxu0 0.0
      %6332 = vmatpush2.msra.mxu0 0.0
      %6333 = vmatprep.subr.mxu0 0.0
      %6334 = vmatpush2.msra.mxu0 0.0
      %6335 = vmatprep.subr.mxu0 0.0
      %6336 = vmatpush2.msra.mxu0 0.0
      %6337 = vmatprep.subr.mxu0 0.0
      %6338 = vmatpush2.msra.mxu0 0.0
      %6339 = vmatprep.subr.mxu0 0.0
      %6340 = vmatpush2.msra.mxu0 0.0
      %6341 = vmatprep.subr.mxu0 0.0
      %6342 = vmatpush2.msra.mxu0 0.0
      %6343 = vmatprep.mubr.f32.mxu0 0.0
      %6344 = vmatmul.mubr.f32.gmra.mxu0 %v6253
      %v6345 = vpop.f32.mrf.mxu0
      %v6346 = vadd.f32 0.0, %v6345
      %v6347 = vpop.f32.mrf.mxu0
      %6348 = vmatprep.mubr.f32.mxu0 0.0
      %6349 = vmatmul.mubr.f32.gmra.mxu0 %v6254
      %v6350 = vpop.f32.mrf.mxu0
      %v6351 = vpop.f32.mrf.mxu0
      %6352 = vmatprep.mubr.f32.mxu0 0.0
      %6353 = vmatmul.mubr.f32.gmra.mxu0 %v6255
      %v6354 = vpop.f32.mrf.mxu0
      %v6355 = vpop.f32.mrf.mxu0
      %6356 = vmatprep.mubr.f32.mxu0 0.0
      %6357 = vmatmul.mubr.f32.gmra.mxu0 %v6256
      %v6358 = vpop.f32.mrf.mxu0
      %v6359 = vpop.f32.mrf.mxu0
      %6360 = vmatprep.mubr.f32.mxu0 0.0
      %6361 = vmatmul.mubr.f32.gmra.mxu0 %v6257
      %v6362 = vpop.f32.mrf.mxu0
      %v6363 = vpop.f32.mrf.mxu0
      %6364 = vmatprep.mubr.f32.mxu0 0.0
      %6365 = vmatmul.mubr.f32.gmra.mxu0 %v6258
      %v6366 = vpop.f32.mrf.mxu0
      %v6367 = vpop.f32.mrf.mxu0
      %6368 = vmatprep.mubr.f32.mxu0 0.0
      %6369 = vmatmul.mubr.f32.gmra.mxu0 %v6259
      %v6370 = vpop.f32.mrf.mxu0
      %v6371 = vpop.f32.mrf.mxu0
      %6372 = vmatprep.mubr.f32.mxu0 0.0
      %6373 = vmatmul.mubr.f32.gmra.mxu0 %v6260
      %v6374 = vpop.f32.mrf.mxu0
      %v6375 = vpop.f32.mrf.mxu0
      %6376 = vmatprep.mubr.f32.mxu0 0.0
      %6377 = vmatmul.mubr.f32.gmra.mxu0 %v6261
      %v6378 = vpop.f32.mrf.mxu0
      %v6379 = vpop.f32.mrf.mxu0
      %6380 = vdwg.mxu0
      %v6381 = vadd.f32 %v5871, %v6346
      %s6382 = scalar_lea.vmem %s12, 1
      %v6383 = vld [vmem:[%s6382] sm:$0x1]
      %v6385 = vlaneseq
      %v6386 = vshrl.u32 %v6385, 7
      %v6387 = vsub.s32 0, %v6386
      %v6388 = vrot.slane %v6383, %v6387
      %v6390 = vadd.f32 %v6381, %v6388
      %v6391 = vld [vmem:[%s13] sm:$0x1]
      %v6392 = vld [vmem:[%s14] sm:$0x1]
      %v6393 = vsel %vm581, %v6390, 0.0
      %6394 = vadd.xlane.f32.xlu0 %v6393
      %v6395 = vpop.xlane.xlu0 %6394
      %v6396 = vmul.f32 %v6395, %v585
      %v6397 = vsub.f32 %v6390, %v6396
      %v6398 = vmul.f32 %v6397, %v6397
      %v6399 = vsel %vm581, %v6398, 0.0
      %6400 = vadd.xlane.f32.xlu0 %v6399
      %v6401 = vpop.xlane.xlu0 %6400
      %v6402 = vmul.f32 %v6401, %v585
      %v6403 = vadd.f32 %v6402, 1e-05
      %v6404 = vrsqrt.pop %v6403
      %v6405 = vmul.f32 %v6397, %v6404
      %v6406 = vmul.f32 %v6405, %v6391
      %v6407 = vadd.f32 %v6406, %v6392
      %v6408 = vld [vmem:[%s15] sm:$0xff]
      %v6409 = vld [vmem:[%s15 + $0x8] sm:$0xff]
      %v6410 = vld [vmem:[%s15 + $0x10] sm:$0xff]
      %v6411 = vld [vmem:[%s15 + $0x18] sm:$0xff]
      %v6412 = vld [vmem:[%s16] sm:$0x1]
      %v6414 = vsel %vm556, %v6407, 0
      %6416 = vmatprep.subr.mxu0 0.0
      %6417 = vmatpush1.msra.mxu0 0.0
      %6418 = vmatprep.subr.mxu0 0.0
      %6419 = vmatpush1.msra.mxu0 0.0
      %6420 = vmatprep.subr.mxu0 0.0
      %6421 = vmatpush1.msra.mxu0 0.0
      %6422 = vmatprep.subr.mxu0 0.0
      %6423 = vmatpush1.msra.mxu0 0.0
      %6424 = vmatprep.subr.mxu0 0.0
      %6425 = vmatpush1.msra.mxu0 0.0
      %6426 = vmatprep.subr.mxu0 0.0
      %6427 = vmatpush1.msra.mxu0 0.0
      %6428 = vmatprep.subr.mxu0 0.0
      %6429 = vmatpush1.msra.mxu0 0.0
      %6430 = vmatprep.subr.mxu0 0.0
      %6431 = vmatpush1.msra.mxu0 0.0
      %6432 = vmatprep.subr.mxu0 0.0
      %6433 = vmatpush1.msra.mxu0 0.0
      %6434 = vmatprep.subr.mxu0 0.0
      %6435 = vmatpush1.msra.mxu0 0.0
      %6436 = vmatprep.subr.mxu0 0.0
      %6437 = vmatpush1.msra.mxu0 0.0
      %6438 = vmatprep.subr.mxu0 0.0
      %6439 = vmatpush1.msra.mxu0 0.0
      %6440 = vmatprep.subr.mxu0 0.0
      %6441 = vmatpush1.msra.mxu0 %v6411
      %6442 = vmatprep.subr.mxu0 0.0
      %6443 = vmatpush1.msra.mxu0 %v6410
      %6444 = vmatprep.subr.mxu0 0.0
      %6445 = vmatpush1.msra.mxu0 %v6409
      %6446 = vmatprep.subr.mxu0 0.0
      %6447 = vmatpush1.msra.mxu0 %v6408
      %6448 = vmatprep.subr.mxu0 0.0
      %6449 = vmatpush2.msra.mxu0 0.0
      %6450 = vmatprep.subr.mxu0 0.0
      %6451 = vmatpush2.msra.mxu0 0.0
      %6452 = vmatprep.subr.mxu0 0.0
      %6453 = vmatpush2.msra.mxu0 0.0
      %6454 = vmatprep.subr.mxu0 0.0
      %6455 = vmatpush2.msra.mxu0 0.0
      %6456 = vmatprep.subr.mxu0 0.0
      %6457 = vmatpush2.msra.mxu0 0.0
      %6458 = vmatprep.subr.mxu0 0.0
      %6459 = vmatpush2.msra.mxu0 0.0
      %6460 = vmatprep.subr.mxu0 0.0
      %6461 = vmatpush2.msra.mxu0 0.0
      %6462 = vmatprep.subr.mxu0 0.0
      %6463 = vmatpush2.msra.mxu0 0.0
      %6464 = vmatprep.subr.mxu0 0.0
      %6465 = vmatpush2.msra.mxu0 0.0
      %6466 = vmatprep.subr.mxu0 0.0
      %6467 = vmatpush2.msra.mxu0 0.0
      %6468 = vmatprep.subr.mxu0 0.0
      %6469 = vmatpush2.msra.mxu0 0.0
      %6470 = vmatprep.subr.mxu0 0.0
      %6471 = vmatpush2.msra.mxu0 0.0
      %6472 = vmatprep.subr.mxu0 0.0
      %6473 = vmatpush2.msra.mxu0 0.0
      %6474 = vmatprep.subr.mxu0 0.0
      %6475 = vmatpush2.msra.mxu0 0.0
      %6476 = vmatprep.subr.mxu0 0.0
      %6477 = vmatpush2.msra.mxu0 0.0
      %6478 = vmatprep.subr.mxu0 0.0
      %6479 = vmatpush2.msra.mxu0 0.0
      %6480 = vmatprep.mubr.f32.mxu0 0.0
      %6481 = vmatmul.mubr.f32.gmra.mxu0 %v6414
      %v6482 = vpop.f32.mrf.mxu0
      %v6483 = vadd.f32 %v6412, %v6482
      %v6484 = vpop.f32.mrf.mxu0
      %6485 = vdwg.mxu0
      %6486 = vst [vmem:[%s544] sm:$0x1] %v6483
      %p6487 = scmp.lt.s32.totalorder %s28, 1
      %s6488 = scalar_select %p6487, %s28, 1
      %s6489 = scalar_lea.vmem %s17, %s6488
      // Predicated region
      $region89: #{chess_forward.1} parent=87 // pred_check
        %p6490 = pneg %p408
      $region90: #{chess_forward.1} parent=87 // pred_check_branch
        %6492 = sbr.rel (%p6490) target = $region92
      $region91: #{chess_forward.1} parent=87 // pred_region
        _
      $region92: #{chess_forward.1} parent=87 // pred_fallthru
        _
    $region88: #{chess_forward.1} parent=5 // pred_fallthru
      _
    %p6493 = scmp.le.s32.totalorder 2, %s23
    // Predicated region
    $region93: #{chess_forward.1} parent=5 // pred_check
      %p6494 = pneg %p6493
    $region94: #{chess_forward.1} parent=5 // pred_check_branch
      %6496 = sbr.rel (%p6494) target = $region96
    $region95: #{chess_forward.1} parent=5 // pred_region
      %s6497 = ssub.s32 %s23, 2
      // Predicated region
      $region97: #{chess_forward.1} parent=95 // pred_check
        %p6498 = pneg %p414
      $region98: #{chess_forward.1} parent=95 // pred_check_branch
        %6500 = sbr.rel (%p6498) target = $region100
      $region99: #{chess_forward.1} parent=95 // pred_region
        %p6501 = scmp.lt.s32.totalorder %s29, 1
        %s6502 = scalar_select %p6501, %s29, 1
        %s6503 = scalar_lea.vmem %s17, %s6502
      $region100: #{chess_forward.1} parent=95 // pred_fallthru
        _
    $region96: #{chess_forward.1} parent=5 // pred_fallthru
      _
  $region6: #{chess_forward.1} parent=0 // loop_footer
    %s27 = sadd.s32 1, %s23
  $region7: #{chess_forward.1} parent=0 // loop_footer_branch
    %22 = sbr.rel target = $region3
  $region8: #{chess_forward.1} parent=0 // loop_exit
    _

</llo_original>
